<compile_context>
chip_gen: v6e
topology: v6e:2x2x1
jax: 0.10.0
libtpu: 0.0.40
codegen_flags: <defaults>
</compile_context>

<pallas_src>
import functools

import jax
import jax.numpy as jnp
from jax import lax
from jax.experimental import pallas as pl
from jax.experimental.pallas import tpu as pltpu


# ----------------------------- small helpers --------------------------------

def _cdiv(a, b):
    return -(-a // b)


def _round_up(a, b):
    return _cdiv(a, b) * b


def _vmem_capacity_bytes():
    """Generation-aware VMEM capacity (v5e/v6e 128 MiB, v7x 64 MiB)."""
    try:
        info = pltpu.get_tpu_info()
        cap = getattr(info, "vmem_capacity_bytes", None)
        if cap:
            return int(cap)
    except Exception:
        pass
    return 64 << 20  # conservative default (v7x per-TensorCore VMEM)


def _pick_h_tile(h_out, w_out, n, out_row_bytes, budget):
    """Output-row tile for the resident-image path: divides H_out, gives an
    8-aligned (or full) row block, fits the tile budget, and keeps >=min(4, N*H)
    total grid steps so both TensorCores on v7x get work."""
    min_steps = min(4, n * h_out)
    best = h_out  # full-extent block is always legal
    for th in range(1, h_out + 1):
        if h_out % th:
            continue
        if (th * w_out) % 8 != 0 and th != h_out:
            continue
        if th * out_row_bytes > budget:
            continue
        if n * (h_out // th) < min_steps:
            continue
        best = th
    return best


def _pick_flat_row_tile(r, n, row_bytes, budget, patch_row_bytes,
                        patch_tile_cap=8 << 20):
    """Row tile (multiple of 8) for the flattened-row fallback path."""
    min_steps = min(4, n * _cdiv(r, 8))
    limit = max(_round_up(r, 8), 8)
    best = 8
    t = 8
    while t <= 4096:
        if (t <= limit
                and t * row_bytes <= budget
                and t * patch_row_bytes <= patch_tile_cap
                and n * _cdiv(r, t) >= min_steps):
            best = t
        t *= 2
    return best


# ------------------------------- kernels -------------------------------------

def _resident_tap_kernel(x_ref, w_ref, scale_ref, shift_ref, o_ref, *,
                         k, d, th, w_out, apply_act, precision):
    """Grid step = (image n, output row-tile h).  stride == 1.

    x_ref:     (1, H_pad, W_pad, C_in)  whole padded image; index_map ignores h
               so it is DMA'd once per image and reused across h steps.
    w_ref:     (k, k, C_in, C_out)      conv weights, tap-major.
    scale_ref: (1, C_out)  f32          folded BN scale  gamma / sqrt(var+eps)
    shift_ref: (1, C_out)  f32          folded BN shift  beta - mean*scale
    o_ref:     (1, th*w_out, C_out)
    """
    c_in = x_ref.shape[-1]
    c_out = o_ref.shape[-1]
    rows = th * w_out

    base = pl.program_id(1) * th
    if th % 8 == 0:
        base = pl.multiple_of(base, 8)

    acc = jnp.zeros((rows, c_out), jnp.float32)
    for kh in range(k):
        for kw in range(k):
            tap = x_ref[0, pl.ds(base + kh * d, th), kw * d:kw * d + w_out, :]
            tap = tap.reshape(rows, c_in)
            acc = acc + jnp.dot(tap, w_ref[kh, kw],
                                preferred_element_type=jnp.float32,
                                precision=precision)

    y = acc * scale_ref[...] + shift_ref[...]          # per-channel BN affine (f32)
    if apply_act:
        y = jnp.maximum(y, 0.0)                        # ReLU
    o_ref[...] = y.reshape(1, rows, c_out).astype(o_ref.dtype)


def _rows_matmul_kernel(p_ref, w_ref, scale_ref, shift_ref, o_ref, *,
                        apply_act, precision):
    """Fallback path: one deep-contraction MXU matmul over pre-built rows.

    p_ref: (1, tr, KKC)   rows of im2col patches (or plain channels for 1x1)
    w_ref: (KKC, C_out)   scale/shift: (1, C_out) f32   o_ref: (1, tr, C_out)
    """
    acc = jnp.dot(p_ref[0], w_ref[...], preferred_element_type=jnp.float32,
                  precision=precision)
    y = acc * scale_ref[...] + shift_ref[...]
    if apply_act:
        y = jnp.maximum(y, 0.0)
    o_ref[0] = y.astype(o_ref.dtype)


# ------------------------------- wrappers ------------------------------------

def conv_bn_act_nhwc(x, weight, gamma, beta, running_mean, running_var, *,
                     kernel_size=1, stride=1, padding=0, dilation=1, groups=1,
                     apply_act=True, eps=1e-5, compute_dtype=None,
                     force_im2col=False):
    """ConvBnAct forward, NHWC in / NHWC out (preferred: avoids layout transposes).

    x: (N, H, W, C_in).  weight: (C_out, C_in, K, K) (PyTorch OIHW layout).
    compute_dtype: optionally cast activations/weights (e.g. jnp.bfloat16) to
    halve HBM traffic; accumulation and the BN/ReLU epilogue stay f32.
    """
    assert groups == 1, "grouped conv not implemented"  # TODO(synk)
    N, H, W, C_in = x.shape
    C_out, C_in_w, KH, KW = weight.shape
    assert C_in_w == C_in and KH == KW == kernel_size
    K, s, d, p = kernel_size, stride, dilation, padding

    H_out = (H + 2 * p - d * (K - 1) - 1) // s + 1
    W_out = (W + 2 * p - d * (K - 1) - 1) // s + 1
    R = H_out * W_out
    KKC = K * K * C_in

    out_dtype = x.dtype
    if compute_dtype is not None and x.dtype != compute_dtype:
        x = x.astype(compute_dtype)
    dtype = x.dtype
    itemsize = dtype.itemsize
    out_itemsize = out_dtype.itemsize

    # f32 inputs: force true-f32 MXU contraction (default precision decomposes
    # into bf16 passes, which can exceed tight tolerances on deep contractions).
    precision = (lax.Precision.HIGHEST if dtype == jnp.float32
                 else lax.Precision.DEFAULT)

    # Weights (OIHW) -> (K, K, C_in, C_out), tap-major (matches tap ordering).
    w_taps = jnp.transpose(weight, (2, 3, 1, 0)).astype(dtype)

    # Fold BN (inference / running-stats form) into per-channel f32 scale/shift.
    scale = (gamma.astype(jnp.float32)
             / jnp.sqrt(running_var.astype(jnp.float32) + eps))
    shift = beta.astype(jnp.float32) - running_mean.astype(jnp.float32) * scale
    scale = scale.reshape(1, C_out)
    shift = shift.reshape(1, C_out)

    # Generation-aware VMEM budgeting + explicit scoped limit.
    vmem_cap = _vmem_capacity_bytes()
    vmem_limit = min((vmem_cap * 3) // 4, 96 << 20)

    w_bytes = KKC * C_out * itemsize
    cost = pl.CostEstimate(
        flops=2 * N * R * KKC * C_out + 3 * N * R * C_out,
        transcendentals=0,
        bytes_accessed=(N * (H + 2 * p) * (W + 2 * p) * C_in * itemsize
                        + w_bytes + N * R * C_out * out_itemsize))

    x_pad = jnp.pad(x, ((0, 0), (p, p), (p, p), (0, 0))) if p else x
    H_pad, W_pad = H + 2 * p, W + 2 * p
    img_bytes = H_pad * W_pad * C_in * itemsize

    compiler_params = pltpu.CompilerParams(
        dimension_semantics=("parallel", "parallel"),
        vmem_limit_bytes=vmem_limit)

    # ---------------- Path B: resident image, in-kernel K*K taps --------------
    # (no HBM-materialized im2col; input HBM traffic ~1x instead of K^2 x)
    resident_ok = (K > 1 and s == 1 and not force_im2col
                   and 2 * img_bytes + 2 * w_bytes + (4 << 20)
                   <= (vmem_limit * 7) // 10)
    if resident_ok:
        out_row_bytes = W_out * C_out * out_itemsize
        th = _pick_h_tile(H_out, W_out, N, out_row_bytes, 2 << 20)
        footprint = (2 * img_bytes + 2 * w_bytes
                     + 2 * th * out_row_bytes + (256 << 10))
        if footprint > (vmem_limit * 8) // 10:
            resident_ok = False
        else:
            rows = th * W_out
            kernel = functools.partial(
                _resident_tap_kernel, k=K, d=d, th=th, w_out=W_out,
                apply_act=apply_act, precision=precision)
            out_flat = pl.pallas_call(
                kernel,
                out_shape=jax.ShapeDtypeStruct((N, R, C_out), out_dtype),
                grid_spec=pltpu.PrefetchScalarGridSpec(
                    num_scalar_prefetch=0,
                    grid=(N, H_out // th),
                    in_specs=[
                        pl.BlockSpec((1, H_pad, W_pad, C_in),
                                     lambda n, h: (n, 0, 0, 0)),
                        pl.BlockSpec((K, K, C_in, C_out),
                                     lambda n, h: (0, 0, 0, 0)),
                        pl.BlockSpec((1, C_out), lambda n, h: (0, 0)),
                        pl.BlockSpec((1, C_out), lambda n, h: (0, 0)),
                    ],
                    out_specs=pl.BlockSpec((1, rows, C_out),
                                           lambda n, h: (n, h, 0)),
                ),
                compiler_params=compiler_params,
                cost_estimate=cost,
            )(x_pad, w_taps, scale, shift)
            return out_flat.reshape(N, H_out, W_out, C_out)

    # ------------- Path C: flattened-row matmul fallback (im2col) -------------
    # (1x1 convs need no expansion; K>1 with stride/dilation or huge images.)
    if K == 1 and s == 1:
        patches = x_pad.reshape(N, R, C_in)
    else:
        taps = []
        for kh in range(K):
            for kw in range(K):
                taps.append(x_pad[:, kh * d: kh * d + (H_out - 1) * s + 1: s,
                                     kw * d: kw * d + (W_out - 1) * s + 1: s, :])
        patches = jnp.concatenate(taps, axis=-1).reshape(N, R, KKC)

    w2 = w_taps.reshape(KKC, C_out)

    avail = max(vmem_limit - 2 * w_bytes - (256 << 10), 4 << 20)
    row_bytes = 2 * KKC * itemsize + 2 * C_out * out_itemsize  # double-buffered
    tr = _pick_flat_row_tile(R, N, row_bytes, min(avail // 2, 24 << 20),
                             patch_row_bytes=KKC * itemsize)
    R_pad = _round_up(R, tr)
    if R_pad != R:
        patches = jnp.pad(patches, ((0, 0), (0, R_pad - R), (0, 0)))

    kernel = functools.partial(_rows_matmul_kernel, apply_act=apply_act,
                               precision=precision)
    out_flat = pl.pallas_call(
        kernel,
        out_shape=jax.ShapeDtypeStruct((N, R_pad, C_out), out_dtype),
        grid_spec=pltpu.PrefetchScalarGridSpec(
            num_scalar_prefetch=0,
            grid=(N, R_pad // tr),
            in_specs=[
                pl.BlockSpec((1, tr, KKC), lambda n, r: (n, r, 0)),
                pl.BlockSpec((KKC, C_out), lambda n, r: (0, 0)),
                pl.BlockSpec((1, C_out), lambda n, r: (0, 0)),
                pl.BlockSpec((1, C_out), lambda n, r: (0, 0)),
            ],
            out_specs=pl.BlockSpec((1, tr, C_out), lambda n, r: (n, r, 0)),
        ),
        compiler_params=compiler_params,
        cost_estimate=cost,
    )(patches, w2, scale, shift)
    if R_pad != R:
        out_flat = out_flat[:, :R, :]
    return out_flat.reshape(N, H_out, W_out, C_out)


def conv_bn_act(x_nchw, weight, gamma, beta, running_mean, running_var, **kw):
    """Drop-in NCHW wrapper matching the PyTorch module's layout.

    NOTE: prefer conv_bn_act_nhwc end-to-end in a real model; each transpose
    below is a full-tensor HBM round trip outside the kernel.
    """
    x = jnp.transpose(x_nchw, (0, 2, 3, 1))            # NCHW -> NHWC
    y = conv_bn_act_nhwc(x, weight, gamma, beta, running_mean, running_var, **kw)
    return jnp.transpose(y, (0, 3, 1, 2))              # NHWC -> NCHW


# ------------------------------- reference -----------------------------------

def _reference(x_nchw, weight, gamma, beta, mean, var, *, stride=1, padding=0,
               dilation=1, apply_act=True, eps=1e-5):
    y = lax.conv_general_dilated(
        x_nchw.astype(jnp.float32), weight.astype(jnp.float32),
        window_strides=(stride, stride), padding=[(padding, padding)] * 2,
        rhs_dilation=(dilation, dilation),
        dimension_numbers=("NCHW", "OIHW", "NCHW"),
        precision=lax.Precision.HIGHEST)
    s = (gamma / jnp.sqrt(var + eps)).reshape(1, -1, 1, 1)
    b = (beta - mean * gamma / jnp.sqrt(var + eps)).reshape(1, -1, 1, 1)
    y = y * s + b
    if apply_act:
        y = jnp.maximum(y, 0.0)
    return y


if __name__ == "__main__":
    key = jax.random.PRNGKey(0)
    k_x, k_w3, k_w1, k_g, k_b, k_m, k_v = jax.random.split(key, 7)

    # Small config consistent with ConvBnAct(in_channels=4, out_channels=8, ...)
    N, C_in, H, W = 2, 4, 16, 16
    C_out = 8

    x = jax.random.normal(k_x, (N, C_in, H, W), dtype=jnp.float32)
    gamma = 1.0 + 0.1 * jax.random.normal(k_g, (C_out,), dtype=jnp.float32)
    beta = 0.1 * jax.random.normal(k_b, (C_out,), dtype=jnp.float32)
    running_mean = 0.1 * jax.random.normal(k_m, (C_out,), dtype=jnp.float32)
    running_var = jnp.abs(1.0 + 0.1 * jax.random.normal(k_v, (C_out,),
                                                        dtype=jnp.float32))

    # (1) 3x3 / stride 1 / padding 1 / ReLU -> resident-image tap path (no im2col).
    w3 = 0.1 * jax.random.normal(k_w3, (C_out, C_in, 3, 3), dtype=jnp.float32)
    out = conv_bn_act(x, w3, gamma, beta, running_mean, running_var,
                      kernel_size=3, stride=1, padding=1, apply_act=True)
    out = jax.block_until_ready(out)
    ref = _reference(x, w3, gamma, beta, running_mean, running_var,
                     padding=1, apply_act=True)
    assert out.shape == (N, C_out, H, W)
    assert jnp.allclose(out, ref, atol=1e-4, rtol=1e-4), "3x3 tap path mismatch"

    # (2) Same conv forced through the flattened-row im2col fallback path.
    out_f = conv_bn_act(x, w3, gamma, beta, running_mean, running_var,
                        kernel_size=3, stride=1, padding=1, apply_act=True,
                        force_im2col=True)
    out_f = jax.block_until_ready(out_f)
    assert jnp.allclose(out_f, ref, atol=1e-4, rtol=1e-4), "fallback path mismatch"

    # (3) 1x1 conv without activation (apply_act=False branch).
    w1 = 0.1 * jax.random.normal(k_w1, (C_out, C_in, 1, 1), dtype=jnp.float32)
    out1 = conv_bn_act(x, w1, gamma, beta, running_mean, running_var,
                       kernel_size=1, stride=1, padding=0, apply_act=False)
    out1 = jax.block_until_ready(out1)
    ref1 = _reference(x, w1, gamma, beta, running_mean, running_var,
                      padding=0, apply_act=False)
    assert jnp.allclose(out1, ref1, atol=1e-4, rtol=1e-4), "1x1 path mismatch"

    print("KERNEL_OK")
</pallas_src>

<mosaic_0001>
module attributes {stable_mosaic.version = 11 : i64} {
  func.func @_resident_tap_kernel(%arg0: i32, %arg1: i32, %arg2: memref<1x18x18x4xf32, #tpu.memory_space<vmem>>, %arg3: memref<3x3x4x8xf32, #tpu.memory_space<vmem>>, %arg4: memref<1x8xf32, #tpu.memory_space<vmem>>, %arg5: memref<1x8xf32, #tpu.memory_space<vmem>>, %arg6: memref<1x128x8xf32, #tpu.memory_space<vmem>>) attributes {dimension_semantics = [#tpu.dimension_semantics<parallel>, #tpu.dimension_semantics<parallel>], iteration_bounds = array<i64: 2, 2>, scalar_prefetch = 0 : i64, scratch_operands = 0 : i64, tpu.core_type = #tpu.core_type<tc>, window_params = [{transform_indices = @transform_0, window_bounds = array<i64: 1, 18, 18, 4>}, {pipeline_mode = #tpu.pipeline_mode<synchronous>, transform_indices = @transform_1, window_bounds = array<i64: 3, 3, 4, 8>}, {pipeline_mode = #tpu.pipeline_mode<synchronous>, transform_indices = @transform_2, window_bounds = array<i64: 1, 8>}, {pipeline_mode = #tpu.pipeline_mode<synchronous>, transform_indices = @transform_3, window_bounds = array<i64: 1, 8>}, {transform_indices = @transform_4, window_bounds = array<i64: 1, 128, 8>}]} {
    %c8_i32 = arith.constant 8 : i32
    %0 = arith.muli %arg1, %c8_i32 : i32
    %1 = tpu.assume_multiple %0, 8 : i32
    %cst = arith.constant 0.000000e+00 : f32
    %2 = vector.broadcast %cst : f32 to vector<128x8xf32>
    %c0_i32 = arith.constant 0 : i32
    %3 = arith.addi %1, %c0_i32 : i32
    %c0 = arith.constant 0 : index
    %4 = arith.index_cast %3 : i32 to index
    %c0_0 = arith.constant 0 : index
    %c0_1 = arith.constant 0 : index
    %5 = vector.load %arg2[%c0, %4, %c0_0, %c0_1] : memref<1x18x18x4xf32, #tpu.memory_space<vmem>>, vector<1x8x16x4xf32>
    %6 = vector.shape_cast %5 : vector<1x8x16x4xf32> to vector<8x16x4xf32>
    %7 = vector.shape_cast %6 : vector<8x16x4xf32> to vector<128x4xf32>
    %c0_2 = arith.constant 0 : index
    %c0_3 = arith.constant 0 : index
    %c0_4 = arith.constant 0 : index
    %c0_5 = arith.constant 0 : index
    %8 = vector.load %arg3[%c0_2, %c0_3, %c0_4, %c0_5] : memref<3x3x4x8xf32, #tpu.memory_space<vmem>>, vector<1x1x4x8xf32>
    %9 = vector.shape_cast %8 : vector<1x1x4x8xf32> to vector<4x8xf32>
    %cst_6 = arith.constant dense<0.000000e+00> : vector<128x8xf32>
    %10 = tpu.matmul %7, %9, %cst_6 {dimension_numbers = #tpu.dot_dimension_numbers<[1], [0], [0], [1], [0, 0, 1, 1], [], []>, precision = #tpu.contract_precision<fp32>} : vector<128x4xf32>, vector<4x8xf32>, vector<128x8xf32> -> vector<128x8xf32>
    %11 = arith.addf %2, %10 : vector<128x8xf32>
    %c0_i32_7 = arith.constant 0 : i32
    %12 = arith.addi %1, %c0_i32_7 : i32
    %c0_8 = arith.constant 0 : index
    %13 = arith.index_cast %12 : i32 to index
    %c1 = arith.constant 1 : index
    %c0_9 = arith.constant 0 : index
    %14 = vector.load %arg2[%c0_8, %13, %c1, %c0_9] : memref<1x18x18x4xf32, #tpu.memory_space<vmem>>, vector<1x8x16x4xf32>
    %15 = vector.shape_cast %14 : vector<1x8x16x4xf32> to vector<8x16x4xf32>
    %16 = vector.shape_cast %15 : vector<8x16x4xf32> to vector<128x4xf32>
    %c0_10 = arith.constant 0 : index
    %c1_11 = arith.constant 1 : index
    %c0_12 = arith.constant 0 : index
    %c0_13 = arith.constant 0 : index
    %17 = vector.load %arg3[%c0_10, %c1_11, %c0_12, %c0_13] : memref<3x3x4x8xf32, #tpu.memory_space<vmem>>, vector<1x1x4x8xf32>
    %18 = vector.shape_cast %17 : vector<1x1x4x8xf32> to vector<4x8xf32>
    %cst_14 = arith.constant dense<0.000000e+00> : vector<128x8xf32>
    %19 = tpu.matmul %16, %18, %cst_14 {dimension_numbers = #tpu.dot_dimension_numbers<[1], [0], [0], [1], [0, 0, 1, 1], [], []>, precision = #tpu.contract_precision<fp32>} : vector<128x4xf32>, vector<4x8xf32>, vector<128x8xf32> -> vector<128x8xf32>
    %20 = arith.addf %11, %19 : vector<128x8xf32>
    %c0_i32_15 = arith.constant 0 : i32
    %21 = arith.addi %1, %c0_i32_15 : i32
    %c0_16 = arith.constant 0 : index
    %22 = arith.index_cast %21 : i32 to index
    %c2 = arith.constant 2 : index
    %c0_17 = arith.constant 0 : index
    %23 = vector.load %arg2[%c0_16, %22, %c2, %c0_17] : memref<1x18x18x4xf32, #tpu.memory_space<vmem>>, vector<1x8x16x4xf32>
    %24 = vector.shape_cast %23 : vector<1x8x16x4xf32> to vector<8x16x4xf32>
    %25 = vector.shape_cast %24 : vector<8x16x4xf32> to vector<128x4xf32>
    %c0_18 = arith.constant 0 : index
    %c2_19 = arith.constant 2 : index
    %c0_20 = arith.constant 0 : index
    %c0_21 = arith.constant 0 : index
    %26 = vector.load %arg3[%c0_18, %c2_19, %c0_20, %c0_21] : memref<3x3x4x8xf32, #tpu.memory_space<vmem>>, vector<1x1x4x8xf32>
    %27 = vector.shape_cast %26 : vector<1x1x4x8xf32> to vector<4x8xf32>
    %cst_22 = arith.constant dense<0.000000e+00> : vector<128x8xf32>
    %28 = tpu.matmul %25, %27, %cst_22 {dimension_numbers = #tpu.dot_dimension_numbers<[1], [0], [0], [1], [0, 0, 1, 1], [], []>, precision = #tpu.contract_precision<fp32>} : vector<128x4xf32>, vector<4x8xf32>, vector<128x8xf32> -> vector<128x8xf32>
    %29 = arith.addf %20, %28 : vector<128x8xf32>
    %c1_i32 = arith.constant 1 : i32
    %30 = arith.addi %1, %c1_i32 : i32
    %c0_23 = arith.constant 0 : index
    %31 = arith.index_cast %30 : i32 to index
    %c0_24 = arith.constant 0 : index
    %c0_25 = arith.constant 0 : index
    %32 = vector.load %arg2[%c0_23, %31, %c0_24, %c0_25] : memref<1x18x18x4xf32, #tpu.memory_space<vmem>>, vector<1x8x16x4xf32>
    %33 = vector.shape_cast %32 : vector<1x8x16x4xf32> to vector<8x16x4xf32>
    %34 = vector.shape_cast %33 : vector<8x16x4xf32> to vector<128x4xf32>
    %c1_26 = arith.constant 1 : index
    %c0_27 = arith.constant 0 : index
    %c0_28 = arith.constant 0 : index
    %c0_29 = arith.constant 0 : index
    %35 = vector.load %arg3[%c1_26, %c0_27, %c0_28, %c0_29] : memref<3x3x4x8xf32, #tpu.memory_space<vmem>>, vector<1x1x4x8xf32>
    %36 = vector.shape_cast %35 : vector<1x1x4x8xf32> to vector<4x8xf32>
    %cst_30 = arith.constant dense<0.000000e+00> : vector<128x8xf32>
    %37 = tpu.matmul %34, %36, %cst_30 {dimension_numbers = #tpu.dot_dimension_numbers<[1], [0], [0], [1], [0, 0, 1, 1], [], []>, precision = #tpu.contract_precision<fp32>} : vector<128x4xf32>, vector<4x8xf32>, vector<128x8xf32> -> vector<128x8xf32>
    %38 = arith.addf %29, %37 : vector<128x8xf32>
    %c1_i32_31 = arith.constant 1 : i32
    %39 = arith.addi %1, %c1_i32_31 : i32
    %c0_32 = arith.constant 0 : index
    %40 = arith.index_cast %39 : i32 to index
    %c1_33 = arith.constant 1 : index
    %c0_34 = arith.constant 0 : index
    %41 = vector.load %arg2[%c0_32, %40, %c1_33, %c0_34] : memref<1x18x18x4xf32, #tpu.memory_space<vmem>>, vector<1x8x16x4xf32>
    %42 = vector.shape_cast %41 : vector<1x8x16x4xf32> to vector<8x16x4xf32>
    %43 = vector.shape_cast %42 : vector<8x16x4xf32> to vector<128x4xf32>
    %c1_35 = arith.constant 1 : index
    %c1_36 = arith.constant 1 : index
    %c0_37 = arith.constant 0 : index
    %c0_38 = arith.constant 0 : index
    %44 = vector.load %arg3[%c1_35, %c1_36, %c0_37, %c0_38] : memref<3x3x4x8xf32, #tpu.memory_space<vmem>>, vector<1x1x4x8xf32>
    %45 = vector.shape_cast %44 : vector<1x1x4x8xf32> to vector<4x8xf32>
    %cst_39 = arith.constant dense<0.000000e+00> : vector<128x8xf32>
    %46 = tpu.matmul %43, %45, %cst_39 {dimension_numbers = #tpu.dot_dimension_numbers<[1], [0], [0], [1], [0, 0, 1, 1], [], []>, precision = #tpu.contract_precision<fp32>} : vector<128x4xf32>, vector<4x8xf32>, vector<128x8xf32> -> vector<128x8xf32>
    %47 = arith.addf %38, %46 : vector<128x8xf32>
    %c1_i32_40 = arith.constant 1 : i32
    %48 = arith.addi %1, %c1_i32_40 : i32
    %c0_41 = arith.constant 0 : index
    %49 = arith.index_cast %48 : i32 to index
    %c2_42 = arith.constant 2 : index
    %c0_43 = arith.constant 0 : index
    %50 = vector.load %arg2[%c0_41, %49, %c2_42, %c0_43] : memref<1x18x18x4xf32, #tpu.memory_space<vmem>>, vector<1x8x16x4xf32>
    %51 = vector.shape_cast %50 : vector<1x8x16x4xf32> to vector<8x16x4xf32>
    %52 = vector.shape_cast %51 : vector<8x16x4xf32> to vector<128x4xf32>
    %c1_44 = arith.constant 1 : index
    %c2_45 = arith.constant 2 : index
    %c0_46 = arith.constant 0 : index
    %c0_47 = arith.constant 0 : index
    %53 = vector.load %arg3[%c1_44, %c2_45, %c0_46, %c0_47] : memref<3x3x4x8xf32, #tpu.memory_space<vmem>>, vector<1x1x4x8xf32>
    %54 = vector.shape_cast %53 : vector<1x1x4x8xf32> to vector<4x8xf32>
    %cst_48 = arith.constant dense<0.000000e+00> : vector<128x8xf32>
    %55 = tpu.matmul %52, %54, %cst_48 {dimension_numbers = #tpu.dot_dimension_numbers<[1], [0], [0], [1], [0, 0, 1, 1], [], []>, precision = #tpu.contract_precision<fp32>} : vector<128x4xf32>, vector<4x8xf32>, vector<128x8xf32> -> vector<128x8xf32>
    %56 = arith.addf %47, %55 : vector<128x8xf32>
    %c2_i32 = arith.constant 2 : i32
    %57 = arith.addi %1, %c2_i32 : i32
    %c0_49 = arith.constant 0 : index
    %58 = arith.index_cast %57 : i32 to index
    %c0_50 = arith.constant 0 : index
    %c0_51 = arith.constant 0 : index
    %59 = vector.load %arg2[%c0_49, %58, %c0_50, %c0_51] : memref<1x18x18x4xf32, #tpu.memory_space<vmem>>, vector<1x8x16x4xf32>
    %60 = vector.shape_cast %59 : vector<1x8x16x4xf32> to vector<8x16x4xf32>
    %61 = vector.shape_cast %60 : vector<8x16x4xf32> to vector<128x4xf32>
    %c2_52 = arith.constant 2 : index
    %c0_53 = arith.constant 0 : index
    %c0_54 = arith.constant 0 : index
    %c0_55 = arith.constant 0 : index
    %62 = vector.load %arg3[%c2_52, %c0_53, %c0_54, %c0_55] : memref<3x3x4x8xf32, #tpu.memory_space<vmem>>, vector<1x1x4x8xf32>
    %63 = vector.shape_cast %62 : vector<1x1x4x8xf32> to vector<4x8xf32>
    %cst_56 = arith.constant dense<0.000000e+00> : vector<128x8xf32>
    %64 = tpu.matmul %61, %63, %cst_56 {dimension_numbers = #tpu.dot_dimension_numbers<[1], [0], [0], [1], [0, 0, 1, 1], [], []>, precision = #tpu.contract_precision<fp32>} : vector<128x4xf32>, vector<4x8xf32>, vector<128x8xf32> -> vector<128x8xf32>
    %65 = arith.addf %56, %64 : vector<128x8xf32>
    %c2_i32_57 = arith.constant 2 : i32
    %66 = arith.addi %1, %c2_i32_57 : i32
    %c0_58 = arith.constant 0 : index
    %67 = arith.index_cast %66 : i32 to index
    %c1_59 = arith.constant 1 : index
    %c0_60 = arith.constant 0 : index
    %68 = vector.load %arg2[%c0_58, %67, %c1_59, %c0_60] : memref<1x18x18x4xf32, #tpu.memory_space<vmem>>, vector<1x8x16x4xf32>
    %69 = vector.shape_cast %68 : vector<1x8x16x4xf32> to vector<8x16x4xf32>
    %70 = vector.shape_cast %69 : vector<8x16x4xf32> to vector<128x4xf32>
    %c2_61 = arith.constant 2 : index
    %c1_62 = arith.constant 1 : index
    %c0_63 = arith.constant 0 : index
    %c0_64 = arith.constant 0 : index
    %71 = vector.load %arg3[%c2_61, %c1_62, %c0_63, %c0_64] : memref<3x3x4x8xf32, #tpu.memory_space<vmem>>, vector<1x1x4x8xf32>
    %72 = vector.shape_cast %71 : vector<1x1x4x8xf32> to vector<4x8xf32>
    %cst_65 = arith.constant dense<0.000000e+00> : vector<128x8xf32>
    %73 = tpu.matmul %70, %72, %cst_65 {dimension_numbers = #tpu.dot_dimension_numbers<[1], [0], [0], [1], [0, 0, 1, 1], [], []>, precision = #tpu.contract_precision<fp32>} : vector<128x4xf32>, vector<4x8xf32>, vector<128x8xf32> -> vector<128x8xf32>
    %74 = arith.addf %65, %73 : vector<128x8xf32>
    %c2_i32_66 = arith.constant 2 : i32
    %75 = arith.addi %1, %c2_i32_66 : i32
    %c0_67 = arith.constant 0 : index
    %76 = arith.index_cast %75 : i32 to index
    %c2_68 = arith.constant 2 : index
    %c0_69 = arith.constant 0 : index
    %77 = vector.load %arg2[%c0_67, %76, %c2_68, %c0_69] : memref<1x18x18x4xf32, #tpu.memory_space<vmem>>, vector<1x8x16x4xf32>
    %78 = vector.shape_cast %77 : vector<1x8x16x4xf32> to vector<8x16x4xf32>
    %79 = vector.shape_cast %78 : vector<8x16x4xf32> to vector<128x4xf32>
    %c2_70 = arith.constant 2 : index
    %c2_71 = arith.constant 2 : index
    %c0_72 = arith.constant 0 : index
    %c0_73 = arith.constant 0 : index
    %80 = vector.load %arg3[%c2_70, %c2_71, %c0_72, %c0_73] : memref<3x3x4x8xf32, #tpu.memory_space<vmem>>, vector<1x1x4x8xf32>
    %81 = vector.shape_cast %80 : vector<1x1x4x8xf32> to vector<4x8xf32>
    %cst_74 = arith.constant dense<0.000000e+00> : vector<128x8xf32>
    %82 = tpu.matmul %79, %81, %cst_74 {dimension_numbers = #tpu.dot_dimension_numbers<[1], [0], [0], [1], [0, 0, 1, 1], [], []>, precision = #tpu.contract_precision<fp32>} : vector<128x4xf32>, vector<4x8xf32>, vector<128x8xf32> -> vector<128x8xf32>
    %83 = arith.addf %74, %82 : vector<128x8xf32>
    %c0_75 = arith.constant 0 : index
    %c0_76 = arith.constant 0 : index
    %84 = vector.load %arg4[%c0_75, %c0_76] : memref<1x8xf32, #tpu.memory_space<vmem>>, vector<1x8xf32>
    %85 = vector.broadcast %84 : vector<1x8xf32> to vector<128x8xf32>
    %86 = arith.mulf %83, %85 : vector<128x8xf32>
    %c0_77 = arith.constant 0 : index
    %c0_78 = arith.constant 0 : index
    %87 = vector.load %arg5[%c0_77, %c0_78] : memref<1x8xf32, #tpu.memory_space<vmem>>, vector<1x8xf32>
    %88 = vector.broadcast %87 : vector<1x8xf32> to vector<128x8xf32>
    %89 = arith.addf %86, %88 : vector<128x8xf32>
    %cst_79 = arith.constant 0.000000e+00 : f32
    %90 = vector.broadcast %cst_79 : f32 to vector<128x8xf32>
    %91 = arith.maximumf %89, %90 : vector<128x8xf32>
    %92 = vector.shape_cast %91 : vector<128x8xf32> to vector<1x128x8xf32>
    %c0_80 = arith.constant 0 : index
    %c0_81 = arith.constant 0 : index
    %c0_82 = arith.constant 0 : index
    %93 = vector.load %arg6[%c0_80, %c0_81, %c0_82] : memref<1x128x8xf32, #tpu.memory_space<vmem>>, vector<1x128x8xf32>
    tpu.vector_store %arg6[%c0_80, %c0_81, %c0_82], %92 {strides = array<i32>} : memref<1x128x8xf32, #tpu.memory_space<vmem>>, vector<1x128x8xf32>,
    return
  }
  func.func @transform_0(%arg0: i32, %arg1: i32) -> (i32, i32, i32, i32) {
    %c0_i32 = arith.constant 0 : i32
    %c0_i32_0 = arith.constant 0 : i32
    %c0_i32_1 = arith.constant 0 : i32
    %c0_i32_2 = arith.constant 0 : i32
    return %arg0, %c0_i32, %c0_i32_0, %c0_i32_1 : i32, i32, i32, i32
  }
  func.func @transform_1(%arg0: i32, %arg1: i32) -> (i32, i32, i32, i32) {
    %c0_i32 = arith.constant 0 : i32
    %c0_i32_0 = arith.constant 0 : i32
    %c0_i32_1 = arith.constant 0 : i32
    %c0_i32_2 = arith.constant 0 : i32
    %c0_i32_3 = arith.constant 0 : i32
    return %c0_i32, %c0_i32_0, %c0_i32_1, %c0_i32_2 : i32, i32, i32, i32
  }
  func.func @transform_2(%arg0: i32, %arg1: i32) -> (i32, i32) {
    %c0_i32 = arith.constant 0 : i32
    %c0_i32_0 = arith.constant 0 : i32
    %c0_i32_1 = arith.constant 0 : i32
    return %c0_i32, %c0_i32_0 : i32, i32
  }
  func.func @transform_3(%arg0: i32, %arg1: i32) -> (i32, i32) {
    %c0_i32 = arith.constant 0 : i32
    %c0_i32_0 = arith.constant 0 : i32
    %c0_i32_1 = arith.constant 0 : i32
    return %c0_i32, %c0_i32_0 : i32, i32
  }
  func.func @transform_4(%arg0: i32, %arg1: i32) -> (i32, i32, i32) {
    %c0_i32 = arith.constant 0 : i32
    %c0_i32_0 = arith.constant 0 : i32
    return %arg0, %arg1, %c0_i32 : i32, i32, i32
  }
}

</mosaic_0001>

<llo_original>
// kernel: tpu_custom_call.1
$region0: #{tpu_custom_call.1}
  #allocation0 [shape = 'u32[]', space=smem, size = 0x4, offset = 0x4, fixed_abs, tag = 'smem constant byte address 0x4 - core index']
  #allocation1 [shape = 'u32[144,128]{1,0:T(1,128)}', space=vmem, size = 0x12000, scoped, tag = 'internal scratch']
  %s0 = inlined_call_operand.vmem [shape: f32[2,18,18,4], index: 0, kind: input, shape index: {}]
  %s1 = inlined_call_operand.vmem [shape: f32[3,3,4,8], index: 1, kind: input, shape index: {}]
  %s2 = inlined_call_operand.vmem [shape: f32[1,8], index: 2, kind: input, shape index: {}]
  %s3 = inlined_call_operand.vmem [shape: f32[1,8], index: 3, kind: input, shape index: {}]
  %s4 = inlined_call_operand.vmem [shape: f32[2,256,8], index: 4, kind: output, shape index: {}]
  %s5 = sld [smem:[#allocation0]]
  $region49: #{tpu_custom_call.1} parent=0
    _
  %s7 = ssub.s32 1, %s5
  %s8 = scalar_select 0, %s7, %s5
  loop: start=0, step=1, limit=6
  $region2: #{tpu_custom_call.1} parent=0 // loop_pre_header
    _
  $region3: #{tpu_custom_call.1} parent=0 // loop_header
    %s10 = sphi 0, %s14
    %p11 = scmp.ge.s32.totalorder %s10, 6
    %s17 = sphi 0, %s29
    %s18 = sphi 0, %s25
    %s19 = sphi 0, %s17
    %s20 = sphi 0, %s18
    %s21 = sphi 0, %s19
    %s22 = sphi 0, %s20
    %s32 = sphi 0, %s34
    %s35 = sphi 0, %s32
    %s36 = sphi 0, %s35
    %s52 = sphi 0, %s36
    %s56 = sphi 0, %s56
    %s58 = sphi 0, %s56
    %s59 = sphi 0, %s58
    %s73 = sphi 0, %s59
    %s77 = sphi 0, %s77
    %s79 = sphi 0, %s77
    %s80 = sphi 0, %s79
    %s94 = sphi 0, %s80
    %s98 = sphi 0, %s98
    %s100 = sphi 0, %s98
    %s101 = sphi 0, %s100
    %s115 = sphi 0, %s101
    %s123 = sphi 0, %s125
    %s126 = sphi 0, %s123
    %s127 = sphi 0, %s126
    %s143 = sphi 0, %s127
  $region4: #{tpu_custom_call.1} parent=0 // loop_header_branch
    %13 = sbr.rel (%p11) target = $region8
  $region5: #{tpu_custom_call.1} parent=0 // loop_body
    %s15 = ssub.s32 %s10, 1
    %s16 = ssub.s32 %s10, 2
    %s23 = sadd.s32 1, %s18
    %p24 = scmp.ge.s32.totalorder %s23, 2
    %s25 = scalar_select %p24, 0, %s23
    %s26 = sadd.s32 1, %s17
    %s27 = scalar_select %p24, %s26, %s17
    %p28 = scmp.ge.s32.totalorder %s27, 2
    %s29 = scalar_select %p28, 0, %s27
    %s30 = ssub.s32 %s17, %s29
    %p31 = scmp.eq.s32.totalorder %s30, 0
    %s33 = sadd.s32 %s32, 1
    %s34 = scalar_select %p31, %s32, %s33
    %p37 = pneg %p31
    %p38 = scmp.eq.s32.totalorder %s10, 3
    %p39 = por %p37, %p38
    %p40 = scmp.ne.s32.totalorder %s32, %s35
    %p41 = scmp.eq.s32.totalorder %s10, 0
    %p42 = por %p40, %p41
    %p43 = scmp.ne.s32.totalorder %s32, %s35
    %p44 = scmp.eq.s32.totalorder %s15, 3
    %p45 = por %p43, %p44
    %p46 = scmp.ne.s32.totalorder %s35, %s36
    %p47 = scmp.eq.s32.totalorder %s15, 0
    %p48 = por %p46, %p47
    %p49 = scmp.ne.s32.totalorder %s35, %s36
    %p50 = scmp.eq.s32.totalorder %s16, 3
    %p51 = por %p49, %p50
    %p53 = scmp.ne.s32.totalorder %s36, %s52
    %p54 = scmp.eq.s32.totalorder %s16, 0
    %p55 = por %p53, %p54
    %s57 = sadd.s32 %s56, 1
    %p60 = scmp.eq.s32.totalorder %s10, 3
    %p61 = scmp.ne.s32.totalorder %s56, %s58
    %p62 = scmp.eq.s32.totalorder %s10, 0
    %p63 = por %p61, %p62
    %p64 = scmp.ne.s32.totalorder %s56, %s58
    %p65 = scmp.eq.s32.totalorder %s15, 3
    %p66 = por %p64, %p65
    %p67 = scmp.ne.s32.totalorder %s58, %s59
    %p68 = scmp.eq.s32.totalorder %s15, 0
    %p69 = por %p67, %p68
    %p70 = scmp.ne.s32.totalorder %s58, %s59
    %p71 = scmp.eq.s32.totalorder %s16, 3
    %p72 = por %p70, %p71
    %p74 = scmp.ne.s32.totalorder %s59, %s73
    %p75 = scmp.eq.s32.totalorder %s16, 0
    %p76 = por %p74, %p75
    %s78 = sadd.s32 %s77, 1
    %p81 = scmp.eq.s32.totalorder %s10, 3
    %p82 = scmp.ne.s32.totalorder %s77, %s79
    %p83 = scmp.eq.s32.totalorder %s10, 0
    %p84 = por %p82, %p83
    %p85 = scmp.ne.s32.totalorder %s77, %s79
    %p86 = scmp.eq.s32.totalorder %s15, 3
    %p87 = por %p85, %p86
    %p88 = scmp.ne.s32.totalorder %s79, %s80
    %p89 = scmp.eq.s32.totalorder %s15, 0
    %p90 = por %p88, %p89
    %p91 = scmp.ne.s32.totalorder %s79, %s80
    %p92 = scmp.eq.s32.totalorder %s16, 3
    %p93 = por %p91, %p92
    %p95 = scmp.ne.s32.totalorder %s80, %s94
    %p96 = scmp.eq.s32.totalorder %s16, 0
    %p97 = por %p95, %p96
    %s99 = sadd.s32 %s98, 1
    %p102 = scmp.eq.s32.totalorder %s10, 3
    %p103 = scmp.ne.s32.totalorder %s98, %s100
    %p104 = scmp.eq.s32.totalorder %s10, 0
    %p105 = por %p103, %p104
    %p106 = scmp.ne.s32.totalorder %s98, %s100
    %p107 = scmp.eq.s32.totalorder %s15, 3
    %p108 = por %p106, %p107
    %p109 = scmp.ne.s32.totalorder %s100, %s101
    %p110 = scmp.eq.s32.totalorder %s15, 0
    %p111 = por %p109, %p110
    %p112 = scmp.ne.s32.totalorder %s100, %s101
    %p113 = scmp.eq.s32.totalorder %s16, 3
    %p114 = por %p112, %p113
    %p116 = scmp.ne.s32.totalorder %s101, %s115
    %p117 = scmp.eq.s32.totalorder %s16, 0
    %p118 = por %p116, %p117
    %s119 = ssub.s32 %s17, %s29
    %s120 = ssub.s32 %s18, %s25
    %s121 = sor.u32 %s119, %s120
    %p122 = scmp.eq.s32.totalorder %s121, 0
    %s124 = sadd.s32 %s123, 1
    %s125 = scalar_select %p122, %s123, %s124
    %p128 = pneg %p122
    %p129 = scmp.eq.s32.totalorder %s10, 3
    %p130 = por %p128, %p129
    %p131 = scmp.ne.s32.totalorder %s123, %s126
    %p132 = scmp.eq.s32.totalorder %s10, 0
    %p133 = por %p131, %p132
    %p134 = scmp.ne.s32.totalorder %s123, %s126
    %p135 = scmp.eq.s32.totalorder %s15, 3
    %p136 = por %p134, %p135
    %p137 = scmp.ne.s32.totalorder %s126, %s127
    %p138 = scmp.eq.s32.totalorder %s15, 0
    %p139 = por %p137, %p138
    %p140 = scmp.ne.s32.totalorder %s126, %s127
    %p141 = scmp.eq.s32.totalorder %s16, 3
    %p142 = por %p140, %p141
    %p144 = scmp.ne.s32.totalorder %s127, %s143
    %p145 = scmp.eq.s32.totalorder %s16, 0
    %p146 = por %p144, %p145
    %p147 = scmp.le.s32.totalorder 1, %s10
    %p148 = scmp.lt.s32.totalorder %s10, 5
    %p149 = pnand %p147, %p148
    %p150 = pneg %p149
    // Predicated region
    $region9: #{tpu_custom_call.1} parent=5 // pred_check
      _
    $region10: #{tpu_custom_call.1} parent=5 // pred_check_branch
      %152 = sbr.rel (%p149) target = $region12
    $region11: #{tpu_custom_call.1} parent=5 // pred_region
      %s153 = ssub.s32 %s10, 1
      // Predicated region
      $region13: #{tpu_custom_call.1} parent=11 // pred_check
        %p154 = pneg %p69
      $region14: #{tpu_custom_call.1} parent=11 // pred_check_branch
        %156 = sbr.rel (%p154) target = $region16
      $region15: #{tpu_custom_call.1} parent=11 // pred_region
        _
      $region16: #{tpu_custom_call.1} parent=11 // pred_fallthru
        _
      // Predicated region
      $region17: #{tpu_custom_call.1} parent=11 // pred_check
        %p157 = pneg %p90
      $region18: #{tpu_custom_call.1} parent=11 // pred_check_branch
        %159 = sbr.rel (%p157) target = $region20
      $region19: #{tpu_custom_call.1} parent=11 // pred_region
        _
      $region20: #{tpu_custom_call.1} parent=11 // pred_fallthru
        _
      // Predicated region
      $region21: #{tpu_custom_call.1} parent=11 // pred_check
        %p160 = pneg %p111
      $region22: #{tpu_custom_call.1} parent=11 // pred_check_branch
        %162 = sbr.rel (%p160) target = $region24
      $region23: #{tpu_custom_call.1} parent=11 // pred_region
        _
      $region24: #{tpu_custom_call.1} parent=11 // pred_fallthru
        _
    $region12: #{tpu_custom_call.1} parent=5 // pred_fallthru
      _
    %p163 = scmp.lt.s32.totalorder %s10, 4
    // Predicated region
    $region25: #{tpu_custom_call.1} parent=5 // pred_check
      %p164 = pneg %p163
    $region26: #{tpu_custom_call.1} parent=5 // pred_check_branch
      %166 = sbr.rel (%p164) target = $region28
    $region27: #{tpu_custom_call.1} parent=5 // pred_region
      // Predicated region
      $region29: #{tpu_custom_call.1} parent=27 // pred_check
        %p167 = pneg %p42
      $region30: #{tpu_custom_call.1} parent=27 // pred_check_branch
        %169 = sbr.rel (%p167) target = $region32
      $region31: #{tpu_custom_call.1} parent=27 // pred_region
        %p170 = scmp.lt.s32.totalorder %s17, 1
        %s171 = scalar_select %p170, %s17, 1
        %s172 = smul.addr %s171, 54
        %s173 = smul.addr %s172, 8
        %s174 = scalar_lea.vmem %s0, %s173
      $region32: #{tpu_custom_call.1} parent=27 // pred_fallthru
        _
    $region28: #{tpu_custom_call.1} parent=5 // pred_fallthru
      _
    %p175 = scmp.le.s32.totalorder 1, %s10
    %p176 = scmp.lt.s32.totalorder %s10, 5
    %p177 = pnand %p175, %p176
    %p178 = pneg %p177
    // Predicated region
    $region33: #{tpu_custom_call.1} parent=5 // pred_check
      _
    $region34: #{tpu_custom_call.1} parent=5 // pred_check_branch
      %180 = sbr.rel (%p177) target = $region36
    $region35: #{tpu_custom_call.1} parent=5 // pred_region
      %s181 = ssub.s32 %s10, 1
      %p182 = scmp.lt.s32.totalorder %s19, 1
      %s183 = scalar_select %p182, %s19, 1
      %s184 = smul.addr %s183, 54
      %s185 = smul.addr %s184, 8
      %s186 = scalar_lea.vmem %s0, %s185
      %p187 = pneg %p48
      %p188 = pneg %p45
      %p189 = pneg %p69
      %p190 = pneg %p66
      %p191 = pneg %p90
      %p192 = pneg %p87
      %p193 = pneg %p111
      %p194 = pneg %p108
      %p195 = pneg %p139
      %p196 = pneg %p136
      %s197 = smul.u32 16, %s20
      %p198 = scmp.lt.s32.totalorder %s19, 1
      %s199 = scalar_select %p198, %s19, 1
      %p200 = scmp.lt.s32.totalorder %s197, 31
      %s201 = scalar_select %p200, %s197, 31
      %s202 = smul.addr %s199, 32
      %s203 = sadd.s32 %s201, %s202
      %s204 = smul.addr %s203, 8
      %s205 = scalar_lea.vmem %s4, %s204
      %p206 = scmp.lt.s32.totalorder %s19, 1
      %s207 = scalar_select %p206, %s19, 1
      %s208 = smul.addr %s207, 54
      %s209 = smul.addr %s208, 8
      %s210 = scalar_lea.vmem %s0, %s209
      %s211 = smul.u32 16, %s20
      %p212 = scmp.lt.s32.totalorder %s19, 1
      %s213 = scalar_select %p212, %s19, 1
      %p214 = scmp.lt.s32.totalorder %s211, 31
      %s215 = scalar_select %p214, %s211, 31
      %s216 = smul.addr %s213, 32
      %s217 = sadd.s32 %s215, %s216
      %s218 = smul.addr %s217, 8
      %s219 = scalar_lea.vmem %s4, %s218
      %s220 = smul.u32 16, %s20
      %s221 = smul.u32 %s20, 8
      %s222 = smul.u32 %s221, 24
      %s223 = scalar_lea.vmem %s210, %s222
      %v224 = vld [vmem:[%s223] sm:$0xff]
      %v225 = vld [vmem:[%s223 + $0x8] sm:$0xff]
      %v226 = vld [vmem:[%s223 + $0x18] sm:$0xff]
      %v227 = vld [vmem:[%s223 + $0x20] sm:$0xff]
      %v228 = vld [vmem:[%s223 + $0x30] sm:$0xff]
      %v229 = vld [vmem:[%s223 + $0x38] sm:$0xff]
      %v230 = vld [vmem:[%s223 + $0x48] sm:$0xff]
      %v231 = vld [vmem:[%s223 + $0x50] sm:$0xff]
      %v232 = vld [vmem:[%s223 + $0x60] sm:$0xff]
      %v233 = vld [vmem:[%s223 + $0x68] sm:$0xff]
      %v234 = vld [vmem:[%s223 + $0x78] sm:$0xff]
      %v235 = vld [vmem:[%s223 + $0x80] sm:$0xff]
      %v236 = vld [vmem:[%s223 + $0x90] sm:$0xff]
      %v237 = vld [vmem:[%s223 + $0x98] sm:$0xff]
      %v238 = vld [vmem:[%s223 + $0xa8] sm:$0xff]
      %v239 = vld [vmem:[%s223 + $0xb0] sm:$0xff]
      %v240 = vld [vmem:[%s1] sm:$0xf]
      %v241 = vld [vmem:[%s223 + $0x1] sm:$0xff]
      %v242 = vld [vmem:[%s223 + $0x9] sm:$0xff]
      %v243 = vld [vmem:[%s223 + $0x19] sm:$0xff]
      %v244 = vld [vmem:[%s223 + $0x21] sm:$0xff]
      %v245 = vld [vmem:[%s223 + $0x31] sm:$0xff]
      %v246 = vld [vmem:[%s223 + $0x39] sm:$0xff]
      %v247 = vld [vmem:[%s223 + $0x49] sm:$0xff]
      %v248 = vld [vmem:[%s223 + $0x51] sm:$0xff]
      %v249 = vld [vmem:[%s223 + $0x61] sm:$0xff]
      %v250 = vld [vmem:[%s223 + $0x69] sm:$0xff]
      %v251 = vld [vmem:[%s223 + $0x79] sm:$0xff]
      %v252 = vld [vmem:[%s223 + $0x81] sm:$0xff]
      %v253 = vld [vmem:[%s223 + $0x91] sm:$0xff]
      %v254 = vld [vmem:[%s223 + $0x99] sm:$0xff]
      %v255 = vld [vmem:[%s223 + $0xa9] sm:$0xff]
      %v256 = vld [vmem:[%s223 + $0xb1] sm:$0xff]
      %s257 = scalar_lea.vmem %s1, 4
      %v258 = vld [vmem:[%s257] sm:$0xf]
      %vm259 = vcmask 31744
      %v261 = vsel %vm259, %v241, 0
      %v264 = vsel %vm259, %v242, 0
      %v267 = vsel %vm259, %v243, 0
      %v270 = vsel %vm259, %v244, 0
      %v273 = vsel %vm259, %v245, 0
      %v276 = vsel %vm259, %v246, 0
      %v279 = vsel %vm259, %v247, 0
      %v282 = vsel %vm259, %v248, 0
      %v285 = vsel %vm259, %v249, 0
      %v288 = vsel %vm259, %v250, 0
      %v291 = vsel %vm259, %v251, 0
      %v294 = vsel %vm259, %v252, 0
      %v297 = vsel %vm259, %v253, 0
      %v300 = vsel %vm259, %v254, 0
      %v303 = vsel %vm259, %v255, 0
      %v306 = vsel %vm259, %v256, 0
      %vm308 = vcmask 1043456
      %v310 = vsel %vm308, %v258, 0
      %312 = vmatprep.subr.mxu0 0.0
      %313 = vmatpush1.msra.mxu0 0.0
      %314 = vmatprep.subr.mxu0 0.0
      %315 = vmatpush1.msra.mxu0 0.0
      %316 = vmatprep.subr.mxu0 0.0
      %317 = vmatpush1.msra.mxu0 0.0
      %318 = vmatprep.subr.mxu0 0.0
      %319 = vmatpush1.msra.mxu0 0.0
      %320 = vmatprep.subr.mxu0 0.0
      %321 = vmatpush1.msra.mxu0 0.0
      %322 = vmatprep.subr.mxu0 0.0
      %323 = vmatpush1.msra.mxu0 0.0
      %324 = vmatprep.subr.mxu0 0.0
      %325 = vmatpush1.msra.mxu0 0.0
      %326 = vmatprep.subr.mxu0 0.0
      %327 = vmatpush1.msra.mxu0 0.0
      %328 = vmatprep.subr.mxu0 0.0
      %329 = vmatpush1.msra.mxu0 0.0
      %330 = vmatprep.subr.mxu0 0.0
      %331 = vmatpush1.msra.mxu0 0.0
      %332 = vmatprep.subr.mxu0 0.0
      %333 = vmatpush1.msra.mxu0 0.0
      %334 = vmatprep.subr.mxu0 0.0
      %335 = vmatpush1.msra.mxu0 0.0
      %336 = vmatprep.subr.mxu0 0.0
      %337 = vmatpush1.msra.mxu0 0.0
      %338 = vmatprep.subr.mxu0 0.0
      %339 = vmatpush1.msra.mxu0 0.0
      %340 = vmatprep.subr.mxu0 0.0
      %341 = vmatpush1.msra.mxu0 0.0
      %342 = vmatprep.subr.mxu0 0.0
      %v343 = vand.u32 %v310, 4294901760
      %344 = vmatpush1.msra.mxu0 %v343
      %345 = vmatprep.subr.mxu0 0.0
      %346 = vmatpush2.msra.mxu0 0.0
      %347 = vmatprep.subr.mxu0 0.0
      %348 = vmatpush2.msra.mxu0 0.0
      %349 = vmatprep.subr.mxu0 0.0
      %350 = vmatpush2.msra.mxu0 0.0
      %351 = vmatprep.subr.mxu0 0.0
      %352 = vmatpush2.msra.mxu0 0.0
      %353 = vmatprep.subr.mxu0 0.0
      %354 = vmatpush2.msra.mxu0 0.0
      %355 = vmatprep.subr.mxu0 0.0
      %356 = vmatpush2.msra.mxu0 0.0
      %357 = vmatprep.subr.mxu0 0.0
      %358 = vmatpush2.msra.mxu0 0.0
      %359 = vmatprep.subr.mxu0 0.0
      %360 = vmatpush2.msra.mxu0 0.0
      %361 = vmatprep.subr.mxu0 0.0
      %362 = vmatpush2.msra.mxu0 0.0
      %363 = vmatprep.subr.mxu0 0.0
      %364 = vmatpush2.msra.mxu0 0.0
      %365 = vmatprep.subr.mxu0 0.0
      %366 = vmatpush2.msra.mxu0 0.0
      %367 = vmatprep.subr.mxu0 0.0
      %368 = vmatpush2.msra.mxu0 0.0
      %369 = vmatprep.subr.mxu0 0.0
      %370 = vmatpush2.msra.mxu0 0.0
      %371 = vmatprep.subr.mxu0 0.0
      %372 = vmatpush2.msra.mxu0 0.0
      %373 = vmatprep.subr.mxu0 0.0
      %374 = vmatpush2.msra.mxu0 0.0
      %375 = vmatprep.subr.mxu0 0.0
      %376 = vmatpush2.msra.mxu0 0.0
      %377 = vmatprep.mubr.f32.mxu0 0.0
      %v378 = vand.u32 %v261, 4294901760
      %v379 = vsub.f32 %v261, %v378
      %v380 = vand.u32 %v379, 4294901760
      %v381 = vsub.f32 %v379, %v380
      %v382 = vand.u32 %v381, 4294901760
      %383 = vmatmul.mubr.f32.gmra.mxu0 %v382
      %v384 = vpop.f32.mrf.mxu0
      %v385 = vadd.f32 0.0, %v384
      %v386 = vpop.f32.mrf.mxu0
      %387 = vmatprep.mubr.f32.mxu0 0.0
      %v388 = vand.u32 %v264, 4294901760
      %v389 = vsub.f32 %v264, %v388
      %v390 = vand.u32 %v389, 4294901760
      %v391 = vsub.f32 %v389, %v390
      %v392 = vand.u32 %v391, 4294901760
      %393 = vmatmul.mubr.f32.gmra.mxu0 %v392
      %v394 = vpop.f32.mrf.mxu0
      %v395 = vadd.f32 0.0, %v394
      %v396 = vpop.f32.mrf.mxu0
      %397 = vmatprep.mubr.f32.mxu0 0.0
      %v398 = vand.u32 %v267, 4294901760
      %v399 = vsub.f32 %v267, %v398
      %v400 = vand.u32 %v399, 4294901760
      %v401 = vsub.f32 %v399, %v400
      %v402 = vand.u32 %v401, 4294901760
      %403 = vmatmul.mubr.f32.gmra.mxu0 %v402
      %v404 = vpop.f32.mrf.mxu0
      %v405 = vadd.f32 0.0, %v404
      %v406 = vpop.f32.mrf.mxu0
      %407 = vmatprep.mubr.f32.mxu0 0.0
      %v408 = vand.u32 %v270, 4294901760
      %v409 = vsub.f32 %v270, %v408
      %v410 = vand.u32 %v409, 4294901760
      %v411 = vsub.f32 %v409, %v410
      %v412 = vand.u32 %v411, 4294901760
      %413 = vmatmul.mubr.f32.gmra.mxu0 %v412
      %v414 = vpop.f32.mrf.mxu0
      %v415 = vadd.f32 0.0, %v414
      %v416 = vpop.f32.mrf.mxu0
      %417 = vmatprep.mubr.f32.mxu0 0.0
      %v418 = vand.u32 %v273, 4294901760
      %v419 = vsub.f32 %v273, %v418
      %v420 = vand.u32 %v419, 4294901760
      %v421 = vsub.f32 %v419, %v420
      %v422 = vand.u32 %v421, 4294901760
      %423 = vmatmul.mubr.f32.gmra.mxu0 %v422
      %v424 = vpop.f32.mrf.mxu0
      %v425 = vadd.f32 0.0, %v424
      %v426 = vpop.f32.mrf.mxu0
      %427 = vmatprep.mubr.f32.mxu0 0.0
      %v428 = vand.u32 %v276, 4294901760
      %v429 = vsub.f32 %v276, %v428
      %v430 = vand.u32 %v429, 4294901760
      %v431 = vsub.f32 %v429, %v430
      %v432 = vand.u32 %v431, 4294901760
      %433 = vmatmul.mubr.f32.gmra.mxu0 %v432
      %v434 = vpop.f32.mrf.mxu0
      %v435 = vadd.f32 0.0, %v434
      %v436 = vpop.f32.mrf.mxu0
      %437 = vmatprep.mubr.f32.mxu0 0.0
      %v438 = vand.u32 %v279, 4294901760
      %v439 = vsub.f32 %v279, %v438
      %v440 = vand.u32 %v439, 4294901760
      %v441 = vsub.f32 %v439, %v440
      %v442 = vand.u32 %v441, 4294901760
      %443 = vmatmul.mubr.f32.gmra.mxu0 %v442
      %v444 = vpop.f32.mrf.mxu0
      %v445 = vadd.f32 0.0, %v444
      %v446 = vpop.f32.mrf.mxu0
      %447 = vmatprep.mubr.f32.mxu0 0.0
      %v448 = vand.u32 %v282, 4294901760
      %v449 = vsub.f32 %v282, %v448
      %v450 = vand.u32 %v449, 4294901760
      %v451 = vsub.f32 %v449, %v450
      %v452 = vand.u32 %v451, 4294901760
      %453 = vmatmul.mubr.f32.gmra.mxu0 %v452
      %v454 = vpop.f32.mrf.mxu0
      %v455 = vadd.f32 0.0, %v454
      %v456 = vpop.f32.mrf.mxu0
      %457 = vmatprep.mubr.f32.mxu0 0.0
      %v458 = vand.u32 %v285, 4294901760
      %v459 = vsub.f32 %v285, %v458
      %v460 = vand.u32 %v459, 4294901760
      %v461 = vsub.f32 %v459, %v460
      %v462 = vand.u32 %v461, 4294901760
      %463 = vmatmul.mubr.f32.gmra.mxu0 %v462
      %v464 = vpop.f32.mrf.mxu0
      %v465 = vadd.f32 0.0, %v464
      %v466 = vpop.f32.mrf.mxu0
      %467 = vmatprep.mubr.f32.mxu0 0.0
      %v468 = vand.u32 %v288, 4294901760
      %v469 = vsub.f32 %v288, %v468
      %v470 = vand.u32 %v469, 4294901760
      %v471 = vsub.f32 %v469, %v470
      %v472 = vand.u32 %v471, 4294901760
      %473 = vmatmul.mubr.f32.gmra.mxu0 %v472
      %v474 = vpop.f32.mrf.mxu0
      %v475 = vadd.f32 0.0, %v474
      %v476 = vpop.f32.mrf.mxu0
      %477 = vmatprep.mubr.f32.mxu0 0.0
      %v478 = vand.u32 %v291, 4294901760
      %v479 = vsub.f32 %v291, %v478
      %v480 = vand.u32 %v479, 4294901760
      %v481 = vsub.f32 %v479, %v480
      %v482 = vand.u32 %v481, 4294901760
      %483 = vmatmul.mubr.f32.gmra.mxu0 %v482
      %v484 = vpop.f32.mrf.mxu0
      %v485 = vadd.f32 0.0, %v484
      %v486 = vpop.f32.mrf.mxu0
      %487 = vmatprep.mubr.f32.mxu0 0.0
      %v488 = vand.u32 %v294, 4294901760
      %v489 = vsub.f32 %v294, %v488
      %v490 = vand.u32 %v489, 4294901760
      %v491 = vsub.f32 %v489, %v490
      %v492 = vand.u32 %v491, 4294901760
      %493 = vmatmul.mubr.f32.gmra.mxu0 %v492
      %v494 = vpop.f32.mrf.mxu0
      %v495 = vadd.f32 0.0, %v494
      %v496 = vpop.f32.mrf.mxu0
      %497 = vmatprep.mubr.f32.mxu0 0.0
      %v498 = vand.u32 %v297, 4294901760
      %v499 = vsub.f32 %v297, %v498
      %v500 = vand.u32 %v499, 4294901760
      %v501 = vsub.f32 %v499, %v500
      %v502 = vand.u32 %v501, 4294901760
      %503 = vmatmul.mubr.f32.gmra.mxu0 %v502
      %v504 = vpop.f32.mrf.mxu0
      %v505 = vadd.f32 0.0, %v504
      %v506 = vpop.f32.mrf.mxu0
      %507 = vmatprep.mubr.f32.mxu0 0.0
      %v508 = vand.u32 %v300, 4294901760
      %v509 = vsub.f32 %v300, %v508
      %v510 = vand.u32 %v509, 4294901760
      %v511 = vsub.f32 %v509, %v510
      %v512 = vand.u32 %v511, 4294901760
      %513 = vmatmul.mubr.f32.gmra.mxu0 %v512
      %v514 = vpop.f32.mrf.mxu0
      %v515 = vadd.f32 0.0, %v514
      %v516 = vpop.f32.mrf.mxu0
      %517 = vmatprep.mubr.f32.mxu0 0.0
      %v518 = vand.u32 %v303, 4294901760
      %v519 = vsub.f32 %v303, %v518
      %v520 = vand.u32 %v519, 4294901760
      %v521 = vsub.f32 %v519, %v520
      %v522 = vand.u32 %v521, 4294901760
      %523 = vmatmul.mubr.f32.gmra.mxu0 %v522
      %v524 = vpop.f32.mrf.mxu0
      %v525 = vadd.f32 0.0, %v524
      %v526 = vpop.f32.mrf.mxu0
      %527 = vmatprep.mubr.f32.mxu0 0.0
      %v528 = vand.u32 %v306, 4294901760
      %v529 = vsub.f32 %v306, %v528
      %v530 = vand.u32 %v529, 4294901760
      %v531 = vsub.f32 %v529, %v530
      %v532 = vand.u32 %v531, 4294901760
      %533 = vmatmul.mubr.f32.gmra.mxu0 %v532
      %v534 = vpop.f32.mrf.mxu0
      %v535 = vadd.f32 0.0, %v534
      %v536 = vpop.f32.mrf.mxu0
      %537 = vdwg.mxu0
      %538 = vmatprep.subr.mxu0 0.0
      %539 = vmatpush1.msra.mxu0 0.0
      %540 = vmatprep.subr.mxu0 0.0
      %541 = vmatpush1.msra.mxu0 0.0
      %542 = vmatprep.subr.mxu0 0.0
      %543 = vmatpush1.msra.mxu0 0.0
      %544 = vmatprep.subr.mxu0 0.0
      %545 = vmatpush1.msra.mxu0 0.0
      %546 = vmatprep.subr.mxu0 0.0
      %547 = vmatpush1.msra.mxu0 0.0
      %548 = vmatprep.subr.mxu0 0.0
      %549 = vmatpush1.msra.mxu0 0.0
      %550 = vmatprep.subr.mxu0 0.0
      %551 = vmatpush1.msra.mxu0 0.0
      %552 = vmatprep.subr.mxu0 0.0
      %553 = vmatpush1.msra.mxu0 0.0
      %554 = vmatprep.subr.mxu0 0.0
      %555 = vmatpush1.msra.mxu0 0.0
      %556 = vmatprep.subr.mxu0 0.0
      %557 = vmatpush1.msra.mxu0 0.0
      %558 = vmatprep.subr.mxu0 0.0
      %559 = vmatpush1.msra.mxu0 0.0
      %560 = vmatprep.subr.mxu0 0.0
      %561 = vmatpush1.msra.mxu0 0.0
      %562 = vmatprep.subr.mxu0 0.0
      %563 = vmatpush1.msra.mxu0 0.0
      %564 = vmatprep.subr.mxu0 0.0
      %565 = vmatpush1.msra.mxu0 0.0
      %566 = vmatprep.subr.mxu0 0.0
      %567 = vmatpush1.msra.mxu0 0.0
      %568 = vmatprep.subr.mxu0 0.0
      %v569 = vand.u32 %v310, 4294901760
      %v570 = vsub.f32 %v310, %v569
      %v571 = vand.u32 %v570, 4294901760
      %v572 = vsub.f32 %v570, %v571
      %v573 = vand.u32 %v572, 4294901760
      %574 = vmatpush1.msra.mxu0 %v573
      %575 = vmatprep.subr.mxu0 0.0
      %576 = vmatpush2.msra.mxu0 0.0
      %577 = vmatprep.subr.mxu0 0.0
      %578 = vmatpush2.msra.mxu0 0.0
      %579 = vmatprep.subr.mxu0 0.0
      %580 = vmatpush2.msra.mxu0 0.0
      %581 = vmatprep.subr.mxu0 0.0
      %582 = vmatpush2.msra.mxu0 0.0
      %583 = vmatprep.subr.mxu0 0.0
      %584 = vmatpush2.msra.mxu0 0.0
      %585 = vmatprep.subr.mxu0 0.0
      %586 = vmatpush2.msra.mxu0 0.0
      %587 = vmatprep.subr.mxu0 0.0
      %588 = vmatpush2.msra.mxu0 0.0
      %589 = vmatprep.subr.mxu0 0.0
      %590 = vmatpush2.msra.mxu0 0.0
      %591 = vmatprep.subr.mxu0 0.0
      %592 = vmatpush2.msra.mxu0 0.0
      %593 = vmatprep.subr.mxu0 0.0
      %594 = vmatpush2.msra.mxu0 0.0
      %595 = vmatprep.subr.mxu0 0.0
      %596 = vmatpush2.msra.mxu0 0.0
      %597 = vmatprep.subr.mxu0 0.0
      %598 = vmatpush2.msra.mxu0 0.0
      %599 = vmatprep.subr.mxu0 0.0
      %600 = vmatpush2.msra.mxu0 0.0
      %601 = vmatprep.subr.mxu0 0.0
      %602 = vmatpush2.msra.mxu0 0.0
      %603 = vmatprep.subr.mxu0 0.0
      %604 = vmatpush2.msra.mxu0 0.0
      %605 = vmatprep.subr.mxu0 0.0
      %606 = vmatpush2.msra.mxu0 0.0
      %607 = vmatprep.mubr.f32.mxu0 0.0
      %v608 = vand.u32 %v261, 4294901760
      %609 = vmatmul.mubr.f32.gmra.mxu0 %v608
      %v610 = vpop.f32.mrf.mxu0
      %v611 = vadd.f32 %v385, %v610
      %v612 = vpop.f32.mrf.mxu0
      %613 = vmatprep.mubr.f32.mxu0 0.0
      %v614 = vand.u32 %v264, 4294901760
      %615 = vmatmul.mubr.f32.gmra.mxu0 %v614
      %v616 = vpop.f32.mrf.mxu0
      %v617 = vadd.f32 %v395, %v616
      %v618 = vpop.f32.mrf.mxu0
      %619 = vmatprep.mubr.f32.mxu0 0.0
      %v620 = vand.u32 %v267, 4294901760
      %621 = vmatmul.mubr.f32.gmra.mxu0 %v620
      %v622 = vpop.f32.mrf.mxu0
      %v623 = vadd.f32 %v405, %v622
      %v624 = vpop.f32.mrf.mxu0
      %625 = vmatprep.mubr.f32.mxu0 0.0
      %v626 = vand.u32 %v270, 4294901760
      %627 = vmatmul.mubr.f32.gmra.mxu0 %v626
      %v628 = vpop.f32.mrf.mxu0
      %v629 = vadd.f32 %v415, %v628
      %v630 = vpop.f32.mrf.mxu0
      %631 = vmatprep.mubr.f32.mxu0 0.0
      %v632 = vand.u32 %v273, 4294901760
      %633 = vmatmul.mubr.f32.gmra.mxu0 %v632
      %v634 = vpop.f32.mrf.mxu0
      %v635 = vadd.f32 %v425, %v634
      %v636 = vpop.f32.mrf.mxu0
      %637 = vmatprep.mubr.f32.mxu0 0.0
      %v638 = vand.u32 %v276, 4294901760
      %639 = vmatmul.mubr.f32.gmra.mxu0 %v638
      %v640 = vpop.f32.mrf.mxu0
      %v641 = vadd.f32 %v435, %v640
      %v642 = vpop.f32.mrf.mxu0
      %643 = vmatprep.mubr.f32.mxu0 0.0
      %v644 = vand.u32 %v279, 4294901760
      %645 = vmatmul.mubr.f32.gmra.mxu0 %v644
      %v646 = vpop.f32.mrf.mxu0
      %v647 = vadd.f32 %v445, %v646
      %v648 = vpop.f32.mrf.mxu0
      %649 = vmatprep.mubr.f32.mxu0 0.0
      %v650 = vand.u32 %v282, 4294901760
      %651 = vmatmul.mubr.f32.gmra.mxu0 %v650
      %v652 = vpop.f32.mrf.mxu0
      %v653 = vadd.f32 %v455, %v652
      %v654 = vpop.f32.mrf.mxu0
      %655 = vmatprep.mubr.f32.mxu0 0.0
      %v656 = vand.u32 %v285, 4294901760
      %657 = vmatmul.mubr.f32.gmra.mxu0 %v656
      %v658 = vpop.f32.mrf.mxu0
      %v659 = vadd.f32 %v465, %v658
      %v660 = vpop.f32.mrf.mxu0
      %661 = vmatprep.mubr.f32.mxu0 0.0
      %v662 = vand.u32 %v288, 4294901760
      %663 = vmatmul.mubr.f32.gmra.mxu0 %v662
      %v664 = vpop.f32.mrf.mxu0
      %v665 = vadd.f32 %v475, %v664
      %v666 = vpop.f32.mrf.mxu0
      %667 = vmatprep.mubr.f32.mxu0 0.0
      %v668 = vand.u32 %v291, 4294901760
      %669 = vmatmul.mubr.f32.gmra.mxu0 %v668
      %v670 = vpop.f32.mrf.mxu0
      %v671 = vadd.f32 %v485, %v670
      %v672 = vpop.f32.mrf.mxu0
      %673 = vmatprep.mubr.f32.mxu0 0.0
      %v674 = vand.u32 %v294, 4294901760
      %675 = vmatmul.mubr.f32.gmra.mxu0 %v674
      %v676 = vpop.f32.mrf.mxu0
      %v677 = vadd.f32 %v495, %v676
      %v678 = vpop.f32.mrf.mxu0
      %679 = vmatprep.mubr.f32.mxu0 0.0
      %v680 = vand.u32 %v297, 4294901760
      %681 = vmatmul.mubr.f32.gmra.mxu0 %v680
      %v682 = vpop.f32.mrf.mxu0
      %v683 = vadd.f32 %v505, %v682
      %v684 = vpop.f32.mrf.mxu0
      %685 = vmatprep.mubr.f32.mxu0 0.0
      %v686 = vand.u32 %v300, 4294901760
      %687 = vmatmul.mubr.f32.gmra.mxu0 %v686
      %v688 = vpop.f32.mrf.mxu0
      %v689 = vadd.f32 %v515, %v688
      %v690 = vpop.f32.mrf.mxu0
      %691 = vmatprep.mubr.f32.mxu0 0.0
      %v692 = vand.u32 %v303, 4294901760
      %693 = vmatmul.mubr.f32.gmra.mxu0 %v692
      %v694 = vpop.f32.mrf.mxu0
      %v695 = vadd.f32 %v525, %v694
      %v696 = vpop.f32.mrf.mxu0
      %697 = vmatprep.mubr.f32.mxu0 0.0
      %v698 = vand.u32 %v306, 4294901760
      %699 = vmatmul.mubr.f32.gmra.mxu0 %v698
      %v700 = vpop.f32.mrf.mxu0
      %v701 = vadd.f32 %v535, %v700
      %v702 = vpop.f32.mrf.mxu0
      %703 = vdwg.mxu0
      %704 = vmatprep.subr.mxu0 0.0
      %705 = vmatpush1.msra.mxu0 0.0
      %706 = vmatprep.subr.mxu0 0.0
      %707 = vmatpush1.msra.mxu0 0.0
      %708 = vmatprep.subr.mxu0 0.0
      %709 = vmatpush1.msra.mxu0 0.0
      %710 = vmatprep.subr.mxu0 0.0
      %711 = vmatpush1.msra.mxu0 0.0
      %712 = vmatprep.subr.mxu0 0.0
      %713 = vmatpush1.msra.mxu0 0.0
      %714 = vmatprep.subr.mxu0 0.0
      %715 = vmatpush1.msra.mxu0 0.0
      %716 = vmatprep.subr.mxu0 0.0
      %717 = vmatpush1.msra.mxu0 0.0
      %718 = vmatprep.subr.mxu0 0.0
      %719 = vmatpush1.msra.mxu0 0.0
      %720 = vmatprep.subr.mxu0 0.0
      %721 = vmatpush1.msra.mxu0 0.0
      %722 = vmatprep.subr.mxu0 0.0
      %723 = vmatpush1.msra.mxu0 0.0
      %724 = vmatprep.subr.mxu0 0.0
      %725 = vmatpush1.msra.mxu0 0.0
      %726 = vmatprep.subr.mxu0 0.0
      %727 = vmatpush1.msra.mxu0 0.0
      %728 = vmatprep.subr.mxu0 0.0
      %729 = vmatpush1.msra.mxu0 0.0
      %730 = vmatprep.subr.mxu0 0.0
      %731 = vmatpush1.msra.mxu0 0.0
      %732 = vmatprep.subr.mxu0 0.0
      %733 = vmatpush1.msra.mxu0 0.0
      %734 = vmatprep.subr.mxu0 0.0
      %v735 = vand.u32 %v310, 4294901760
      %v736 = vsub.f32 %v310, %v735
      %737 = vmatpush1.msra.mxu0 %v736
      %738 = vmatprep.subr.mxu0 0.0
      %739 = vmatpush2.msra.mxu0 0.0
      %740 = vmatprep.subr.mxu0 0.0
      %741 = vmatpush2.msra.mxu0 0.0
      %742 = vmatprep.subr.mxu0 0.0
      %743 = vmatpush2.msra.mxu0 0.0
      %744 = vmatprep.subr.mxu0 0.0
      %745 = vmatpush2.msra.mxu0 0.0
      %746 = vmatprep.subr.mxu0 0.0
      %747 = vmatpush2.msra.mxu0 0.0
      %748 = vmatprep.subr.mxu0 0.0
      %749 = vmatpush2.msra.mxu0 0.0
      %750 = vmatprep.subr.mxu0 0.0
      %751 = vmatpush2.msra.mxu0 0.0
      %752 = vmatprep.subr.mxu0 0.0
      %753 = vmatpush2.msra.mxu0 0.0
      %754 = vmatprep.subr.mxu0 0.0
      %755 = vmatpush2.msra.mxu0 0.0
      %756 = vmatprep.subr.mxu0 0.0
      %757 = vmatpush2.msra.mxu0 0.0
      %758 = vmatprep.subr.mxu0 0.0
      %759 = vmatpush2.msra.mxu0 0.0
      %760 = vmatprep.subr.mxu0 0.0
      %761 = vmatpush2.msra.mxu0 0.0
      %762 = vmatprep.subr.mxu0 0.0
      %763 = vmatpush2.msra.mxu0 0.0
      %764 = vmatprep.subr.mxu0 0.0
      %765 = vmatpush2.msra.mxu0 0.0
      %766 = vmatprep.subr.mxu0 0.0
      %767 = vmatpush2.msra.mxu0 0.0
      %768 = vmatprep.subr.mxu0 0.0
      %769 = vmatpush2.msra.mxu0 0.0
      %770 = vmatprep.mubr.f32.mxu0 0.0
      %v771 = vand.u32 %v261, 4294901760
      %v772 = vsub.f32 %v261, %v771
      %773 = vmatmul.mubr.f32.gmra.mxu0 %v772
      %v774 = vpop.f32.mrf.mxu0
      %v775 = vadd.f32 %v611, %v774
      %v776 = vpop.f32.mrf.mxu0
      %777 = vmatprep.mubr.f32.mxu0 0.0
      %v778 = vand.u32 %v264, 4294901760
      %v779 = vsub.f32 %v264, %v778
      %780 = vmatmul.mubr.f32.gmra.mxu0 %v779
      %v781 = vpop.f32.mrf.mxu0
      %v782 = vadd.f32 %v617, %v781
      %v783 = vpop.f32.mrf.mxu0
      %784 = vmatprep.mubr.f32.mxu0 0.0
      %v785 = vand.u32 %v267, 4294901760
      %v786 = vsub.f32 %v267, %v785
      %787 = vmatmul.mubr.f32.gmra.mxu0 %v786
      %v788 = vpop.f32.mrf.mxu0
      %v789 = vadd.f32 %v623, %v788
      %v790 = vpop.f32.mrf.mxu0
      %791 = vmatprep.mubr.f32.mxu0 0.0
      %v792 = vand.u32 %v270, 4294901760
      %v793 = vsub.f32 %v270, %v792
      %794 = vmatmul.mubr.f32.gmra.mxu0 %v793
      %v795 = vpop.f32.mrf.mxu0
      %v796 = vadd.f32 %v629, %v795
      %v797 = vpop.f32.mrf.mxu0
      %798 = vmatprep.mubr.f32.mxu0 0.0
      %v799 = vand.u32 %v273, 4294901760
      %v800 = vsub.f32 %v273, %v799
      %801 = vmatmul.mubr.f32.gmra.mxu0 %v800
      %v802 = vpop.f32.mrf.mxu0
      %v803 = vadd.f32 %v635, %v802
      %v804 = vpop.f32.mrf.mxu0
      %805 = vmatprep.mubr.f32.mxu0 0.0
      %v806 = vand.u32 %v276, 4294901760
      %v807 = vsub.f32 %v276, %v806
      %808 = vmatmul.mubr.f32.gmra.mxu0 %v807
      %v809 = vpop.f32.mrf.mxu0
      %v810 = vadd.f32 %v641, %v809
      %v811 = vpop.f32.mrf.mxu0
      %812 = vmatprep.mubr.f32.mxu0 0.0
      %v813 = vand.u32 %v279, 4294901760
      %v814 = vsub.f32 %v279, %v813
      %815 = vmatmul.mubr.f32.gmra.mxu0 %v814
      %v816 = vpop.f32.mrf.mxu0
      %v817 = vadd.f32 %v647, %v816
      %v818 = vpop.f32.mrf.mxu0
      %819 = vmatprep.mubr.f32.mxu0 0.0
      %v820 = vand.u32 %v282, 4294901760
      %v821 = vsub.f32 %v282, %v820
      %822 = vmatmul.mubr.f32.gmra.mxu0 %v821
      %v823 = vpop.f32.mrf.mxu0
      %v824 = vadd.f32 %v653, %v823
      %v825 = vpop.f32.mrf.mxu0
      %826 = vmatprep.mubr.f32.mxu0 0.0
      %v827 = vand.u32 %v285, 4294901760
      %v828 = vsub.f32 %v285, %v827
      %829 = vmatmul.mubr.f32.gmra.mxu0 %v828
      %v830 = vpop.f32.mrf.mxu0
      %v831 = vadd.f32 %v659, %v830
      %v832 = vpop.f32.mrf.mxu0
      %833 = vmatprep.mubr.f32.mxu0 0.0
      %v834 = vand.u32 %v288, 4294901760
      %v835 = vsub.f32 %v288, %v834
      %836 = vmatmul.mubr.f32.gmra.mxu0 %v835
      %v837 = vpop.f32.mrf.mxu0
      %v838 = vadd.f32 %v665, %v837
      %v839 = vpop.f32.mrf.mxu0
      %840 = vmatprep.mubr.f32.mxu0 0.0
      %v841 = vand.u32 %v291, 4294901760
      %v842 = vsub.f32 %v291, %v841
      %843 = vmatmul.mubr.f32.gmra.mxu0 %v842
      %v844 = vpop.f32.mrf.mxu0
      %v845 = vadd.f32 %v671, %v844
      %v846 = vpop.f32.mrf.mxu0
      %847 = vmatprep.mubr.f32.mxu0 0.0
      %v848 = vand.u32 %v294, 4294901760
      %v849 = vsub.f32 %v294, %v848
      %850 = vmatmul.mubr.f32.gmra.mxu0 %v849
      %v851 = vpop.f32.mrf.mxu0
      %v852 = vadd.f32 %v677, %v851
      %v853 = vpop.f32.mrf.mxu0
      %854 = vmatprep.mubr.f32.mxu0 0.0
      %v855 = vand.u32 %v297, 4294901760
      %v856 = vsub.f32 %v297, %v855
      %857 = vmatmul.mubr.f32.gmra.mxu0 %v856
      %v858 = vpop.f32.mrf.mxu0
      %v859 = vadd.f32 %v683, %v858
      %v860 = vpop.f32.mrf.mxu0
      %861 = vmatprep.mubr.f32.mxu0 0.0
      %v862 = vand.u32 %v300, 4294901760
      %v863 = vsub.f32 %v300, %v862
      %864 = vmatmul.mubr.f32.gmra.mxu0 %v863
      %v865 = vpop.f32.mrf.mxu0
      %v866 = vadd.f32 %v689, %v865
      %v867 = vpop.f32.mrf.mxu0
      %868 = vmatprep.mubr.f32.mxu0 0.0
      %v869 = vand.u32 %v303, 4294901760
      %v870 = vsub.f32 %v303, %v869
      %871 = vmatmul.mubr.f32.gmra.mxu0 %v870
      %v872 = vpop.f32.mrf.mxu0
      %v873 = vadd.f32 %v695, %v872
      %v874 = vpop.f32.mrf.mxu0
      %875 = vmatprep.mubr.f32.mxu0 0.0
      %v876 = vand.u32 %v306, 4294901760
      %v877 = vsub.f32 %v306, %v876
      %878 = vmatmul.mubr.f32.gmra.mxu0 %v877
      %v879 = vpop.f32.mrf.mxu0
      %v880 = vadd.f32 %v701, %v879
      %v881 = vpop.f32.mrf.mxu0
      %882 = vdwg.mxu0
      %883 = vmatprep.subr.mxu0 0.0
      %884 = vmatpush1.msra.mxu0 0.0
      %885 = vmatprep.subr.mxu0 0.0
      %886 = vmatpush1.msra.mxu0 0.0
      %887 = vmatprep.subr.mxu0 0.0
      %888 = vmatpush1.msra.mxu0 0.0
      %889 = vmatprep.subr.mxu0 0.0
      %890 = vmatpush1.msra.mxu0 0.0
      %891 = vmatprep.subr.mxu0 0.0
      %892 = vmatpush1.msra.mxu0 0.0
      %893 = vmatprep.subr.mxu0 0.0
      %894 = vmatpush1.msra.mxu0 0.0
      %895 = vmatprep.subr.mxu0 0.0
      %896 = vmatpush1.msra.mxu0 0.0
      %897 = vmatprep.subr.mxu0 0.0
      %898 = vmatpush1.msra.mxu0 0.0
      %899 = vmatprep.subr.mxu0 0.0
      %900 = vmatpush1.msra.mxu0 0.0
      %901 = vmatprep.subr.mxu0 0.0
      %902 = vmatpush1.msra.mxu0 0.0
      %903 = vmatprep.subr.mxu0 0.0
      %904 = vmatpush1.msra.mxu0 0.0
      %905 = vmatprep.subr.mxu0 0.0
      %906 = vmatpush1.msra.mxu0 0.0
      %907 = vmatprep.subr.mxu0 0.0
      %908 = vmatpush1.msra.mxu0 0.0
      %909 = vmatprep.subr.mxu0 0.0
      %910 = vmatpush1.msra.mxu0 0.0
      %911 = vmatprep.subr.mxu0 0.0
      %912 = vmatpush1.msra.mxu0 0.0
      %913 = vmatprep.subr.mxu0 0.0
      %v914 = vand.u32 %v310, 4294901760
      %915 = vmatpush1.msra.mxu0 %v914
      %916 = vmatprep.subr.mxu0 0.0
      %917 = vmatpush2.msra.mxu0 0.0
      %918 = vmatprep.subr.mxu0 0.0
      %919 = vmatpush2.msra.mxu0 0.0
      %920 = vmatprep.subr.mxu0 0.0
      %921 = vmatpush2.msra.mxu0 0.0
      %922 = vmatprep.subr.mxu0 0.0
      %923 = vmatpush2.msra.mxu0 0.0
      %924 = vmatprep.subr.mxu0 0.0
      %925 = vmatpush2.msra.mxu0 0.0
      %926 = vmatprep.subr.mxu0 0.0
      %927 = vmatpush2.msra.mxu0 0.0
      %928 = vmatprep.subr.mxu0 0.0
      %929 = vmatpush2.msra.mxu0 0.0
      %930 = vmatprep.subr.mxu0 0.0
      %931 = vmatpush2.msra.mxu0 0.0
      %932 = vmatprep.subr.mxu0 0.0
      %933 = vmatpush2.msra.mxu0 0.0
      %934 = vmatprep.subr.mxu0 0.0
      %935 = vmatpush2.msra.mxu0 0.0
      %936 = vmatprep.subr.mxu0 0.0
      %937 = vmatpush2.msra.mxu0 0.0
      %938 = vmatprep.subr.mxu0 0.0
      %939 = vmatpush2.msra.mxu0 0.0
      %940 = vmatprep.subr.mxu0 0.0
      %941 = vmatpush2.msra.mxu0 0.0
      %942 = vmatprep.subr.mxu0 0.0
      %943 = vmatpush2.msra.mxu0 0.0
      %944 = vmatprep.subr.mxu0 0.0
      %945 = vmatpush2.msra.mxu0 0.0
      %946 = vmatprep.subr.mxu0 0.0
      %947 = vmatpush2.msra.mxu0 0.0
      %948 = vmatprep.mubr.f32.mxu0 0.0
      %v949 = vand.u32 %v261, 4294901760
      %v950 = vsub.f32 %v261, %v949
      %v951 = vand.u32 %v950, 4294901760
      %952 = vmatmul.mubr.f32.gmra.mxu0 %v951
      %v953 = vpop.f32.mrf.mxu0
      %v954 = vadd.f32 %v775, %v953
      %v955 = vpop.f32.mrf.mxu0
      %956 = vmatprep.mubr.f32.mxu0 0.0
      %v957 = vand.u32 %v264, 4294901760
      %v958 = vsub.f32 %v264, %v957
      %v959 = vand.u32 %v958, 4294901760
      %960 = vmatmul.mubr.f32.gmra.mxu0 %v959
      %v961 = vpop.f32.mrf.mxu0
      %v962 = vadd.f32 %v782, %v961
      %v963 = vpop.f32.mrf.mxu0
      %964 = vmatprep.mubr.f32.mxu0 0.0
      %v965 = vand.u32 %v267, 4294901760
      %v966 = vsub.f32 %v267, %v965
      %v967 = vand.u32 %v966, 4294901760
      %968 = vmatmul.mubr.f32.gmra.mxu0 %v967
      %v969 = vpop.f32.mrf.mxu0
      %v970 = vadd.f32 %v789, %v969
      %v971 = vpop.f32.mrf.mxu0
      %972 = vmatprep.mubr.f32.mxu0 0.0
      %v973 = vand.u32 %v270, 4294901760
      %v974 = vsub.f32 %v270, %v973
      %v975 = vand.u32 %v974, 4294901760
      %976 = vmatmul.mubr.f32.gmra.mxu0 %v975
      %v977 = vpop.f32.mrf.mxu0
      %v978 = vadd.f32 %v796, %v977
      %v979 = vpop.f32.mrf.mxu0
      %980 = vmatprep.mubr.f32.mxu0 0.0
      %v981 = vand.u32 %v273, 4294901760
      %v982 = vsub.f32 %v273, %v981
      %v983 = vand.u32 %v982, 4294901760
      %984 = vmatmul.mubr.f32.gmra.mxu0 %v983
      %v985 = vpop.f32.mrf.mxu0
      %v986 = vadd.f32 %v803, %v985
      %v987 = vpop.f32.mrf.mxu0
      %988 = vmatprep.mubr.f32.mxu0 0.0
      %v989 = vand.u32 %v276, 4294901760
      %v990 = vsub.f32 %v276, %v989
      %v991 = vand.u32 %v990, 4294901760
      %992 = vmatmul.mubr.f32.gmra.mxu0 %v991
      %v993 = vpop.f32.mrf.mxu0
      %v994 = vadd.f32 %v810, %v993
      %v995 = vpop.f32.mrf.mxu0
      %996 = vmatprep.mubr.f32.mxu0 0.0
      %v997 = vand.u32 %v279, 4294901760
      %v998 = vsub.f32 %v279, %v997
      %v999 = vand.u32 %v998, 4294901760
      %1000 = vmatmul.mubr.f32.gmra.mxu0 %v999
      %v1001 = vpop.f32.mrf.mxu0
      %v1002 = vadd.f32 %v817, %v1001
      %v1003 = vpop.f32.mrf.mxu0
      %1004 = vmatprep.mubr.f32.mxu0 0.0
      %v1005 = vand.u32 %v282, 4294901760
      %v1006 = vsub.f32 %v282, %v1005
      %v1007 = vand.u32 %v1006, 4294901760
      %1008 = vmatmul.mubr.f32.gmra.mxu0 %v1007
      %v1009 = vpop.f32.mrf.mxu0
      %v1010 = vadd.f32 %v824, %v1009
      %v1011 = vpop.f32.mrf.mxu0
      %1012 = vmatprep.mubr.f32.mxu0 0.0
      %v1013 = vand.u32 %v285, 4294901760
      %v1014 = vsub.f32 %v285, %v1013
      %v1015 = vand.u32 %v1014, 4294901760
      %1016 = vmatmul.mubr.f32.gmra.mxu0 %v1015
      %v1017 = vpop.f32.mrf.mxu0
      %v1018 = vadd.f32 %v831, %v1017
      %v1019 = vpop.f32.mrf.mxu0
      %1020 = vmatprep.mubr.f32.mxu0 0.0
      %v1021 = vand.u32 %v288, 4294901760
      %v1022 = vsub.f32 %v288, %v1021
      %v1023 = vand.u32 %v1022, 4294901760
      %1024 = vmatmul.mubr.f32.gmra.mxu0 %v1023
      %v1025 = vpop.f32.mrf.mxu0
      %v1026 = vadd.f32 %v838, %v1025
      %v1027 = vpop.f32.mrf.mxu0
      %1028 = vmatprep.mubr.f32.mxu0 0.0
      %v1029 = vand.u32 %v291, 4294901760
      %v1030 = vsub.f32 %v291, %v1029
      %v1031 = vand.u32 %v1030, 4294901760
      %1032 = vmatmul.mubr.f32.gmra.mxu0 %v1031
      %v1033 = vpop.f32.mrf.mxu0
      %v1034 = vadd.f32 %v845, %v1033
      %v1035 = vpop.f32.mrf.mxu0
      %1036 = vmatprep.mubr.f32.mxu0 0.0
      %v1037 = vand.u32 %v294, 4294901760
      %v1038 = vsub.f32 %v294, %v1037
      %v1039 = vand.u32 %v1038, 4294901760
      %1040 = vmatmul.mubr.f32.gmra.mxu0 %v1039
      %v1041 = vpop.f32.mrf.mxu0
      %v1042 = vadd.f32 %v852, %v1041
      %v1043 = vpop.f32.mrf.mxu0
      %1044 = vmatprep.mubr.f32.mxu0 0.0
      %v1045 = vand.u32 %v297, 4294901760
      %v1046 = vsub.f32 %v297, %v1045
      %v1047 = vand.u32 %v1046, 4294901760
      %1048 = vmatmul.mubr.f32.gmra.mxu0 %v1047
      %v1049 = vpop.f32.mrf.mxu0
      %v1050 = vadd.f32 %v859, %v1049
      %v1051 = vpop.f32.mrf.mxu0
      %1052 = vmatprep.mubr.f32.mxu0 0.0
      %v1053 = vand.u32 %v300, 4294901760
      %v1054 = vsub.f32 %v300, %v1053
      %v1055 = vand.u32 %v1054, 4294901760
      %1056 = vmatmul.mubr.f32.gmra.mxu0 %v1055
      %v1057 = vpop.f32.mrf.mxu0
      %v1058 = vadd.f32 %v866, %v1057
      %v1059 = vpop.f32.mrf.mxu0
      %1060 = vmatprep.mubr.f32.mxu0 0.0
      %v1061 = vand.u32 %v303, 4294901760
      %v1062 = vsub.f32 %v303, %v1061
      %v1063 = vand.u32 %v1062, 4294901760
      %1064 = vmatmul.mubr.f32.gmra.mxu0 %v1063
      %v1065 = vpop.f32.mrf.mxu0
      %v1066 = vadd.f32 %v873, %v1065
      %v1067 = vpop.f32.mrf.mxu0
      %1068 = vmatprep.mubr.f32.mxu0 0.0
      %v1069 = vand.u32 %v306, 4294901760
      %v1070 = vsub.f32 %v306, %v1069
      %v1071 = vand.u32 %v1070, 4294901760
      %1072 = vmatmul.mubr.f32.gmra.mxu0 %v1071
      %v1073 = vpop.f32.mrf.mxu0
      %v1074 = vadd.f32 %v880, %v1073
      %v1075 = vpop.f32.mrf.mxu0
      %1076 = vdwg.mxu0
      %1077 = vmatprep.subr.mxu0 0.0
      %1078 = vmatpush1.msra.mxu0 0.0
      %1079 = vmatprep.subr.mxu0 0.0
      %1080 = vmatpush1.msra.mxu0 0.0
      %1081 = vmatprep.subr.mxu0 0.0
      %1082 = vmatpush1.msra.mxu0 0.0
      %1083 = vmatprep.subr.mxu0 0.0
      %1084 = vmatpush1.msra.mxu0 0.0
      %1085 = vmatprep.subr.mxu0 0.0
      %1086 = vmatpush1.msra.mxu0 0.0
      %1087 = vmatprep.subr.mxu0 0.0
      %1088 = vmatpush1.msra.mxu0 0.0
      %1089 = vmatprep.subr.mxu0 0.0
      %1090 = vmatpush1.msra.mxu0 0.0
      %1091 = vmatprep.subr.mxu0 0.0
      %1092 = vmatpush1.msra.mxu0 0.0
      %1093 = vmatprep.subr.mxu0 0.0
      %1094 = vmatpush1.msra.mxu0 0.0
      %1095 = vmatprep.subr.mxu0 0.0
      %1096 = vmatpush1.msra.mxu0 0.0
      %1097 = vmatprep.subr.mxu0 0.0
      %1098 = vmatpush1.msra.mxu0 0.0
      %1099 = vmatprep.subr.mxu0 0.0
      %1100 = vmatpush1.msra.mxu0 0.0
      %1101 = vmatprep.subr.mxu0 0.0
      %1102 = vmatpush1.msra.mxu0 0.0
      %1103 = vmatprep.subr.mxu0 0.0
      %1104 = vmatpush1.msra.mxu0 0.0
      %1105 = vmatprep.subr.mxu0 0.0
      %1106 = vmatpush1.msra.mxu0 0.0
      %1107 = vmatprep.subr.mxu0 0.0
      %v1108 = vand.u32 %v310, 4294901760
      %v1109 = vsub.f32 %v310, %v1108
      %v1110 = vand.u32 %v1109, 4294901760
      %1111 = vmatpush1.msra.mxu0 %v1110
      %1112 = vmatprep.subr.mxu0 0.0
      %1113 = vmatpush2.msra.mxu0 0.0
      %1114 = vmatprep.subr.mxu0 0.0
      %1115 = vmatpush2.msra.mxu0 0.0
      %1116 = vmatprep.subr.mxu0 0.0
      %1117 = vmatpush2.msra.mxu0 0.0
      %1118 = vmatprep.subr.mxu0 0.0
      %1119 = vmatpush2.msra.mxu0 0.0
      %1120 = vmatprep.subr.mxu0 0.0
      %1121 = vmatpush2.msra.mxu0 0.0
      %1122 = vmatprep.subr.mxu0 0.0
      %1123 = vmatpush2.msra.mxu0 0.0
      %1124 = vmatprep.subr.mxu0 0.0
      %1125 = vmatpush2.msra.mxu0 0.0
      %1126 = vmatprep.subr.mxu0 0.0
      %1127 = vmatpush2.msra.mxu0 0.0
      %1128 = vmatprep.subr.mxu0 0.0
      %1129 = vmatpush2.msra.mxu0 0.0
      %1130 = vmatprep.subr.mxu0 0.0
      %1131 = vmatpush2.msra.mxu0 0.0
      %1132 = vmatprep.subr.mxu0 0.0
      %1133 = vmatpush2.msra.mxu0 0.0
      %1134 = vmatprep.subr.mxu0 0.0
      %1135 = vmatpush2.msra.mxu0 0.0
      %1136 = vmatprep.subr.mxu0 0.0
      %1137 = vmatpush2.msra.mxu0 0.0
      %1138 = vmatprep.subr.mxu0 0.0
      %1139 = vmatpush2.msra.mxu0 0.0
      %1140 = vmatprep.subr.mxu0 0.0
      %1141 = vmatpush2.msra.mxu0 0.0
      %1142 = vmatprep.subr.mxu0 0.0
      %1143 = vmatpush2.msra.mxu0 0.0
      %1144 = vmatprep.mubr.f32.mxu0 0.0
      %v1145 = vand.u32 %v261, 4294901760
      %1146 = vmatmul.mubr.f32.gmra.mxu0 %v1145
      %v1147 = vpop.f32.mrf.mxu0
      %v1148 = vadd.f32 %v954, %v1147
      %v1149 = vpop.f32.mrf.mxu0
      %1150 = vmatprep.mubr.f32.mxu0 0.0
      %v1151 = vand.u32 %v264, 4294901760
      %1152 = vmatmul.mubr.f32.gmra.mxu0 %v1151
      %v1153 = vpop.f32.mrf.mxu0
      %v1154 = vadd.f32 %v962, %v1153
      %v1155 = vpop.f32.mrf.mxu0
      %1156 = vmatprep.mubr.f32.mxu0 0.0
      %v1157 = vand.u32 %v267, 4294901760
      %1158 = vmatmul.mubr.f32.gmra.mxu0 %v1157
      %v1159 = vpop.f32.mrf.mxu0
      %v1160 = vadd.f32 %v970, %v1159
      %v1161 = vpop.f32.mrf.mxu0
      %1162 = vmatprep.mubr.f32.mxu0 0.0
      %v1163 = vand.u32 %v270, 4294901760
      %1164 = vmatmul.mubr.f32.gmra.mxu0 %v1163
      %v1165 = vpop.f32.mrf.mxu0
      %v1166 = vadd.f32 %v978, %v1165
      %v1167 = vpop.f32.mrf.mxu0
      %1168 = vmatprep.mubr.f32.mxu0 0.0
      %v1169 = vand.u32 %v273, 4294901760
      %1170 = vmatmul.mubr.f32.gmra.mxu0 %v1169
      %v1171 = vpop.f32.mrf.mxu0
      %v1172 = vadd.f32 %v986, %v1171
      %v1173 = vpop.f32.mrf.mxu0
      %1174 = vmatprep.mubr.f32.mxu0 0.0
      %v1175 = vand.u32 %v276, 4294901760
      %1176 = vmatmul.mubr.f32.gmra.mxu0 %v1175
      %v1177 = vpop.f32.mrf.mxu0
      %v1178 = vadd.f32 %v994, %v1177
      %v1179 = vpop.f32.mrf.mxu0
      %1180 = vmatprep.mubr.f32.mxu0 0.0
      %v1181 = vand.u32 %v279, 4294901760
      %1182 = vmatmul.mubr.f32.gmra.mxu0 %v1181
      %v1183 = vpop.f32.mrf.mxu0
      %v1184 = vadd.f32 %v1002, %v1183
      %v1185 = vpop.f32.mrf.mxu0
      %1186 = vmatprep.mubr.f32.mxu0 0.0
      %v1187 = vand.u32 %v282, 4294901760
      %1188 = vmatmul.mubr.f32.gmra.mxu0 %v1187
      %v1189 = vpop.f32.mrf.mxu0
      %v1190 = vadd.f32 %v1010, %v1189
      %v1191 = vpop.f32.mrf.mxu0
      %1192 = vmatprep.mubr.f32.mxu0 0.0
      %v1193 = vand.u32 %v285, 4294901760
      %1194 = vmatmul.mubr.f32.gmra.mxu0 %v1193
      %v1195 = vpop.f32.mrf.mxu0
      %v1196 = vadd.f32 %v1018, %v1195
      %v1197 = vpop.f32.mrf.mxu0
      %1198 = vmatprep.mubr.f32.mxu0 0.0
      %v1199 = vand.u32 %v288, 4294901760
      %1200 = vmatmul.mubr.f32.gmra.mxu0 %v1199
      %v1201 = vpop.f32.mrf.mxu0
      %v1202 = vadd.f32 %v1026, %v1201
      %v1203 = vpop.f32.mrf.mxu0
      %1204 = vmatprep.mubr.f32.mxu0 0.0
      %v1205 = vand.u32 %v291, 4294901760
      %1206 = vmatmul.mubr.f32.gmra.mxu0 %v1205
      %v1207 = vpop.f32.mrf.mxu0
      %v1208 = vadd.f32 %v1034, %v1207
      %v1209 = vpop.f32.mrf.mxu0
      %1210 = vmatprep.mubr.f32.mxu0 0.0
      %v1211 = vand.u32 %v294, 4294901760
      %1212 = vmatmul.mubr.f32.gmra.mxu0 %v1211
      %v1213 = vpop.f32.mrf.mxu0
      %v1214 = vadd.f32 %v1042, %v1213
      %v1215 = vpop.f32.mrf.mxu0
      %1216 = vmatprep.mubr.f32.mxu0 0.0
      %v1217 = vand.u32 %v297, 4294901760
      %1218 = vmatmul.mubr.f32.gmra.mxu0 %v1217
      %v1219 = vpop.f32.mrf.mxu0
      %v1220 = vadd.f32 %v1050, %v1219
      %v1221 = vpop.f32.mrf.mxu0
      %1222 = vmatprep.mubr.f32.mxu0 0.0
      %v1223 = vand.u32 %v300, 4294901760
      %1224 = vmatmul.mubr.f32.gmra.mxu0 %v1223
      %v1225 = vpop.f32.mrf.mxu0
      %v1226 = vadd.f32 %v1058, %v1225
      %v1227 = vpop.f32.mrf.mxu0
      %1228 = vmatprep.mubr.f32.mxu0 0.0
      %v1229 = vand.u32 %v303, 4294901760
      %1230 = vmatmul.mubr.f32.gmra.mxu0 %v1229
      %v1231 = vpop.f32.mrf.mxu0
      %v1232 = vadd.f32 %v1066, %v1231
      %v1233 = vpop.f32.mrf.mxu0
      %1234 = vmatprep.mubr.f32.mxu0 0.0
      %v1235 = vand.u32 %v306, 4294901760
      %1236 = vmatmul.mubr.f32.gmra.mxu0 %v1235
      %v1237 = vpop.f32.mrf.mxu0
      %v1238 = vadd.f32 %v1074, %v1237
      %v1239 = vpop.f32.mrf.mxu0
      %1240 = vdwg.mxu0
      %1241 = vmatprep.subr.mxu0 0.0
      %1242 = vmatpush1.msra.mxu0 0.0
      %1243 = vmatprep.subr.mxu0 0.0
      %1244 = vmatpush1.msra.mxu0 0.0
      %1245 = vmatprep.subr.mxu0 0.0
      %1246 = vmatpush1.msra.mxu0 0.0
      %1247 = vmatprep.subr.mxu0 0.0
      %1248 = vmatpush1.msra.mxu0 0.0
      %1249 = vmatprep.subr.mxu0 0.0
      %1250 = vmatpush1.msra.mxu0 0.0
      %1251 = vmatprep.subr.mxu0 0.0
      %1252 = vmatpush1.msra.mxu0 0.0
      %1253 = vmatprep.subr.mxu0 0.0
      %1254 = vmatpush1.msra.mxu0 0.0
      %1255 = vmatprep.subr.mxu0 0.0
      %1256 = vmatpush1.msra.mxu0 0.0
      %1257 = vmatprep.subr.mxu0 0.0
      %1258 = vmatpush1.msra.mxu0 0.0
      %1259 = vmatprep.subr.mxu0 0.0
      %1260 = vmatpush1.msra.mxu0 0.0
      %1261 = vmatprep.subr.mxu0 0.0
      %1262 = vmatpush1.msra.mxu0 0.0
      %1263 = vmatprep.subr.mxu0 0.0
      %1264 = vmatpush1.msra.mxu0 0.0
      %1265 = vmatprep.subr.mxu0 0.0
      %1266 = vmatpush1.msra.mxu0 0.0
      %1267 = vmatprep.subr.mxu0 0.0
      %1268 = vmatpush1.msra.mxu0 0.0
      %1269 = vmatprep.subr.mxu0 0.0
      %1270 = vmatpush1.msra.mxu0 0.0
      %1271 = vmatprep.subr.mxu0 0.0
      %v1272 = vand.u32 %v310, 4294901760
      %1273 = vmatpush1.msra.mxu0 %v1272
      %1274 = vmatprep.subr.mxu0 0.0
      %1275 = vmatpush2.msra.mxu0 0.0
      %1276 = vmatprep.subr.mxu0 0.0
      %1277 = vmatpush2.msra.mxu0 0.0
      %1278 = vmatprep.subr.mxu0 0.0
      %1279 = vmatpush2.msra.mxu0 0.0
      %1280 = vmatprep.subr.mxu0 0.0
      %1281 = vmatpush2.msra.mxu0 0.0
      %1282 = vmatprep.subr.mxu0 0.0
      %1283 = vmatpush2.msra.mxu0 0.0
      %1284 = vmatprep.subr.mxu0 0.0
      %1285 = vmatpush2.msra.mxu0 0.0
      %1286 = vmatprep.subr.mxu0 0.0
      %1287 = vmatpush2.msra.mxu0 0.0
      %1288 = vmatprep.subr.mxu0 0.0
      %1289 = vmatpush2.msra.mxu0 0.0
      %1290 = vmatprep.subr.mxu0 0.0
      %1291 = vmatpush2.msra.mxu0 0.0
      %1292 = vmatprep.subr.mxu0 0.0
      %1293 = vmatpush2.msra.mxu0 0.0
      %1294 = vmatprep.subr.mxu0 0.0
      %1295 = vmatpush2.msra.mxu0 0.0
      %1296 = vmatprep.subr.mxu0 0.0
      %1297 = vmatpush2.msra.mxu0 0.0
      %1298 = vmatprep.subr.mxu0 0.0
      %1299 = vmatpush2.msra.mxu0 0.0
      %1300 = vmatprep.subr.mxu0 0.0
      %1301 = vmatpush2.msra.mxu0 0.0
      %1302 = vmatprep.subr.mxu0 0.0
      %1303 = vmatpush2.msra.mxu0 0.0
      %1304 = vmatprep.subr.mxu0 0.0
      %1305 = vmatpush2.msra.mxu0 0.0
      %1306 = vmatprep.mubr.f32.mxu0 0.0
      %v1307 = vand.u32 %v261, 4294901760
      %1308 = vmatmul.mubr.f32.gmra.mxu0 %v1307
      %v1309 = vpop.f32.mrf.mxu0
      %v1310 = vadd.f32 %v1148, %v1309
      %v1311 = vpop.f32.mrf.mxu0
      %1312 = vmatprep.mubr.f32.mxu0 0.0
      %v1313 = vand.u32 %v264, 4294901760
      %1314 = vmatmul.mubr.f32.gmra.mxu0 %v1313
      %v1315 = vpop.f32.mrf.mxu0
      %v1316 = vadd.f32 %v1154, %v1315
      %v1317 = vpop.f32.mrf.mxu0
      %1318 = vmatprep.mubr.f32.mxu0 0.0
      %v1319 = vand.u32 %v267, 4294901760
      %1320 = vmatmul.mubr.f32.gmra.mxu0 %v1319
      %v1321 = vpop.f32.mrf.mxu0
      %v1322 = vadd.f32 %v1160, %v1321
      %v1323 = vpop.f32.mrf.mxu0
      %1324 = vmatprep.mubr.f32.mxu0 0.0
      %v1325 = vand.u32 %v270, 4294901760
      %1326 = vmatmul.mubr.f32.gmra.mxu0 %v1325
      %v1327 = vpop.f32.mrf.mxu0
      %v1328 = vadd.f32 %v1166, %v1327
      %v1329 = vpop.f32.mrf.mxu0
      %1330 = vmatprep.mubr.f32.mxu0 0.0
      %v1331 = vand.u32 %v273, 4294901760
      %1332 = vmatmul.mubr.f32.gmra.mxu0 %v1331
      %v1333 = vpop.f32.mrf.mxu0
      %v1334 = vadd.f32 %v1172, %v1333
      %v1335 = vpop.f32.mrf.mxu0
      %1336 = vmatprep.mubr.f32.mxu0 0.0
      %v1337 = vand.u32 %v276, 4294901760
      %1338 = vmatmul.mubr.f32.gmra.mxu0 %v1337
      %v1339 = vpop.f32.mrf.mxu0
      %v1340 = vadd.f32 %v1178, %v1339
      %v1341 = vpop.f32.mrf.mxu0
      %1342 = vmatprep.mubr.f32.mxu0 0.0
      %v1343 = vand.u32 %v279, 4294901760
      %1344 = vmatmul.mubr.f32.gmra.mxu0 %v1343
      %v1345 = vpop.f32.mrf.mxu0
      %v1346 = vadd.f32 %v1184, %v1345
      %v1347 = vpop.f32.mrf.mxu0
      %1348 = vmatprep.mubr.f32.mxu0 0.0
      %v1349 = vand.u32 %v282, 4294901760
      %1350 = vmatmul.mubr.f32.gmra.mxu0 %v1349
      %v1351 = vpop.f32.mrf.mxu0
      %v1352 = vadd.f32 %v1190, %v1351
      %v1353 = vpop.f32.mrf.mxu0
      %1354 = vmatprep.mubr.f32.mxu0 0.0
      %v1355 = vand.u32 %v285, 4294901760
      %1356 = vmatmul.mubr.f32.gmra.mxu0 %v1355
      %v1357 = vpop.f32.mrf.mxu0
      %v1358 = vadd.f32 %v1196, %v1357
      %v1359 = vpop.f32.mrf.mxu0
      %1360 = vmatprep.mubr.f32.mxu0 0.0
      %v1361 = vand.u32 %v288, 4294901760
      %1362 = vmatmul.mubr.f32.gmra.mxu0 %v1361
      %v1363 = vpop.f32.mrf.mxu0
      %v1364 = vadd.f32 %v1202, %v1363
      %v1365 = vpop.f32.mrf.mxu0
      %1366 = vmatprep.mubr.f32.mxu0 0.0
      %v1367 = vand.u32 %v291, 4294901760
      %1368 = vmatmul.mubr.f32.gmra.mxu0 %v1367
      %v1369 = vpop.f32.mrf.mxu0
      %v1370 = vadd.f32 %v1208, %v1369
      %v1371 = vpop.f32.mrf.mxu0
      %1372 = vmatprep.mubr.f32.mxu0 0.0
      %v1373 = vand.u32 %v294, 4294901760
      %1374 = vmatmul.mubr.f32.gmra.mxu0 %v1373
      %v1375 = vpop.f32.mrf.mxu0
      %v1376 = vadd.f32 %v1214, %v1375
      %v1377 = vpop.f32.mrf.mxu0
      %1378 = vmatprep.mubr.f32.mxu0 0.0
      %v1379 = vand.u32 %v297, 4294901760
      %1380 = vmatmul.mubr.f32.gmra.mxu0 %v1379
      %v1381 = vpop.f32.mrf.mxu0
      %v1382 = vadd.f32 %v1220, %v1381
      %v1383 = vpop.f32.mrf.mxu0
      %1384 = vmatprep.mubr.f32.mxu0 0.0
      %v1385 = vand.u32 %v300, 4294901760
      %1386 = vmatmul.mubr.f32.gmra.mxu0 %v1385
      %v1387 = vpop.f32.mrf.mxu0
      %v1388 = vadd.f32 %v1226, %v1387
      %v1389 = vpop.f32.mrf.mxu0
      %1390 = vmatprep.mubr.f32.mxu0 0.0
      %v1391 = vand.u32 %v303, 4294901760
      %1392 = vmatmul.mubr.f32.gmra.mxu0 %v1391
      %v1393 = vpop.f32.mrf.mxu0
      %v1394 = vadd.f32 %v1232, %v1393
      %v1395 = vpop.f32.mrf.mxu0
      %1396 = vmatprep.mubr.f32.mxu0 0.0
      %v1397 = vand.u32 %v306, 4294901760
      %1398 = vmatmul.mubr.f32.gmra.mxu0 %v1397
      %v1399 = vpop.f32.mrf.mxu0
      %v1400 = vadd.f32 %v1238, %v1399
      %v1401 = vpop.f32.mrf.mxu0
      %1402 = vdwg.mxu0
      %v1404 = vsel %vm259, %v224, 0
      %v1407 = vsel %vm259, %v225, 0
      %v1410 = vsel %vm259, %v226, 0
      %v1413 = vsel %vm259, %v227, 0
      %v1416 = vsel %vm259, %v228, 0
      %v1419 = vsel %vm259, %v229, 0
      %v1422 = vsel %vm259, %v230, 0
      %v1425 = vsel %vm259, %v231, 0
      %v1428 = vsel %vm259, %v232, 0
      %v1431 = vsel %vm259, %v233, 0
      %v1434 = vsel %vm259, %v234, 0
      %v1437 = vsel %vm259, %v235, 0
      %v1440 = vsel %vm259, %v236, 0
      %v1443 = vsel %vm259, %v237, 0
      %v1446 = vsel %vm259, %v238, 0
      %v1449 = vsel %vm259, %v239, 0
      %v1452 = vsel %vm308, %v240, 0
      %1454 = vmatprep.subr.mxu0 0.0
      %1455 = vmatpush1.msra.mxu0 0.0
      %1456 = vmatprep.subr.mxu0 0.0
      %1457 = vmatpush1.msra.mxu0 0.0
      %1458 = vmatprep.subr.mxu0 0.0
      %1459 = vmatpush1.msra.mxu0 0.0
      %1460 = vmatprep.subr.mxu0 0.0
      %1461 = vmatpush1.msra.mxu0 0.0
      %1462 = vmatprep.subr.mxu0 0.0
      %1463 = vmatpush1.msra.mxu0 0.0
      %1464 = vmatprep.subr.mxu0 0.0
      %1465 = vmatpush1.msra.mxu0 0.0
      %1466 = vmatprep.subr.mxu0 0.0
      %1467 = vmatpush1.msra.mxu0 0.0
      %1468 = vmatprep.subr.mxu0 0.0
      %1469 = vmatpush1.msra.mxu0 0.0
      %1470 = vmatprep.subr.mxu0 0.0
      %1471 = vmatpush1.msra.mxu0 0.0
      %1472 = vmatprep.subr.mxu0 0.0
      %1473 = vmatpush1.msra.mxu0 0.0
      %1474 = vmatprep.subr.mxu0 0.0
      %1475 = vmatpush1.msra.mxu0 0.0
      %1476 = vmatprep.subr.mxu0 0.0
      %1477 = vmatpush1.msra.mxu0 0.0
      %1478 = vmatprep.subr.mxu0 0.0
      %1479 = vmatpush1.msra.mxu0 0.0
      %1480 = vmatprep.subr.mxu0 0.0
      %1481 = vmatpush1.msra.mxu0 0.0
      %1482 = vmatprep.subr.mxu0 0.0
      %1483 = vmatpush1.msra.mxu0 0.0
      %1484 = vmatprep.subr.mxu0 0.0
      %v1485 = vand.u32 %v1452, 4294901760
      %1486 = vmatpush1.msra.mxu0 %v1485
      %1487 = vmatprep.subr.mxu0 0.0
      %1488 = vmatpush2.msra.mxu0 0.0
      %1489 = vmatprep.subr.mxu0 0.0
      %1490 = vmatpush2.msra.mxu0 0.0
      %1491 = vmatprep.subr.mxu0 0.0
      %1492 = vmatpush2.msra.mxu0 0.0
      %1493 = vmatprep.subr.mxu0 0.0
      %1494 = vmatpush2.msra.mxu0 0.0
      %1495 = vmatprep.subr.mxu0 0.0
      %1496 = vmatpush2.msra.mxu0 0.0
      %1497 = vmatprep.subr.mxu0 0.0
      %1498 = vmatpush2.msra.mxu0 0.0
      %1499 = vmatprep.subr.mxu0 0.0
      %1500 = vmatpush2.msra.mxu0 0.0
      %1501 = vmatprep.subr.mxu0 0.0
      %1502 = vmatpush2.msra.mxu0 0.0
      %1503 = vmatprep.subr.mxu0 0.0
      %1504 = vmatpush2.msra.mxu0 0.0
      %1505 = vmatprep.subr.mxu0 0.0
      %1506 = vmatpush2.msra.mxu0 0.0
      %1507 = vmatprep.subr.mxu0 0.0
      %1508 = vmatpush2.msra.mxu0 0.0
      %1509 = vmatprep.subr.mxu0 0.0
      %1510 = vmatpush2.msra.mxu0 0.0
      %1511 = vmatprep.subr.mxu0 0.0
      %1512 = vmatpush2.msra.mxu0 0.0
      %1513 = vmatprep.subr.mxu0 0.0
      %1514 = vmatpush2.msra.mxu0 0.0
      %1515 = vmatprep.subr.mxu0 0.0
      %1516 = vmatpush2.msra.mxu0 0.0
      %1517 = vmatprep.subr.mxu0 0.0
      %1518 = vmatpush2.msra.mxu0 0.0
      %1519 = vmatprep.mubr.f32.mxu0 0.0
      %v1520 = vand.u32 %v1404, 4294901760
      %v1521 = vsub.f32 %v1404, %v1520
      %v1522 = vand.u32 %v1521, 4294901760
      %v1523 = vsub.f32 %v1521, %v1522
      %v1524 = vand.u32 %v1523, 4294901760
      %1525 = vmatmul.mubr.f32.gmra.mxu0 %v1524
      %v1526 = vpop.f32.mrf.mxu0
      %v1527 = vadd.f32 %v1310, %v1526
      %v1528 = vpop.f32.mrf.mxu0
      %1529 = vmatprep.mubr.f32.mxu0 0.0
      %v1530 = vand.u32 %v1407, 4294901760
      %v1531 = vsub.f32 %v1407, %v1530
      %v1532 = vand.u32 %v1531, 4294901760
      %v1533 = vsub.f32 %v1531, %v1532
      %v1534 = vand.u32 %v1533, 4294901760
      %1535 = vmatmul.mubr.f32.gmra.mxu0 %v1534
      %v1536 = vpop.f32.mrf.mxu0
      %v1537 = vadd.f32 %v1316, %v1536
      %v1538 = vpop.f32.mrf.mxu0
      %1539 = vmatprep.mubr.f32.mxu0 0.0
      %v1540 = vand.u32 %v1410, 4294901760
      %v1541 = vsub.f32 %v1410, %v1540
      %v1542 = vand.u32 %v1541, 4294901760
      %v1543 = vsub.f32 %v1541, %v1542
      %v1544 = vand.u32 %v1543, 4294901760
      %1545 = vmatmul.mubr.f32.gmra.mxu0 %v1544
      %v1546 = vpop.f32.mrf.mxu0
      %v1547 = vadd.f32 %v1322, %v1546
      %v1548 = vpop.f32.mrf.mxu0
      %1549 = vmatprep.mubr.f32.mxu0 0.0
      %v1550 = vand.u32 %v1413, 4294901760
      %v1551 = vsub.f32 %v1413, %v1550
      %v1552 = vand.u32 %v1551, 4294901760
      %v1553 = vsub.f32 %v1551, %v1552
      %v1554 = vand.u32 %v1553, 4294901760
      %1555 = vmatmul.mubr.f32.gmra.mxu0 %v1554
      %v1556 = vpop.f32.mrf.mxu0
      %v1557 = vadd.f32 %v1328, %v1556
      %v1558 = vpop.f32.mrf.mxu0
      %1559 = vmatprep.mubr.f32.mxu0 0.0
      %v1560 = vand.u32 %v1416, 4294901760
      %v1561 = vsub.f32 %v1416, %v1560
      %v1562 = vand.u32 %v1561, 4294901760
      %v1563 = vsub.f32 %v1561, %v1562
      %v1564 = vand.u32 %v1563, 4294901760
      %1565 = vmatmul.mubr.f32.gmra.mxu0 %v1564
      %v1566 = vpop.f32.mrf.mxu0
      %v1567 = vadd.f32 %v1334, %v1566
      %v1568 = vpop.f32.mrf.mxu0
      %1569 = vmatprep.mubr.f32.mxu0 0.0
      %v1570 = vand.u32 %v1419, 4294901760
      %v1571 = vsub.f32 %v1419, %v1570
      %v1572 = vand.u32 %v1571, 4294901760
      %v1573 = vsub.f32 %v1571, %v1572
      %v1574 = vand.u32 %v1573, 4294901760
      %1575 = vmatmul.mubr.f32.gmra.mxu0 %v1574
      %v1576 = vpop.f32.mrf.mxu0
      %v1577 = vadd.f32 %v1340, %v1576
      %v1578 = vpop.f32.mrf.mxu0
      %1579 = vmatprep.mubr.f32.mxu0 0.0
      %v1580 = vand.u32 %v1422, 4294901760
      %v1581 = vsub.f32 %v1422, %v1580
      %v1582 = vand.u32 %v1581, 4294901760
      %v1583 = vsub.f32 %v1581, %v1582
      %v1584 = vand.u32 %v1583, 4294901760
      %1585 = vmatmul.mubr.f32.gmra.mxu0 %v1584
      %v1586 = vpop.f32.mrf.mxu0
      %v1587 = vadd.f32 %v1346, %v1586
      %v1588 = vpop.f32.mrf.mxu0
      %1589 = vmatprep.mubr.f32.mxu0 0.0
      %v1590 = vand.u32 %v1425, 4294901760
      %v1591 = vsub.f32 %v1425, %v1590
      %v1592 = vand.u32 %v1591, 4294901760
      %v1593 = vsub.f32 %v1591, %v1592
      %v1594 = vand.u32 %v1593, 4294901760
      %1595 = vmatmul.mubr.f32.gmra.mxu0 %v1594
      %v1596 = vpop.f32.mrf.mxu0
      %v1597 = vadd.f32 %v1352, %v1596
      %v1598 = vpop.f32.mrf.mxu0
      %1599 = vmatprep.mubr.f32.mxu0 0.0
      %v1600 = vand.u32 %v1428, 4294901760
      %v1601 = vsub.f32 %v1428, %v1600
      %v1602 = vand.u32 %v1601, 4294901760
      %v1603 = vsub.f32 %v1601, %v1602
      %v1604 = vand.u32 %v1603, 4294901760
      %1605 = vmatmul.mubr.f32.gmra.mxu0 %v1604
      %v1606 = vpop.f32.mrf.mxu0
      %v1607 = vadd.f32 %v1358, %v1606
      %v1608 = vpop.f32.mrf.mxu0
      %1609 = vmatprep.mubr.f32.mxu0 0.0
      %v1610 = vand.u32 %v1431, 4294901760
      %v1611 = vsub.f32 %v1431, %v1610
      %v1612 = vand.u32 %v1611, 4294901760
      %v1613 = vsub.f32 %v1611, %v1612
      %v1614 = vand.u32 %v1613, 4294901760
      %1615 = vmatmul.mubr.f32.gmra.mxu0 %v1614
      %v1616 = vpop.f32.mrf.mxu0
      %v1617 = vadd.f32 %v1364, %v1616
      %v1618 = vpop.f32.mrf.mxu0
      %1619 = vmatprep.mubr.f32.mxu0 0.0
      %v1620 = vand.u32 %v1434, 4294901760
      %v1621 = vsub.f32 %v1434, %v1620
      %v1622 = vand.u32 %v1621, 4294901760
      %v1623 = vsub.f32 %v1621, %v1622
      %v1624 = vand.u32 %v1623, 4294901760
      %1625 = vmatmul.mubr.f32.gmra.mxu0 %v1624
      %v1626 = vpop.f32.mrf.mxu0
      %v1627 = vadd.f32 %v1370, %v1626
      %v1628 = vpop.f32.mrf.mxu0
      %1629 = vmatprep.mubr.f32.mxu0 0.0
      %v1630 = vand.u32 %v1437, 4294901760
      %v1631 = vsub.f32 %v1437, %v1630
      %v1632 = vand.u32 %v1631, 4294901760
      %v1633 = vsub.f32 %v1631, %v1632
      %v1634 = vand.u32 %v1633, 4294901760
      %1635 = vmatmul.mubr.f32.gmra.mxu0 %v1634
      %v1636 = vpop.f32.mrf.mxu0
      %v1637 = vadd.f32 %v1376, %v1636
      %v1638 = vpop.f32.mrf.mxu0
      %1639 = vmatprep.mubr.f32.mxu0 0.0
      %v1640 = vand.u32 %v1440, 4294901760
      %v1641 = vsub.f32 %v1440, %v1640
      %v1642 = vand.u32 %v1641, 4294901760
      %v1643 = vsub.f32 %v1641, %v1642
      %v1644 = vand.u32 %v1643, 4294901760
      %1645 = vmatmul.mubr.f32.gmra.mxu0 %v1644
      %v1646 = vpop.f32.mrf.mxu0
      %v1647 = vadd.f32 %v1382, %v1646
      %v1648 = vpop.f32.mrf.mxu0
      %1649 = vmatprep.mubr.f32.mxu0 0.0
      %v1650 = vand.u32 %v1443, 4294901760
      %v1651 = vsub.f32 %v1443, %v1650
      %v1652 = vand.u32 %v1651, 4294901760
      %v1653 = vsub.f32 %v1651, %v1652
      %v1654 = vand.u32 %v1653, 4294901760
      %1655 = vmatmul.mubr.f32.gmra.mxu0 %v1654
      %v1656 = vpop.f32.mrf.mxu0
      %v1657 = vadd.f32 %v1388, %v1656
      %v1658 = vpop.f32.mrf.mxu0
      %1659 = vmatprep.mubr.f32.mxu0 0.0
      %v1660 = vand.u32 %v1446, 4294901760
      %v1661 = vsub.f32 %v1446, %v1660
      %v1662 = vand.u32 %v1661, 4294901760
      %v1663 = vsub.f32 %v1661, %v1662
      %v1664 = vand.u32 %v1663, 4294901760
      %1665 = vmatmul.mubr.f32.gmra.mxu0 %v1664
      %v1666 = vpop.f32.mrf.mxu0
      %v1667 = vadd.f32 %v1394, %v1666
      %v1668 = vpop.f32.mrf.mxu0
      %1669 = vmatprep.mubr.f32.mxu0 0.0
      %v1670 = vand.u32 %v1449, 4294901760
      %v1671 = vsub.f32 %v1449, %v1670
      %v1672 = vand.u32 %v1671, 4294901760
      %v1673 = vsub.f32 %v1671, %v1672
      %v1674 = vand.u32 %v1673, 4294901760
      %1675 = vmatmul.mubr.f32.gmra.mxu0 %v1674
      %v1676 = vpop.f32.mrf.mxu0
      %v1677 = vadd.f32 %v1400, %v1676
      %v1678 = vpop.f32.mrf.mxu0
      %1679 = vdwg.mxu0
      %1680 = vmatprep.subr.mxu0 0.0
      %1681 = vmatpush1.msra.mxu0 0.0
      %1682 = vmatprep.subr.mxu0 0.0
      %1683 = vmatpush1.msra.mxu0 0.0
      %1684 = vmatprep.subr.mxu0 0.0
      %1685 = vmatpush1.msra.mxu0 0.0
      %1686 = vmatprep.subr.mxu0 0.0
      %1687 = vmatpush1.msra.mxu0 0.0
      %1688 = vmatprep.subr.mxu0 0.0
      %1689 = vmatpush1.msra.mxu0 0.0
      %1690 = vmatprep.subr.mxu0 0.0
      %1691 = vmatpush1.msra.mxu0 0.0
      %1692 = vmatprep.subr.mxu0 0.0
      %1693 = vmatpush1.msra.mxu0 0.0
      %1694 = vmatprep.subr.mxu0 0.0
      %1695 = vmatpush1.msra.mxu0 0.0
      %1696 = vmatprep.subr.mxu0 0.0
      %1697 = vmatpush1.msra.mxu0 0.0
      %1698 = vmatprep.subr.mxu0 0.0
      %1699 = vmatpush1.msra.mxu0 0.0
      %1700 = vmatprep.subr.mxu0 0.0
      %1701 = vmatpush1.msra.mxu0 0.0
      %1702 = vmatprep.subr.mxu0 0.0
      %1703 = vmatpush1.msra.mxu0 0.0
      %1704 = vmatprep.subr.mxu0 0.0
      %1705 = vmatpush1.msra.mxu0 0.0
      %1706 = vmatprep.subr.mxu0 0.0
      %1707 = vmatpush1.msra.mxu0 0.0
      %1708 = vmatprep.subr.mxu0 0.0
      %1709 = vmatpush1.msra.mxu0 0.0
      %1710 = vmatprep.subr.mxu0 0.0
      %v1711 = vand.u32 %v1452, 4294901760
      %v1712 = vsub.f32 %v1452, %v1711
      %v1713 = vand.u32 %v1712, 4294901760
      %v1714 = vsub.f32 %v1712, %v1713
      %v1715 = vand.u32 %v1714, 4294901760
      %1716 = vmatpush1.msra.mxu0 %v1715
      %1717 = vmatprep.subr.mxu0 0.0
      %1718 = vmatpush2.msra.mxu0 0.0
      %1719 = vmatprep.subr.mxu0 0.0
      %1720 = vmatpush2.msra.mxu0 0.0
      %1721 = vmatprep.subr.mxu0 0.0
      %1722 = vmatpush2.msra.mxu0 0.0
      %1723 = vmatprep.subr.mxu0 0.0
      %1724 = vmatpush2.msra.mxu0 0.0
      %1725 = vmatprep.subr.mxu0 0.0
      %1726 = vmatpush2.msra.mxu0 0.0
      %1727 = vmatprep.subr.mxu0 0.0
      %1728 = vmatpush2.msra.mxu0 0.0
      %1729 = vmatprep.subr.mxu0 0.0
      %1730 = vmatpush2.msra.mxu0 0.0
      %1731 = vmatprep.subr.mxu0 0.0
      %1732 = vmatpush2.msra.mxu0 0.0
      %1733 = vmatprep.subr.mxu0 0.0
      %1734 = vmatpush2.msra.mxu0 0.0
      %1735 = vmatprep.subr.mxu0 0.0
      %1736 = vmatpush2.msra.mxu0 0.0
      %1737 = vmatprep.subr.mxu0 0.0
      %1738 = vmatpush2.msra.mxu0 0.0
      %1739 = vmatprep.subr.mxu0 0.0
      %1740 = vmatpush2.msra.mxu0 0.0
      %1741 = vmatprep.subr.mxu0 0.0
      %1742 = vmatpush2.msra.mxu0 0.0
      %1743 = vmatprep.subr.mxu0 0.0
      %1744 = vmatpush2.msra.mxu0 0.0
      %1745 = vmatprep.subr.mxu0 0.0
      %1746 = vmatpush2.msra.mxu0 0.0
      %1747 = vmatprep.subr.mxu0 0.0
      %1748 = vmatpush2.msra.mxu0 0.0
      %1749 = vmatprep.mubr.f32.mxu0 0.0
      %v1750 = vand.u32 %v1404, 4294901760
      %1751 = vmatmul.mubr.f32.gmra.mxu0 %v1750
      %v1752 = vpop.f32.mrf.mxu0
      %v1753 = vadd.f32 %v1527, %v1752
      %v1754 = vpop.f32.mrf.mxu0
      %1755 = vmatprep.mubr.f32.mxu0 0.0
      %v1756 = vand.u32 %v1407, 4294901760
      %1757 = vmatmul.mubr.f32.gmra.mxu0 %v1756
      %v1758 = vpop.f32.mrf.mxu0
      %v1759 = vadd.f32 %v1537, %v1758
      %v1760 = vpop.f32.mrf.mxu0
      %1761 = vmatprep.mubr.f32.mxu0 0.0
      %v1762 = vand.u32 %v1410, 4294901760
      %1763 = vmatmul.mubr.f32.gmra.mxu0 %v1762
      %v1764 = vpop.f32.mrf.mxu0
      %v1765 = vadd.f32 %v1547, %v1764
      %v1766 = vpop.f32.mrf.mxu0
      %1767 = vmatprep.mubr.f32.mxu0 0.0
      %v1768 = vand.u32 %v1413, 4294901760
      %1769 = vmatmul.mubr.f32.gmra.mxu0 %v1768
      %v1770 = vpop.f32.mrf.mxu0
      %v1771 = vadd.f32 %v1557, %v1770
      %v1772 = vpop.f32.mrf.mxu0
      %1773 = vmatprep.mubr.f32.mxu0 0.0
      %v1774 = vand.u32 %v1416, 4294901760
      %1775 = vmatmul.mubr.f32.gmra.mxu0 %v1774
      %v1776 = vpop.f32.mrf.mxu0
      %v1777 = vadd.f32 %v1567, %v1776
      %v1778 = vpop.f32.mrf.mxu0
      %1779 = vmatprep.mubr.f32.mxu0 0.0
      %v1780 = vand.u32 %v1419, 4294901760
      %1781 = vmatmul.mubr.f32.gmra.mxu0 %v1780
      %v1782 = vpop.f32.mrf.mxu0
      %v1783 = vadd.f32 %v1577, %v1782
      %v1784 = vpop.f32.mrf.mxu0
      %1785 = vmatprep.mubr.f32.mxu0 0.0
      %v1786 = vand.u32 %v1422, 4294901760
      %1787 = vmatmul.mubr.f32.gmra.mxu0 %v1786
      %v1788 = vpop.f32.mrf.mxu0
      %v1789 = vadd.f32 %v1587, %v1788
      %v1790 = vpop.f32.mrf.mxu0
      %1791 = vmatprep.mubr.f32.mxu0 0.0
      %v1792 = vand.u32 %v1425, 4294901760
      %1793 = vmatmul.mubr.f32.gmra.mxu0 %v1792
      %v1794 = vpop.f32.mrf.mxu0
      %v1795 = vadd.f32 %v1597, %v1794
      %v1796 = vpop.f32.mrf.mxu0
      %1797 = vmatprep.mubr.f32.mxu0 0.0
      %v1798 = vand.u32 %v1428, 4294901760
      %1799 = vmatmul.mubr.f32.gmra.mxu0 %v1798
      %v1800 = vpop.f32.mrf.mxu0
      %v1801 = vadd.f32 %v1607, %v1800
      %v1802 = vpop.f32.mrf.mxu0
      %1803 = vmatprep.mubr.f32.mxu0 0.0
      %v1804 = vand.u32 %v1431, 4294901760
      %1805 = vmatmul.mubr.f32.gmra.mxu0 %v1804
      %v1806 = vpop.f32.mrf.mxu0
      %v1807 = vadd.f32 %v1617, %v1806
      %v1808 = vpop.f32.mrf.mxu0
      %1809 = vmatprep.mubr.f32.mxu0 0.0
      %v1810 = vand.u32 %v1434, 4294901760
      %1811 = vmatmul.mubr.f32.gmra.mxu0 %v1810
      %v1812 = vpop.f32.mrf.mxu0
      %v1813 = vadd.f32 %v1627, %v1812
      %v1814 = vpop.f32.mrf.mxu0
      %1815 = vmatprep.mubr.f32.mxu0 0.0
      %v1816 = vand.u32 %v1437, 4294901760
      %1817 = vmatmul.mubr.f32.gmra.mxu0 %v1816
      %v1818 = vpop.f32.mrf.mxu0
      %v1819 = vadd.f32 %v1637, %v1818
      %v1820 = vpop.f32.mrf.mxu0
      %1821 = vmatprep.mubr.f32.mxu0 0.0
      %v1822 = vand.u32 %v1440, 4294901760
      %1823 = vmatmul.mubr.f32.gmra.mxu0 %v1822
      %v1824 = vpop.f32.mrf.mxu0
      %v1825 = vadd.f32 %v1647, %v1824
      %v1826 = vpop.f32.mrf.mxu0
      %1827 = vmatprep.mubr.f32.mxu0 0.0
      %v1828 = vand.u32 %v1443, 4294901760
      %1829 = vmatmul.mubr.f32.gmra.mxu0 %v1828
      %v1830 = vpop.f32.mrf.mxu0
      %v1831 = vadd.f32 %v1657, %v1830
      %v1832 = vpop.f32.mrf.mxu0
      %1833 = vmatprep.mubr.f32.mxu0 0.0
      %v1834 = vand.u32 %v1446, 4294901760
      %1835 = vmatmul.mubr.f32.gmra.mxu0 %v1834
      %v1836 = vpop.f32.mrf.mxu0
      %v1837 = vadd.f32 %v1667, %v1836
      %v1838 = vpop.f32.mrf.mxu0
      %1839 = vmatprep.mubr.f32.mxu0 0.0
      %v1840 = vand.u32 %v1449, 4294901760
      %1841 = vmatmul.mubr.f32.gmra.mxu0 %v1840
      %v1842 = vpop.f32.mrf.mxu0
      %v1843 = vadd.f32 %v1677, %v1842
      %v1844 = vpop.f32.mrf.mxu0
      %1845 = vdwg.mxu0
      %1846 = vmatprep.subr.mxu0 0.0
      %1847 = vmatpush1.msra.mxu0 0.0
      %1848 = vmatprep.subr.mxu0 0.0
      %1849 = vmatpush1.msra.mxu0 0.0
      %1850 = vmatprep.subr.mxu0 0.0
      %1851 = vmatpush1.msra.mxu0 0.0
      %1852 = vmatprep.subr.mxu0 0.0
      %1853 = vmatpush1.msra.mxu0 0.0
      %1854 = vmatprep.subr.mxu0 0.0
      %1855 = vmatpush1.msra.mxu0 0.0
      %1856 = vmatprep.subr.mxu0 0.0
      %1857 = vmatpush1.msra.mxu0 0.0
      %1858 = vmatprep.subr.mxu0 0.0
      %1859 = vmatpush1.msra.mxu0 0.0
      %1860 = vmatprep.subr.mxu0 0.0
      %1861 = vmatpush1.msra.mxu0 0.0
      %1862 = vmatprep.subr.mxu0 0.0
      %1863 = vmatpush1.msra.mxu0 0.0
      %1864 = vmatprep.subr.mxu0 0.0
      %1865 = vmatpush1.msra.mxu0 0.0
      %1866 = vmatprep.subr.mxu0 0.0
      %1867 = vmatpush1.msra.mxu0 0.0
      %1868 = vmatprep.subr.mxu0 0.0
      %1869 = vmatpush1.msra.mxu0 0.0
      %1870 = vmatprep.subr.mxu0 0.0
      %1871 = vmatpush1.msra.mxu0 0.0
      %1872 = vmatprep.subr.mxu0 0.0
      %1873 = vmatpush1.msra.mxu0 0.0
      %1874 = vmatprep.subr.mxu0 0.0
      %1875 = vmatpush1.msra.mxu0 0.0
      %1876 = vmatprep.subr.mxu0 0.0
      %v1877 = vand.u32 %v1452, 4294901760
      %v1878 = vsub.f32 %v1452, %v1877
      %1879 = vmatpush1.msra.mxu0 %v1878
      %1880 = vmatprep.subr.mxu0 0.0
      %1881 = vmatpush2.msra.mxu0 0.0
      %1882 = vmatprep.subr.mxu0 0.0
      %1883 = vmatpush2.msra.mxu0 0.0
      %1884 = vmatprep.subr.mxu0 0.0
      %1885 = vmatpush2.msra.mxu0 0.0
      %1886 = vmatprep.subr.mxu0 0.0
      %1887 = vmatpush2.msra.mxu0 0.0
      %1888 = vmatprep.subr.mxu0 0.0
      %1889 = vmatpush2.msra.mxu0 0.0
      %1890 = vmatprep.subr.mxu0 0.0
      %1891 = vmatpush2.msra.mxu0 0.0
      %1892 = vmatprep.subr.mxu0 0.0
      %1893 = vmatpush2.msra.mxu0 0.0
      %1894 = vmatprep.subr.mxu0 0.0
      %1895 = vmatpush2.msra.mxu0 0.0
      %1896 = vmatprep.subr.mxu0 0.0
      %1897 = vmatpush2.msra.mxu0 0.0
      %1898 = vmatprep.subr.mxu0 0.0
      %1899 = vmatpush2.msra.mxu0 0.0
      %1900 = vmatprep.subr.mxu0 0.0
      %1901 = vmatpush2.msra.mxu0 0.0
      %1902 = vmatprep.subr.mxu0 0.0
      %1903 = vmatpush2.msra.mxu0 0.0
      %1904 = vmatprep.subr.mxu0 0.0
      %1905 = vmatpush2.msra.mxu0 0.0
      %1906 = vmatprep.subr.mxu0 0.0
      %1907 = vmatpush2.msra.mxu0 0.0
      %1908 = vmatprep.subr.mxu0 0.0
      %1909 = vmatpush2.msra.mxu0 0.0
      %1910 = vmatprep.subr.mxu0 0.0
      %1911 = vmatpush2.msra.mxu0 0.0
      %1912 = vmatprep.mubr.f32.mxu0 0.0
      %v1913 = vand.u32 %v1404, 4294901760
      %v1914 = vsub.f32 %v1404, %v1913
      %1915 = vmatmul.mubr.f32.gmra.mxu0 %v1914
      %v1916 = vpop.f32.mrf.mxu0
      %v1917 = vadd.f32 %v1753, %v1916
      %v1918 = vpop.f32.mrf.mxu0
      %1919 = vmatprep.mubr.f32.mxu0 0.0
      %v1920 = vand.u32 %v1407, 4294901760
      %v1921 = vsub.f32 %v1407, %v1920
      %1922 = vmatmul.mubr.f32.gmra.mxu0 %v1921
      %v1923 = vpop.f32.mrf.mxu0
      %v1924 = vadd.f32 %v1759, %v1923
      %v1925 = vpop.f32.mrf.mxu0
      %1926 = vmatprep.mubr.f32.mxu0 0.0
      %v1927 = vand.u32 %v1410, 4294901760
      %v1928 = vsub.f32 %v1410, %v1927
      %1929 = vmatmul.mubr.f32.gmra.mxu0 %v1928
      %v1930 = vpop.f32.mrf.mxu0
      %v1931 = vadd.f32 %v1765, %v1930
      %v1932 = vpop.f32.mrf.mxu0
      %1933 = vmatprep.mubr.f32.mxu0 0.0
      %v1934 = vand.u32 %v1413, 4294901760
      %v1935 = vsub.f32 %v1413, %v1934
      %1936 = vmatmul.mubr.f32.gmra.mxu0 %v1935
      %v1937 = vpop.f32.mrf.mxu0
      %v1938 = vadd.f32 %v1771, %v1937
      %v1939 = vpop.f32.mrf.mxu0
      %1940 = vmatprep.mubr.f32.mxu0 0.0
      %v1941 = vand.u32 %v1416, 4294901760
      %v1942 = vsub.f32 %v1416, %v1941
      %1943 = vmatmul.mubr.f32.gmra.mxu0 %v1942
      %v1944 = vpop.f32.mrf.mxu0
      %v1945 = vadd.f32 %v1777, %v1944
      %v1946 = vpop.f32.mrf.mxu0
      %1947 = vmatprep.mubr.f32.mxu0 0.0
      %v1948 = vand.u32 %v1419, 4294901760
      %v1949 = vsub.f32 %v1419, %v1948
      %1950 = vmatmul.mubr.f32.gmra.mxu0 %v1949
      %v1951 = vpop.f32.mrf.mxu0
      %v1952 = vadd.f32 %v1783, %v1951
      %v1953 = vpop.f32.mrf.mxu0
      %1954 = vmatprep.mubr.f32.mxu0 0.0
      %v1955 = vand.u32 %v1422, 4294901760
      %v1956 = vsub.f32 %v1422, %v1955
      %1957 = vmatmul.mubr.f32.gmra.mxu0 %v1956
      %v1958 = vpop.f32.mrf.mxu0
      %v1959 = vadd.f32 %v1789, %v1958
      %v1960 = vpop.f32.mrf.mxu0
      %1961 = vmatprep.mubr.f32.mxu0 0.0
      %v1962 = vand.u32 %v1425, 4294901760
      %v1963 = vsub.f32 %v1425, %v1962
      %1964 = vmatmul.mubr.f32.gmra.mxu0 %v1963
      %v1965 = vpop.f32.mrf.mxu0
      %v1966 = vadd.f32 %v1795, %v1965
      %v1967 = vpop.f32.mrf.mxu0
      %1968 = vmatprep.mubr.f32.mxu0 0.0
      %v1969 = vand.u32 %v1428, 4294901760
      %v1970 = vsub.f32 %v1428, %v1969
      %1971 = vmatmul.mubr.f32.gmra.mxu0 %v1970
      %v1972 = vpop.f32.mrf.mxu0
      %v1973 = vadd.f32 %v1801, %v1972
      %v1974 = vpop.f32.mrf.mxu0
      %1975 = vmatprep.mubr.f32.mxu0 0.0
      %v1976 = vand.u32 %v1431, 4294901760
      %v1977 = vsub.f32 %v1431, %v1976
      %1978 = vmatmul.mubr.f32.gmra.mxu0 %v1977
      %v1979 = vpop.f32.mrf.mxu0
      %v1980 = vadd.f32 %v1807, %v1979
      %v1981 = vpop.f32.mrf.mxu0
      %1982 = vmatprep.mubr.f32.mxu0 0.0
      %v1983 = vand.u32 %v1434, 4294901760
      %v1984 = vsub.f32 %v1434, %v1983
      %1985 = vmatmul.mubr.f32.gmra.mxu0 %v1984
      %v1986 = vpop.f32.mrf.mxu0
      %v1987 = vadd.f32 %v1813, %v1986
      %v1988 = vpop.f32.mrf.mxu0
      %1989 = vmatprep.mubr.f32.mxu0 0.0
      %v1990 = vand.u32 %v1437, 4294901760
      %v1991 = vsub.f32 %v1437, %v1990
      %1992 = vmatmul.mubr.f32.gmra.mxu0 %v1991
      %v1993 = vpop.f32.mrf.mxu0
      %v1994 = vadd.f32 %v1819, %v1993
      %v1995 = vpop.f32.mrf.mxu0
      %1996 = vmatprep.mubr.f32.mxu0 0.0
      %v1997 = vand.u32 %v1440, 4294901760
      %v1998 = vsub.f32 %v1440, %v1997
      %1999 = vmatmul.mubr.f32.gmra.mxu0 %v1998
      %v2000 = vpop.f32.mrf.mxu0
      %v2001 = vadd.f32 %v1825, %v2000
      %v2002 = vpop.f32.mrf.mxu0
      %2003 = vmatprep.mubr.f32.mxu0 0.0
      %v2004 = vand.u32 %v1443, 4294901760
      %v2005 = vsub.f32 %v1443, %v2004
      %2006 = vmatmul.mubr.f32.gmra.mxu0 %v2005
      %v2007 = vpop.f32.mrf.mxu0
      %v2008 = vadd.f32 %v1831, %v2007
      %v2009 = vpop.f32.mrf.mxu0
      %2010 = vmatprep.mubr.f32.mxu0 0.0
      %v2011 = vand.u32 %v1446, 4294901760
      %v2012 = vsub.f32 %v1446, %v2011
      %2013 = vmatmul.mubr.f32.gmra.mxu0 %v2012
      %v2014 = vpop.f32.mrf.mxu0
      %v2015 = vadd.f32 %v1837, %v2014
      %v2016 = vpop.f32.mrf.mxu0
      %2017 = vmatprep.mubr.f32.mxu0 0.0
      %v2018 = vand.u32 %v1449, 4294901760
      %v2019 = vsub.f32 %v1449, %v2018
      %2020 = vmatmul.mubr.f32.gmra.mxu0 %v2019
      %v2021 = vpop.f32.mrf.mxu0
      %v2022 = vadd.f32 %v1843, %v2021
      %v2023 = vpop.f32.mrf.mxu0
      %2024 = vdwg.mxu0
      %2025 = vmatprep.subr.mxu0 0.0
      %2026 = vmatpush1.msra.mxu0 0.0
      %2027 = vmatprep.subr.mxu0 0.0
      %2028 = vmatpush1.msra.mxu0 0.0
      %2029 = vmatprep.subr.mxu0 0.0
      %2030 = vmatpush1.msra.mxu0 0.0
      %2031 = vmatprep.subr.mxu0 0.0
      %2032 = vmatpush1.msra.mxu0 0.0
      %2033 = vmatprep.subr.mxu0 0.0
      %2034 = vmatpush1.msra.mxu0 0.0
      %2035 = vmatprep.subr.mxu0 0.0
      %2036 = vmatpush1.msra.mxu0 0.0
      %2037 = vmatprep.subr.mxu0 0.0
      %2038 = vmatpush1.msra.mxu0 0.0
      %2039 = vmatprep.subr.mxu0 0.0
      %2040 = vmatpush1.msra.mxu0 0.0
      %2041 = vmatprep.subr.mxu0 0.0
      %2042 = vmatpush1.msra.mxu0 0.0
      %2043 = vmatprep.subr.mxu0 0.0
      %2044 = vmatpush1.msra.mxu0 0.0
      %2045 = vmatprep.subr.mxu0 0.0
      %2046 = vmatpush1.msra.mxu0 0.0
      %2047 = vmatprep.subr.mxu0 0.0
      %2048 = vmatpush1.msra.mxu0 0.0
      %2049 = vmatprep.subr.mxu0 0.0
      %2050 = vmatpush1.msra.mxu0 0.0
      %2051 = vmatprep.subr.mxu0 0.0
      %2052 = vmatpush1.msra.mxu0 0.0
      %2053 = vmatprep.subr.mxu0 0.0
      %2054 = vmatpush1.msra.mxu0 0.0
      %2055 = vmatprep.subr.mxu0 0.0
      %v2056 = vand.u32 %v1452, 4294901760
      %2057 = vmatpush1.msra.mxu0 %v2056
      %2058 = vmatprep.subr.mxu0 0.0
      %2059 = vmatpush2.msra.mxu0 0.0
      %2060 = vmatprep.subr.mxu0 0.0
      %2061 = vmatpush2.msra.mxu0 0.0
      %2062 = vmatprep.subr.mxu0 0.0
      %2063 = vmatpush2.msra.mxu0 0.0
      %2064 = vmatprep.subr.mxu0 0.0
      %2065 = vmatpush2.msra.mxu0 0.0
      %2066 = vmatprep.subr.mxu0 0.0
      %2067 = vmatpush2.msra.mxu0 0.0
      %2068 = vmatprep.subr.mxu0 0.0
      %2069 = vmatpush2.msra.mxu0 0.0
      %2070 = vmatprep.subr.mxu0 0.0
      %2071 = vmatpush2.msra.mxu0 0.0
      %2072 = vmatprep.subr.mxu0 0.0
      %2073 = vmatpush2.msra.mxu0 0.0
      %2074 = vmatprep.subr.mxu0 0.0
      %2075 = vmatpush2.msra.mxu0 0.0
      %2076 = vmatprep.subr.mxu0 0.0
      %2077 = vmatpush2.msra.mxu0 0.0
      %2078 = vmatprep.subr.mxu0 0.0
      %2079 = vmatpush2.msra.mxu0 0.0
      %2080 = vmatprep.subr.mxu0 0.0
      %2081 = vmatpush2.msra.mxu0 0.0
      %2082 = vmatprep.subr.mxu0 0.0
      %2083 = vmatpush2.msra.mxu0 0.0
      %2084 = vmatprep.subr.mxu0 0.0
      %2085 = vmatpush2.msra.mxu0 0.0
      %2086 = vmatprep.subr.mxu0 0.0
      %2087 = vmatpush2.msra.mxu0 0.0
      %2088 = vmatprep.subr.mxu0 0.0
      %2089 = vmatpush2.msra.mxu0 0.0
      %2090 = vmatprep.mubr.f32.mxu0 0.0
      %v2091 = vand.u32 %v1404, 4294901760
      %v2092 = vsub.f32 %v1404, %v2091
      %v2093 = vand.u32 %v2092, 4294901760
      %2094 = vmatmul.mubr.f32.gmra.mxu0 %v2093
      %v2095 = vpop.f32.mrf.mxu0
      %v2096 = vadd.f32 %v1917, %v2095
      %v2097 = vpop.f32.mrf.mxu0
      %2098 = vmatprep.mubr.f32.mxu0 0.0
      %v2099 = vand.u32 %v1407, 4294901760
      %v2100 = vsub.f32 %v1407, %v2099
      %v2101 = vand.u32 %v2100, 4294901760
      %2102 = vmatmul.mubr.f32.gmra.mxu0 %v2101
      %v2103 = vpop.f32.mrf.mxu0
      %v2104 = vadd.f32 %v1924, %v2103
      %v2105 = vpop.f32.mrf.mxu0
      %2106 = vmatprep.mubr.f32.mxu0 0.0
      %v2107 = vand.u32 %v1410, 4294901760
      %v2108 = vsub.f32 %v1410, %v2107
      %v2109 = vand.u32 %v2108, 4294901760
      %2110 = vmatmul.mubr.f32.gmra.mxu0 %v2109
      %v2111 = vpop.f32.mrf.mxu0
      %v2112 = vadd.f32 %v1931, %v2111
      %v2113 = vpop.f32.mrf.mxu0
      %2114 = vmatprep.mubr.f32.mxu0 0.0
      %v2115 = vand.u32 %v1413, 4294901760
      %v2116 = vsub.f32 %v1413, %v2115
      %v2117 = vand.u32 %v2116, 4294901760
      %2118 = vmatmul.mubr.f32.gmra.mxu0 %v2117
      %v2119 = vpop.f32.mrf.mxu0
      %v2120 = vadd.f32 %v1938, %v2119
      %v2121 = vpop.f32.mrf.mxu0
      %2122 = vmatprep.mubr.f32.mxu0 0.0
      %v2123 = vand.u32 %v1416, 4294901760
      %v2124 = vsub.f32 %v1416, %v2123
      %v2125 = vand.u32 %v2124, 4294901760
      %2126 = vmatmul.mubr.f32.gmra.mxu0 %v2125
      %v2127 = vpop.f32.mrf.mxu0
      %v2128 = vadd.f32 %v1945, %v2127
      %v2129 = vpop.f32.mrf.mxu0
      %2130 = vmatprep.mubr.f32.mxu0 0.0
      %v2131 = vand.u32 %v1419, 4294901760
      %v2132 = vsub.f32 %v1419, %v2131
      %v2133 = vand.u32 %v2132, 4294901760
      %2134 = vmatmul.mubr.f32.gmra.mxu0 %v2133
      %v2135 = vpop.f32.mrf.mxu0
      %v2136 = vadd.f32 %v1952, %v2135
      %v2137 = vpop.f32.mrf.mxu0
      %2138 = vmatprep.mubr.f32.mxu0 0.0
      %v2139 = vand.u32 %v1422, 4294901760
      %v2140 = vsub.f32 %v1422, %v2139
      %v2141 = vand.u32 %v2140, 4294901760
      %2142 = vmatmul.mubr.f32.gmra.mxu0 %v2141
      %v2143 = vpop.f32.mrf.mxu0
      %v2144 = vadd.f32 %v1959, %v2143
      %v2145 = vpop.f32.mrf.mxu0
      %2146 = vmatprep.mubr.f32.mxu0 0.0
      %v2147 = vand.u32 %v1425, 4294901760
      %v2148 = vsub.f32 %v1425, %v2147
      %v2149 = vand.u32 %v2148, 4294901760
      %2150 = vmatmul.mubr.f32.gmra.mxu0 %v2149
      %v2151 = vpop.f32.mrf.mxu0
      %v2152 = vadd.f32 %v1966, %v2151
      %v2153 = vpop.f32.mrf.mxu0
      %2154 = vmatprep.mubr.f32.mxu0 0.0
      %v2155 = vand.u32 %v1428, 4294901760
      %v2156 = vsub.f32 %v1428, %v2155
      %v2157 = vand.u32 %v2156, 4294901760
      %2158 = vmatmul.mubr.f32.gmra.mxu0 %v2157
      %v2159 = vpop.f32.mrf.mxu0
      %v2160 = vadd.f32 %v1973, %v2159
      %v2161 = vpop.f32.mrf.mxu0
      %2162 = vmatprep.mubr.f32.mxu0 0.0
      %v2163 = vand.u32 %v1431, 4294901760
      %v2164 = vsub.f32 %v1431, %v2163
      %v2165 = vand.u32 %v2164, 4294901760
      %2166 = vmatmul.mubr.f32.gmra.mxu0 %v2165
      %v2167 = vpop.f32.mrf.mxu0
      %v2168 = vadd.f32 %v1980, %v2167
      %v2169 = vpop.f32.mrf.mxu0
      %2170 = vmatprep.mubr.f32.mxu0 0.0
      %v2171 = vand.u32 %v1434, 4294901760
      %v2172 = vsub.f32 %v1434, %v2171
      %v2173 = vand.u32 %v2172, 4294901760
      %2174 = vmatmul.mubr.f32.gmra.mxu0 %v2173
      %v2175 = vpop.f32.mrf.mxu0
      %v2176 = vadd.f32 %v1987, %v2175
      %v2177 = vpop.f32.mrf.mxu0
      %2178 = vmatprep.mubr.f32.mxu0 0.0
      %v2179 = vand.u32 %v1437, 4294901760
      %v2180 = vsub.f32 %v1437, %v2179
      %v2181 = vand.u32 %v2180, 4294901760
      %2182 = vmatmul.mubr.f32.gmra.mxu0 %v2181
      %v2183 = vpop.f32.mrf.mxu0
      %v2184 = vadd.f32 %v1994, %v2183
      %v2185 = vpop.f32.mrf.mxu0
      %2186 = vmatprep.mubr.f32.mxu0 0.0
      %v2187 = vand.u32 %v1440, 4294901760
      %v2188 = vsub.f32 %v1440, %v2187
      %v2189 = vand.u32 %v2188, 4294901760
      %2190 = vmatmul.mubr.f32.gmra.mxu0 %v2189
      %v2191 = vpop.f32.mrf.mxu0
      %v2192 = vadd.f32 %v2001, %v2191
      %v2193 = vpop.f32.mrf.mxu0
      %2194 = vmatprep.mubr.f32.mxu0 0.0
      %v2195 = vand.u32 %v1443, 4294901760
      %v2196 = vsub.f32 %v1443, %v2195
      %v2197 = vand.u32 %v2196, 4294901760
      %2198 = vmatmul.mubr.f32.gmra.mxu0 %v2197
      %v2199 = vpop.f32.mrf.mxu0
      %v2200 = vadd.f32 %v2008, %v2199
      %v2201 = vpop.f32.mrf.mxu0
      %2202 = vmatprep.mubr.f32.mxu0 0.0
      %v2203 = vand.u32 %v1446, 4294901760
      %v2204 = vsub.f32 %v1446, %v2203
      %v2205 = vand.u32 %v2204, 4294901760
      %2206 = vmatmul.mubr.f32.gmra.mxu0 %v2205
      %v2207 = vpop.f32.mrf.mxu0
      %v2208 = vadd.f32 %v2015, %v2207
      %v2209 = vpop.f32.mrf.mxu0
      %2210 = vmatprep.mubr.f32.mxu0 0.0
      %v2211 = vand.u32 %v1449, 4294901760
      %v2212 = vsub.f32 %v1449, %v2211
      %v2213 = vand.u32 %v2212, 4294901760
      %2214 = vmatmul.mubr.f32.gmra.mxu0 %v2213
      %v2215 = vpop.f32.mrf.mxu0
      %v2216 = vadd.f32 %v2022, %v2215
      %v2217 = vpop.f32.mrf.mxu0
      %2218 = vdwg.mxu0
      %2219 = vmatprep.subr.mxu0 0.0
      %2220 = vmatpush1.msra.mxu0 0.0
      %2221 = vmatprep.subr.mxu0 0.0
      %2222 = vmatpush1.msra.mxu0 0.0
      %2223 = vmatprep.subr.mxu0 0.0
      %2224 = vmatpush1.msra.mxu0 0.0
      %2225 = vmatprep.subr.mxu0 0.0
      %2226 = vmatpush1.msra.mxu0 0.0
      %2227 = vmatprep.subr.mxu0 0.0
      %2228 = vmatpush1.msra.mxu0 0.0
      %2229 = vmatprep.subr.mxu0 0.0
      %2230 = vmatpush1.msra.mxu0 0.0
      %2231 = vmatprep.subr.mxu0 0.0
      %2232 = vmatpush1.msra.mxu0 0.0
      %2233 = vmatprep.subr.mxu0 0.0
      %2234 = vmatpush1.msra.mxu0 0.0
      %2235 = vmatprep.subr.mxu0 0.0
      %2236 = vmatpush1.msra.mxu0 0.0
      %2237 = vmatprep.subr.mxu0 0.0
      %2238 = vmatpush1.msra.mxu0 0.0
      %2239 = vmatprep.subr.mxu0 0.0
      %2240 = vmatpush1.msra.mxu0 0.0
      %2241 = vmatprep.subr.mxu0 0.0
      %2242 = vmatpush1.msra.mxu0 0.0
      %2243 = vmatprep.subr.mxu0 0.0
      %2244 = vmatpush1.msra.mxu0 0.0
      %2245 = vmatprep.subr.mxu0 0.0
      %2246 = vmatpush1.msra.mxu0 0.0
      %2247 = vmatprep.subr.mxu0 0.0
      %2248 = vmatpush1.msra.mxu0 0.0
      %2249 = vmatprep.subr.mxu0 0.0
      %v2250 = vand.u32 %v1452, 4294901760
      %v2251 = vsub.f32 %v1452, %v2250
      %v2252 = vand.u32 %v2251, 4294901760
      %2253 = vmatpush1.msra.mxu0 %v2252
      %2254 = vmatprep.subr.mxu0 0.0
      %2255 = vmatpush2.msra.mxu0 0.0
      %2256 = vmatprep.subr.mxu0 0.0
      %2257 = vmatpush2.msra.mxu0 0.0
      %2258 = vmatprep.subr.mxu0 0.0
      %2259 = vmatpush2.msra.mxu0 0.0
      %2260 = vmatprep.subr.mxu0 0.0
      %2261 = vmatpush2.msra.mxu0 0.0
      %2262 = vmatprep.subr.mxu0 0.0
      %2263 = vmatpush2.msra.mxu0 0.0
      %2264 = vmatprep.subr.mxu0 0.0
      %2265 = vmatpush2.msra.mxu0 0.0
      %2266 = vmatprep.subr.mxu0 0.0
      %2267 = vmatpush2.msra.mxu0 0.0
      %2268 = vmatprep.subr.mxu0 0.0
      %2269 = vmatpush2.msra.mxu0 0.0
      %2270 = vmatprep.subr.mxu0 0.0
      %2271 = vmatpush2.msra.mxu0 0.0
      %2272 = vmatprep.subr.mxu0 0.0
      %2273 = vmatpush2.msra.mxu0 0.0
      %2274 = vmatprep.subr.mxu0 0.0
      %2275 = vmatpush2.msra.mxu0 0.0
      %2276 = vmatprep.subr.mxu0 0.0
      %2277 = vmatpush2.msra.mxu0 0.0
      %2278 = vmatprep.subr.mxu0 0.0
      %2279 = vmatpush2.msra.mxu0 0.0
      %2280 = vmatprep.subr.mxu0 0.0
      %2281 = vmatpush2.msra.mxu0 0.0
      %2282 = vmatprep.subr.mxu0 0.0
      %2283 = vmatpush2.msra.mxu0 0.0
      %2284 = vmatprep.subr.mxu0 0.0
      %2285 = vmatpush2.msra.mxu0 0.0
      %2286 = vmatprep.mubr.f32.mxu0 0.0
      %v2287 = vand.u32 %v1404, 4294901760
      %2288 = vmatmul.mubr.f32.gmra.mxu0 %v2287
      %v2289 = vpop.f32.mrf.mxu0
      %v2290 = vadd.f32 %v2096, %v2289
      %v2291 = vpop.f32.mrf.mxu0
      %2292 = vmatprep.mubr.f32.mxu0 0.0
      %v2293 = vand.u32 %v1407, 4294901760
      %2294 = vmatmul.mubr.f32.gmra.mxu0 %v2293
      %v2295 = vpop.f32.mrf.mxu0
      %v2296 = vadd.f32 %v2104, %v2295
      %v2297 = vpop.f32.mrf.mxu0
      %2298 = vmatprep.mubr.f32.mxu0 0.0
      %v2299 = vand.u32 %v1410, 4294901760
      %2300 = vmatmul.mubr.f32.gmra.mxu0 %v2299
      %v2301 = vpop.f32.mrf.mxu0
      %v2302 = vadd.f32 %v2112, %v2301
      %v2303 = vpop.f32.mrf.mxu0
      %2304 = vmatprep.mubr.f32.mxu0 0.0
      %v2305 = vand.u32 %v1413, 4294901760
      %2306 = vmatmul.mubr.f32.gmra.mxu0 %v2305
      %v2307 = vpop.f32.mrf.mxu0
      %v2308 = vadd.f32 %v2120, %v2307
      %v2309 = vpop.f32.mrf.mxu0
      %2310 = vmatprep.mubr.f32.mxu0 0.0
      %v2311 = vand.u32 %v1416, 4294901760
      %2312 = vmatmul.mubr.f32.gmra.mxu0 %v2311
      %v2313 = vpop.f32.mrf.mxu0
      %v2314 = vadd.f32 %v2128, %v2313
      %v2315 = vpop.f32.mrf.mxu0
      %2316 = vmatprep.mubr.f32.mxu0 0.0
      %v2317 = vand.u32 %v1419, 4294901760
      %2318 = vmatmul.mubr.f32.gmra.mxu0 %v2317
      %v2319 = vpop.f32.mrf.mxu0
      %v2320 = vadd.f32 %v2136, %v2319
      %v2321 = vpop.f32.mrf.mxu0
      %2322 = vmatprep.mubr.f32.mxu0 0.0
      %v2323 = vand.u32 %v1422, 4294901760
      %2324 = vmatmul.mubr.f32.gmra.mxu0 %v2323
      %v2325 = vpop.f32.mrf.mxu0
      %v2326 = vadd.f32 %v2144, %v2325
      %v2327 = vpop.f32.mrf.mxu0
      %2328 = vmatprep.mubr.f32.mxu0 0.0
      %v2329 = vand.u32 %v1425, 4294901760
      %2330 = vmatmul.mubr.f32.gmra.mxu0 %v2329
      %v2331 = vpop.f32.mrf.mxu0
      %v2332 = vadd.f32 %v2152, %v2331
      %v2333 = vpop.f32.mrf.mxu0
      %2334 = vmatprep.mubr.f32.mxu0 0.0
      %v2335 = vand.u32 %v1428, 4294901760
      %2336 = vmatmul.mubr.f32.gmra.mxu0 %v2335
      %v2337 = vpop.f32.mrf.mxu0
      %v2338 = vadd.f32 %v2160, %v2337
      %v2339 = vpop.f32.mrf.mxu0
      %2340 = vmatprep.mubr.f32.mxu0 0.0
      %v2341 = vand.u32 %v1431, 4294901760
      %2342 = vmatmul.mubr.f32.gmra.mxu0 %v2341
      %v2343 = vpop.f32.mrf.mxu0
      %v2344 = vadd.f32 %v2168, %v2343
      %v2345 = vpop.f32.mrf.mxu0
      %2346 = vmatprep.mubr.f32.mxu0 0.0
      %v2347 = vand.u32 %v1434, 4294901760
      %2348 = vmatmul.mubr.f32.gmra.mxu0 %v2347
      %v2349 = vpop.f32.mrf.mxu0
      %v2350 = vadd.f32 %v2176, %v2349
      %v2351 = vpop.f32.mrf.mxu0
      %2352 = vmatprep.mubr.f32.mxu0 0.0
      %v2353 = vand.u32 %v1437, 4294901760
      %2354 = vmatmul.mubr.f32.gmra.mxu0 %v2353
      %v2355 = vpop.f32.mrf.mxu0
      %v2356 = vadd.f32 %v2184, %v2355
      %v2357 = vpop.f32.mrf.mxu0
      %2358 = vmatprep.mubr.f32.mxu0 0.0
      %v2359 = vand.u32 %v1440, 4294901760
      %2360 = vmatmul.mubr.f32.gmra.mxu0 %v2359
      %v2361 = vpop.f32.mrf.mxu0
      %v2362 = vadd.f32 %v2192, %v2361
      %v2363 = vpop.f32.mrf.mxu0
      %2364 = vmatprep.mubr.f32.mxu0 0.0
      %v2365 = vand.u32 %v1443, 4294901760
      %2366 = vmatmul.mubr.f32.gmra.mxu0 %v2365
      %v2367 = vpop.f32.mrf.mxu0
      %v2368 = vadd.f32 %v2200, %v2367
      %v2369 = vpop.f32.mrf.mxu0
      %2370 = vmatprep.mubr.f32.mxu0 0.0
      %v2371 = vand.u32 %v1446, 4294901760
      %2372 = vmatmul.mubr.f32.gmra.mxu0 %v2371
      %v2373 = vpop.f32.mrf.mxu0
      %v2374 = vadd.f32 %v2208, %v2373
      %v2375 = vpop.f32.mrf.mxu0
      %2376 = vmatprep.mubr.f32.mxu0 0.0
      %v2377 = vand.u32 %v1449, 4294901760
      %2378 = vmatmul.mubr.f32.gmra.mxu0 %v2377
      %v2379 = vpop.f32.mrf.mxu0
      %v2380 = vadd.f32 %v2216, %v2379
      %v2381 = vpop.f32.mrf.mxu0
      %2382 = vdwg.mxu0
      %2383 = vmatprep.subr.mxu0 0.0
      %2384 = vmatpush1.msra.mxu0 0.0
      %2385 = vmatprep.subr.mxu0 0.0
      %2386 = vmatpush1.msra.mxu0 0.0
      %2387 = vmatprep.subr.mxu0 0.0
      %2388 = vmatpush1.msra.mxu0 0.0
      %2389 = vmatprep.subr.mxu0 0.0
      %2390 = vmatpush1.msra.mxu0 0.0
      %2391 = vmatprep.subr.mxu0 0.0
      %2392 = vmatpush1.msra.mxu0 0.0
      %2393 = vmatprep.subr.mxu0 0.0
      %2394 = vmatpush1.msra.mxu0 0.0
      %2395 = vmatprep.subr.mxu0 0.0
      %2396 = vmatpush1.msra.mxu0 0.0
      %2397 = vmatprep.subr.mxu0 0.0
      %2398 = vmatpush1.msra.mxu0 0.0
      %2399 = vmatprep.subr.mxu0 0.0
      %2400 = vmatpush1.msra.mxu0 0.0
      %2401 = vmatprep.subr.mxu0 0.0
      %2402 = vmatpush1.msra.mxu0 0.0
      %2403 = vmatprep.subr.mxu0 0.0
      %2404 = vmatpush1.msra.mxu0 0.0
      %2405 = vmatprep.subr.mxu0 0.0
      %2406 = vmatpush1.msra.mxu0 0.0
      %2407 = vmatprep.subr.mxu0 0.0
      %2408 = vmatpush1.msra.mxu0 0.0
      %2409 = vmatprep.subr.mxu0 0.0
      %2410 = vmatpush1.msra.mxu0 0.0
      %2411 = vmatprep.subr.mxu0 0.0
      %2412 = vmatpush1.msra.mxu0 0.0
      %2413 = vmatprep.subr.mxu0 0.0
      %v2414 = vand.u32 %v1452, 4294901760
      %2415 = vmatpush1.msra.mxu0 %v2414
      %2416 = vmatprep.subr.mxu0 0.0
      %2417 = vmatpush2.msra.mxu0 0.0
      %2418 = vmatprep.subr.mxu0 0.0
      %2419 = vmatpush2.msra.mxu0 0.0
      %2420 = vmatprep.subr.mxu0 0.0
      %2421 = vmatpush2.msra.mxu0 0.0
      %2422 = vmatprep.subr.mxu0 0.0
      %2423 = vmatpush2.msra.mxu0 0.0
      %2424 = vmatprep.subr.mxu0 0.0
      %2425 = vmatpush2.msra.mxu0 0.0
      %2426 = vmatprep.subr.mxu0 0.0
      %2427 = vmatpush2.msra.mxu0 0.0
      %2428 = vmatprep.subr.mxu0 0.0
      %2429 = vmatpush2.msra.mxu0 0.0
      %2430 = vmatprep.subr.mxu0 0.0
      %2431 = vmatpush2.msra.mxu0 0.0
      %2432 = vmatprep.subr.mxu0 0.0
      %2433 = vmatpush2.msra.mxu0 0.0
      %2434 = vmatprep.subr.mxu0 0.0
      %2435 = vmatpush2.msra.mxu0 0.0
      %2436 = vmatprep.subr.mxu0 0.0
      %2437 = vmatpush2.msra.mxu0 0.0
      %2438 = vmatprep.subr.mxu0 0.0
      %2439 = vmatpush2.msra.mxu0 0.0
      %2440 = vmatprep.subr.mxu0 0.0
      %2441 = vmatpush2.msra.mxu0 0.0
      %2442 = vmatprep.subr.mxu0 0.0
      %2443 = vmatpush2.msra.mxu0 0.0
      %2444 = vmatprep.subr.mxu0 0.0
      %2445 = vmatpush2.msra.mxu0 0.0
      %2446 = vmatprep.subr.mxu0 0.0
      %2447 = vmatpush2.msra.mxu0 0.0
      %2448 = vmatprep.mubr.f32.mxu0 0.0
      %v2449 = vand.u32 %v1404, 4294901760
      %2450 = vmatmul.mubr.f32.gmra.mxu0 %v2449
      %v2451 = vpop.f32.mrf.mxu0
      %v2452 = vadd.f32 %v2290, %v2451
      %v2453 = vpop.f32.mrf.mxu0
      %2454 = vmatprep.mubr.f32.mxu0 0.0
      %v2455 = vand.u32 %v1407, 4294901760
      %2456 = vmatmul.mubr.f32.gmra.mxu0 %v2455
      %v2457 = vpop.f32.mrf.mxu0
      %v2458 = vadd.f32 %v2296, %v2457
      %v2459 = vpop.f32.mrf.mxu0
      %2460 = vmatprep.mubr.f32.mxu0 0.0
      %v2461 = vand.u32 %v1410, 4294901760
      %2462 = vmatmul.mubr.f32.gmra.mxu0 %v2461
      %v2463 = vpop.f32.mrf.mxu0
      %v2464 = vadd.f32 %v2302, %v2463
      %v2465 = vpop.f32.mrf.mxu0
      %2466 = vmatprep.mubr.f32.mxu0 0.0
      %v2467 = vand.u32 %v1413, 4294901760
      %2468 = vmatmul.mubr.f32.gmra.mxu0 %v2467
      %v2469 = vpop.f32.mrf.mxu0
      %v2470 = vadd.f32 %v2308, %v2469
      %v2471 = vpop.f32.mrf.mxu0
      %2472 = vmatprep.mubr.f32.mxu0 0.0
      %v2473 = vand.u32 %v1416, 4294901760
      %2474 = vmatmul.mubr.f32.gmra.mxu0 %v2473
      %v2475 = vpop.f32.mrf.mxu0
      %v2476 = vadd.f32 %v2314, %v2475
      %v2477 = vpop.f32.mrf.mxu0
      %2478 = vmatprep.mubr.f32.mxu0 0.0
      %v2479 = vand.u32 %v1419, 4294901760
      %2480 = vmatmul.mubr.f32.gmra.mxu0 %v2479
      %v2481 = vpop.f32.mrf.mxu0
      %v2482 = vadd.f32 %v2320, %v2481
      %v2483 = vpop.f32.mrf.mxu0
      %2484 = vmatprep.mubr.f32.mxu0 0.0
      %v2485 = vand.u32 %v1422, 4294901760
      %2486 = vmatmul.mubr.f32.gmra.mxu0 %v2485
      %v2487 = vpop.f32.mrf.mxu0
      %v2488 = vadd.f32 %v2326, %v2487
      %v2489 = vpop.f32.mrf.mxu0
      %2490 = vmatprep.mubr.f32.mxu0 0.0
      %v2491 = vand.u32 %v1425, 4294901760
      %2492 = vmatmul.mubr.f32.gmra.mxu0 %v2491
      %v2493 = vpop.f32.mrf.mxu0
      %v2494 = vadd.f32 %v2332, %v2493
      %v2495 = vpop.f32.mrf.mxu0
      %2496 = vmatprep.mubr.f32.mxu0 0.0
      %v2497 = vand.u32 %v1428, 4294901760
      %2498 = vmatmul.mubr.f32.gmra.mxu0 %v2497
      %v2499 = vpop.f32.mrf.mxu0
      %v2500 = vadd.f32 %v2338, %v2499
      %v2501 = vpop.f32.mrf.mxu0
      %2502 = vmatprep.mubr.f32.mxu0 0.0
      %v2503 = vand.u32 %v1431, 4294901760
      %2504 = vmatmul.mubr.f32.gmra.mxu0 %v2503
      %v2505 = vpop.f32.mrf.mxu0
      %v2506 = vadd.f32 %v2344, %v2505
      %v2507 = vpop.f32.mrf.mxu0
      %2508 = vmatprep.mubr.f32.mxu0 0.0
      %v2509 = vand.u32 %v1434, 4294901760
      %2510 = vmatmul.mubr.f32.gmra.mxu0 %v2509
      %v2511 = vpop.f32.mrf.mxu0
      %v2512 = vadd.f32 %v2350, %v2511
      %v2513 = vpop.f32.mrf.mxu0
      %2514 = vmatprep.mubr.f32.mxu0 0.0
      %v2515 = vand.u32 %v1437, 4294901760
      %2516 = vmatmul.mubr.f32.gmra.mxu0 %v2515
      %v2517 = vpop.f32.mrf.mxu0
      %v2518 = vadd.f32 %v2356, %v2517
      %v2519 = vpop.f32.mrf.mxu0
      %2520 = vmatprep.mubr.f32.mxu0 0.0
      %v2521 = vand.u32 %v1440, 4294901760
      %2522 = vmatmul.mubr.f32.gmra.mxu0 %v2521
      %v2523 = vpop.f32.mrf.mxu0
      %v2524 = vadd.f32 %v2362, %v2523
      %v2525 = vpop.f32.mrf.mxu0
      %2526 = vmatprep.mubr.f32.mxu0 0.0
      %v2527 = vand.u32 %v1443, 4294901760
      %2528 = vmatmul.mubr.f32.gmra.mxu0 %v2527
      %v2529 = vpop.f32.mrf.mxu0
      %v2530 = vadd.f32 %v2368, %v2529
      %v2531 = vpop.f32.mrf.mxu0
      %2532 = vmatprep.mubr.f32.mxu0 0.0
      %v2533 = vand.u32 %v1446, 4294901760
      %2534 = vmatmul.mubr.f32.gmra.mxu0 %v2533
      %v2535 = vpop.f32.mrf.mxu0
      %v2536 = vadd.f32 %v2374, %v2535
      %v2537 = vpop.f32.mrf.mxu0
      %2538 = vmatprep.mubr.f32.mxu0 0.0
      %v2539 = vand.u32 %v1449, 4294901760
      %2540 = vmatmul.mubr.f32.gmra.mxu0 %v2539
      %v2541 = vpop.f32.mrf.mxu0
      %v2542 = vadd.f32 %v2380, %v2541
      %v2543 = vpop.f32.mrf.mxu0
      %2544 = vdwg.mxu0
      %v2545 = vld [vmem:[%s223 + $0x2] sm:$0xff]
      %v2546 = vld [vmem:[%s223 + $0xa] sm:$0xff]
      %v2547 = vld [vmem:[%s223 + $0x1a] sm:$0xff]
      %v2548 = vld [vmem:[%s223 + $0x22] sm:$0xff]
      %v2549 = vld [vmem:[%s223 + $0x32] sm:$0xff]
      %v2550 = vld [vmem:[%s223 + $0x3a] sm:$0xff]
      %v2551 = vld [vmem:[%s223 + $0x4a] sm:$0xff]
      %v2552 = vld [vmem:[%s223 + $0x52] sm:$0xff]
      %v2553 = vld [vmem:[%s223 + $0x62] sm:$0xff]
      %v2554 = vld [vmem:[%s223 + $0x6a] sm:$0xff]
      %v2555 = vld [vmem:[%s223 + $0x7a] sm:$0xff]
      %v2556 = vld [vmem:[%s223 + $0x82] sm:$0xff]
      %v2557 = vld [vmem:[%s223 + $0x92] sm:$0xff]
      %v2558 = vld [vmem:[%s223 + $0x9a] sm:$0xff]
      %v2559 = vld [vmem:[%s223 + $0xaa] sm:$0xff]
      %v2560 = vld [vmem:[%s223 + $0xb2] sm:$0xff]
      %s2561 = scalar_lea.vmem %s1, 8
      %v2562 = vld [vmem:[%s2561] sm:$0xf]
      %v2564 = vsel %vm259, %v2545, 0
      %v2567 = vsel %vm259, %v2546, 0
      %v2570 = vsel %vm259, %v2547, 0
      %v2573 = vsel %vm259, %v2548, 0
      %v2576 = vsel %vm259, %v2549, 0
      %v2579 = vsel %vm259, %v2550, 0
      %v2582 = vsel %vm259, %v2551, 0
      %v2585 = vsel %vm259, %v2552, 0
      %v2588 = vsel %vm259, %v2553, 0
      %v2591 = vsel %vm259, %v2554, 0
      %v2594 = vsel %vm259, %v2555, 0
      %v2597 = vsel %vm259, %v2556, 0
      %v2600 = vsel %vm259, %v2557, 0
      %v2603 = vsel %vm259, %v2558, 0
      %v2606 = vsel %vm259, %v2559, 0
      %v2609 = vsel %vm259, %v2560, 0
      %v2612 = vsel %vm308, %v2562, 0
      %2614 = vmatprep.subr.mxu0 0.0
      %2615 = vmatpush1.msra.mxu0 0.0
      %2616 = vmatprep.subr.mxu0 0.0
      %2617 = vmatpush1.msra.mxu0 0.0
      %2618 = vmatprep.subr.mxu0 0.0
      %2619 = vmatpush1.msra.mxu0 0.0
      %2620 = vmatprep.subr.mxu0 0.0
      %2621 = vmatpush1.msra.mxu0 0.0
      %2622 = vmatprep.subr.mxu0 0.0
      %2623 = vmatpush1.msra.mxu0 0.0
      %2624 = vmatprep.subr.mxu0 0.0
      %2625 = vmatpush1.msra.mxu0 0.0
      %2626 = vmatprep.subr.mxu0 0.0
      %2627 = vmatpush1.msra.mxu0 0.0
      %2628 = vmatprep.subr.mxu0 0.0
      %2629 = vmatpush1.msra.mxu0 0.0
      %2630 = vmatprep.subr.mxu0 0.0
      %2631 = vmatpush1.msra.mxu0 0.0
      %2632 = vmatprep.subr.mxu0 0.0
      %2633 = vmatpush1.msra.mxu0 0.0
      %2634 = vmatprep.subr.mxu0 0.0
      %2635 = vmatpush1.msra.mxu0 0.0
      %2636 = vmatprep.subr.mxu0 0.0
      %2637 = vmatpush1.msra.mxu0 0.0
      %2638 = vmatprep.subr.mxu0 0.0
      %2639 = vmatpush1.msra.mxu0 0.0
      %2640 = vmatprep.subr.mxu0 0.0
      %2641 = vmatpush1.msra.mxu0 0.0
      %2642 = vmatprep.subr.mxu0 0.0
      %2643 = vmatpush1.msra.mxu0 0.0
      %2644 = vmatprep.subr.mxu0 0.0
      %v2645 = vand.u32 %v2612, 4294901760
      %2646 = vmatpush1.msra.mxu0 %v2645
      %2647 = vmatprep.subr.mxu0 0.0
      %2648 = vmatpush2.msra.mxu0 0.0
      %2649 = vmatprep.subr.mxu0 0.0
      %2650 = vmatpush2.msra.mxu0 0.0
      %2651 = vmatprep.subr.mxu0 0.0
      %2652 = vmatpush2.msra.mxu0 0.0
      %2653 = vmatprep.subr.mxu0 0.0
      %2654 = vmatpush2.msra.mxu0 0.0
      %2655 = vmatprep.subr.mxu0 0.0
      %2656 = vmatpush2.msra.mxu0 0.0
      %2657 = vmatprep.subr.mxu0 0.0
      %2658 = vmatpush2.msra.mxu0 0.0
      %2659 = vmatprep.subr.mxu0 0.0
      %2660 = vmatpush2.msra.mxu0 0.0
      %2661 = vmatprep.subr.mxu0 0.0
      %2662 = vmatpush2.msra.mxu0 0.0
      %2663 = vmatprep.subr.mxu0 0.0
      %2664 = vmatpush2.msra.mxu0 0.0
      %2665 = vmatprep.subr.mxu0 0.0
      %2666 = vmatpush2.msra.mxu0 0.0
      %2667 = vmatprep.subr.mxu0 0.0
      %2668 = vmatpush2.msra.mxu0 0.0
      %2669 = vmatprep.subr.mxu0 0.0
      %2670 = vmatpush2.msra.mxu0 0.0
      %2671 = vmatprep.subr.mxu0 0.0
      %2672 = vmatpush2.msra.mxu0 0.0
      %2673 = vmatprep.subr.mxu0 0.0
      %2674 = vmatpush2.msra.mxu0 0.0
      %2675 = vmatprep.subr.mxu0 0.0
      %2676 = vmatpush2.msra.mxu0 0.0
      %2677 = vmatprep.subr.mxu0 0.0
      %2678 = vmatpush2.msra.mxu0 0.0
      %2679 = vmatprep.mubr.f32.mxu0 0.0
      %v2680 = vand.u32 %v2564, 4294901760
      %v2681 = vsub.f32 %v2564, %v2680
      %v2682 = vand.u32 %v2681, 4294901760
      %v2683 = vsub.f32 %v2681, %v2682
      %v2684 = vand.u32 %v2683, 4294901760
      %2685 = vmatmul.mubr.f32.gmra.mxu0 %v2684
      %v2686 = vpop.f32.mrf.mxu0
      %v2687 = vadd.f32 0.0, %v2686
      %v2688 = vpop.f32.mrf.mxu0
      %2689 = vmatprep.mubr.f32.mxu0 0.0
      %v2690 = vand.u32 %v2567, 4294901760
      %v2691 = vsub.f32 %v2567, %v2690
      %v2692 = vand.u32 %v2691, 4294901760
      %v2693 = vsub.f32 %v2691, %v2692
      %v2694 = vand.u32 %v2693, 4294901760
      %2695 = vmatmul.mubr.f32.gmra.mxu0 %v2694
      %v2696 = vpop.f32.mrf.mxu0
      %v2697 = vadd.f32 0.0, %v2696
      %v2698 = vpop.f32.mrf.mxu0
      %2699 = vmatprep.mubr.f32.mxu0 0.0
      %v2700 = vand.u32 %v2570, 4294901760
      %v2701 = vsub.f32 %v2570, %v2700
      %v2702 = vand.u32 %v2701, 4294901760
      %v2703 = vsub.f32 %v2701, %v2702
      %v2704 = vand.u32 %v2703, 4294901760
      %2705 = vmatmul.mubr.f32.gmra.mxu0 %v2704
      %v2706 = vpop.f32.mrf.mxu0
      %v2707 = vadd.f32 0.0, %v2706
      %v2708 = vpop.f32.mrf.mxu0
      %2709 = vmatprep.mubr.f32.mxu0 0.0
      %v2710 = vand.u32 %v2573, 4294901760
      %v2711 = vsub.f32 %v2573, %v2710
      %v2712 = vand.u32 %v2711, 4294901760
      %v2713 = vsub.f32 %v2711, %v2712
      %v2714 = vand.u32 %v2713, 4294901760
      %2715 = vmatmul.mubr.f32.gmra.mxu0 %v2714
      %v2716 = vpop.f32.mrf.mxu0
      %v2717 = vadd.f32 0.0, %v2716
      %v2718 = vpop.f32.mrf.mxu0
      %2719 = vmatprep.mubr.f32.mxu0 0.0
      %v2720 = vand.u32 %v2576, 4294901760
      %v2721 = vsub.f32 %v2576, %v2720
      %v2722 = vand.u32 %v2721, 4294901760
      %v2723 = vsub.f32 %v2721, %v2722
      %v2724 = vand.u32 %v2723, 4294901760
      %2725 = vmatmul.mubr.f32.gmra.mxu0 %v2724
      %v2726 = vpop.f32.mrf.mxu0
      %v2727 = vadd.f32 0.0, %v2726
      %v2728 = vpop.f32.mrf.mxu0
      %2729 = vmatprep.mubr.f32.mxu0 0.0
      %v2730 = vand.u32 %v2579, 4294901760
      %v2731 = vsub.f32 %v2579, %v2730
      %v2732 = vand.u32 %v2731, 4294901760
      %v2733 = vsub.f32 %v2731, %v2732
      %v2734 = vand.u32 %v2733, 4294901760
      %2735 = vmatmul.mubr.f32.gmra.mxu0 %v2734
      %v2736 = vpop.f32.mrf.mxu0
      %v2737 = vadd.f32 0.0, %v2736
      %v2738 = vpop.f32.mrf.mxu0
      %2739 = vmatprep.mubr.f32.mxu0 0.0
      %v2740 = vand.u32 %v2582, 4294901760
      %v2741 = vsub.f32 %v2582, %v2740
      %v2742 = vand.u32 %v2741, 4294901760
      %v2743 = vsub.f32 %v2741, %v2742
      %v2744 = vand.u32 %v2743, 4294901760
      %2745 = vmatmul.mubr.f32.gmra.mxu0 %v2744
      %v2746 = vpop.f32.mrf.mxu0
      %v2747 = vadd.f32 0.0, %v2746
      %v2748 = vpop.f32.mrf.mxu0
      %2749 = vmatprep.mubr.f32.mxu0 0.0
      %v2750 = vand.u32 %v2585, 4294901760
      %v2751 = vsub.f32 %v2585, %v2750
      %v2752 = vand.u32 %v2751, 4294901760
      %v2753 = vsub.f32 %v2751, %v2752
      %v2754 = vand.u32 %v2753, 4294901760
      %2755 = vmatmul.mubr.f32.gmra.mxu0 %v2754
      %v2756 = vpop.f32.mrf.mxu0
      %v2757 = vadd.f32 0.0, %v2756
      %v2758 = vpop.f32.mrf.mxu0
      %2759 = vmatprep.mubr.f32.mxu0 0.0
      %v2760 = vand.u32 %v2588, 4294901760
      %v2761 = vsub.f32 %v2588, %v2760
      %v2762 = vand.u32 %v2761, 4294901760
      %v2763 = vsub.f32 %v2761, %v2762
      %v2764 = vand.u32 %v2763, 4294901760
      %2765 = vmatmul.mubr.f32.gmra.mxu0 %v2764
      %v2766 = vpop.f32.mrf.mxu0
      %v2767 = vadd.f32 0.0, %v2766
      %v2768 = vpop.f32.mrf.mxu0
      %2769 = vmatprep.mubr.f32.mxu0 0.0
      %v2770 = vand.u32 %v2591, 4294901760
      %v2771 = vsub.f32 %v2591, %v2770
      %v2772 = vand.u32 %v2771, 4294901760
      %v2773 = vsub.f32 %v2771, %v2772
      %v2774 = vand.u32 %v2773, 4294901760
      %2775 = vmatmul.mubr.f32.gmra.mxu0 %v2774
      %v2776 = vpop.f32.mrf.mxu0
      %v2777 = vadd.f32 0.0, %v2776
      %v2778 = vpop.f32.mrf.mxu0
      %2779 = vmatprep.mubr.f32.mxu0 0.0
      %v2780 = vand.u32 %v2594, 4294901760
      %v2781 = vsub.f32 %v2594, %v2780
      %v2782 = vand.u32 %v2781, 4294901760
      %v2783 = vsub.f32 %v2781, %v2782
      %v2784 = vand.u32 %v2783, 4294901760
      %2785 = vmatmul.mubr.f32.gmra.mxu0 %v2784
      %v2786 = vpop.f32.mrf.mxu0
      %v2787 = vadd.f32 0.0, %v2786
      %v2788 = vpop.f32.mrf.mxu0
      %2789 = vmatprep.mubr.f32.mxu0 0.0
      %v2790 = vand.u32 %v2597, 4294901760
      %v2791 = vsub.f32 %v2597, %v2790
      %v2792 = vand.u32 %v2791, 4294901760
      %v2793 = vsub.f32 %v2791, %v2792
      %v2794 = vand.u32 %v2793, 4294901760
      %2795 = vmatmul.mubr.f32.gmra.mxu0 %v2794
      %v2796 = vpop.f32.mrf.mxu0
      %v2797 = vadd.f32 0.0, %v2796
      %v2798 = vpop.f32.mrf.mxu0
      %2799 = vmatprep.mubr.f32.mxu0 0.0
      %v2800 = vand.u32 %v2600, 4294901760
      %v2801 = vsub.f32 %v2600, %v2800
      %v2802 = vand.u32 %v2801, 4294901760
      %v2803 = vsub.f32 %v2801, %v2802
      %v2804 = vand.u32 %v2803, 4294901760
      %2805 = vmatmul.mubr.f32.gmra.mxu0 %v2804
      %v2806 = vpop.f32.mrf.mxu0
      %v2807 = vadd.f32 0.0, %v2806
      %v2808 = vpop.f32.mrf.mxu0
      %2809 = vmatprep.mubr.f32.mxu0 0.0
      %v2810 = vand.u32 %v2603, 4294901760
      %v2811 = vsub.f32 %v2603, %v2810
      %v2812 = vand.u32 %v2811, 4294901760
      %v2813 = vsub.f32 %v2811, %v2812
      %v2814 = vand.u32 %v2813, 4294901760
      %2815 = vmatmul.mubr.f32.gmra.mxu0 %v2814
      %v2816 = vpop.f32.mrf.mxu0
      %v2817 = vadd.f32 0.0, %v2816
      %v2818 = vpop.f32.mrf.mxu0
      %2819 = vmatprep.mubr.f32.mxu0 0.0
      %v2820 = vand.u32 %v2606, 4294901760
      %v2821 = vsub.f32 %v2606, %v2820
      %v2822 = vand.u32 %v2821, 4294901760
      %v2823 = vsub.f32 %v2821, %v2822
      %v2824 = vand.u32 %v2823, 4294901760
      %2825 = vmatmul.mubr.f32.gmra.mxu0 %v2824
      %v2826 = vpop.f32.mrf.mxu0
      %v2827 = vadd.f32 0.0, %v2826
      %v2828 = vpop.f32.mrf.mxu0
      %2829 = vmatprep.mubr.f32.mxu0 0.0
      %v2830 = vand.u32 %v2609, 4294901760
      %v2831 = vsub.f32 %v2609, %v2830
      %v2832 = vand.u32 %v2831, 4294901760
      %v2833 = vsub.f32 %v2831, %v2832
      %v2834 = vand.u32 %v2833, 4294901760
      %2835 = vmatmul.mubr.f32.gmra.mxu0 %v2834
      %v2836 = vpop.f32.mrf.mxu0
      %v2837 = vadd.f32 0.0, %v2836
      %v2838 = vpop.f32.mrf.mxu0
      %2839 = vdwg.mxu0
      %2840 = vmatprep.subr.mxu0 0.0
      %2841 = vmatpush1.msra.mxu0 0.0
      %2842 = vmatprep.subr.mxu0 0.0
      %2843 = vmatpush1.msra.mxu0 0.0
      %2844 = vmatprep.subr.mxu0 0.0
      %2845 = vmatpush1.msra.mxu0 0.0
      %2846 = vmatprep.subr.mxu0 0.0
      %2847 = vmatpush1.msra.mxu0 0.0
      %2848 = vmatprep.subr.mxu0 0.0
      %2849 = vmatpush1.msra.mxu0 0.0
      %2850 = vmatprep.subr.mxu0 0.0
      %2851 = vmatpush1.msra.mxu0 0.0
      %2852 = vmatprep.subr.mxu0 0.0
      %2853 = vmatpush1.msra.mxu0 0.0
      %2854 = vmatprep.subr.mxu0 0.0
      %2855 = vmatpush1.msra.mxu0 0.0
      %2856 = vmatprep.subr.mxu0 0.0
      %2857 = vmatpush1.msra.mxu0 0.0
      %2858 = vmatprep.subr.mxu0 0.0
      %2859 = vmatpush1.msra.mxu0 0.0
      %2860 = vmatprep.subr.mxu0 0.0
      %2861 = vmatpush1.msra.mxu0 0.0
      %2862 = vmatprep.subr.mxu0 0.0
      %2863 = vmatpush1.msra.mxu0 0.0
      %2864 = vmatprep.subr.mxu0 0.0
      %2865 = vmatpush1.msra.mxu0 0.0
      %2866 = vmatprep.subr.mxu0 0.0
      %2867 = vmatpush1.msra.mxu0 0.0
      %2868 = vmatprep.subr.mxu0 0.0
      %2869 = vmatpush1.msra.mxu0 0.0
      %2870 = vmatprep.subr.mxu0 0.0
      %v2871 = vand.u32 %v2612, 4294901760
      %v2872 = vsub.f32 %v2612, %v2871
      %v2873 = vand.u32 %v2872, 4294901760
      %v2874 = vsub.f32 %v2872, %v2873
      %v2875 = vand.u32 %v2874, 4294901760
      %2876 = vmatpush1.msra.mxu0 %v2875
      %2877 = vmatprep.subr.mxu0 0.0
      %2878 = vmatpush2.msra.mxu0 0.0
      %2879 = vmatprep.subr.mxu0 0.0
      %2880 = vmatpush2.msra.mxu0 0.0
      %2881 = vmatprep.subr.mxu0 0.0
      %2882 = vmatpush2.msra.mxu0 0.0
      %2883 = vmatprep.subr.mxu0 0.0
      %2884 = vmatpush2.msra.mxu0 0.0
      %2885 = vmatprep.subr.mxu0 0.0
      %2886 = vmatpush2.msra.mxu0 0.0
      %2887 = vmatprep.subr.mxu0 0.0
      %2888 = vmatpush2.msra.mxu0 0.0
      %2889 = vmatprep.subr.mxu0 0.0
      %2890 = vmatpush2.msra.mxu0 0.0
      %2891 = vmatprep.subr.mxu0 0.0
      %2892 = vmatpush2.msra.mxu0 0.0
      %2893 = vmatprep.subr.mxu0 0.0
      %2894 = vmatpush2.msra.mxu0 0.0
      %2895 = vmatprep.subr.mxu0 0.0
      %2896 = vmatpush2.msra.mxu0 0.0
      %2897 = vmatprep.subr.mxu0 0.0
      %2898 = vmatpush2.msra.mxu0 0.0
      %2899 = vmatprep.subr.mxu0 0.0
      %2900 = vmatpush2.msra.mxu0 0.0
      %2901 = vmatprep.subr.mxu0 0.0
      %2902 = vmatpush2.msra.mxu0 0.0
      %2903 = vmatprep.subr.mxu0 0.0
      %2904 = vmatpush2.msra.mxu0 0.0
      %2905 = vmatprep.subr.mxu0 0.0
      %2906 = vmatpush2.msra.mxu0 0.0
      %2907 = vmatprep.subr.mxu0 0.0
      %2908 = vmatpush2.msra.mxu0 0.0
      %2909 = vmatprep.mubr.f32.mxu0 0.0
      %v2910 = vand.u32 %v2564, 4294901760
      %2911 = vmatmul.mubr.f32.gmra.mxu0 %v2910
      %v2912 = vpop.f32.mrf.mxu0
      %v2913 = vadd.f32 %v2687, %v2912
      %v2914 = vpop.f32.mrf.mxu0
      %2915 = vmatprep.mubr.f32.mxu0 0.0
      %v2916 = vand.u32 %v2567, 4294901760
      %2917 = vmatmul.mubr.f32.gmra.mxu0 %v2916
      %v2918 = vpop.f32.mrf.mxu0
      %v2919 = vadd.f32 %v2697, %v2918
      %v2920 = vpop.f32.mrf.mxu0
      %2921 = vmatprep.mubr.f32.mxu0 0.0
      %v2922 = vand.u32 %v2570, 4294901760
      %2923 = vmatmul.mubr.f32.gmra.mxu0 %v2922
      %v2924 = vpop.f32.mrf.mxu0
      %v2925 = vadd.f32 %v2707, %v2924
      %v2926 = vpop.f32.mrf.mxu0
      %2927 = vmatprep.mubr.f32.mxu0 0.0
      %v2928 = vand.u32 %v2573, 4294901760
      %2929 = vmatmul.mubr.f32.gmra.mxu0 %v2928
      %v2930 = vpop.f32.mrf.mxu0
      %v2931 = vadd.f32 %v2717, %v2930
      %v2932 = vpop.f32.mrf.mxu0
      %2933 = vmatprep.mubr.f32.mxu0 0.0
      %v2934 = vand.u32 %v2576, 4294901760
      %2935 = vmatmul.mubr.f32.gmra.mxu0 %v2934
      %v2936 = vpop.f32.mrf.mxu0
      %v2937 = vadd.f32 %v2727, %v2936
      %v2938 = vpop.f32.mrf.mxu0
      %2939 = vmatprep.mubr.f32.mxu0 0.0
      %v2940 = vand.u32 %v2579, 4294901760
      %2941 = vmatmul.mubr.f32.gmra.mxu0 %v2940
      %v2942 = vpop.f32.mrf.mxu0
      %v2943 = vadd.f32 %v2737, %v2942
      %v2944 = vpop.f32.mrf.mxu0
      %2945 = vmatprep.mubr.f32.mxu0 0.0
      %v2946 = vand.u32 %v2582, 4294901760
      %2947 = vmatmul.mubr.f32.gmra.mxu0 %v2946
      %v2948 = vpop.f32.mrf.mxu0
      %v2949 = vadd.f32 %v2747, %v2948
      %v2950 = vpop.f32.mrf.mxu0
      %2951 = vmatprep.mubr.f32.mxu0 0.0
      %v2952 = vand.u32 %v2585, 4294901760
      %2953 = vmatmul.mubr.f32.gmra.mxu0 %v2952
      %v2954 = vpop.f32.mrf.mxu0
      %v2955 = vadd.f32 %v2757, %v2954
      %v2956 = vpop.f32.mrf.mxu0
      %2957 = vmatprep.mubr.f32.mxu0 0.0
      %v2958 = vand.u32 %v2588, 4294901760
      %2959 = vmatmul.mubr.f32.gmra.mxu0 %v2958
      %v2960 = vpop.f32.mrf.mxu0
      %v2961 = vadd.f32 %v2767, %v2960
      %v2962 = vpop.f32.mrf.mxu0
      %2963 = vmatprep.mubr.f32.mxu0 0.0
      %v2964 = vand.u32 %v2591, 4294901760
      %2965 = vmatmul.mubr.f32.gmra.mxu0 %v2964
      %v2966 = vpop.f32.mrf.mxu0
      %v2967 = vadd.f32 %v2777, %v2966
      %v2968 = vpop.f32.mrf.mxu0
      %2969 = vmatprep.mubr.f32.mxu0 0.0
      %v2970 = vand.u32 %v2594, 4294901760
      %2971 = vmatmul.mubr.f32.gmra.mxu0 %v2970
      %v2972 = vpop.f32.mrf.mxu0
      %v2973 = vadd.f32 %v2787, %v2972
      %v2974 = vpop.f32.mrf.mxu0
      %2975 = vmatprep.mubr.f32.mxu0 0.0
      %v2976 = vand.u32 %v2597, 4294901760
      %2977 = vmatmul.mubr.f32.gmra.mxu0 %v2976
      %v2978 = vpop.f32.mrf.mxu0
      %v2979 = vadd.f32 %v2797, %v2978
      %v2980 = vpop.f32.mrf.mxu0
      %2981 = vmatprep.mubr.f32.mxu0 0.0
      %v2982 = vand.u32 %v2600, 4294901760
      %2983 = vmatmul.mubr.f32.gmra.mxu0 %v2982
      %v2984 = vpop.f32.mrf.mxu0
      %v2985 = vadd.f32 %v2807, %v2984
      %v2986 = vpop.f32.mrf.mxu0
      %2987 = vmatprep.mubr.f32.mxu0 0.0
      %v2988 = vand.u32 %v2603, 4294901760
      %2989 = vmatmul.mubr.f32.gmra.mxu0 %v2988
      %v2990 = vpop.f32.mrf.mxu0
      %v2991 = vadd.f32 %v2817, %v2990
      %v2992 = vpop.f32.mrf.mxu0
      %2993 = vmatprep.mubr.f32.mxu0 0.0
      %v2994 = vand.u32 %v2606, 4294901760
      %2995 = vmatmul.mubr.f32.gmra.mxu0 %v2994
      %v2996 = vpop.f32.mrf.mxu0
      %v2997 = vadd.f32 %v2827, %v2996
      %v2998 = vpop.f32.mrf.mxu0
      %2999 = vmatprep.mubr.f32.mxu0 0.0
      %v3000 = vand.u32 %v2609, 4294901760
      %3001 = vmatmul.mubr.f32.gmra.mxu0 %v3000
      %v3002 = vpop.f32.mrf.mxu0
      %v3003 = vadd.f32 %v2837, %v3002
      %v3004 = vpop.f32.mrf.mxu0
      %3005 = vdwg.mxu0
      %3006 = vmatprep.subr.mxu0 0.0
      %3007 = vmatpush1.msra.mxu0 0.0
      %3008 = vmatprep.subr.mxu0 0.0
      %3009 = vmatpush1.msra.mxu0 0.0
      %3010 = vmatprep.subr.mxu0 0.0
      %3011 = vmatpush1.msra.mxu0 0.0
      %3012 = vmatprep.subr.mxu0 0.0
      %3013 = vmatpush1.msra.mxu0 0.0
      %3014 = vmatprep.subr.mxu0 0.0
      %3015 = vmatpush1.msra.mxu0 0.0
      %3016 = vmatprep.subr.mxu0 0.0
      %3017 = vmatpush1.msra.mxu0 0.0
      %3018 = vmatprep.subr.mxu0 0.0
      %3019 = vmatpush1.msra.mxu0 0.0
      %3020 = vmatprep.subr.mxu0 0.0
      %3021 = vmatpush1.msra.mxu0 0.0
      %3022 = vmatprep.subr.mxu0 0.0
      %3023 = vmatpush1.msra.mxu0 0.0
      %3024 = vmatprep.subr.mxu0 0.0
      %3025 = vmatpush1.msra.mxu0 0.0
      %3026 = vmatprep.subr.mxu0 0.0
      %3027 = vmatpush1.msra.mxu0 0.0
      %3028 = vmatprep.subr.mxu0 0.0
      %3029 = vmatpush1.msra.mxu0 0.0
      %3030 = vmatprep.subr.mxu0 0.0
      %3031 = vmatpush1.msra.mxu0 0.0
      %3032 = vmatprep.subr.mxu0 0.0
      %3033 = vmatpush1.msra.mxu0 0.0
      %3034 = vmatprep.subr.mxu0 0.0
      %3035 = vmatpush1.msra.mxu0 0.0
      %3036 = vmatprep.subr.mxu0 0.0
      %v3037 = vand.u32 %v2612, 4294901760
      %v3038 = vsub.f32 %v2612, %v3037
      %3039 = vmatpush1.msra.mxu0 %v3038
      %3040 = vmatprep.subr.mxu0 0.0
      %3041 = vmatpush2.msra.mxu0 0.0
      %3042 = vmatprep.subr.mxu0 0.0
      %3043 = vmatpush2.msra.mxu0 0.0
      %3044 = vmatprep.subr.mxu0 0.0
      %3045 = vmatpush2.msra.mxu0 0.0
      %3046 = vmatprep.subr.mxu0 0.0
      %3047 = vmatpush2.msra.mxu0 0.0
      %3048 = vmatprep.subr.mxu0 0.0
      %3049 = vmatpush2.msra.mxu0 0.0
      %3050 = vmatprep.subr.mxu0 0.0
      %3051 = vmatpush2.msra.mxu0 0.0
      %3052 = vmatprep.subr.mxu0 0.0
      %3053 = vmatpush2.msra.mxu0 0.0
      %3054 = vmatprep.subr.mxu0 0.0
      %3055 = vmatpush2.msra.mxu0 0.0
      %3056 = vmatprep.subr.mxu0 0.0
      %3057 = vmatpush2.msra.mxu0 0.0
      %3058 = vmatprep.subr.mxu0 0.0
      %3059 = vmatpush2.msra.mxu0 0.0
      %3060 = vmatprep.subr.mxu0 0.0
      %3061 = vmatpush2.msra.mxu0 0.0
      %3062 = vmatprep.subr.mxu0 0.0
      %3063 = vmatpush2.msra.mxu0 0.0
      %3064 = vmatprep.subr.mxu0 0.0
      %3065 = vmatpush2.msra.mxu0 0.0
      %3066 = vmatprep.subr.mxu0 0.0
      %3067 = vmatpush2.msra.mxu0 0.0
      %3068 = vmatprep.subr.mxu0 0.0
      %3069 = vmatpush2.msra.mxu0 0.0
      %3070 = vmatprep.subr.mxu0 0.0
      %3071 = vmatpush2.msra.mxu0 0.0
      %3072 = vmatprep.mubr.f32.mxu0 0.0
      %v3073 = vand.u32 %v2564, 4294901760
      %v3074 = vsub.f32 %v2564, %v3073
      %3075 = vmatmul.mubr.f32.gmra.mxu0 %v3074
      %v3076 = vpop.f32.mrf.mxu0
      %v3077 = vadd.f32 %v2913, %v3076
      %v3078 = vpop.f32.mrf.mxu0
      %3079 = vmatprep.mubr.f32.mxu0 0.0
      %v3080 = vand.u32 %v2567, 4294901760
      %v3081 = vsub.f32 %v2567, %v3080
      %3082 = vmatmul.mubr.f32.gmra.mxu0 %v3081
      %v3083 = vpop.f32.mrf.mxu0
      %v3084 = vadd.f32 %v2919, %v3083
      %v3085 = vpop.f32.mrf.mxu0
      %3086 = vmatprep.mubr.f32.mxu0 0.0
      %v3087 = vand.u32 %v2570, 4294901760
      %v3088 = vsub.f32 %v2570, %v3087
      %3089 = vmatmul.mubr.f32.gmra.mxu0 %v3088
      %v3090 = vpop.f32.mrf.mxu0
      %v3091 = vadd.f32 %v2925, %v3090
      %v3092 = vpop.f32.mrf.mxu0
      %3093 = vmatprep.mubr.f32.mxu0 0.0
      %v3094 = vand.u32 %v2573, 4294901760
      %v3095 = vsub.f32 %v2573, %v3094
      %3096 = vmatmul.mubr.f32.gmra.mxu0 %v3095
      %v3097 = vpop.f32.mrf.mxu0
      %v3098 = vadd.f32 %v2931, %v3097
      %v3099 = vpop.f32.mrf.mxu0
      %3100 = vmatprep.mubr.f32.mxu0 0.0
      %v3101 = vand.u32 %v2576, 4294901760
      %v3102 = vsub.f32 %v2576, %v3101
      %3103 = vmatmul.mubr.f32.gmra.mxu0 %v3102
      %v3104 = vpop.f32.mrf.mxu0
      %v3105 = vadd.f32 %v2937, %v3104
      %v3106 = vpop.f32.mrf.mxu0
      %3107 = vmatprep.mubr.f32.mxu0 0.0
      %v3108 = vand.u32 %v2579, 4294901760
      %v3109 = vsub.f32 %v2579, %v3108
      %3110 = vmatmul.mubr.f32.gmra.mxu0 %v3109
      %v3111 = vpop.f32.mrf.mxu0
      %v3112 = vadd.f32 %v2943, %v3111
      %v3113 = vpop.f32.mrf.mxu0
      %3114 = vmatprep.mubr.f32.mxu0 0.0
      %v3115 = vand.u32 %v2582, 4294901760
      %v3116 = vsub.f32 %v2582, %v3115
      %3117 = vmatmul.mubr.f32.gmra.mxu0 %v3116
      %v3118 = vpop.f32.mrf.mxu0
      %v3119 = vadd.f32 %v2949, %v3118
      %v3120 = vpop.f32.mrf.mxu0
      %3121 = vmatprep.mubr.f32.mxu0 0.0
      %v3122 = vand.u32 %v2585, 4294901760
      %v3123 = vsub.f32 %v2585, %v3122
      %3124 = vmatmul.mubr.f32.gmra.mxu0 %v3123
      %v3125 = vpop.f32.mrf.mxu0
      %v3126 = vadd.f32 %v2955, %v3125
      %v3127 = vpop.f32.mrf.mxu0
      %3128 = vmatprep.mubr.f32.mxu0 0.0
      %v3129 = vand.u32 %v2588, 4294901760
      %v3130 = vsub.f32 %v2588, %v3129
      %3131 = vmatmul.mubr.f32.gmra.mxu0 %v3130
      %v3132 = vpop.f32.mrf.mxu0
      %v3133 = vadd.f32 %v2961, %v3132
      %v3134 = vpop.f32.mrf.mxu0
      %3135 = vmatprep.mubr.f32.mxu0 0.0
      %v3136 = vand.u32 %v2591, 4294901760
      %v3137 = vsub.f32 %v2591, %v3136
      %3138 = vmatmul.mubr.f32.gmra.mxu0 %v3137
      %v3139 = vpop.f32.mrf.mxu0
      %v3140 = vadd.f32 %v2967, %v3139
      %v3141 = vpop.f32.mrf.mxu0
      %3142 = vmatprep.mubr.f32.mxu0 0.0
      %v3143 = vand.u32 %v2594, 4294901760
      %v3144 = vsub.f32 %v2594, %v3143
      %3145 = vmatmul.mubr.f32.gmra.mxu0 %v3144
      %v3146 = vpop.f32.mrf.mxu0
      %v3147 = vadd.f32 %v2973, %v3146
      %v3148 = vpop.f32.mrf.mxu0
      %3149 = vmatprep.mubr.f32.mxu0 0.0
      %v3150 = vand.u32 %v2597, 4294901760
      %v3151 = vsub.f32 %v2597, %v3150
      %3152 = vmatmul.mubr.f32.gmra.mxu0 %v3151
      %v3153 = vpop.f32.mrf.mxu0
      %v3154 = vadd.f32 %v2979, %v3153
      %v3155 = vpop.f32.mrf.mxu0
      %3156 = vmatprep.mubr.f32.mxu0 0.0
      %v3157 = vand.u32 %v2600, 4294901760
      %v3158 = vsub.f32 %v2600, %v3157
      %3159 = vmatmul.mubr.f32.gmra.mxu0 %v3158
      %v3160 = vpop.f32.mrf.mxu0
      %v3161 = vadd.f32 %v2985, %v3160
      %v3162 = vpop.f32.mrf.mxu0
      %3163 = vmatprep.mubr.f32.mxu0 0.0
      %v3164 = vand.u32 %v2603, 4294901760
      %v3165 = vsub.f32 %v2603, %v3164
      %3166 = vmatmul.mubr.f32.gmra.mxu0 %v3165
      %v3167 = vpop.f32.mrf.mxu0
      %v3168 = vadd.f32 %v2991, %v3167
      %v3169 = vpop.f32.mrf.mxu0
      %3170 = vmatprep.mubr.f32.mxu0 0.0
      %v3171 = vand.u32 %v2606, 4294901760
      %v3172 = vsub.f32 %v2606, %v3171
      %3173 = vmatmul.mubr.f32.gmra.mxu0 %v3172
      %v3174 = vpop.f32.mrf.mxu0
      %v3175 = vadd.f32 %v2997, %v3174
      %v3176 = vpop.f32.mrf.mxu0
      %3177 = vmatprep.mubr.f32.mxu0 0.0
      %v3178 = vand.u32 %v2609, 4294901760
      %v3179 = vsub.f32 %v2609, %v3178
      %3180 = vmatmul.mubr.f32.gmra.mxu0 %v3179
      %v3181 = vpop.f32.mrf.mxu0
      %v3182 = vadd.f32 %v3003, %v3181
      %v3183 = vpop.f32.mrf.mxu0
      %3184 = vdwg.mxu0
      %3185 = vmatprep.subr.mxu0 0.0
      %3186 = vmatpush1.msra.mxu0 0.0
      %3187 = vmatprep.subr.mxu0 0.0
      %3188 = vmatpush1.msra.mxu0 0.0
      %3189 = vmatprep.subr.mxu0 0.0
      %3190 = vmatpush1.msra.mxu0 0.0
      %3191 = vmatprep.subr.mxu0 0.0
      %3192 = vmatpush1.msra.mxu0 0.0
      %3193 = vmatprep.subr.mxu0 0.0
      %3194 = vmatpush1.msra.mxu0 0.0
      %3195 = vmatprep.subr.mxu0 0.0
      %3196 = vmatpush1.msra.mxu0 0.0
      %3197 = vmatprep.subr.mxu0 0.0
      %3198 = vmatpush1.msra.mxu0 0.0
      %3199 = vmatprep.subr.mxu0 0.0
      %3200 = vmatpush1.msra.mxu0 0.0
      %3201 = vmatprep.subr.mxu0 0.0
      %3202 = vmatpush1.msra.mxu0 0.0
      %3203 = vmatprep.subr.mxu0 0.0
      %3204 = vmatpush1.msra.mxu0 0.0
      %3205 = vmatprep.subr.mxu0 0.0
      %3206 = vmatpush1.msra.mxu0 0.0
      %3207 = vmatprep.subr.mxu0 0.0
      %3208 = vmatpush1.msra.mxu0 0.0
      %3209 = vmatprep.subr.mxu0 0.0
      %3210 = vmatpush1.msra.mxu0 0.0
      %3211 = vmatprep.subr.mxu0 0.0
      %3212 = vmatpush1.msra.mxu0 0.0
      %3213 = vmatprep.subr.mxu0 0.0
      %3214 = vmatpush1.msra.mxu0 0.0
      %3215 = vmatprep.subr.mxu0 0.0
      %v3216 = vand.u32 %v2612, 4294901760
      %3217 = vmatpush1.msra.mxu0 %v3216
      %3218 = vmatprep.subr.mxu0 0.0
      %3219 = vmatpush2.msra.mxu0 0.0
      %3220 = vmatprep.subr.mxu0 0.0
      %3221 = vmatpush2.msra.mxu0 0.0
      %3222 = vmatprep.subr.mxu0 0.0
      %3223 = vmatpush2.msra.mxu0 0.0
      %3224 = vmatprep.subr.mxu0 0.0
      %3225 = vmatpush2.msra.mxu0 0.0
      %3226 = vmatprep.subr.mxu0 0.0
      %3227 = vmatpush2.msra.mxu0 0.0
      %3228 = vmatprep.subr.mxu0 0.0
      %3229 = vmatpush2.msra.mxu0 0.0
      %3230 = vmatprep.subr.mxu0 0.0
      %3231 = vmatpush2.msra.mxu0 0.0
      %3232 = vmatprep.subr.mxu0 0.0
      %3233 = vmatpush2.msra.mxu0 0.0
      %3234 = vmatprep.subr.mxu0 0.0
      %3235 = vmatpush2.msra.mxu0 0.0
      %3236 = vmatprep.subr.mxu0 0.0
      %3237 = vmatpush2.msra.mxu0 0.0
      %3238 = vmatprep.subr.mxu0 0.0
      %3239 = vmatpush2.msra.mxu0 0.0
      %3240 = vmatprep.subr.mxu0 0.0
      %3241 = vmatpush2.msra.mxu0 0.0
      %3242 = vmatprep.subr.mxu0 0.0
      %3243 = vmatpush2.msra.mxu0 0.0
      %3244 = vmatprep.subr.mxu0 0.0
      %3245 = vmatpush2.msra.mxu0 0.0
      %3246 = vmatprep.subr.mxu0 0.0
      %3247 = vmatpush2.msra.mxu0 0.0
      %3248 = vmatprep.subr.mxu0 0.0
      %3249 = vmatpush2.msra.mxu0 0.0
      %3250 = vmatprep.mubr.f32.mxu0 0.0
      %v3251 = vand.u32 %v2564, 4294901760
      %v3252 = vsub.f32 %v2564, %v3251
      %v3253 = vand.u32 %v3252, 4294901760
      %3254 = vmatmul.mubr.f32.gmra.mxu0 %v3253
      %v3255 = vpop.f32.mrf.mxu0
      %v3256 = vadd.f32 %v3077, %v3255
      %v3257 = vpop.f32.mrf.mxu0
      %3258 = vmatprep.mubr.f32.mxu0 0.0
      %v3259 = vand.u32 %v2567, 4294901760
      %v3260 = vsub.f32 %v2567, %v3259
      %v3261 = vand.u32 %v3260, 4294901760
      %3262 = vmatmul.mubr.f32.gmra.mxu0 %v3261
      %v3263 = vpop.f32.mrf.mxu0
      %v3264 = vadd.f32 %v3084, %v3263
      %v3265 = vpop.f32.mrf.mxu0
      %3266 = vmatprep.mubr.f32.mxu0 0.0
      %v3267 = vand.u32 %v2570, 4294901760
      %v3268 = vsub.f32 %v2570, %v3267
      %v3269 = vand.u32 %v3268, 4294901760
      %3270 = vmatmul.mubr.f32.gmra.mxu0 %v3269
      %v3271 = vpop.f32.mrf.mxu0
      %v3272 = vadd.f32 %v3091, %v3271
      %v3273 = vpop.f32.mrf.mxu0
      %3274 = vmatprep.mubr.f32.mxu0 0.0
      %v3275 = vand.u32 %v2573, 4294901760
      %v3276 = vsub.f32 %v2573, %v3275
      %v3277 = vand.u32 %v3276, 4294901760
      %3278 = vmatmul.mubr.f32.gmra.mxu0 %v3277
      %v3279 = vpop.f32.mrf.mxu0
      %v3280 = vadd.f32 %v3098, %v3279
      %v3281 = vpop.f32.mrf.mxu0
      %3282 = vmatprep.mubr.f32.mxu0 0.0
      %v3283 = vand.u32 %v2576, 4294901760
      %v3284 = vsub.f32 %v2576, %v3283
      %v3285 = vand.u32 %v3284, 4294901760
      %3286 = vmatmul.mubr.f32.gmra.mxu0 %v3285
      %v3287 = vpop.f32.mrf.mxu0
      %v3288 = vadd.f32 %v3105, %v3287
      %v3289 = vpop.f32.mrf.mxu0
      %3290 = vmatprep.mubr.f32.mxu0 0.0
      %v3291 = vand.u32 %v2579, 4294901760
      %v3292 = vsub.f32 %v2579, %v3291
      %v3293 = vand.u32 %v3292, 4294901760
      %3294 = vmatmul.mubr.f32.gmra.mxu0 %v3293
      %v3295 = vpop.f32.mrf.mxu0
      %v3296 = vadd.f32 %v3112, %v3295
      %v3297 = vpop.f32.mrf.mxu0
      %3298 = vmatprep.mubr.f32.mxu0 0.0
      %v3299 = vand.u32 %v2582, 4294901760
      %v3300 = vsub.f32 %v2582, %v3299
      %v3301 = vand.u32 %v3300, 4294901760
      %3302 = vmatmul.mubr.f32.gmra.mxu0 %v3301
      %v3303 = vpop.f32.mrf.mxu0
      %v3304 = vadd.f32 %v3119, %v3303
      %v3305 = vpop.f32.mrf.mxu0
      %3306 = vmatprep.mubr.f32.mxu0 0.0
      %v3307 = vand.u32 %v2585, 4294901760
      %v3308 = vsub.f32 %v2585, %v3307
      %v3309 = vand.u32 %v3308, 4294901760
      %3310 = vmatmul.mubr.f32.gmra.mxu0 %v3309
      %v3311 = vpop.f32.mrf.mxu0
      %v3312 = vadd.f32 %v3126, %v3311
      %v3313 = vpop.f32.mrf.mxu0
      %3314 = vmatprep.mubr.f32.mxu0 0.0
      %v3315 = vand.u32 %v2588, 4294901760
      %v3316 = vsub.f32 %v2588, %v3315
      %v3317 = vand.u32 %v3316, 4294901760
      %3318 = vmatmul.mubr.f32.gmra.mxu0 %v3317
      %v3319 = vpop.f32.mrf.mxu0
      %v3320 = vadd.f32 %v3133, %v3319
      %v3321 = vpop.f32.mrf.mxu0
      %3322 = vmatprep.mubr.f32.mxu0 0.0
      %v3323 = vand.u32 %v2591, 4294901760
      %v3324 = vsub.f32 %v2591, %v3323
      %v3325 = vand.u32 %v3324, 4294901760
      %3326 = vmatmul.mubr.f32.gmra.mxu0 %v3325
      %v3327 = vpop.f32.mrf.mxu0
      %v3328 = vadd.f32 %v3140, %v3327
      %v3329 = vpop.f32.mrf.mxu0
      %3330 = vmatprep.mubr.f32.mxu0 0.0
      %v3331 = vand.u32 %v2594, 4294901760
      %v3332 = vsub.f32 %v2594, %v3331
      %v3333 = vand.u32 %v3332, 4294901760
      %3334 = vmatmul.mubr.f32.gmra.mxu0 %v3333
      %v3335 = vpop.f32.mrf.mxu0
      %v3336 = vadd.f32 %v3147, %v3335
      %v3337 = vpop.f32.mrf.mxu0
      %3338 = vmatprep.mubr.f32.mxu0 0.0
      %v3339 = vand.u32 %v2597, 4294901760
      %v3340 = vsub.f32 %v2597, %v3339
      %v3341 = vand.u32 %v3340, 4294901760
      %3342 = vmatmul.mubr.f32.gmra.mxu0 %v3341
      %v3343 = vpop.f32.mrf.mxu0
      %v3344 = vadd.f32 %v3154, %v3343
      %v3345 = vpop.f32.mrf.mxu0
      %3346 = vmatprep.mubr.f32.mxu0 0.0
      %v3347 = vand.u32 %v2600, 4294901760
      %v3348 = vsub.f32 %v2600, %v3347
      %v3349 = vand.u32 %v3348, 4294901760
      %3350 = vmatmul.mubr.f32.gmra.mxu0 %v3349
      %v3351 = vpop.f32.mrf.mxu0
      %v3352 = vadd.f32 %v3161, %v3351
      %v3353 = vpop.f32.mrf.mxu0
      %3354 = vmatprep.mubr.f32.mxu0 0.0
      %v3355 = vand.u32 %v2603, 4294901760
      %v3356 = vsub.f32 %v2603, %v3355
      %v3357 = vand.u32 %v3356, 4294901760
      %3358 = vmatmul.mubr.f32.gmra.mxu0 %v3357
      %v3359 = vpop.f32.mrf.mxu0
      %v3360 = vadd.f32 %v3168, %v3359
      %v3361 = vpop.f32.mrf.mxu0
      %3362 = vmatprep.mubr.f32.mxu0 0.0
      %v3363 = vand.u32 %v2606, 4294901760
      %v3364 = vsub.f32 %v2606, %v3363
      %v3365 = vand.u32 %v3364, 4294901760
      %3366 = vmatmul.mubr.f32.gmra.mxu0 %v3365
      %v3367 = vpop.f32.mrf.mxu0
      %v3368 = vadd.f32 %v3175, %v3367
      %v3369 = vpop.f32.mrf.mxu0
      %3370 = vmatprep.mubr.f32.mxu0 0.0
      %v3371 = vand.u32 %v2609, 4294901760
      %v3372 = vsub.f32 %v2609, %v3371
      %v3373 = vand.u32 %v3372, 4294901760
      %3374 = vmatmul.mubr.f32.gmra.mxu0 %v3373
      %v3375 = vpop.f32.mrf.mxu0
      %v3376 = vadd.f32 %v3182, %v3375
      %v3377 = vpop.f32.mrf.mxu0
      %3378 = vdwg.mxu0
      %3379 = vmatprep.subr.mxu0 0.0
      %3380 = vmatpush1.msra.mxu0 0.0
      %3381 = vmatprep.subr.mxu0 0.0
      %3382 = vmatpush1.msra.mxu0 0.0
      %3383 = vmatprep.subr.mxu0 0.0
      %3384 = vmatpush1.msra.mxu0 0.0
      %3385 = vmatprep.subr.mxu0 0.0
      %3386 = vmatpush1.msra.mxu0 0.0
      %3387 = vmatprep.subr.mxu0 0.0
      %3388 = vmatpush1.msra.mxu0 0.0
      %3389 = vmatprep.subr.mxu0 0.0
      %3390 = vmatpush1.msra.mxu0 0.0
      %3391 = vmatprep.subr.mxu0 0.0
      %3392 = vmatpush1.msra.mxu0 0.0
      %3393 = vmatprep.subr.mxu0 0.0
      %3394 = vmatpush1.msra.mxu0 0.0
      %3395 = vmatprep.subr.mxu0 0.0
      %3396 = vmatpush1.msra.mxu0 0.0
      %3397 = vmatprep.subr.mxu0 0.0
      %3398 = vmatpush1.msra.mxu0 0.0
      %3399 = vmatprep.subr.mxu0 0.0
      %3400 = vmatpush1.msra.mxu0 0.0
      %3401 = vmatprep.subr.mxu0 0.0
      %3402 = vmatpush1.msra.mxu0 0.0
      %3403 = vmatprep.subr.mxu0 0.0
      %3404 = vmatpush1.msra.mxu0 0.0
      %3405 = vmatprep.subr.mxu0 0.0
      %3406 = vmatpush1.msra.mxu0 0.0
      %3407 = vmatprep.subr.mxu0 0.0
      %3408 = vmatpush1.msra.mxu0 0.0
      %3409 = vmatprep.subr.mxu0 0.0
      %v3410 = vand.u32 %v2612, 4294901760
      %v3411 = vsub.f32 %v2612, %v3410
      %v3412 = vand.u32 %v3411, 4294901760
      %3413 = vmatpush1.msra.mxu0 %v3412
      %3414 = vmatprep.subr.mxu0 0.0
      %3415 = vmatpush2.msra.mxu0 0.0
      %3416 = vmatprep.subr.mxu0 0.0
      %3417 = vmatpush2.msra.mxu0 0.0
      %3418 = vmatprep.subr.mxu0 0.0
      %3419 = vmatpush2.msra.mxu0 0.0
      %3420 = vmatprep.subr.mxu0 0.0
      %3421 = vmatpush2.msra.mxu0 0.0
      %3422 = vmatprep.subr.mxu0 0.0
      %3423 = vmatpush2.msra.mxu0 0.0
      %3424 = vmatprep.subr.mxu0 0.0
      %3425 = vmatpush2.msra.mxu0 0.0
      %3426 = vmatprep.subr.mxu0 0.0
      %3427 = vmatpush2.msra.mxu0 0.0
      %3428 = vmatprep.subr.mxu0 0.0
      %3429 = vmatpush2.msra.mxu0 0.0
      %3430 = vmatprep.subr.mxu0 0.0
      %3431 = vmatpush2.msra.mxu0 0.0
      %3432 = vmatprep.subr.mxu0 0.0
      %3433 = vmatpush2.msra.mxu0 0.0
      %3434 = vmatprep.subr.mxu0 0.0
      %3435 = vmatpush2.msra.mxu0 0.0
      %3436 = vmatprep.subr.mxu0 0.0
      %3437 = vmatpush2.msra.mxu0 0.0
      %3438 = vmatprep.subr.mxu0 0.0
      %3439 = vmatpush2.msra.mxu0 0.0
      %3440 = vmatprep.subr.mxu0 0.0
      %3441 = vmatpush2.msra.mxu0 0.0
      %3442 = vmatprep.subr.mxu0 0.0
      %3443 = vmatpush2.msra.mxu0 0.0
      %3444 = vmatprep.subr.mxu0 0.0
      %3445 = vmatpush2.msra.mxu0 0.0
      %3446 = vmatprep.mubr.f32.mxu0 0.0
      %v3447 = vand.u32 %v2564, 4294901760
      %3448 = vmatmul.mubr.f32.gmra.mxu0 %v3447
      %v3449 = vpop.f32.mrf.mxu0
      %v3450 = vadd.f32 %v3256, %v3449
      %v3451 = vpop.f32.mrf.mxu0
      %3452 = vmatprep.mubr.f32.mxu0 0.0
      %v3453 = vand.u32 %v2567, 4294901760
      %3454 = vmatmul.mubr.f32.gmra.mxu0 %v3453
      %v3455 = vpop.f32.mrf.mxu0
      %v3456 = vadd.f32 %v3264, %v3455
      %v3457 = vpop.f32.mrf.mxu0
      %3458 = vmatprep.mubr.f32.mxu0 0.0
      %v3459 = vand.u32 %v2570, 4294901760
      %3460 = vmatmul.mubr.f32.gmra.mxu0 %v3459
      %v3461 = vpop.f32.mrf.mxu0
      %v3462 = vadd.f32 %v3272, %v3461
      %v3463 = vpop.f32.mrf.mxu0
      %3464 = vmatprep.mubr.f32.mxu0 0.0
      %v3465 = vand.u32 %v2573, 4294901760
      %3466 = vmatmul.mubr.f32.gmra.mxu0 %v3465
      %v3467 = vpop.f32.mrf.mxu0
      %v3468 = vadd.f32 %v3280, %v3467
      %v3469 = vpop.f32.mrf.mxu0
      %3470 = vmatprep.mubr.f32.mxu0 0.0
      %v3471 = vand.u32 %v2576, 4294901760
      %3472 = vmatmul.mubr.f32.gmra.mxu0 %v3471
      %v3473 = vpop.f32.mrf.mxu0
      %v3474 = vadd.f32 %v3288, %v3473
      %v3475 = vpop.f32.mrf.mxu0
      %3476 = vmatprep.mubr.f32.mxu0 0.0
      %v3477 = vand.u32 %v2579, 4294901760
      %3478 = vmatmul.mubr.f32.gmra.mxu0 %v3477
      %v3479 = vpop.f32.mrf.mxu0
      %v3480 = vadd.f32 %v3296, %v3479
      %v3481 = vpop.f32.mrf.mxu0
      %3482 = vmatprep.mubr.f32.mxu0 0.0
      %v3483 = vand.u32 %v2582, 4294901760
      %3484 = vmatmul.mubr.f32.gmra.mxu0 %v3483
      %v3485 = vpop.f32.mrf.mxu0
      %v3486 = vadd.f32 %v3304, %v3485
      %v3487 = vpop.f32.mrf.mxu0
      %3488 = vmatprep.mubr.f32.mxu0 0.0
      %v3489 = vand.u32 %v2585, 4294901760
      %3490 = vmatmul.mubr.f32.gmra.mxu0 %v3489
      %v3491 = vpop.f32.mrf.mxu0
      %v3492 = vadd.f32 %v3312, %v3491
      %v3493 = vpop.f32.mrf.mxu0
      %3494 = vmatprep.mubr.f32.mxu0 0.0
      %v3495 = vand.u32 %v2588, 4294901760
      %3496 = vmatmul.mubr.f32.gmra.mxu0 %v3495
      %v3497 = vpop.f32.mrf.mxu0
      %v3498 = vadd.f32 %v3320, %v3497
      %v3499 = vpop.f32.mrf.mxu0
      %3500 = vmatprep.mubr.f32.mxu0 0.0
      %v3501 = vand.u32 %v2591, 4294901760
      %3502 = vmatmul.mubr.f32.gmra.mxu0 %v3501
      %v3503 = vpop.f32.mrf.mxu0
      %v3504 = vadd.f32 %v3328, %v3503
      %v3505 = vpop.f32.mrf.mxu0
      %3506 = vmatprep.mubr.f32.mxu0 0.0
      %v3507 = vand.u32 %v2594, 4294901760
      %3508 = vmatmul.mubr.f32.gmra.mxu0 %v3507
      %v3509 = vpop.f32.mrf.mxu0
      %v3510 = vadd.f32 %v3336, %v3509
      %v3511 = vpop.f32.mrf.mxu0
      %3512 = vmatprep.mubr.f32.mxu0 0.0
      %v3513 = vand.u32 %v2597, 4294901760
      %3514 = vmatmul.mubr.f32.gmra.mxu0 %v3513
      %v3515 = vpop.f32.mrf.mxu0
      %v3516 = vadd.f32 %v3344, %v3515
      %v3517 = vpop.f32.mrf.mxu0
      %3518 = vmatprep.mubr.f32.mxu0 0.0
      %v3519 = vand.u32 %v2600, 4294901760
      %3520 = vmatmul.mubr.f32.gmra.mxu0 %v3519
      %v3521 = vpop.f32.mrf.mxu0
      %v3522 = vadd.f32 %v3352, %v3521
      %v3523 = vpop.f32.mrf.mxu0
      %3524 = vmatprep.mubr.f32.mxu0 0.0
      %v3525 = vand.u32 %v2603, 4294901760
      %3526 = vmatmul.mubr.f32.gmra.mxu0 %v3525
      %v3527 = vpop.f32.mrf.mxu0
      %v3528 = vadd.f32 %v3360, %v3527
      %v3529 = vpop.f32.mrf.mxu0
      %3530 = vmatprep.mubr.f32.mxu0 0.0
      %v3531 = vand.u32 %v2606, 4294901760
      %3532 = vmatmul.mubr.f32.gmra.mxu0 %v3531
      %v3533 = vpop.f32.mrf.mxu0
      %v3534 = vadd.f32 %v3368, %v3533
      %v3535 = vpop.f32.mrf.mxu0
      %3536 = vmatprep.mubr.f32.mxu0 0.0
      %v3537 = vand.u32 %v2609, 4294901760
      %3538 = vmatmul.mubr.f32.gmra.mxu0 %v3537
      %v3539 = vpop.f32.mrf.mxu0
      %v3540 = vadd.f32 %v3376, %v3539
      %v3541 = vpop.f32.mrf.mxu0
      %3542 = vdwg.mxu0
      %3543 = vmatprep.subr.mxu0 0.0
      %3544 = vmatpush1.msra.mxu0 0.0
      %3545 = vmatprep.subr.mxu0 0.0
      %3546 = vmatpush1.msra.mxu0 0.0
      %3547 = vmatprep.subr.mxu0 0.0
      %3548 = vmatpush1.msra.mxu0 0.0
      %3549 = vmatprep.subr.mxu0 0.0
      %3550 = vmatpush1.msra.mxu0 0.0
      %3551 = vmatprep.subr.mxu0 0.0
      %3552 = vmatpush1.msra.mxu0 0.0
      %3553 = vmatprep.subr.mxu0 0.0
      %3554 = vmatpush1.msra.mxu0 0.0
      %3555 = vmatprep.subr.mxu0 0.0
      %3556 = vmatpush1.msra.mxu0 0.0
      %3557 = vmatprep.subr.mxu0 0.0
      %3558 = vmatpush1.msra.mxu0 0.0
      %3559 = vmatprep.subr.mxu0 0.0
      %3560 = vmatpush1.msra.mxu0 0.0
      %3561 = vmatprep.subr.mxu0 0.0
      %3562 = vmatpush1.msra.mxu0 0.0
      %3563 = vmatprep.subr.mxu0 0.0
      %3564 = vmatpush1.msra.mxu0 0.0
      %3565 = vmatprep.subr.mxu0 0.0
      %3566 = vmatpush1.msra.mxu0 0.0
      %3567 = vmatprep.subr.mxu0 0.0
      %3568 = vmatpush1.msra.mxu0 0.0
      %3569 = vmatprep.subr.mxu0 0.0
      %3570 = vmatpush1.msra.mxu0 0.0
      %3571 = vmatprep.subr.mxu0 0.0
      %3572 = vmatpush1.msra.mxu0 0.0
      %3573 = vmatprep.subr.mxu0 0.0
      %v3574 = vand.u32 %v2612, 4294901760
      %3575 = vmatpush1.msra.mxu0 %v3574
      %3576 = vmatprep.subr.mxu0 0.0
      %3577 = vmatpush2.msra.mxu0 0.0
      %3578 = vmatprep.subr.mxu0 0.0
      %3579 = vmatpush2.msra.mxu0 0.0
      %3580 = vmatprep.subr.mxu0 0.0
      %3581 = vmatpush2.msra.mxu0 0.0
      %3582 = vmatprep.subr.mxu0 0.0
      %3583 = vmatpush2.msra.mxu0 0.0
      %3584 = vmatprep.subr.mxu0 0.0
      %3585 = vmatpush2.msra.mxu0 0.0
      %3586 = vmatprep.subr.mxu0 0.0
      %3587 = vmatpush2.msra.mxu0 0.0
      %3588 = vmatprep.subr.mxu0 0.0
      %3589 = vmatpush2.msra.mxu0 0.0
      %3590 = vmatprep.subr.mxu0 0.0
      %3591 = vmatpush2.msra.mxu0 0.0
      %3592 = vmatprep.subr.mxu0 0.0
      %3593 = vmatpush2.msra.mxu0 0.0
      %3594 = vmatprep.subr.mxu0 0.0
      %3595 = vmatpush2.msra.mxu0 0.0
      %3596 = vmatprep.subr.mxu0 0.0
      %3597 = vmatpush2.msra.mxu0 0.0
      %3598 = vmatprep.subr.mxu0 0.0
      %3599 = vmatpush2.msra.mxu0 0.0
      %3600 = vmatprep.subr.mxu0 0.0
      %3601 = vmatpush2.msra.mxu0 0.0
      %3602 = vmatprep.subr.mxu0 0.0
      %3603 = vmatpush2.msra.mxu0 0.0
      %3604 = vmatprep.subr.mxu0 0.0
      %3605 = vmatpush2.msra.mxu0 0.0
      %3606 = vmatprep.subr.mxu0 0.0
      %3607 = vmatpush2.msra.mxu0 0.0
      %3608 = vmatprep.mubr.f32.mxu0 0.0
      %v3609 = vand.u32 %v2564, 4294901760
      %3610 = vmatmul.mubr.f32.gmra.mxu0 %v3609
      %v3611 = vpop.f32.mrf.mxu0
      %v3612 = vadd.f32 %v3450, %v3611
      %v3613 = vpop.f32.mrf.mxu0
      %3614 = vmatprep.mubr.f32.mxu0 0.0
      %v3615 = vand.u32 %v2567, 4294901760
      %3616 = vmatmul.mubr.f32.gmra.mxu0 %v3615
      %v3617 = vpop.f32.mrf.mxu0
      %v3618 = vadd.f32 %v3456, %v3617
      %v3619 = vpop.f32.mrf.mxu0
      %3620 = vmatprep.mubr.f32.mxu0 0.0
      %v3621 = vand.u32 %v2570, 4294901760
      %3622 = vmatmul.mubr.f32.gmra.mxu0 %v3621
      %v3623 = vpop.f32.mrf.mxu0
      %v3624 = vadd.f32 %v3462, %v3623
      %v3625 = vpop.f32.mrf.mxu0
      %3626 = vmatprep.mubr.f32.mxu0 0.0
      %v3627 = vand.u32 %v2573, 4294901760
      %3628 = vmatmul.mubr.f32.gmra.mxu0 %v3627
      %v3629 = vpop.f32.mrf.mxu0
      %v3630 = vadd.f32 %v3468, %v3629
      %v3631 = vpop.f32.mrf.mxu0
      %3632 = vmatprep.mubr.f32.mxu0 0.0
      %v3633 = vand.u32 %v2576, 4294901760
      %3634 = vmatmul.mubr.f32.gmra.mxu0 %v3633
      %v3635 = vpop.f32.mrf.mxu0
      %v3636 = vadd.f32 %v3474, %v3635
      %v3637 = vpop.f32.mrf.mxu0
      %3638 = vmatprep.mubr.f32.mxu0 0.0
      %v3639 = vand.u32 %v2579, 4294901760
      %3640 = vmatmul.mubr.f32.gmra.mxu0 %v3639
      %v3641 = vpop.f32.mrf.mxu0
      %v3642 = vadd.f32 %v3480, %v3641
      %v3643 = vpop.f32.mrf.mxu0
      %3644 = vmatprep.mubr.f32.mxu0 0.0
      %v3645 = vand.u32 %v2582, 4294901760
      %3646 = vmatmul.mubr.f32.gmra.mxu0 %v3645
      %v3647 = vpop.f32.mrf.mxu0
      %v3648 = vadd.f32 %v3486, %v3647
      %v3649 = vpop.f32.mrf.mxu0
      %3650 = vmatprep.mubr.f32.mxu0 0.0
      %v3651 = vand.u32 %v2585, 4294901760
      %3652 = vmatmul.mubr.f32.gmra.mxu0 %v3651
      %v3653 = vpop.f32.mrf.mxu0
      %v3654 = vadd.f32 %v3492, %v3653
      %v3655 = vpop.f32.mrf.mxu0
      %3656 = vmatprep.mubr.f32.mxu0 0.0
      %v3657 = vand.u32 %v2588, 4294901760
      %3658 = vmatmul.mubr.f32.gmra.mxu0 %v3657
      %v3659 = vpop.f32.mrf.mxu0
      %v3660 = vadd.f32 %v3498, %v3659
      %v3661 = vpop.f32.mrf.mxu0
      %3662 = vmatprep.mubr.f32.mxu0 0.0
      %v3663 = vand.u32 %v2591, 4294901760
      %3664 = vmatmul.mubr.f32.gmra.mxu0 %v3663
      %v3665 = vpop.f32.mrf.mxu0
      %v3666 = vadd.f32 %v3504, %v3665
      %v3667 = vpop.f32.mrf.mxu0
      %3668 = vmatprep.mubr.f32.mxu0 0.0
      %v3669 = vand.u32 %v2594, 4294901760
      %3670 = vmatmul.mubr.f32.gmra.mxu0 %v3669
      %v3671 = vpop.f32.mrf.mxu0
      %v3672 = vadd.f32 %v3510, %v3671
      %v3673 = vpop.f32.mrf.mxu0
      %3674 = vmatprep.mubr.f32.mxu0 0.0
      %v3675 = vand.u32 %v2597, 4294901760
      %3676 = vmatmul.mubr.f32.gmra.mxu0 %v3675
      %v3677 = vpop.f32.mrf.mxu0
      %v3678 = vadd.f32 %v3516, %v3677
      %v3679 = vpop.f32.mrf.mxu0
      %3680 = vmatprep.mubr.f32.mxu0 0.0
      %v3681 = vand.u32 %v2600, 4294901760
      %3682 = vmatmul.mubr.f32.gmra.mxu0 %v3681
      %v3683 = vpop.f32.mrf.mxu0
      %v3684 = vadd.f32 %v3522, %v3683
      %v3685 = vpop.f32.mrf.mxu0
      %3686 = vmatprep.mubr.f32.mxu0 0.0
      %v3687 = vand.u32 %v2603, 4294901760
      %3688 = vmatmul.mubr.f32.gmra.mxu0 %v3687
      %v3689 = vpop.f32.mrf.mxu0
      %v3690 = vadd.f32 %v3528, %v3689
      %v3691 = vpop.f32.mrf.mxu0
      %3692 = vmatprep.mubr.f32.mxu0 0.0
      %v3693 = vand.u32 %v2606, 4294901760
      %3694 = vmatmul.mubr.f32.gmra.mxu0 %v3693
      %v3695 = vpop.f32.mrf.mxu0
      %v3696 = vadd.f32 %v3534, %v3695
      %v3697 = vpop.f32.mrf.mxu0
      %3698 = vmatprep.mubr.f32.mxu0 0.0
      %v3699 = vand.u32 %v2609, 4294901760
      %3700 = vmatmul.mubr.f32.gmra.mxu0 %v3699
      %v3701 = vpop.f32.mrf.mxu0
      %v3702 = vadd.f32 %v3540, %v3701
      %v3703 = vpop.f32.mrf.mxu0
      %3704 = vdwg.mxu0
      %v3705 = vadd.f32 %v2452, %v3612
      %v3706 = vadd.f32 %v2458, %v3618
      %v3707 = vadd.f32 %v2464, %v3624
      %v3708 = vadd.f32 %v2470, %v3630
      %v3709 = vadd.f32 %v2476, %v3636
      %v3710 = vadd.f32 %v2482, %v3642
      %v3711 = vadd.f32 %v2488, %v3648
      %v3712 = vadd.f32 %v2494, %v3654
      %v3713 = vadd.f32 %v2500, %v3660
      %v3714 = vadd.f32 %v2506, %v3666
      %v3715 = vadd.f32 %v2512, %v3672
      %v3716 = vadd.f32 %v2518, %v3678
      %v3717 = vadd.f32 %v2524, %v3684
      %v3718 = vadd.f32 %v2530, %v3690
      %v3719 = vadd.f32 %v2536, %v3696
      %v3720 = vadd.f32 %v2542, %v3702
      %s3721 = sadd.s32 %s221, 1
      %s3722 = smul.u32 %s3721, 24
      %s3723 = scalar_lea.vmem %s210, %s3722
      %v3724 = vld [vmem:[%s3723] sm:$0xff]
      %v3725 = vld [vmem:[%s3723 + $0x8] sm:$0xff]
      %v3726 = vld [vmem:[%s3723 + $0x18] sm:$0xff]
      %v3727 = vld [vmem:[%s3723 + $0x20] sm:$0xff]
      %v3728 = vld [vmem:[%s3723 + $0x30] sm:$0xff]
      %v3729 = vld [vmem:[%s3723 + $0x38] sm:$0xff]
      %v3730 = vld [vmem:[%s3723 + $0x48] sm:$0xff]
      %v3731 = vld [vmem:[%s3723 + $0x50] sm:$0xff]
      %v3732 = vld [vmem:[%s3723 + $0x60] sm:$0xff]
      %v3733 = vld [vmem:[%s3723 + $0x68] sm:$0xff]
      %v3734 = vld [vmem:[%s3723 + $0x78] sm:$0xff]
      %v3735 = vld [vmem:[%s3723 + $0x80] sm:$0xff]
      %v3736 = vld [vmem:[%s3723 + $0x90] sm:$0xff]
      %v3737 = vld [vmem:[%s3723 + $0x98] sm:$0xff]
      %v3738 = vld [vmem:[%s3723 + $0xa8] sm:$0xff]
      %v3739 = vld [vmem:[%s3723 + $0xb0] sm:$0xff]
      %s3740 = scalar_lea.vmem %s1, 12
      %v3741 = vld [vmem:[%s3740] sm:$0xf]
      %v3743 = vsel %vm259, %v3724, 0
      %v3746 = vsel %vm259, %v3725, 0
      %v3749 = vsel %vm259, %v3726, 0
      %v3752 = vsel %vm259, %v3727, 0
      %v3755 = vsel %vm259, %v3728, 0
      %v3758 = vsel %vm259, %v3729, 0
      %v3761 = vsel %vm259, %v3730, 0
      %v3764 = vsel %vm259, %v3731, 0
      %v3767 = vsel %vm259, %v3732, 0
      %v3770 = vsel %vm259, %v3733, 0
      %v3773 = vsel %vm259, %v3734, 0
      %v3776 = vsel %vm259, %v3735, 0
      %v3779 = vsel %vm259, %v3736, 0
      %v3782 = vsel %vm259, %v3737, 0
      %v3785 = vsel %vm259, %v3738, 0
      %v3788 = vsel %vm259, %v3739, 0
      %v3791 = vsel %vm308, %v3741, 0
      %3793 = vmatprep.subr.mxu0 0.0
      %3794 = vmatpush1.msra.mxu0 0.0
      %3795 = vmatprep.subr.mxu0 0.0
      %3796 = vmatpush1.msra.mxu0 0.0
      %3797 = vmatprep.subr.mxu0 0.0
      %3798 = vmatpush1.msra.mxu0 0.0
      %3799 = vmatprep.subr.mxu0 0.0
      %3800 = vmatpush1.msra.mxu0 0.0
      %3801 = vmatprep.subr.mxu0 0.0
      %3802 = vmatpush1.msra.mxu0 0.0
      %3803 = vmatprep.subr.mxu0 0.0
      %3804 = vmatpush1.msra.mxu0 0.0
      %3805 = vmatprep.subr.mxu0 0.0
      %3806 = vmatpush1.msra.mxu0 0.0
      %3807 = vmatprep.subr.mxu0 0.0
      %3808 = vmatpush1.msra.mxu0 0.0
      %3809 = vmatprep.subr.mxu0 0.0
      %3810 = vmatpush1.msra.mxu0 0.0
      %3811 = vmatprep.subr.mxu0 0.0
      %3812 = vmatpush1.msra.mxu0 0.0
      %3813 = vmatprep.subr.mxu0 0.0
      %3814 = vmatpush1.msra.mxu0 0.0
      %3815 = vmatprep.subr.mxu0 0.0
      %3816 = vmatpush1.msra.mxu0 0.0
      %3817 = vmatprep.subr.mxu0 0.0
      %3818 = vmatpush1.msra.mxu0 0.0
      %3819 = vmatprep.subr.mxu0 0.0
      %3820 = vmatpush1.msra.mxu0 0.0
      %3821 = vmatprep.subr.mxu0 0.0
      %3822 = vmatpush1.msra.mxu0 0.0
      %3823 = vmatprep.subr.mxu0 0.0
      %v3824 = vand.u32 %v3791, 4294901760
      %3825 = vmatpush1.msra.mxu0 %v3824
      %3826 = vmatprep.subr.mxu0 0.0
      %3827 = vmatpush2.msra.mxu0 0.0
      %3828 = vmatprep.subr.mxu0 0.0
      %3829 = vmatpush2.msra.mxu0 0.0
      %3830 = vmatprep.subr.mxu0 0.0
      %3831 = vmatpush2.msra.mxu0 0.0
      %3832 = vmatprep.subr.mxu0 0.0
      %3833 = vmatpush2.msra.mxu0 0.0
      %3834 = vmatprep.subr.mxu0 0.0
      %3835 = vmatpush2.msra.mxu0 0.0
      %3836 = vmatprep.subr.mxu0 0.0
      %3837 = vmatpush2.msra.mxu0 0.0
      %3838 = vmatprep.subr.mxu0 0.0
      %3839 = vmatpush2.msra.mxu0 0.0
      %3840 = vmatprep.subr.mxu0 0.0
      %3841 = vmatpush2.msra.mxu0 0.0
      %3842 = vmatprep.subr.mxu0 0.0
      %3843 = vmatpush2.msra.mxu0 0.0
      %3844 = vmatprep.subr.mxu0 0.0
      %3845 = vmatpush2.msra.mxu0 0.0
      %3846 = vmatprep.subr.mxu0 0.0
      %3847 = vmatpush2.msra.mxu0 0.0
      %3848 = vmatprep.subr.mxu0 0.0
      %3849 = vmatpush2.msra.mxu0 0.0
      %3850 = vmatprep.subr.mxu0 0.0
      %3851 = vmatpush2.msra.mxu0 0.0
      %3852 = vmatprep.subr.mxu0 0.0
      %3853 = vmatpush2.msra.mxu0 0.0
      %3854 = vmatprep.subr.mxu0 0.0
      %3855 = vmatpush2.msra.mxu0 0.0
      %3856 = vmatprep.subr.mxu0 0.0
      %3857 = vmatpush2.msra.mxu0 0.0
      %3858 = vmatprep.mubr.f32.mxu0 0.0
      %v3859 = vand.u32 %v3743, 4294901760
      %v3860 = vsub.f32 %v3743, %v3859
      %v3861 = vand.u32 %v3860, 4294901760
      %v3862 = vsub.f32 %v3860, %v3861
      %v3863 = vand.u32 %v3862, 4294901760
      %3864 = vmatmul.mubr.f32.gmra.mxu0 %v3863
      %v3865 = vpop.f32.mrf.mxu0
      %v3866 = vadd.f32 0.0, %v3865
      %v3867 = vpop.f32.mrf.mxu0
      %3868 = vmatprep.mubr.f32.mxu0 0.0
      %v3869 = vand.u32 %v3746, 4294901760
      %v3870 = vsub.f32 %v3746, %v3869
      %v3871 = vand.u32 %v3870, 4294901760
      %v3872 = vsub.f32 %v3870, %v3871
      %v3873 = vand.u32 %v3872, 4294901760
      %3874 = vmatmul.mubr.f32.gmra.mxu0 %v3873
      %v3875 = vpop.f32.mrf.mxu0
      %v3876 = vadd.f32 0.0, %v3875
      %v3877 = vpop.f32.mrf.mxu0
      %3878 = vmatprep.mubr.f32.mxu0 0.0
      %v3879 = vand.u32 %v3749, 4294901760
      %v3880 = vsub.f32 %v3749, %v3879
      %v3881 = vand.u32 %v3880, 4294901760
      %v3882 = vsub.f32 %v3880, %v3881
      %v3883 = vand.u32 %v3882, 4294901760
      %3884 = vmatmul.mubr.f32.gmra.mxu0 %v3883
      %v3885 = vpop.f32.mrf.mxu0
      %v3886 = vadd.f32 0.0, %v3885
      %v3887 = vpop.f32.mrf.mxu0
      %3888 = vmatprep.mubr.f32.mxu0 0.0
      %v3889 = vand.u32 %v3752, 4294901760
      %v3890 = vsub.f32 %v3752, %v3889
      %v3891 = vand.u32 %v3890, 4294901760
      %v3892 = vsub.f32 %v3890, %v3891
      %v3893 = vand.u32 %v3892, 4294901760
      %3894 = vmatmul.mubr.f32.gmra.mxu0 %v3893
      %v3895 = vpop.f32.mrf.mxu0
      %v3896 = vadd.f32 0.0, %v3895
      %v3897 = vpop.f32.mrf.mxu0
      %3898 = vmatprep.mubr.f32.mxu0 0.0
      %v3899 = vand.u32 %v3755, 4294901760
      %v3900 = vsub.f32 %v3755, %v3899
      %v3901 = vand.u32 %v3900, 4294901760
      %v3902 = vsub.f32 %v3900, %v3901
      %v3903 = vand.u32 %v3902, 4294901760
      %3904 = vmatmul.mubr.f32.gmra.mxu0 %v3903
      %v3905 = vpop.f32.mrf.mxu0
      %v3906 = vadd.f32 0.0, %v3905
      %v3907 = vpop.f32.mrf.mxu0
      %3908 = vmatprep.mubr.f32.mxu0 0.0
      %v3909 = vand.u32 %v3758, 4294901760
      %v3910 = vsub.f32 %v3758, %v3909
      %v3911 = vand.u32 %v3910, 4294901760
      %v3912 = vsub.f32 %v3910, %v3911
      %v3913 = vand.u32 %v3912, 4294901760
      %3914 = vmatmul.mubr.f32.gmra.mxu0 %v3913
      %v3915 = vpop.f32.mrf.mxu0
      %v3916 = vadd.f32 0.0, %v3915
      %v3917 = vpop.f32.mrf.mxu0
      %3918 = vmatprep.mubr.f32.mxu0 0.0
      %v3919 = vand.u32 %v3761, 4294901760
      %v3920 = vsub.f32 %v3761, %v3919
      %v3921 = vand.u32 %v3920, 4294901760
      %v3922 = vsub.f32 %v3920, %v3921
      %v3923 = vand.u32 %v3922, 4294901760
      %3924 = vmatmul.mubr.f32.gmra.mxu0 %v3923
      %v3925 = vpop.f32.mrf.mxu0
      %v3926 = vadd.f32 0.0, %v3925
      %v3927 = vpop.f32.mrf.mxu0
      %3928 = vmatprep.mubr.f32.mxu0 0.0
      %v3929 = vand.u32 %v3764, 4294901760
      %v3930 = vsub.f32 %v3764, %v3929
      %v3931 = vand.u32 %v3930, 4294901760
      %v3932 = vsub.f32 %v3930, %v3931
      %v3933 = vand.u32 %v3932, 4294901760
      %3934 = vmatmul.mubr.f32.gmra.mxu0 %v3933
      %v3935 = vpop.f32.mrf.mxu0
      %v3936 = vadd.f32 0.0, %v3935
      %v3937 = vpop.f32.mrf.mxu0
      %3938 = vmatprep.mubr.f32.mxu0 0.0
      %v3939 = vand.u32 %v3767, 4294901760
      %v3940 = vsub.f32 %v3767, %v3939
      %v3941 = vand.u32 %v3940, 4294901760
      %v3942 = vsub.f32 %v3940, %v3941
      %v3943 = vand.u32 %v3942, 4294901760
      %3944 = vmatmul.mubr.f32.gmra.mxu0 %v3943
      %v3945 = vpop.f32.mrf.mxu0
      %v3946 = vadd.f32 0.0, %v3945
      %v3947 = vpop.f32.mrf.mxu0
      %3948 = vmatprep.mubr.f32.mxu0 0.0
      %v3949 = vand.u32 %v3770, 4294901760
      %v3950 = vsub.f32 %v3770, %v3949
      %v3951 = vand.u32 %v3950, 4294901760
      %v3952 = vsub.f32 %v3950, %v3951
      %v3953 = vand.u32 %v3952, 4294901760
      %3954 = vmatmul.mubr.f32.gmra.mxu0 %v3953
      %v3955 = vpop.f32.mrf.mxu0
      %v3956 = vadd.f32 0.0, %v3955
      %v3957 = vpop.f32.mrf.mxu0
      %3958 = vmatprep.mubr.f32.mxu0 0.0
      %v3959 = vand.u32 %v3773, 4294901760
      %v3960 = vsub.f32 %v3773, %v3959
      %v3961 = vand.u32 %v3960, 4294901760
      %v3962 = vsub.f32 %v3960, %v3961
      %v3963 = vand.u32 %v3962, 4294901760
      %3964 = vmatmul.mubr.f32.gmra.mxu0 %v3963
      %v3965 = vpop.f32.mrf.mxu0
      %v3966 = vadd.f32 0.0, %v3965
      %v3967 = vpop.f32.mrf.mxu0
      %3968 = vmatprep.mubr.f32.mxu0 0.0
      %v3969 = vand.u32 %v3776, 4294901760
      %v3970 = vsub.f32 %v3776, %v3969
      %v3971 = vand.u32 %v3970, 4294901760
      %v3972 = vsub.f32 %v3970, %v3971
      %v3973 = vand.u32 %v3972, 4294901760
      %3974 = vmatmul.mubr.f32.gmra.mxu0 %v3973
      %v3975 = vpop.f32.mrf.mxu0
      %v3976 = vadd.f32 0.0, %v3975
      %v3977 = vpop.f32.mrf.mxu0
      %3978 = vmatprep.mubr.f32.mxu0 0.0
      %v3979 = vand.u32 %v3779, 4294901760
      %v3980 = vsub.f32 %v3779, %v3979
      %v3981 = vand.u32 %v3980, 4294901760
      %v3982 = vsub.f32 %v3980, %v3981
      %v3983 = vand.u32 %v3982, 4294901760
      %3984 = vmatmul.mubr.f32.gmra.mxu0 %v3983
      %v3985 = vpop.f32.mrf.mxu0
      %v3986 = vadd.f32 0.0, %v3985
      %v3987 = vpop.f32.mrf.mxu0
      %3988 = vmatprep.mubr.f32.mxu0 0.0
      %v3989 = vand.u32 %v3782, 4294901760
      %v3990 = vsub.f32 %v3782, %v3989
      %v3991 = vand.u32 %v3990, 4294901760
      %v3992 = vsub.f32 %v3990, %v3991
      %v3993 = vand.u32 %v3992, 4294901760
      %3994 = vmatmul.mubr.f32.gmra.mxu0 %v3993
      %v3995 = vpop.f32.mrf.mxu0
      %v3996 = vadd.f32 0.0, %v3995
      %v3997 = vpop.f32.mrf.mxu0
      %3998 = vmatprep.mubr.f32.mxu0 0.0
      %v3999 = vand.u32 %v3785, 4294901760
      %v4000 = vsub.f32 %v3785, %v3999
      %v4001 = vand.u32 %v4000, 4294901760
      %v4002 = vsub.f32 %v4000, %v4001
      %v4003 = vand.u32 %v4002, 4294901760
      %4004 = vmatmul.mubr.f32.gmra.mxu0 %v4003
      %v4005 = vpop.f32.mrf.mxu0
      %v4006 = vadd.f32 0.0, %v4005
      %v4007 = vpop.f32.mrf.mxu0
      %4008 = vmatprep.mubr.f32.mxu0 0.0
      %v4009 = vand.u32 %v3788, 4294901760
      %v4010 = vsub.f32 %v3788, %v4009
      %v4011 = vand.u32 %v4010, 4294901760
      %v4012 = vsub.f32 %v4010, %v4011
      %v4013 = vand.u32 %v4012, 4294901760
      %4014 = vmatmul.mubr.f32.gmra.mxu0 %v4013
      %v4015 = vpop.f32.mrf.mxu0
      %v4016 = vadd.f32 0.0, %v4015
      %v4017 = vpop.f32.mrf.mxu0
      %4018 = vdwg.mxu0
      %4019 = vmatprep.subr.mxu0 0.0
      %4020 = vmatpush1.msra.mxu0 0.0
      %4021 = vmatprep.subr.mxu0 0.0
      %4022 = vmatpush1.msra.mxu0 0.0
      %4023 = vmatprep.subr.mxu0 0.0
      %4024 = vmatpush1.msra.mxu0 0.0
      %4025 = vmatprep.subr.mxu0 0.0
      %4026 = vmatpush1.msra.mxu0 0.0
      %4027 = vmatprep.subr.mxu0 0.0
      %4028 = vmatpush1.msra.mxu0 0.0
      %4029 = vmatprep.subr.mxu0 0.0
      %4030 = vmatpush1.msra.mxu0 0.0
      %4031 = vmatprep.subr.mxu0 0.0
      %4032 = vmatpush1.msra.mxu0 0.0
      %4033 = vmatprep.subr.mxu0 0.0
      %4034 = vmatpush1.msra.mxu0 0.0
      %4035 = vmatprep.subr.mxu0 0.0
      %4036 = vmatpush1.msra.mxu0 0.0
      %4037 = vmatprep.subr.mxu0 0.0
      %4038 = vmatpush1.msra.mxu0 0.0
      %4039 = vmatprep.subr.mxu0 0.0
      %4040 = vmatpush1.msra.mxu0 0.0
      %4041 = vmatprep.subr.mxu0 0.0
      %4042 = vmatpush1.msra.mxu0 0.0
      %4043 = vmatprep.subr.mxu0 0.0
      %4044 = vmatpush1.msra.mxu0 0.0
      %4045 = vmatprep.subr.mxu0 0.0
      %4046 = vmatpush1.msra.mxu0 0.0
      %4047 = vmatprep.subr.mxu0 0.0
      %4048 = vmatpush1.msra.mxu0 0.0
      %4049 = vmatprep.subr.mxu0 0.0
      %v4050 = vand.u32 %v3791, 4294901760
      %v4051 = vsub.f32 %v3791, %v4050
      %v4052 = vand.u32 %v4051, 4294901760
      %v4053 = vsub.f32 %v4051, %v4052
      %v4054 = vand.u32 %v4053, 4294901760
      %4055 = vmatpush1.msra.mxu0 %v4054
      %4056 = vmatprep.subr.mxu0 0.0
      %4057 = vmatpush2.msra.mxu0 0.0
      %4058 = vmatprep.subr.mxu0 0.0
      %4059 = vmatpush2.msra.mxu0 0.0
      %4060 = vmatprep.subr.mxu0 0.0
      %4061 = vmatpush2.msra.mxu0 0.0
      %4062 = vmatprep.subr.mxu0 0.0
      %4063 = vmatpush2.msra.mxu0 0.0
      %4064 = vmatprep.subr.mxu0 0.0
      %4065 = vmatpush2.msra.mxu0 0.0
      %4066 = vmatprep.subr.mxu0 0.0
      %4067 = vmatpush2.msra.mxu0 0.0
      %4068 = vmatprep.subr.mxu0 0.0
      %4069 = vmatpush2.msra.mxu0 0.0
      %4070 = vmatprep.subr.mxu0 0.0
      %4071 = vmatpush2.msra.mxu0 0.0
      %4072 = vmatprep.subr.mxu0 0.0
      %4073 = vmatpush2.msra.mxu0 0.0
      %4074 = vmatprep.subr.mxu0 0.0
      %4075 = vmatpush2.msra.mxu0 0.0
      %4076 = vmatprep.subr.mxu0 0.0
      %4077 = vmatpush2.msra.mxu0 0.0
      %4078 = vmatprep.subr.mxu0 0.0
      %4079 = vmatpush2.msra.mxu0 0.0
      %4080 = vmatprep.subr.mxu0 0.0
      %4081 = vmatpush2.msra.mxu0 0.0
      %4082 = vmatprep.subr.mxu0 0.0
      %4083 = vmatpush2.msra.mxu0 0.0
      %4084 = vmatprep.subr.mxu0 0.0
      %4085 = vmatpush2.msra.mxu0 0.0
      %4086 = vmatprep.subr.mxu0 0.0
      %4087 = vmatpush2.msra.mxu0 0.0
      %4088 = vmatprep.mubr.f32.mxu0 0.0
      %v4089 = vand.u32 %v3743, 4294901760
      %4090 = vmatmul.mubr.f32.gmra.mxu0 %v4089
      %v4091 = vpop.f32.mrf.mxu0
      %v4092 = vadd.f32 %v3866, %v4091
      %v4093 = vpop.f32.mrf.mxu0
      %4094 = vmatprep.mubr.f32.mxu0 0.0
      %v4095 = vand.u32 %v3746, 4294901760
      %4096 = vmatmul.mubr.f32.gmra.mxu0 %v4095
      %v4097 = vpop.f32.mrf.mxu0
      %v4098 = vadd.f32 %v3876, %v4097
      %v4099 = vpop.f32.mrf.mxu0
      %4100 = vmatprep.mubr.f32.mxu0 0.0
      %v4101 = vand.u32 %v3749, 4294901760
      %4102 = vmatmul.mubr.f32.gmra.mxu0 %v4101
      %v4103 = vpop.f32.mrf.mxu0
      %v4104 = vadd.f32 %v3886, %v4103
      %v4105 = vpop.f32.mrf.mxu0
      %4106 = vmatprep.mubr.f32.mxu0 0.0
      %v4107 = vand.u32 %v3752, 4294901760
      %4108 = vmatmul.mubr.f32.gmra.mxu0 %v4107
      %v4109 = vpop.f32.mrf.mxu0
      %v4110 = vadd.f32 %v3896, %v4109
      %v4111 = vpop.f32.mrf.mxu0
      %4112 = vmatprep.mubr.f32.mxu0 0.0
      %v4113 = vand.u32 %v3755, 4294901760
      %4114 = vmatmul.mubr.f32.gmra.mxu0 %v4113
      %v4115 = vpop.f32.mrf.mxu0
      %v4116 = vadd.f32 %v3906, %v4115
      %v4117 = vpop.f32.mrf.mxu0
      %4118 = vmatprep.mubr.f32.mxu0 0.0
      %v4119 = vand.u32 %v3758, 4294901760
      %4120 = vmatmul.mubr.f32.gmra.mxu0 %v4119
      %v4121 = vpop.f32.mrf.mxu0
      %v4122 = vadd.f32 %v3916, %v4121
      %v4123 = vpop.f32.mrf.mxu0
      %4124 = vmatprep.mubr.f32.mxu0 0.0
      %v4125 = vand.u32 %v3761, 4294901760
      %4126 = vmatmul.mubr.f32.gmra.mxu0 %v4125
      %v4127 = vpop.f32.mrf.mxu0
      %v4128 = vadd.f32 %v3926, %v4127
      %v4129 = vpop.f32.mrf.mxu0
      %4130 = vmatprep.mubr.f32.mxu0 0.0
      %v4131 = vand.u32 %v3764, 4294901760
      %4132 = vmatmul.mubr.f32.gmra.mxu0 %v4131
      %v4133 = vpop.f32.mrf.mxu0
      %v4134 = vadd.f32 %v3936, %v4133
      %v4135 = vpop.f32.mrf.mxu0
      %4136 = vmatprep.mubr.f32.mxu0 0.0
      %v4137 = vand.u32 %v3767, 4294901760
      %4138 = vmatmul.mubr.f32.gmra.mxu0 %v4137
      %v4139 = vpop.f32.mrf.mxu0
      %v4140 = vadd.f32 %v3946, %v4139
      %v4141 = vpop.f32.mrf.mxu0
      %4142 = vmatprep.mubr.f32.mxu0 0.0
      %v4143 = vand.u32 %v3770, 4294901760
      %4144 = vmatmul.mubr.f32.gmra.mxu0 %v4143
      %v4145 = vpop.f32.mrf.mxu0
      %v4146 = vadd.f32 %v3956, %v4145
      %v4147 = vpop.f32.mrf.mxu0
      %4148 = vmatprep.mubr.f32.mxu0 0.0
      %v4149 = vand.u32 %v3773, 4294901760
      %4150 = vmatmul.mubr.f32.gmra.mxu0 %v4149
      %v4151 = vpop.f32.mrf.mxu0
      %v4152 = vadd.f32 %v3966, %v4151
      %v4153 = vpop.f32.mrf.mxu0
      %4154 = vmatprep.mubr.f32.mxu0 0.0
      %v4155 = vand.u32 %v3776, 4294901760
      %4156 = vmatmul.mubr.f32.gmra.mxu0 %v4155
      %v4157 = vpop.f32.mrf.mxu0
      %v4158 = vadd.f32 %v3976, %v4157
      %v4159 = vpop.f32.mrf.mxu0
      %4160 = vmatprep.mubr.f32.mxu0 0.0
      %v4161 = vand.u32 %v3779, 4294901760
      %4162 = vmatmul.mubr.f32.gmra.mxu0 %v4161
      %v4163 = vpop.f32.mrf.mxu0
      %v4164 = vadd.f32 %v3986, %v4163
      %v4165 = vpop.f32.mrf.mxu0
      %4166 = vmatprep.mubr.f32.mxu0 0.0
      %v4167 = vand.u32 %v3782, 4294901760
      %4168 = vmatmul.mubr.f32.gmra.mxu0 %v4167
      %v4169 = vpop.f32.mrf.mxu0
      %v4170 = vadd.f32 %v3996, %v4169
      %v4171 = vpop.f32.mrf.mxu0
      %4172 = vmatprep.mubr.f32.mxu0 0.0
      %v4173 = vand.u32 %v3785, 4294901760
      %4174 = vmatmul.mubr.f32.gmra.mxu0 %v4173
      %v4175 = vpop.f32.mrf.mxu0
      %v4176 = vadd.f32 %v4006, %v4175
      %v4177 = vpop.f32.mrf.mxu0
      %4178 = vmatprep.mubr.f32.mxu0 0.0
      %v4179 = vand.u32 %v3788, 4294901760
      %4180 = vmatmul.mubr.f32.gmra.mxu0 %v4179
      %v4181 = vpop.f32.mrf.mxu0
      %v4182 = vadd.f32 %v4016, %v4181
      %v4183 = vpop.f32.mrf.mxu0
      %4184 = vdwg.mxu0
      %4185 = vmatprep.subr.mxu0 0.0
      %4186 = vmatpush1.msra.mxu0 0.0
      %4187 = vmatprep.subr.mxu0 0.0
      %4188 = vmatpush1.msra.mxu0 0.0
      %4189 = vmatprep.subr.mxu0 0.0
      %4190 = vmatpush1.msra.mxu0 0.0
      %4191 = vmatprep.subr.mxu0 0.0
      %4192 = vmatpush1.msra.mxu0 0.0
      %4193 = vmatprep.subr.mxu0 0.0
      %4194 = vmatpush1.msra.mxu0 0.0
      %4195 = vmatprep.subr.mxu0 0.0
      %4196 = vmatpush1.msra.mxu0 0.0
      %4197 = vmatprep.subr.mxu0 0.0
      %4198 = vmatpush1.msra.mxu0 0.0
      %4199 = vmatprep.subr.mxu0 0.0
      %4200 = vmatpush1.msra.mxu0 0.0
      %4201 = vmatprep.subr.mxu0 0.0
      %4202 = vmatpush1.msra.mxu0 0.0
      %4203 = vmatprep.subr.mxu0 0.0
      %4204 = vmatpush1.msra.mxu0 0.0
      %4205 = vmatprep.subr.mxu0 0.0
      %4206 = vmatpush1.msra.mxu0 0.0
      %4207 = vmatprep.subr.mxu0 0.0
      %4208 = vmatpush1.msra.mxu0 0.0
      %4209 = vmatprep.subr.mxu0 0.0
      %4210 = vmatpush1.msra.mxu0 0.0
      %4211 = vmatprep.subr.mxu0 0.0
      %4212 = vmatpush1.msra.mxu0 0.0
      %4213 = vmatprep.subr.mxu0 0.0
      %4214 = vmatpush1.msra.mxu0 0.0
      %4215 = vmatprep.subr.mxu0 0.0
      %v4216 = vand.u32 %v3791, 4294901760
      %v4217 = vsub.f32 %v3791, %v4216
      %4218 = vmatpush1.msra.mxu0 %v4217
      %4219 = vmatprep.subr.mxu0 0.0
      %4220 = vmatpush2.msra.mxu0 0.0
      %4221 = vmatprep.subr.mxu0 0.0
      %4222 = vmatpush2.msra.mxu0 0.0
      %4223 = vmatprep.subr.mxu0 0.0
      %4224 = vmatpush2.msra.mxu0 0.0
      %4225 = vmatprep.subr.mxu0 0.0
      %4226 = vmatpush2.msra.mxu0 0.0
      %4227 = vmatprep.subr.mxu0 0.0
      %4228 = vmatpush2.msra.mxu0 0.0
      %4229 = vmatprep.subr.mxu0 0.0
      %4230 = vmatpush2.msra.mxu0 0.0
      %4231 = vmatprep.subr.mxu0 0.0
      %4232 = vmatpush2.msra.mxu0 0.0
      %4233 = vmatprep.subr.mxu0 0.0
      %4234 = vmatpush2.msra.mxu0 0.0
      %4235 = vmatprep.subr.mxu0 0.0
      %4236 = vmatpush2.msra.mxu0 0.0
      %4237 = vmatprep.subr.mxu0 0.0
      %4238 = vmatpush2.msra.mxu0 0.0
      %4239 = vmatprep.subr.mxu0 0.0
      %4240 = vmatpush2.msra.mxu0 0.0
      %4241 = vmatprep.subr.mxu0 0.0
      %4242 = vmatpush2.msra.mxu0 0.0
      %4243 = vmatprep.subr.mxu0 0.0
      %4244 = vmatpush2.msra.mxu0 0.0
      %4245 = vmatprep.subr.mxu0 0.0
      %4246 = vmatpush2.msra.mxu0 0.0
      %4247 = vmatprep.subr.mxu0 0.0
      %4248 = vmatpush2.msra.mxu0 0.0
      %4249 = vmatprep.subr.mxu0 0.0
      %4250 = vmatpush2.msra.mxu0 0.0
      %4251 = vmatprep.mubr.f32.mxu0 0.0
      %v4252 = vand.u32 %v3743, 4294901760
      %v4253 = vsub.f32 %v3743, %v4252
      %4254 = vmatmul.mubr.f32.gmra.mxu0 %v4253
      %v4255 = vpop.f32.mrf.mxu0
      %v4256 = vadd.f32 %v4092, %v4255
      %v4257 = vpop.f32.mrf.mxu0
      %4258 = vmatprep.mubr.f32.mxu0 0.0
      %v4259 = vand.u32 %v3746, 4294901760
      %v4260 = vsub.f32 %v3746, %v4259
      %4261 = vmatmul.mubr.f32.gmra.mxu0 %v4260
      %v4262 = vpop.f32.mrf.mxu0
      %v4263 = vadd.f32 %v4098, %v4262
      %v4264 = vpop.f32.mrf.mxu0
      %4265 = vmatprep.mubr.f32.mxu0 0.0
      %v4266 = vand.u32 %v3749, 4294901760
      %v4267 = vsub.f32 %v3749, %v4266
      %4268 = vmatmul.mubr.f32.gmra.mxu0 %v4267
      %v4269 = vpop.f32.mrf.mxu0
      %v4270 = vadd.f32 %v4104, %v4269
      %v4271 = vpop.f32.mrf.mxu0
      %4272 = vmatprep.mubr.f32.mxu0 0.0
      %v4273 = vand.u32 %v3752, 4294901760
      %v4274 = vsub.f32 %v3752, %v4273
      %4275 = vmatmul.mubr.f32.gmra.mxu0 %v4274
      %v4276 = vpop.f32.mrf.mxu0
      %v4277 = vadd.f32 %v4110, %v4276
      %v4278 = vpop.f32.mrf.mxu0
      %4279 = vmatprep.mubr.f32.mxu0 0.0
      %v4280 = vand.u32 %v3755, 4294901760
      %v4281 = vsub.f32 %v3755, %v4280
      %4282 = vmatmul.mubr.f32.gmra.mxu0 %v4281
      %v4283 = vpop.f32.mrf.mxu0
      %v4284 = vadd.f32 %v4116, %v4283
      %v4285 = vpop.f32.mrf.mxu0
      %4286 = vmatprep.mubr.f32.mxu0 0.0
      %v4287 = vand.u32 %v3758, 4294901760
      %v4288 = vsub.f32 %v3758, %v4287
      %4289 = vmatmul.mubr.f32.gmra.mxu0 %v4288
      %v4290 = vpop.f32.mrf.mxu0
      %v4291 = vadd.f32 %v4122, %v4290
      %v4292 = vpop.f32.mrf.mxu0
      %4293 = vmatprep.mubr.f32.mxu0 0.0
      %v4294 = vand.u32 %v3761, 4294901760
      %v4295 = vsub.f32 %v3761, %v4294
      %4296 = vmatmul.mubr.f32.gmra.mxu0 %v4295
      %v4297 = vpop.f32.mrf.mxu0
      %v4298 = vadd.f32 %v4128, %v4297
      %v4299 = vpop.f32.mrf.mxu0
      %4300 = vmatprep.mubr.f32.mxu0 0.0
      %v4301 = vand.u32 %v3764, 4294901760
      %v4302 = vsub.f32 %v3764, %v4301
      %4303 = vmatmul.mubr.f32.gmra.mxu0 %v4302
      %v4304 = vpop.f32.mrf.mxu0
      %v4305 = vadd.f32 %v4134, %v4304
      %v4306 = vpop.f32.mrf.mxu0
      %4307 = vmatprep.mubr.f32.mxu0 0.0
      %v4308 = vand.u32 %v3767, 4294901760
      %v4309 = vsub.f32 %v3767, %v4308
      %4310 = vmatmul.mubr.f32.gmra.mxu0 %v4309
      %v4311 = vpop.f32.mrf.mxu0
      %v4312 = vadd.f32 %v4140, %v4311
      %v4313 = vpop.f32.mrf.mxu0
      %4314 = vmatprep.mubr.f32.mxu0 0.0
      %v4315 = vand.u32 %v3770, 4294901760
      %v4316 = vsub.f32 %v3770, %v4315
      %4317 = vmatmul.mubr.f32.gmra.mxu0 %v4316
      %v4318 = vpop.f32.mrf.mxu0
      %v4319 = vadd.f32 %v4146, %v4318
      %v4320 = vpop.f32.mrf.mxu0
      %4321 = vmatprep.mubr.f32.mxu0 0.0
      %v4322 = vand.u32 %v3773, 4294901760
      %v4323 = vsub.f32 %v3773, %v4322
      %4324 = vmatmul.mubr.f32.gmra.mxu0 %v4323
      %v4325 = vpop.f32.mrf.mxu0
      %v4326 = vadd.f32 %v4152, %v4325
      %v4327 = vpop.f32.mrf.mxu0
      %4328 = vmatprep.mubr.f32.mxu0 0.0
      %v4329 = vand.u32 %v3776, 4294901760
      %v4330 = vsub.f32 %v3776, %v4329
      %4331 = vmatmul.mubr.f32.gmra.mxu0 %v4330
      %v4332 = vpop.f32.mrf.mxu0
      %v4333 = vadd.f32 %v4158, %v4332
      %v4334 = vpop.f32.mrf.mxu0
      %4335 = vmatprep.mubr.f32.mxu0 0.0
      %v4336 = vand.u32 %v3779, 4294901760
      %v4337 = vsub.f32 %v3779, %v4336
      %4338 = vmatmul.mubr.f32.gmra.mxu0 %v4337
      %v4339 = vpop.f32.mrf.mxu0
      %v4340 = vadd.f32 %v4164, %v4339
      %v4341 = vpop.f32.mrf.mxu0
      %4342 = vmatprep.mubr.f32.mxu0 0.0
      %v4343 = vand.u32 %v3782, 4294901760
      %v4344 = vsub.f32 %v3782, %v4343
      %4345 = vmatmul.mubr.f32.gmra.mxu0 %v4344
      %v4346 = vpop.f32.mrf.mxu0
      %v4347 = vadd.f32 %v4170, %v4346
      %v4348 = vpop.f32.mrf.mxu0
      %4349 = vmatprep.mubr.f32.mxu0 0.0
      %v4350 = vand.u32 %v3785, 4294901760
      %v4351 = vsub.f32 %v3785, %v4350
      %4352 = vmatmul.mubr.f32.gmra.mxu0 %v4351
      %v4353 = vpop.f32.mrf.mxu0
      %v4354 = vadd.f32 %v4176, %v4353
      %v4355 = vpop.f32.mrf.mxu0
      %4356 = vmatprep.mubr.f32.mxu0 0.0
      %v4357 = vand.u32 %v3788, 4294901760
      %v4358 = vsub.f32 %v3788, %v4357
      %4359 = vmatmul.mubr.f32.gmra.mxu0 %v4358
      %v4360 = vpop.f32.mrf.mxu0
      %v4361 = vadd.f32 %v4182, %v4360
      %v4362 = vpop.f32.mrf.mxu0
      %4363 = vdwg.mxu0
      %4364 = vmatprep.subr.mxu0 0.0
      %4365 = vmatpush1.msra.mxu0 0.0
      %4366 = vmatprep.subr.mxu0 0.0
      %4367 = vmatpush1.msra.mxu0 0.0
      %4368 = vmatprep.subr.mxu0 0.0
      %4369 = vmatpush1.msra.mxu0 0.0
      %4370 = vmatprep.subr.mxu0 0.0
      %4371 = vmatpush1.msra.mxu0 0.0
      %4372 = vmatprep.subr.mxu0 0.0
      %4373 = vmatpush1.msra.mxu0 0.0
      %4374 = vmatprep.subr.mxu0 0.0
      %4375 = vmatpush1.msra.mxu0 0.0
      %4376 = vmatprep.subr.mxu0 0.0
      %4377 = vmatpush1.msra.mxu0 0.0
      %4378 = vmatprep.subr.mxu0 0.0
      %4379 = vmatpush1.msra.mxu0 0.0
      %4380 = vmatprep.subr.mxu0 0.0
      %4381 = vmatpush1.msra.mxu0 0.0
      %4382 = vmatprep.subr.mxu0 0.0
      %4383 = vmatpush1.msra.mxu0 0.0
      %4384 = vmatprep.subr.mxu0 0.0
      %4385 = vmatpush1.msra.mxu0 0.0
      %4386 = vmatprep.subr.mxu0 0.0
      %4387 = vmatpush1.msra.mxu0 0.0
      %4388 = vmatprep.subr.mxu0 0.0
      %4389 = vmatpush1.msra.mxu0 0.0
      %4390 = vmatprep.subr.mxu0 0.0
      %4391 = vmatpush1.msra.mxu0 0.0
      %4392 = vmatprep.subr.mxu0 0.0
      %4393 = vmatpush1.msra.mxu0 0.0
      %4394 = vmatprep.subr.mxu0 0.0
      %v4395 = vand.u32 %v3791, 4294901760
      %4396 = vmatpush1.msra.mxu0 %v4395
      %4397 = vmatprep.subr.mxu0 0.0
      %4398 = vmatpush2.msra.mxu0 0.0
      %4399 = vmatprep.subr.mxu0 0.0
      %4400 = vmatpush2.msra.mxu0 0.0
      %4401 = vmatprep.subr.mxu0 0.0
      %4402 = vmatpush2.msra.mxu0 0.0
      %4403 = vmatprep.subr.mxu0 0.0
      %4404 = vmatpush2.msra.mxu0 0.0
      %4405 = vmatprep.subr.mxu0 0.0
      %4406 = vmatpush2.msra.mxu0 0.0
      %4407 = vmatprep.subr.mxu0 0.0
      %4408 = vmatpush2.msra.mxu0 0.0
      %4409 = vmatprep.subr.mxu0 0.0
      %4410 = vmatpush2.msra.mxu0 0.0
      %4411 = vmatprep.subr.mxu0 0.0
      %4412 = vmatpush2.msra.mxu0 0.0
      %4413 = vmatprep.subr.mxu0 0.0
      %4414 = vmatpush2.msra.mxu0 0.0
      %4415 = vmatprep.subr.mxu0 0.0
      %4416 = vmatpush2.msra.mxu0 0.0
      %4417 = vmatprep.subr.mxu0 0.0
      %4418 = vmatpush2.msra.mxu0 0.0
      %4419 = vmatprep.subr.mxu0 0.0
      %4420 = vmatpush2.msra.mxu0 0.0
      %4421 = vmatprep.subr.mxu0 0.0
      %4422 = vmatpush2.msra.mxu0 0.0
      %4423 = vmatprep.subr.mxu0 0.0
      %4424 = vmatpush2.msra.mxu0 0.0
      %4425 = vmatprep.subr.mxu0 0.0
      %4426 = vmatpush2.msra.mxu0 0.0
      %4427 = vmatprep.subr.mxu0 0.0
      %4428 = vmatpush2.msra.mxu0 0.0
      %4429 = vmatprep.mubr.f32.mxu0 0.0
      %v4430 = vand.u32 %v3743, 4294901760
      %v4431 = vsub.f32 %v3743, %v4430
      %v4432 = vand.u32 %v4431, 4294901760
      %4433 = vmatmul.mubr.f32.gmra.mxu0 %v4432
      %v4434 = vpop.f32.mrf.mxu0
      %v4435 = vadd.f32 %v4256, %v4434
      %v4436 = vpop.f32.mrf.mxu0
      %4437 = vmatprep.mubr.f32.mxu0 0.0
      %v4438 = vand.u32 %v3746, 4294901760
      %v4439 = vsub.f32 %v3746, %v4438
      %v4440 = vand.u32 %v4439, 4294901760
      %4441 = vmatmul.mubr.f32.gmra.mxu0 %v4440
      %v4442 = vpop.f32.mrf.mxu0
      %v4443 = vadd.f32 %v4263, %v4442
      %v4444 = vpop.f32.mrf.mxu0
      %4445 = vmatprep.mubr.f32.mxu0 0.0
      %v4446 = vand.u32 %v3749, 4294901760
      %v4447 = vsub.f32 %v3749, %v4446
      %v4448 = vand.u32 %v4447, 4294901760
      %4449 = vmatmul.mubr.f32.gmra.mxu0 %v4448
      %v4450 = vpop.f32.mrf.mxu0
      %v4451 = vadd.f32 %v4270, %v4450
      %v4452 = vpop.f32.mrf.mxu0
      %4453 = vmatprep.mubr.f32.mxu0 0.0
      %v4454 = vand.u32 %v3752, 4294901760
      %v4455 = vsub.f32 %v3752, %v4454
      %v4456 = vand.u32 %v4455, 4294901760
      %4457 = vmatmul.mubr.f32.gmra.mxu0 %v4456
      %v4458 = vpop.f32.mrf.mxu0
      %v4459 = vadd.f32 %v4277, %v4458
      %v4460 = vpop.f32.mrf.mxu0
      %4461 = vmatprep.mubr.f32.mxu0 0.0
      %v4462 = vand.u32 %v3755, 4294901760
      %v4463 = vsub.f32 %v3755, %v4462
      %v4464 = vand.u32 %v4463, 4294901760
      %4465 = vmatmul.mubr.f32.gmra.mxu0 %v4464
      %v4466 = vpop.f32.mrf.mxu0
      %v4467 = vadd.f32 %v4284, %v4466
      %v4468 = vpop.f32.mrf.mxu0
      %4469 = vmatprep.mubr.f32.mxu0 0.0
      %v4470 = vand.u32 %v3758, 4294901760
      %v4471 = vsub.f32 %v3758, %v4470
      %v4472 = vand.u32 %v4471, 4294901760
      %4473 = vmatmul.mubr.f32.gmra.mxu0 %v4472
      %v4474 = vpop.f32.mrf.mxu0
      %v4475 = vadd.f32 %v4291, %v4474
      %v4476 = vpop.f32.mrf.mxu0
      %4477 = vmatprep.mubr.f32.mxu0 0.0
      %v4478 = vand.u32 %v3761, 4294901760
      %v4479 = vsub.f32 %v3761, %v4478
      %v4480 = vand.u32 %v4479, 4294901760
      %4481 = vmatmul.mubr.f32.gmra.mxu0 %v4480
      %v4482 = vpop.f32.mrf.mxu0
      %v4483 = vadd.f32 %v4298, %v4482
      %v4484 = vpop.f32.mrf.mxu0
      %4485 = vmatprep.mubr.f32.mxu0 0.0
      %v4486 = vand.u32 %v3764, 4294901760
      %v4487 = vsub.f32 %v3764, %v4486
      %v4488 = vand.u32 %v4487, 4294901760
      %4489 = vmatmul.mubr.f32.gmra.mxu0 %v4488
      %v4490 = vpop.f32.mrf.mxu0
      %v4491 = vadd.f32 %v4305, %v4490
      %v4492 = vpop.f32.mrf.mxu0
      %4493 = vmatprep.mubr.f32.mxu0 0.0
      %v4494 = vand.u32 %v3767, 4294901760
      %v4495 = vsub.f32 %v3767, %v4494
      %v4496 = vand.u32 %v4495, 4294901760
      %4497 = vmatmul.mubr.f32.gmra.mxu0 %v4496
      %v4498 = vpop.f32.mrf.mxu0
      %v4499 = vadd.f32 %v4312, %v4498
      %v4500 = vpop.f32.mrf.mxu0
      %4501 = vmatprep.mubr.f32.mxu0 0.0
      %v4502 = vand.u32 %v3770, 4294901760
      %v4503 = vsub.f32 %v3770, %v4502
      %v4504 = vand.u32 %v4503, 4294901760
      %4505 = vmatmul.mubr.f32.gmra.mxu0 %v4504
      %v4506 = vpop.f32.mrf.mxu0
      %v4507 = vadd.f32 %v4319, %v4506
      %v4508 = vpop.f32.mrf.mxu0
      %4509 = vmatprep.mubr.f32.mxu0 0.0
      %v4510 = vand.u32 %v3773, 4294901760
      %v4511 = vsub.f32 %v3773, %v4510
      %v4512 = vand.u32 %v4511, 4294901760
      %4513 = vmatmul.mubr.f32.gmra.mxu0 %v4512
      %v4514 = vpop.f32.mrf.mxu0
      %v4515 = vadd.f32 %v4326, %v4514
      %v4516 = vpop.f32.mrf.mxu0
      %4517 = vmatprep.mubr.f32.mxu0 0.0
      %v4518 = vand.u32 %v3776, 4294901760
      %v4519 = vsub.f32 %v3776, %v4518
      %v4520 = vand.u32 %v4519, 4294901760
      %4521 = vmatmul.mubr.f32.gmra.mxu0 %v4520
      %v4522 = vpop.f32.mrf.mxu0
      %v4523 = vadd.f32 %v4333, %v4522
      %v4524 = vpop.f32.mrf.mxu0
      %4525 = vmatprep.mubr.f32.mxu0 0.0
      %v4526 = vand.u32 %v3779, 4294901760
      %v4527 = vsub.f32 %v3779, %v4526
      %v4528 = vand.u32 %v4527, 4294901760
      %4529 = vmatmul.mubr.f32.gmra.mxu0 %v4528
      %v4530 = vpop.f32.mrf.mxu0
      %v4531 = vadd.f32 %v4340, %v4530
      %v4532 = vpop.f32.mrf.mxu0
      %4533 = vmatprep.mubr.f32.mxu0 0.0
      %v4534 = vand.u32 %v3782, 4294901760
      %v4535 = vsub.f32 %v3782, %v4534
      %v4536 = vand.u32 %v4535, 4294901760
      %4537 = vmatmul.mubr.f32.gmra.mxu0 %v4536
      %v4538 = vpop.f32.mrf.mxu0
      %v4539 = vadd.f32 %v4347, %v4538
      %v4540 = vpop.f32.mrf.mxu0
      %4541 = vmatprep.mubr.f32.mxu0 0.0
      %v4542 = vand.u32 %v3785, 4294901760
      %v4543 = vsub.f32 %v3785, %v4542
      %v4544 = vand.u32 %v4543, 4294901760
      %4545 = vmatmul.mubr.f32.gmra.mxu0 %v4544
      %v4546 = vpop.f32.mrf.mxu0
      %v4547 = vadd.f32 %v4354, %v4546
      %v4548 = vpop.f32.mrf.mxu0
      %4549 = vmatprep.mubr.f32.mxu0 0.0
      %v4550 = vand.u32 %v3788, 4294901760
      %v4551 = vsub.f32 %v3788, %v4550
      %v4552 = vand.u32 %v4551, 4294901760
      %4553 = vmatmul.mubr.f32.gmra.mxu0 %v4552
      %v4554 = vpop.f32.mrf.mxu0
      %v4555 = vadd.f32 %v4361, %v4554
      %v4556 = vpop.f32.mrf.mxu0
      %4557 = vdwg.mxu0
      %4558 = vmatprep.subr.mxu0 0.0
      %4559 = vmatpush1.msra.mxu0 0.0
      %4560 = vmatprep.subr.mxu0 0.0
      %4561 = vmatpush1.msra.mxu0 0.0
      %4562 = vmatprep.subr.mxu0 0.0
      %4563 = vmatpush1.msra.mxu0 0.0
      %4564 = vmatprep.subr.mxu0 0.0
      %4565 = vmatpush1.msra.mxu0 0.0
      %4566 = vmatprep.subr.mxu0 0.0
      %4567 = vmatpush1.msra.mxu0 0.0
      %4568 = vmatprep.subr.mxu0 0.0
      %4569 = vmatpush1.msra.mxu0 0.0
      %4570 = vmatprep.subr.mxu0 0.0
      %4571 = vmatpush1.msra.mxu0 0.0
      %4572 = vmatprep.subr.mxu0 0.0
      %4573 = vmatpush1.msra.mxu0 0.0
      %4574 = vmatprep.subr.mxu0 0.0
      %4575 = vmatpush1.msra.mxu0 0.0
      %4576 = vmatprep.subr.mxu0 0.0
      %4577 = vmatpush1.msra.mxu0 0.0
      %4578 = vmatprep.subr.mxu0 0.0
      %4579 = vmatpush1.msra.mxu0 0.0
      %4580 = vmatprep.subr.mxu0 0.0
      %4581 = vmatpush1.msra.mxu0 0.0
      %4582 = vmatprep.subr.mxu0 0.0
      %4583 = vmatpush1.msra.mxu0 0.0
      %4584 = vmatprep.subr.mxu0 0.0
      %4585 = vmatpush1.msra.mxu0 0.0
      %4586 = vmatprep.subr.mxu0 0.0
      %4587 = vmatpush1.msra.mxu0 0.0
      %4588 = vmatprep.subr.mxu0 0.0
      %v4589 = vand.u32 %v3791, 4294901760
      %v4590 = vsub.f32 %v3791, %v4589
      %v4591 = vand.u32 %v4590, 4294901760
      %4592 = vmatpush1.msra.mxu0 %v4591
      %4593 = vmatprep.subr.mxu0 0.0
      %4594 = vmatpush2.msra.mxu0 0.0
      %4595 = vmatprep.subr.mxu0 0.0
      %4596 = vmatpush2.msra.mxu0 0.0
      %4597 = vmatprep.subr.mxu0 0.0
      %4598 = vmatpush2.msra.mxu0 0.0
      %4599 = vmatprep.subr.mxu0 0.0
      %4600 = vmatpush2.msra.mxu0 0.0
      %4601 = vmatprep.subr.mxu0 0.0
      %4602 = vmatpush2.msra.mxu0 0.0
      %4603 = vmatprep.subr.mxu0 0.0
      %4604 = vmatpush2.msra.mxu0 0.0
      %4605 = vmatprep.subr.mxu0 0.0
      %4606 = vmatpush2.msra.mxu0 0.0
      %4607 = vmatprep.subr.mxu0 0.0
      %4608 = vmatpush2.msra.mxu0 0.0
      %4609 = vmatprep.subr.mxu0 0.0
      %4610 = vmatpush2.msra.mxu0 0.0
      %4611 = vmatprep.subr.mxu0 0.0
      %4612 = vmatpush2.msra.mxu0 0.0
      %4613 = vmatprep.subr.mxu0 0.0
      %4614 = vmatpush2.msra.mxu0 0.0
      %4615 = vmatprep.subr.mxu0 0.0
      %4616 = vmatpush2.msra.mxu0 0.0
      %4617 = vmatprep.subr.mxu0 0.0
      %4618 = vmatpush2.msra.mxu0 0.0
      %4619 = vmatprep.subr.mxu0 0.0
      %4620 = vmatpush2.msra.mxu0 0.0
      %4621 = vmatprep.subr.mxu0 0.0
      %4622 = vmatpush2.msra.mxu0 0.0
      %4623 = vmatprep.subr.mxu0 0.0
      %4624 = vmatpush2.msra.mxu0 0.0
      %4625 = vmatprep.mubr.f32.mxu0 0.0
      %v4626 = vand.u32 %v3743, 4294901760
      %4627 = vmatmul.mubr.f32.gmra.mxu0 %v4626
      %v4628 = vpop.f32.mrf.mxu0
      %v4629 = vadd.f32 %v4435, %v4628
      %v4630 = vpop.f32.mrf.mxu0
      %4631 = vmatprep.mubr.f32.mxu0 0.0
      %v4632 = vand.u32 %v3746, 4294901760
      %4633 = vmatmul.mubr.f32.gmra.mxu0 %v4632
      %v4634 = vpop.f32.mrf.mxu0
      %v4635 = vadd.f32 %v4443, %v4634
      %v4636 = vpop.f32.mrf.mxu0
      %4637 = vmatprep.mubr.f32.mxu0 0.0
      %v4638 = vand.u32 %v3749, 4294901760
      %4639 = vmatmul.mubr.f32.gmra.mxu0 %v4638
      %v4640 = vpop.f32.mrf.mxu0
      %v4641 = vadd.f32 %v4451, %v4640
      %v4642 = vpop.f32.mrf.mxu0
      %4643 = vmatprep.mubr.f32.mxu0 0.0
      %v4644 = vand.u32 %v3752, 4294901760
      %4645 = vmatmul.mubr.f32.gmra.mxu0 %v4644
      %v4646 = vpop.f32.mrf.mxu0
      %v4647 = vadd.f32 %v4459, %v4646
      %v4648 = vpop.f32.mrf.mxu0
      %4649 = vmatprep.mubr.f32.mxu0 0.0
      %v4650 = vand.u32 %v3755, 4294901760
      %4651 = vmatmul.mubr.f32.gmra.mxu0 %v4650
      %v4652 = vpop.f32.mrf.mxu0
      %v4653 = vadd.f32 %v4467, %v4652
      %v4654 = vpop.f32.mrf.mxu0
      %4655 = vmatprep.mubr.f32.mxu0 0.0
      %v4656 = vand.u32 %v3758, 4294901760
      %4657 = vmatmul.mubr.f32.gmra.mxu0 %v4656
      %v4658 = vpop.f32.mrf.mxu0
      %v4659 = vadd.f32 %v4475, %v4658
      %v4660 = vpop.f32.mrf.mxu0
      %4661 = vmatprep.mubr.f32.mxu0 0.0
      %v4662 = vand.u32 %v3761, 4294901760
      %4663 = vmatmul.mubr.f32.gmra.mxu0 %v4662
      %v4664 = vpop.f32.mrf.mxu0
      %v4665 = vadd.f32 %v4483, %v4664
      %v4666 = vpop.f32.mrf.mxu0
      %4667 = vmatprep.mubr.f32.mxu0 0.0
      %v4668 = vand.u32 %v3764, 4294901760
      %4669 = vmatmul.mubr.f32.gmra.mxu0 %v4668
      %v4670 = vpop.f32.mrf.mxu0
      %v4671 = vadd.f32 %v4491, %v4670
      %v4672 = vpop.f32.mrf.mxu0
      %4673 = vmatprep.mubr.f32.mxu0 0.0
      %v4674 = vand.u32 %v3767, 4294901760
      %4675 = vmatmul.mubr.f32.gmra.mxu0 %v4674
      %v4676 = vpop.f32.mrf.mxu0
      %v4677 = vadd.f32 %v4499, %v4676
      %v4678 = vpop.f32.mrf.mxu0
      %4679 = vmatprep.mubr.f32.mxu0 0.0
      %v4680 = vand.u32 %v3770, 4294901760
      %4681 = vmatmul.mubr.f32.gmra.mxu0 %v4680
      %v4682 = vpop.f32.mrf.mxu0
      %v4683 = vadd.f32 %v4507, %v4682
      %v4684 = vpop.f32.mrf.mxu0
      %4685 = vmatprep.mubr.f32.mxu0 0.0
      %v4686 = vand.u32 %v3773, 4294901760
      %4687 = vmatmul.mubr.f32.gmra.mxu0 %v4686
      %v4688 = vpop.f32.mrf.mxu0
      %v4689 = vadd.f32 %v4515, %v4688
      %v4690 = vpop.f32.mrf.mxu0
      %4691 = vmatprep.mubr.f32.mxu0 0.0
      %v4692 = vand.u32 %v3776, 4294901760
      %4693 = vmatmul.mubr.f32.gmra.mxu0 %v4692
      %v4694 = vpop.f32.mrf.mxu0
      %v4695 = vadd.f32 %v4523, %v4694
      %v4696 = vpop.f32.mrf.mxu0
      %4697 = vmatprep.mubr.f32.mxu0 0.0
      %v4698 = vand.u32 %v3779, 4294901760
      %4699 = vmatmul.mubr.f32.gmra.mxu0 %v4698
      %v4700 = vpop.f32.mrf.mxu0
      %v4701 = vadd.f32 %v4531, %v4700
      %v4702 = vpop.f32.mrf.mxu0
      %4703 = vmatprep.mubr.f32.mxu0 0.0
      %v4704 = vand.u32 %v3782, 4294901760
      %4705 = vmatmul.mubr.f32.gmra.mxu0 %v4704
      %v4706 = vpop.f32.mrf.mxu0
      %v4707 = vadd.f32 %v4539, %v4706
      %v4708 = vpop.f32.mrf.mxu0
      %4709 = vmatprep.mubr.f32.mxu0 0.0
      %v4710 = vand.u32 %v3785, 4294901760
      %4711 = vmatmul.mubr.f32.gmra.mxu0 %v4710
      %v4712 = vpop.f32.mrf.mxu0
      %v4713 = vadd.f32 %v4547, %v4712
      %v4714 = vpop.f32.mrf.mxu0
      %4715 = vmatprep.mubr.f32.mxu0 0.0
      %v4716 = vand.u32 %v3788, 4294901760
      %4717 = vmatmul.mubr.f32.gmra.mxu0 %v4716
      %v4718 = vpop.f32.mrf.mxu0
      %v4719 = vadd.f32 %v4555, %v4718
      %v4720 = vpop.f32.mrf.mxu0
      %4721 = vdwg.mxu0
      %4722 = vmatprep.subr.mxu0 0.0
      %4723 = vmatpush1.msra.mxu0 0.0
      %4724 = vmatprep.subr.mxu0 0.0
      %4725 = vmatpush1.msra.mxu0 0.0
      %4726 = vmatprep.subr.mxu0 0.0
      %4727 = vmatpush1.msra.mxu0 0.0
      %4728 = vmatprep.subr.mxu0 0.0
      %4729 = vmatpush1.msra.mxu0 0.0
      %4730 = vmatprep.subr.mxu0 0.0
      %4731 = vmatpush1.msra.mxu0 0.0
      %4732 = vmatprep.subr.mxu0 0.0
      %4733 = vmatpush1.msra.mxu0 0.0
      %4734 = vmatprep.subr.mxu0 0.0
      %4735 = vmatpush1.msra.mxu0 0.0
      %4736 = vmatprep.subr.mxu0 0.0
      %4737 = vmatpush1.msra.mxu0 0.0
      %4738 = vmatprep.subr.mxu0 0.0
      %4739 = vmatpush1.msra.mxu0 0.0
      %4740 = vmatprep.subr.mxu0 0.0
      %4741 = vmatpush1.msra.mxu0 0.0
      %4742 = vmatprep.subr.mxu0 0.0
      %4743 = vmatpush1.msra.mxu0 0.0
      %4744 = vmatprep.subr.mxu0 0.0
      %4745 = vmatpush1.msra.mxu0 0.0
      %4746 = vmatprep.subr.mxu0 0.0
      %4747 = vmatpush1.msra.mxu0 0.0
      %4748 = vmatprep.subr.mxu0 0.0
      %4749 = vmatpush1.msra.mxu0 0.0
      %4750 = vmatprep.subr.mxu0 0.0
      %4751 = vmatpush1.msra.mxu0 0.0
      %4752 = vmatprep.subr.mxu0 0.0
      %v4753 = vand.u32 %v3791, 4294901760
      %4754 = vmatpush1.msra.mxu0 %v4753
      %4755 = vmatprep.subr.mxu0 0.0
      %4756 = vmatpush2.msra.mxu0 0.0
      %4757 = vmatprep.subr.mxu0 0.0
      %4758 = vmatpush2.msra.mxu0 0.0
      %4759 = vmatprep.subr.mxu0 0.0
      %4760 = vmatpush2.msra.mxu0 0.0
      %4761 = vmatprep.subr.mxu0 0.0
      %4762 = vmatpush2.msra.mxu0 0.0
      %4763 = vmatprep.subr.mxu0 0.0
      %4764 = vmatpush2.msra.mxu0 0.0
      %4765 = vmatprep.subr.mxu0 0.0
      %4766 = vmatpush2.msra.mxu0 0.0
      %4767 = vmatprep.subr.mxu0 0.0
      %4768 = vmatpush2.msra.mxu0 0.0
      %4769 = vmatprep.subr.mxu0 0.0
      %4770 = vmatpush2.msra.mxu0 0.0
      %4771 = vmatprep.subr.mxu0 0.0
      %4772 = vmatpush2.msra.mxu0 0.0
      %4773 = vmatprep.subr.mxu0 0.0
      %4774 = vmatpush2.msra.mxu0 0.0
      %4775 = vmatprep.subr.mxu0 0.0
      %4776 = vmatpush2.msra.mxu0 0.0
      %4777 = vmatprep.subr.mxu0 0.0
      %4778 = vmatpush2.msra.mxu0 0.0
      %4779 = vmatprep.subr.mxu0 0.0
      %4780 = vmatpush2.msra.mxu0 0.0
      %4781 = vmatprep.subr.mxu0 0.0
      %4782 = vmatpush2.msra.mxu0 0.0
      %4783 = vmatprep.subr.mxu0 0.0
      %4784 = vmatpush2.msra.mxu0 0.0
      %4785 = vmatprep.subr.mxu0 0.0
      %4786 = vmatpush2.msra.mxu0 0.0
      %4787 = vmatprep.mubr.f32.mxu0 0.0
      %v4788 = vand.u32 %v3743, 4294901760
      %4789 = vmatmul.mubr.f32.gmra.mxu0 %v4788
      %v4790 = vpop.f32.mrf.mxu0
      %v4791 = vadd.f32 %v4629, %v4790
      %v4792 = vpop.f32.mrf.mxu0
      %4793 = vmatprep.mubr.f32.mxu0 0.0
      %v4794 = vand.u32 %v3746, 4294901760
      %4795 = vmatmul.mubr.f32.gmra.mxu0 %v4794
      %v4796 = vpop.f32.mrf.mxu0
      %v4797 = vadd.f32 %v4635, %v4796
      %v4798 = vpop.f32.mrf.mxu0
      %4799 = vmatprep.mubr.f32.mxu0 0.0
      %v4800 = vand.u32 %v3749, 4294901760
      %4801 = vmatmul.mubr.f32.gmra.mxu0 %v4800
      %v4802 = vpop.f32.mrf.mxu0
      %v4803 = vadd.f32 %v4641, %v4802
      %v4804 = vpop.f32.mrf.mxu0
      %4805 = vmatprep.mubr.f32.mxu0 0.0
      %v4806 = vand.u32 %v3752, 4294901760
      %4807 = vmatmul.mubr.f32.gmra.mxu0 %v4806
      %v4808 = vpop.f32.mrf.mxu0
      %v4809 = vadd.f32 %v4647, %v4808
      %v4810 = vpop.f32.mrf.mxu0
      %4811 = vmatprep.mubr.f32.mxu0 0.0
      %v4812 = vand.u32 %v3755, 4294901760
      %4813 = vmatmul.mubr.f32.gmra.mxu0 %v4812
      %v4814 = vpop.f32.mrf.mxu0
      %v4815 = vadd.f32 %v4653, %v4814
      %v4816 = vpop.f32.mrf.mxu0
      %4817 = vmatprep.mubr.f32.mxu0 0.0
      %v4818 = vand.u32 %v3758, 4294901760
      %4819 = vmatmul.mubr.f32.gmra.mxu0 %v4818
      %v4820 = vpop.f32.mrf.mxu0
      %v4821 = vadd.f32 %v4659, %v4820
      %v4822 = vpop.f32.mrf.mxu0
      %4823 = vmatprep.mubr.f32.mxu0 0.0
      %v4824 = vand.u32 %v3761, 4294901760
      %4825 = vmatmul.mubr.f32.gmra.mxu0 %v4824
      %v4826 = vpop.f32.mrf.mxu0
      %v4827 = vadd.f32 %v4665, %v4826
      %v4828 = vpop.f32.mrf.mxu0
      %4829 = vmatprep.mubr.f32.mxu0 0.0
      %v4830 = vand.u32 %v3764, 4294901760
      %4831 = vmatmul.mubr.f32.gmra.mxu0 %v4830
      %v4832 = vpop.f32.mrf.mxu0
      %v4833 = vadd.f32 %v4671, %v4832
      %v4834 = vpop.f32.mrf.mxu0
      %4835 = vmatprep.mubr.f32.mxu0 0.0
      %v4836 = vand.u32 %v3767, 4294901760
      %4837 = vmatmul.mubr.f32.gmra.mxu0 %v4836
      %v4838 = vpop.f32.mrf.mxu0
      %v4839 = vadd.f32 %v4677, %v4838
      %v4840 = vpop.f32.mrf.mxu0
      %4841 = vmatprep.mubr.f32.mxu0 0.0
      %v4842 = vand.u32 %v3770, 4294901760
      %4843 = vmatmul.mubr.f32.gmra.mxu0 %v4842
      %v4844 = vpop.f32.mrf.mxu0
      %v4845 = vadd.f32 %v4683, %v4844
      %v4846 = vpop.f32.mrf.mxu0
      %4847 = vmatprep.mubr.f32.mxu0 0.0
      %v4848 = vand.u32 %v3773, 4294901760
      %4849 = vmatmul.mubr.f32.gmra.mxu0 %v4848
      %v4850 = vpop.f32.mrf.mxu0
      %v4851 = vadd.f32 %v4689, %v4850
      %v4852 = vpop.f32.mrf.mxu0
      %4853 = vmatprep.mubr.f32.mxu0 0.0
      %v4854 = vand.u32 %v3776, 4294901760
      %4855 = vmatmul.mubr.f32.gmra.mxu0 %v4854
      %v4856 = vpop.f32.mrf.mxu0
      %v4857 = vadd.f32 %v4695, %v4856
      %v4858 = vpop.f32.mrf.mxu0
      %4859 = vmatprep.mubr.f32.mxu0 0.0
      %v4860 = vand.u32 %v3779, 4294901760
      %4861 = vmatmul.mubr.f32.gmra.mxu0 %v4860
      %v4862 = vpop.f32.mrf.mxu0
      %v4863 = vadd.f32 %v4701, %v4862
      %v4864 = vpop.f32.mrf.mxu0
      %4865 = vmatprep.mubr.f32.mxu0 0.0
      %v4866 = vand.u32 %v3782, 4294901760
      %4867 = vmatmul.mubr.f32.gmra.mxu0 %v4866
      %v4868 = vpop.f32.mrf.mxu0
      %v4869 = vadd.f32 %v4707, %v4868
      %v4870 = vpop.f32.mrf.mxu0
      %4871 = vmatprep.mubr.f32.mxu0 0.0
      %v4872 = vand.u32 %v3785, 4294901760
      %4873 = vmatmul.mubr.f32.gmra.mxu0 %v4872
      %v4874 = vpop.f32.mrf.mxu0
      %v4875 = vadd.f32 %v4713, %v4874
      %v4876 = vpop.f32.mrf.mxu0
      %4877 = vmatprep.mubr.f32.mxu0 0.0
      %v4878 = vand.u32 %v3788, 4294901760
      %4879 = vmatmul.mubr.f32.gmra.mxu0 %v4878
      %v4880 = vpop.f32.mrf.mxu0
      %v4881 = vadd.f32 %v4719, %v4880
      %v4882 = vpop.f32.mrf.mxu0
      %4883 = vdwg.mxu0
      %v4884 = vadd.f32 %v3705, %v4791
      %v4885 = vadd.f32 %v3706, %v4797
      %v4886 = vadd.f32 %v3707, %v4803
      %v4887 = vadd.f32 %v3708, %v4809
      %v4888 = vadd.f32 %v3709, %v4815
      %v4889 = vadd.f32 %v3710, %v4821
      %v4890 = vadd.f32 %v3711, %v4827
      %v4891 = vadd.f32 %v3712, %v4833
      %v4892 = vadd.f32 %v3713, %v4839
      %v4893 = vadd.f32 %v3714, %v4845
      %v4894 = vadd.f32 %v3715, %v4851
      %v4895 = vadd.f32 %v3716, %v4857
      %v4896 = vadd.f32 %v3717, %v4863
      %v4897 = vadd.f32 %v3718, %v4869
      %v4898 = vadd.f32 %v3719, %v4875
      %v4899 = vadd.f32 %v3720, %v4881
      %v4900 = vld [vmem:[%s3723 + $0x1] sm:$0xff]
      %v4901 = vld [vmem:[%s3723 + $0x9] sm:$0xff]
      %v4902 = vld [vmem:[%s3723 + $0x19] sm:$0xff]
      %v4903 = vld [vmem:[%s3723 + $0x21] sm:$0xff]
      %v4904 = vld [vmem:[%s3723 + $0x31] sm:$0xff]
      %v4905 = vld [vmem:[%s3723 + $0x39] sm:$0xff]
      %v4906 = vld [vmem:[%s3723 + $0x49] sm:$0xff]
      %v4907 = vld [vmem:[%s3723 + $0x51] sm:$0xff]
      %v4908 = vld [vmem:[%s3723 + $0x61] sm:$0xff]
      %v4909 = vld [vmem:[%s3723 + $0x69] sm:$0xff]
      %v4910 = vld [vmem:[%s3723 + $0x79] sm:$0xff]
      %v4911 = vld [vmem:[%s3723 + $0x81] sm:$0xff]
      %v4912 = vld [vmem:[%s3723 + $0x91] sm:$0xff]
      %v4913 = vld [vmem:[%s3723 + $0x99] sm:$0xff]
      %v4914 = vld [vmem:[%s3723 + $0xa9] sm:$0xff]
      %v4915 = vld [vmem:[%s3723 + $0xb1] sm:$0xff]
      %s4916 = scalar_lea.vmem %s1, 16
      %v4917 = vld [vmem:[%s4916] sm:$0xf]
      %v4919 = vsel %vm259, %v4900, 0
      %v4922 = vsel %vm259, %v4901, 0
      %v4925 = vsel %vm259, %v4902, 0
      %v4928 = vsel %vm259, %v4903, 0
      %v4931 = vsel %vm259, %v4904, 0
      %v4934 = vsel %vm259, %v4905, 0
      %v4937 = vsel %vm259, %v4906, 0
      %v4940 = vsel %vm259, %v4907, 0
      %v4943 = vsel %vm259, %v4908, 0
      %v4946 = vsel %vm259, %v4909, 0
      %v4949 = vsel %vm259, %v4910, 0
      %v4952 = vsel %vm259, %v4911, 0
      %v4955 = vsel %vm259, %v4912, 0
      %v4958 = vsel %vm259, %v4913, 0
      %v4961 = vsel %vm259, %v4914, 0
      %v4964 = vsel %vm259, %v4915, 0
      %v4967 = vsel %vm308, %v4917, 0
      %4969 = vmatprep.subr.mxu0 0.0
      %4970 = vmatpush1.msra.mxu0 0.0
      %4971 = vmatprep.subr.mxu0 0.0
      %4972 = vmatpush1.msra.mxu0 0.0
      %4973 = vmatprep.subr.mxu0 0.0
      %4974 = vmatpush1.msra.mxu0 0.0
      %4975 = vmatprep.subr.mxu0 0.0
      %4976 = vmatpush1.msra.mxu0 0.0
      %4977 = vmatprep.subr.mxu0 0.0
      %4978 = vmatpush1.msra.mxu0 0.0
      %4979 = vmatprep.subr.mxu0 0.0
      %4980 = vmatpush1.msra.mxu0 0.0
      %4981 = vmatprep.subr.mxu0 0.0
      %4982 = vmatpush1.msra.mxu0 0.0
      %4983 = vmatprep.subr.mxu0 0.0
      %4984 = vmatpush1.msra.mxu0 0.0
      %4985 = vmatprep.subr.mxu0 0.0
      %4986 = vmatpush1.msra.mxu0 0.0
      %4987 = vmatprep.subr.mxu0 0.0
      %4988 = vmatpush1.msra.mxu0 0.0
      %4989 = vmatprep.subr.mxu0 0.0
      %4990 = vmatpush1.msra.mxu0 0.0
      %4991 = vmatprep.subr.mxu0 0.0
      %4992 = vmatpush1.msra.mxu0 0.0
      %4993 = vmatprep.subr.mxu0 0.0
      %4994 = vmatpush1.msra.mxu0 0.0
      %4995 = vmatprep.subr.mxu0 0.0
      %4996 = vmatpush1.msra.mxu0 0.0
      %4997 = vmatprep.subr.mxu0 0.0
      %4998 = vmatpush1.msra.mxu0 0.0
      %4999 = vmatprep.subr.mxu0 0.0
      %v5000 = vand.u32 %v4967, 4294901760
      %5001 = vmatpush1.msra.mxu0 %v5000
      %5002 = vmatprep.subr.mxu0 0.0
      %5003 = vmatpush2.msra.mxu0 0.0
      %5004 = vmatprep.subr.mxu0 0.0
      %5005 = vmatpush2.msra.mxu0 0.0
      %5006 = vmatprep.subr.mxu0 0.0
      %5007 = vmatpush2.msra.mxu0 0.0
      %5008 = vmatprep.subr.mxu0 0.0
      %5009 = vmatpush2.msra.mxu0 0.0
      %5010 = vmatprep.subr.mxu0 0.0
      %5011 = vmatpush2.msra.mxu0 0.0
      %5012 = vmatprep.subr.mxu0 0.0
      %5013 = vmatpush2.msra.mxu0 0.0
      %5014 = vmatprep.subr.mxu0 0.0
      %5015 = vmatpush2.msra.mxu0 0.0
      %5016 = vmatprep.subr.mxu0 0.0
      %5017 = vmatpush2.msra.mxu0 0.0
      %5018 = vmatprep.subr.mxu0 0.0
      %5019 = vmatpush2.msra.mxu0 0.0
      %5020 = vmatprep.subr.mxu0 0.0
      %5021 = vmatpush2.msra.mxu0 0.0
      %5022 = vmatprep.subr.mxu0 0.0
      %5023 = vmatpush2.msra.mxu0 0.0
      %5024 = vmatprep.subr.mxu0 0.0
      %5025 = vmatpush2.msra.mxu0 0.0
      %5026 = vmatprep.subr.mxu0 0.0
      %5027 = vmatpush2.msra.mxu0 0.0
      %5028 = vmatprep.subr.mxu0 0.0
      %5029 = vmatpush2.msra.mxu0 0.0
      %5030 = vmatprep.subr.mxu0 0.0
      %5031 = vmatpush2.msra.mxu0 0.0
      %5032 = vmatprep.subr.mxu0 0.0
      %5033 = vmatpush2.msra.mxu0 0.0
      %5034 = vmatprep.mubr.f32.mxu0 0.0
      %v5035 = vand.u32 %v4919, 4294901760
      %v5036 = vsub.f32 %v4919, %v5035
      %v5037 = vand.u32 %v5036, 4294901760
      %v5038 = vsub.f32 %v5036, %v5037
      %v5039 = vand.u32 %v5038, 4294901760
      %5040 = vmatmul.mubr.f32.gmra.mxu0 %v5039
      %v5041 = vpop.f32.mrf.mxu0
      %v5042 = vadd.f32 0.0, %v5041
      %v5043 = vpop.f32.mrf.mxu0
      %5044 = vmatprep.mubr.f32.mxu0 0.0
      %v5045 = vand.u32 %v4922, 4294901760
      %v5046 = vsub.f32 %v4922, %v5045
      %v5047 = vand.u32 %v5046, 4294901760
      %v5048 = vsub.f32 %v5046, %v5047
      %v5049 = vand.u32 %v5048, 4294901760
      %5050 = vmatmul.mubr.f32.gmra.mxu0 %v5049
      %v5051 = vpop.f32.mrf.mxu0
      %v5052 = vadd.f32 0.0, %v5051
      %v5053 = vpop.f32.mrf.mxu0
      %5054 = vmatprep.mubr.f32.mxu0 0.0
      %v5055 = vand.u32 %v4925, 4294901760
      %v5056 = vsub.f32 %v4925, %v5055
      %v5057 = vand.u32 %v5056, 4294901760
      %v5058 = vsub.f32 %v5056, %v5057
      %v5059 = vand.u32 %v5058, 4294901760
      %5060 = vmatmul.mubr.f32.gmra.mxu0 %v5059
      %v5061 = vpop.f32.mrf.mxu0
      %v5062 = vadd.f32 0.0, %v5061
      %v5063 = vpop.f32.mrf.mxu0
      %5064 = vmatprep.mubr.f32.mxu0 0.0
      %v5065 = vand.u32 %v4928, 4294901760
      %v5066 = vsub.f32 %v4928, %v5065
      %v5067 = vand.u32 %v5066, 4294901760
      %v5068 = vsub.f32 %v5066, %v5067
      %v5069 = vand.u32 %v5068, 4294901760
      %5070 = vmatmul.mubr.f32.gmra.mxu0 %v5069
      %v5071 = vpop.f32.mrf.mxu0
      %v5072 = vadd.f32 0.0, %v5071
      %v5073 = vpop.f32.mrf.mxu0
      %5074 = vmatprep.mubr.f32.mxu0 0.0
      %v5075 = vand.u32 %v4931, 4294901760
      %v5076 = vsub.f32 %v4931, %v5075
      %v5077 = vand.u32 %v5076, 4294901760
      %v5078 = vsub.f32 %v5076, %v5077
      %v5079 = vand.u32 %v5078, 4294901760
      %5080 = vmatmul.mubr.f32.gmra.mxu0 %v5079
      %v5081 = vpop.f32.mrf.mxu0
      %v5082 = vadd.f32 0.0, %v5081
      %v5083 = vpop.f32.mrf.mxu0
      %5084 = vmatprep.mubr.f32.mxu0 0.0
      %v5085 = vand.u32 %v4934, 4294901760
      %v5086 = vsub.f32 %v4934, %v5085
      %v5087 = vand.u32 %v5086, 4294901760
      %v5088 = vsub.f32 %v5086, %v5087
      %v5089 = vand.u32 %v5088, 4294901760
      %5090 = vmatmul.mubr.f32.gmra.mxu0 %v5089
      %v5091 = vpop.f32.mrf.mxu0
      %v5092 = vadd.f32 0.0, %v5091
      %v5093 = vpop.f32.mrf.mxu0
      %5094 = vmatprep.mubr.f32.mxu0 0.0
      %v5095 = vand.u32 %v4937, 4294901760
      %v5096 = vsub.f32 %v4937, %v5095
      %v5097 = vand.u32 %v5096, 4294901760
      %v5098 = vsub.f32 %v5096, %v5097
      %v5099 = vand.u32 %v5098, 4294901760
      %5100 = vmatmul.mubr.f32.gmra.mxu0 %v5099
      %v5101 = vpop.f32.mrf.mxu0
      %v5102 = vadd.f32 0.0, %v5101
      %v5103 = vpop.f32.mrf.mxu0
      %5104 = vmatprep.mubr.f32.mxu0 0.0
      %v5105 = vand.u32 %v4940, 4294901760
      %v5106 = vsub.f32 %v4940, %v5105
      %v5107 = vand.u32 %v5106, 4294901760
      %v5108 = vsub.f32 %v5106, %v5107
      %v5109 = vand.u32 %v5108, 4294901760
      %5110 = vmatmul.mubr.f32.gmra.mxu0 %v5109
      %v5111 = vpop.f32.mrf.mxu0
      %v5112 = vadd.f32 0.0, %v5111
      %v5113 = vpop.f32.mrf.mxu0
      %5114 = vmatprep.mubr.f32.mxu0 0.0
      %v5115 = vand.u32 %v4943, 4294901760
      %v5116 = vsub.f32 %v4943, %v5115
      %v5117 = vand.u32 %v5116, 4294901760
      %v5118 = vsub.f32 %v5116, %v5117
      %v5119 = vand.u32 %v5118, 4294901760
      %5120 = vmatmul.mubr.f32.gmra.mxu0 %v5119
      %v5121 = vpop.f32.mrf.mxu0
      %v5122 = vadd.f32 0.0, %v5121
      %v5123 = vpop.f32.mrf.mxu0
      %5124 = vmatprep.mubr.f32.mxu0 0.0
      %v5125 = vand.u32 %v4946, 4294901760
      %v5126 = vsub.f32 %v4946, %v5125
      %v5127 = vand.u32 %v5126, 4294901760
      %v5128 = vsub.f32 %v5126, %v5127
      %v5129 = vand.u32 %v5128, 4294901760
      %5130 = vmatmul.mubr.f32.gmra.mxu0 %v5129
      %v5131 = vpop.f32.mrf.mxu0
      %v5132 = vadd.f32 0.0, %v5131
      %v5133 = vpop.f32.mrf.mxu0
      %5134 = vmatprep.mubr.f32.mxu0 0.0
      %v5135 = vand.u32 %v4949, 4294901760
      %v5136 = vsub.f32 %v4949, %v5135
      %v5137 = vand.u32 %v5136, 4294901760
      %v5138 = vsub.f32 %v5136, %v5137
      %v5139 = vand.u32 %v5138, 4294901760
      %5140 = vmatmul.mubr.f32.gmra.mxu0 %v5139
      %v5141 = vpop.f32.mrf.mxu0
      %v5142 = vadd.f32 0.0, %v5141
      %v5143 = vpop.f32.mrf.mxu0
      %5144 = vmatprep.mubr.f32.mxu0 0.0
      %v5145 = vand.u32 %v4952, 4294901760
      %v5146 = vsub.f32 %v4952, %v5145
      %v5147 = vand.u32 %v5146, 4294901760
      %v5148 = vsub.f32 %v5146, %v5147
      %v5149 = vand.u32 %v5148, 4294901760
      %5150 = vmatmul.mubr.f32.gmra.mxu0 %v5149
      %v5151 = vpop.f32.mrf.mxu0
      %v5152 = vadd.f32 0.0, %v5151
      %v5153 = vpop.f32.mrf.mxu0
      %5154 = vmatprep.mubr.f32.mxu0 0.0
      %v5155 = vand.u32 %v4955, 4294901760
      %v5156 = vsub.f32 %v4955, %v5155
      %v5157 = vand.u32 %v5156, 4294901760
      %v5158 = vsub.f32 %v5156, %v5157
      %v5159 = vand.u32 %v5158, 4294901760
      %5160 = vmatmul.mubr.f32.gmra.mxu0 %v5159
      %v5161 = vpop.f32.mrf.mxu0
      %v5162 = vadd.f32 0.0, %v5161
      %v5163 = vpop.f32.mrf.mxu0
      %5164 = vmatprep.mubr.f32.mxu0 0.0
      %v5165 = vand.u32 %v4958, 4294901760
      %v5166 = vsub.f32 %v4958, %v5165
      %v5167 = vand.u32 %v5166, 4294901760
      %v5168 = vsub.f32 %v5166, %v5167
      %v5169 = vand.u32 %v5168, 4294901760
      %5170 = vmatmul.mubr.f32.gmra.mxu0 %v5169
      %v5171 = vpop.f32.mrf.mxu0
      %v5172 = vadd.f32 0.0, %v5171
      %v5173 = vpop.f32.mrf.mxu0
      %5174 = vmatprep.mubr.f32.mxu0 0.0
      %v5175 = vand.u32 %v4961, 4294901760
      %v5176 = vsub.f32 %v4961, %v5175
      %v5177 = vand.u32 %v5176, 4294901760
      %v5178 = vsub.f32 %v5176, %v5177
      %v5179 = vand.u32 %v5178, 4294901760
      %5180 = vmatmul.mubr.f32.gmra.mxu0 %v5179
      %v5181 = vpop.f32.mrf.mxu0
      %v5182 = vadd.f32 0.0, %v5181
      %v5183 = vpop.f32.mrf.mxu0
      %5184 = vmatprep.mubr.f32.mxu0 0.0
      %v5185 = vand.u32 %v4964, 4294901760
      %v5186 = vsub.f32 %v4964, %v5185
      %v5187 = vand.u32 %v5186, 4294901760
      %v5188 = vsub.f32 %v5186, %v5187
      %v5189 = vand.u32 %v5188, 4294901760
      %5190 = vmatmul.mubr.f32.gmra.mxu0 %v5189
      %v5191 = vpop.f32.mrf.mxu0
      %v5192 = vadd.f32 0.0, %v5191
      %v5193 = vpop.f32.mrf.mxu0
      %5194 = vdwg.mxu0
      %5195 = vmatprep.subr.mxu0 0.0
      %5196 = vmatpush1.msra.mxu0 0.0
      %5197 = vmatprep.subr.mxu0 0.0
      %5198 = vmatpush1.msra.mxu0 0.0
      %5199 = vmatprep.subr.mxu0 0.0
      %5200 = vmatpush1.msra.mxu0 0.0
      %5201 = vmatprep.subr.mxu0 0.0
      %5202 = vmatpush1.msra.mxu0 0.0
      %5203 = vmatprep.subr.mxu0 0.0
      %5204 = vmatpush1.msra.mxu0 0.0
      %5205 = vmatprep.subr.mxu0 0.0
      %5206 = vmatpush1.msra.mxu0 0.0
      %5207 = vmatprep.subr.mxu0 0.0
      %5208 = vmatpush1.msra.mxu0 0.0
      %5209 = vmatprep.subr.mxu0 0.0
      %5210 = vmatpush1.msra.mxu0 0.0
      %5211 = vmatprep.subr.mxu0 0.0
      %5212 = vmatpush1.msra.mxu0 0.0
      %5213 = vmatprep.subr.mxu0 0.0
      %5214 = vmatpush1.msra.mxu0 0.0
      %5215 = vmatprep.subr.mxu0 0.0
      %5216 = vmatpush1.msra.mxu0 0.0
      %5217 = vmatprep.subr.mxu0 0.0
      %5218 = vmatpush1.msra.mxu0 0.0
      %5219 = vmatprep.subr.mxu0 0.0
      %5220 = vmatpush1.msra.mxu0 0.0
      %5221 = vmatprep.subr.mxu0 0.0
      %5222 = vmatpush1.msra.mxu0 0.0
      %5223 = vmatprep.subr.mxu0 0.0
      %5224 = vmatpush1.msra.mxu0 0.0
      %5225 = vmatprep.subr.mxu0 0.0
      %v5226 = vand.u32 %v4967, 4294901760
      %v5227 = vsub.f32 %v4967, %v5226
      %v5228 = vand.u32 %v5227, 4294901760
      %v5229 = vsub.f32 %v5227, %v5228
      %v5230 = vand.u32 %v5229, 4294901760
      %5231 = vmatpush1.msra.mxu0 %v5230
      %5232 = vmatprep.subr.mxu0 0.0
      %5233 = vmatpush2.msra.mxu0 0.0
      %5234 = vmatprep.subr.mxu0 0.0
      %5235 = vmatpush2.msra.mxu0 0.0
      %5236 = vmatprep.subr.mxu0 0.0
      %5237 = vmatpush2.msra.mxu0 0.0
      %5238 = vmatprep.subr.mxu0 0.0
      %5239 = vmatpush2.msra.mxu0 0.0
      %5240 = vmatprep.subr.mxu0 0.0
      %5241 = vmatpush2.msra.mxu0 0.0
      %5242 = vmatprep.subr.mxu0 0.0
      %5243 = vmatpush2.msra.mxu0 0.0
      %5244 = vmatprep.subr.mxu0 0.0
      %5245 = vmatpush2.msra.mxu0 0.0
      %5246 = vmatprep.subr.mxu0 0.0
      %5247 = vmatpush2.msra.mxu0 0.0
      %5248 = vmatprep.subr.mxu0 0.0
      %5249 = vmatpush2.msra.mxu0 0.0
      %5250 = vmatprep.subr.mxu0 0.0
      %5251 = vmatpush2.msra.mxu0 0.0
      %5252 = vmatprep.subr.mxu0 0.0
      %5253 = vmatpush2.msra.mxu0 0.0
      %5254 = vmatprep.subr.mxu0 0.0
      %5255 = vmatpush2.msra.mxu0 0.0
      %5256 = vmatprep.subr.mxu0 0.0
      %5257 = vmatpush2.msra.mxu0 0.0
      %5258 = vmatprep.subr.mxu0 0.0
      %5259 = vmatpush2.msra.mxu0 0.0
      %5260 = vmatprep.subr.mxu0 0.0
      %5261 = vmatpush2.msra.mxu0 0.0
      %5262 = vmatprep.subr.mxu0 0.0
      %5263 = vmatpush2.msra.mxu0 0.0
      %5264 = vmatprep.mubr.f32.mxu0 0.0
      %v5265 = vand.u32 %v4919, 4294901760
      %5266 = vmatmul.mubr.f32.gmra.mxu0 %v5265
      %v5267 = vpop.f32.mrf.mxu0
      %v5268 = vadd.f32 %v5042, %v5267
      %v5269 = vpop.f32.mrf.mxu0
      %5270 = vmatprep.mubr.f32.mxu0 0.0
      %v5271 = vand.u32 %v4922, 4294901760
      %5272 = vmatmul.mubr.f32.gmra.mxu0 %v5271
      %v5273 = vpop.f32.mrf.mxu0
      %v5274 = vadd.f32 %v5052, %v5273
      %v5275 = vpop.f32.mrf.mxu0
      %5276 = vmatprep.mubr.f32.mxu0 0.0
      %v5277 = vand.u32 %v4925, 4294901760
      %5278 = vmatmul.mubr.f32.gmra.mxu0 %v5277
      %v5279 = vpop.f32.mrf.mxu0
      %v5280 = vadd.f32 %v5062, %v5279
      %v5281 = vpop.f32.mrf.mxu0
      %5282 = vmatprep.mubr.f32.mxu0 0.0
      %v5283 = vand.u32 %v4928, 4294901760
      %5284 = vmatmul.mubr.f32.gmra.mxu0 %v5283
      %v5285 = vpop.f32.mrf.mxu0
      %v5286 = vadd.f32 %v5072, %v5285
      %v5287 = vpop.f32.mrf.mxu0
      %5288 = vmatprep.mubr.f32.mxu0 0.0
      %v5289 = vand.u32 %v4931, 4294901760
      %5290 = vmatmul.mubr.f32.gmra.mxu0 %v5289
      %v5291 = vpop.f32.mrf.mxu0
      %v5292 = vadd.f32 %v5082, %v5291
      %v5293 = vpop.f32.mrf.mxu0
      %5294 = vmatprep.mubr.f32.mxu0 0.0
      %v5295 = vand.u32 %v4934, 4294901760
      %5296 = vmatmul.mubr.f32.gmra.mxu0 %v5295
      %v5297 = vpop.f32.mrf.mxu0
      %v5298 = vadd.f32 %v5092, %v5297
      %v5299 = vpop.f32.mrf.mxu0
      %5300 = vmatprep.mubr.f32.mxu0 0.0
      %v5301 = vand.u32 %v4937, 4294901760
      %5302 = vmatmul.mubr.f32.gmra.mxu0 %v5301
      %v5303 = vpop.f32.mrf.mxu0
      %v5304 = vadd.f32 %v5102, %v5303
      %v5305 = vpop.f32.mrf.mxu0
      %5306 = vmatprep.mubr.f32.mxu0 0.0
      %v5307 = vand.u32 %v4940, 4294901760
      %5308 = vmatmul.mubr.f32.gmra.mxu0 %v5307
      %v5309 = vpop.f32.mrf.mxu0
      %v5310 = vadd.f32 %v5112, %v5309
      %v5311 = vpop.f32.mrf.mxu0
      %5312 = vmatprep.mubr.f32.mxu0 0.0
      %v5313 = vand.u32 %v4943, 4294901760
      %5314 = vmatmul.mubr.f32.gmra.mxu0 %v5313
      %v5315 = vpop.f32.mrf.mxu0
      %v5316 = vadd.f32 %v5122, %v5315
      %v5317 = vpop.f32.mrf.mxu0
      %5318 = vmatprep.mubr.f32.mxu0 0.0
      %v5319 = vand.u32 %v4946, 4294901760
      %5320 = vmatmul.mubr.f32.gmra.mxu0 %v5319
      %v5321 = vpop.f32.mrf.mxu0
      %v5322 = vadd.f32 %v5132, %v5321
      %v5323 = vpop.f32.mrf.mxu0
      %5324 = vmatprep.mubr.f32.mxu0 0.0
      %v5325 = vand.u32 %v4949, 4294901760
      %5326 = vmatmul.mubr.f32.gmra.mxu0 %v5325
      %v5327 = vpop.f32.mrf.mxu0
      %v5328 = vadd.f32 %v5142, %v5327
      %v5329 = vpop.f32.mrf.mxu0
      %5330 = vmatprep.mubr.f32.mxu0 0.0
      %v5331 = vand.u32 %v4952, 4294901760
      %5332 = vmatmul.mubr.f32.gmra.mxu0 %v5331
      %v5333 = vpop.f32.mrf.mxu0
      %v5334 = vadd.f32 %v5152, %v5333
      %v5335 = vpop.f32.mrf.mxu0
      %5336 = vmatprep.mubr.f32.mxu0 0.0
      %v5337 = vand.u32 %v4955, 4294901760
      %5338 = vmatmul.mubr.f32.gmra.mxu0 %v5337
      %v5339 = vpop.f32.mrf.mxu0
      %v5340 = vadd.f32 %v5162, %v5339
      %v5341 = vpop.f32.mrf.mxu0
      %5342 = vmatprep.mubr.f32.mxu0 0.0
      %v5343 = vand.u32 %v4958, 4294901760
      %5344 = vmatmul.mubr.f32.gmra.mxu0 %v5343
      %v5345 = vpop.f32.mrf.mxu0
      %v5346 = vadd.f32 %v5172, %v5345
      %v5347 = vpop.f32.mrf.mxu0
      %5348 = vmatprep.mubr.f32.mxu0 0.0
      %v5349 = vand.u32 %v4961, 4294901760
      %5350 = vmatmul.mubr.f32.gmra.mxu0 %v5349
      %v5351 = vpop.f32.mrf.mxu0
      %v5352 = vadd.f32 %v5182, %v5351
      %v5353 = vpop.f32.mrf.mxu0
      %5354 = vmatprep.mubr.f32.mxu0 0.0
      %v5355 = vand.u32 %v4964, 4294901760
      %5356 = vmatmul.mubr.f32.gmra.mxu0 %v5355
      %v5357 = vpop.f32.mrf.mxu0
      %v5358 = vadd.f32 %v5192, %v5357
      %v5359 = vpop.f32.mrf.mxu0
      %5360 = vdwg.mxu0
      %5361 = vmatprep.subr.mxu0 0.0
      %5362 = vmatpush1.msra.mxu0 0.0
      %5363 = vmatprep.subr.mxu0 0.0
      %5364 = vmatpush1.msra.mxu0 0.0
      %5365 = vmatprep.subr.mxu0 0.0
      %5366 = vmatpush1.msra.mxu0 0.0
      %5367 = vmatprep.subr.mxu0 0.0
      %5368 = vmatpush1.msra.mxu0 0.0
      %5369 = vmatprep.subr.mxu0 0.0
      %5370 = vmatpush1.msra.mxu0 0.0
      %5371 = vmatprep.subr.mxu0 0.0
      %5372 = vmatpush1.msra.mxu0 0.0
      %5373 = vmatprep.subr.mxu0 0.0
      %5374 = vmatpush1.msra.mxu0 0.0
      %5375 = vmatprep.subr.mxu0 0.0
      %5376 = vmatpush1.msra.mxu0 0.0
      %5377 = vmatprep.subr.mxu0 0.0
      %5378 = vmatpush1.msra.mxu0 0.0
      %5379 = vmatprep.subr.mxu0 0.0
      %5380 = vmatpush1.msra.mxu0 0.0
      %5381 = vmatprep.subr.mxu0 0.0
      %5382 = vmatpush1.msra.mxu0 0.0
      %5383 = vmatprep.subr.mxu0 0.0
      %5384 = vmatpush1.msra.mxu0 0.0
      %5385 = vmatprep.subr.mxu0 0.0
      %5386 = vmatpush1.msra.mxu0 0.0
      %5387 = vmatprep.subr.mxu0 0.0
      %5388 = vmatpush1.msra.mxu0 0.0
      %5389 = vmatprep.subr.mxu0 0.0
      %5390 = vmatpush1.msra.mxu0 0.0
      %5391 = vmatprep.subr.mxu0 0.0
      %v5392 = vand.u32 %v4967, 4294901760
      %v5393 = vsub.f32 %v4967, %v5392
      %5394 = vmatpush1.msra.mxu0 %v5393
      %5395 = vmatprep.subr.mxu0 0.0
      %5396 = vmatpush2.msra.mxu0 0.0
      %5397 = vmatprep.subr.mxu0 0.0
      %5398 = vmatpush2.msra.mxu0 0.0
      %5399 = vmatprep.subr.mxu0 0.0
      %5400 = vmatpush2.msra.mxu0 0.0
      %5401 = vmatprep.subr.mxu0 0.0
      %5402 = vmatpush2.msra.mxu0 0.0
      %5403 = vmatprep.subr.mxu0 0.0
      %5404 = vmatpush2.msra.mxu0 0.0
      %5405 = vmatprep.subr.mxu0 0.0
      %5406 = vmatpush2.msra.mxu0 0.0
      %5407 = vmatprep.subr.mxu0 0.0
      %5408 = vmatpush2.msra.mxu0 0.0
      %5409 = vmatprep.subr.mxu0 0.0
      %5410 = vmatpush2.msra.mxu0 0.0
      %5411 = vmatprep.subr.mxu0 0.0
      %5412 = vmatpush2.msra.mxu0 0.0
      %5413 = vmatprep.subr.mxu0 0.0
      %5414 = vmatpush2.msra.mxu0 0.0
      %5415 = vmatprep.subr.mxu0 0.0
      %5416 = vmatpush2.msra.mxu0 0.0
      %5417 = vmatprep.subr.mxu0 0.0
      %5418 = vmatpush2.msra.mxu0 0.0
      %5419 = vmatprep.subr.mxu0 0.0
      %5420 = vmatpush2.msra.mxu0 0.0
      %5421 = vmatprep.subr.mxu0 0.0
      %5422 = vmatpush2.msra.mxu0 0.0
      %5423 = vmatprep.subr.mxu0 0.0
      %5424 = vmatpush2.msra.mxu0 0.0
      %5425 = vmatprep.subr.mxu0 0.0
      %5426 = vmatpush2.msra.mxu0 0.0
      %5427 = vmatprep.mubr.f32.mxu0 0.0
      %v5428 = vand.u32 %v4919, 4294901760
      %v5429 = vsub.f32 %v4919, %v5428
      %5430 = vmatmul.mubr.f32.gmra.mxu0 %v5429
      %v5431 = vpop.f32.mrf.mxu0
      %v5432 = vadd.f32 %v5268, %v5431
      %v5433 = vpop.f32.mrf.mxu0
      %5434 = vmatprep.mubr.f32.mxu0 0.0
      %v5435 = vand.u32 %v4922, 4294901760
      %v5436 = vsub.f32 %v4922, %v5435
      %5437 = vmatmul.mubr.f32.gmra.mxu0 %v5436
      %v5438 = vpop.f32.mrf.mxu0
      %v5439 = vadd.f32 %v5274, %v5438
      %v5440 = vpop.f32.mrf.mxu0
      %5441 = vmatprep.mubr.f32.mxu0 0.0
      %v5442 = vand.u32 %v4925, 4294901760
      %v5443 = vsub.f32 %v4925, %v5442
      %5444 = vmatmul.mubr.f32.gmra.mxu0 %v5443
      %v5445 = vpop.f32.mrf.mxu0
      %v5446 = vadd.f32 %v5280, %v5445
      %v5447 = vpop.f32.mrf.mxu0
      %5448 = vmatprep.mubr.f32.mxu0 0.0
      %v5449 = vand.u32 %v4928, 4294901760
      %v5450 = vsub.f32 %v4928, %v5449
      %5451 = vmatmul.mubr.f32.gmra.mxu0 %v5450
      %v5452 = vpop.f32.mrf.mxu0
      %v5453 = vadd.f32 %v5286, %v5452
      %v5454 = vpop.f32.mrf.mxu0
      %5455 = vmatprep.mubr.f32.mxu0 0.0
      %v5456 = vand.u32 %v4931, 4294901760
      %v5457 = vsub.f32 %v4931, %v5456
      %5458 = vmatmul.mubr.f32.gmra.mxu0 %v5457
      %v5459 = vpop.f32.mrf.mxu0
      %v5460 = vadd.f32 %v5292, %v5459
      %v5461 = vpop.f32.mrf.mxu0
      %5462 = vmatprep.mubr.f32.mxu0 0.0
      %v5463 = vand.u32 %v4934, 4294901760
      %v5464 = vsub.f32 %v4934, %v5463
      %5465 = vmatmul.mubr.f32.gmra.mxu0 %v5464
      %v5466 = vpop.f32.mrf.mxu0
      %v5467 = vadd.f32 %v5298, %v5466
      %v5468 = vpop.f32.mrf.mxu0
      %5469 = vmatprep.mubr.f32.mxu0 0.0
      %v5470 = vand.u32 %v4937, 4294901760
      %v5471 = vsub.f32 %v4937, %v5470
      %5472 = vmatmul.mubr.f32.gmra.mxu0 %v5471
      %v5473 = vpop.f32.mrf.mxu0
      %v5474 = vadd.f32 %v5304, %v5473
      %v5475 = vpop.f32.mrf.mxu0
      %5476 = vmatprep.mubr.f32.mxu0 0.0
      %v5477 = vand.u32 %v4940, 4294901760
      %v5478 = vsub.f32 %v4940, %v5477
      %5479 = vmatmul.mubr.f32.gmra.mxu0 %v5478
      %v5480 = vpop.f32.mrf.mxu0
      %v5481 = vadd.f32 %v5310, %v5480
      %v5482 = vpop.f32.mrf.mxu0
      %5483 = vmatprep.mubr.f32.mxu0 0.0
      %v5484 = vand.u32 %v4943, 4294901760
      %v5485 = vsub.f32 %v4943, %v5484
      %5486 = vmatmul.mubr.f32.gmra.mxu0 %v5485
      %v5487 = vpop.f32.mrf.mxu0
      %v5488 = vadd.f32 %v5316, %v5487
      %v5489 = vpop.f32.mrf.mxu0
      %5490 = vmatprep.mubr.f32.mxu0 0.0
      %v5491 = vand.u32 %v4946, 4294901760
      %v5492 = vsub.f32 %v4946, %v5491
      %5493 = vmatmul.mubr.f32.gmra.mxu0 %v5492
      %v5494 = vpop.f32.mrf.mxu0
      %v5495 = vadd.f32 %v5322, %v5494
      %v5496 = vpop.f32.mrf.mxu0
      %5497 = vmatprep.mubr.f32.mxu0 0.0
      %v5498 = vand.u32 %v4949, 4294901760
      %v5499 = vsub.f32 %v4949, %v5498
      %5500 = vmatmul.mubr.f32.gmra.mxu0 %v5499
      %v5501 = vpop.f32.mrf.mxu0
      %v5502 = vadd.f32 %v5328, %v5501
      %v5503 = vpop.f32.mrf.mxu0
      %5504 = vmatprep.mubr.f32.mxu0 0.0
      %v5505 = vand.u32 %v4952, 4294901760
      %v5506 = vsub.f32 %v4952, %v5505
      %5507 = vmatmul.mubr.f32.gmra.mxu0 %v5506
      %v5508 = vpop.f32.mrf.mxu0
      %v5509 = vadd.f32 %v5334, %v5508
      %v5510 = vpop.f32.mrf.mxu0
      %5511 = vmatprep.mubr.f32.mxu0 0.0
      %v5512 = vand.u32 %v4955, 4294901760
      %v5513 = vsub.f32 %v4955, %v5512
      %5514 = vmatmul.mubr.f32.gmra.mxu0 %v5513
      %v5515 = vpop.f32.mrf.mxu0
      %v5516 = vadd.f32 %v5340, %v5515
      %v5517 = vpop.f32.mrf.mxu0
      %5518 = vmatprep.mubr.f32.mxu0 0.0
      %v5519 = vand.u32 %v4958, 4294901760
      %v5520 = vsub.f32 %v4958, %v5519
      %5521 = vmatmul.mubr.f32.gmra.mxu0 %v5520
      %v5522 = vpop.f32.mrf.mxu0
      %v5523 = vadd.f32 %v5346, %v5522
      %v5524 = vpop.f32.mrf.mxu0
      %5525 = vmatprep.mubr.f32.mxu0 0.0
      %v5526 = vand.u32 %v4961, 4294901760
      %v5527 = vsub.f32 %v4961, %v5526
      %5528 = vmatmul.mubr.f32.gmra.mxu0 %v5527
      %v5529 = vpop.f32.mrf.mxu0
      %v5530 = vadd.f32 %v5352, %v5529
      %v5531 = vpop.f32.mrf.mxu0
      %5532 = vmatprep.mubr.f32.mxu0 0.0
      %v5533 = vand.u32 %v4964, 4294901760
      %v5534 = vsub.f32 %v4964, %v5533
      %5535 = vmatmul.mubr.f32.gmra.mxu0 %v5534
      %v5536 = vpop.f32.mrf.mxu0
      %v5537 = vadd.f32 %v5358, %v5536
      %v5538 = vpop.f32.mrf.mxu0
      %5539 = vdwg.mxu0
      %5540 = vmatprep.subr.mxu0 0.0
      %5541 = vmatpush1.msra.mxu0 0.0
      %5542 = vmatprep.subr.mxu0 0.0
      %5543 = vmatpush1.msra.mxu0 0.0
      %5544 = vmatprep.subr.mxu0 0.0
      %5545 = vmatpush1.msra.mxu0 0.0
      %5546 = vmatprep.subr.mxu0 0.0
      %5547 = vmatpush1.msra.mxu0 0.0
      %5548 = vmatprep.subr.mxu0 0.0
      %5549 = vmatpush1.msra.mxu0 0.0
      %5550 = vmatprep.subr.mxu0 0.0
      %5551 = vmatpush1.msra.mxu0 0.0
      %5552 = vmatprep.subr.mxu0 0.0
      %5553 = vmatpush1.msra.mxu0 0.0
      %5554 = vmatprep.subr.mxu0 0.0
      %5555 = vmatpush1.msra.mxu0 0.0
      %5556 = vmatprep.subr.mxu0 0.0
      %5557 = vmatpush1.msra.mxu0 0.0
      %5558 = vmatprep.subr.mxu0 0.0
      %5559 = vmatpush1.msra.mxu0 0.0
      %5560 = vmatprep.subr.mxu0 0.0
      %5561 = vmatpush1.msra.mxu0 0.0
      %5562 = vmatprep.subr.mxu0 0.0
      %5563 = vmatpush1.msra.mxu0 0.0
      %5564 = vmatprep.subr.mxu0 0.0
      %5565 = vmatpush1.msra.mxu0 0.0
      %5566 = vmatprep.subr.mxu0 0.0
      %5567 = vmatpush1.msra.mxu0 0.0
      %5568 = vmatprep.subr.mxu0 0.0
      %5569 = vmatpush1.msra.mxu0 0.0
      %5570 = vmatprep.subr.mxu0 0.0
      %v5571 = vand.u32 %v4967, 4294901760
      %5572 = vmatpush1.msra.mxu0 %v5571
      %5573 = vmatprep.subr.mxu0 0.0
      %5574 = vmatpush2.msra.mxu0 0.0
      %5575 = vmatprep.subr.mxu0 0.0
      %5576 = vmatpush2.msra.mxu0 0.0
      %5577 = vmatprep.subr.mxu0 0.0
      %5578 = vmatpush2.msra.mxu0 0.0
      %5579 = vmatprep.subr.mxu0 0.0
      %5580 = vmatpush2.msra.mxu0 0.0
      %5581 = vmatprep.subr.mxu0 0.0
      %5582 = vmatpush2.msra.mxu0 0.0
      %5583 = vmatprep.subr.mxu0 0.0
      %5584 = vmatpush2.msra.mxu0 0.0
      %5585 = vmatprep.subr.mxu0 0.0
      %5586 = vmatpush2.msra.mxu0 0.0
      %5587 = vmatprep.subr.mxu0 0.0
      %5588 = vmatpush2.msra.mxu0 0.0
      %5589 = vmatprep.subr.mxu0 0.0
      %5590 = vmatpush2.msra.mxu0 0.0
      %5591 = vmatprep.subr.mxu0 0.0
      %5592 = vmatpush2.msra.mxu0 0.0
      %5593 = vmatprep.subr.mxu0 0.0
      %5594 = vmatpush2.msra.mxu0 0.0
      %5595 = vmatprep.subr.mxu0 0.0
      %5596 = vmatpush2.msra.mxu0 0.0
      %5597 = vmatprep.subr.mxu0 0.0
      %5598 = vmatpush2.msra.mxu0 0.0
      %5599 = vmatprep.subr.mxu0 0.0
      %5600 = vmatpush2.msra.mxu0 0.0
      %5601 = vmatprep.subr.mxu0 0.0
      %5602 = vmatpush2.msra.mxu0 0.0
      %5603 = vmatprep.subr.mxu0 0.0
      %5604 = vmatpush2.msra.mxu0 0.0
      %5605 = vmatprep.mubr.f32.mxu0 0.0
      %v5606 = vand.u32 %v4919, 4294901760
      %v5607 = vsub.f32 %v4919, %v5606
      %v5608 = vand.u32 %v5607, 4294901760
      %5609 = vmatmul.mubr.f32.gmra.mxu0 %v5608
      %v5610 = vpop.f32.mrf.mxu0
      %v5611 = vadd.f32 %v5432, %v5610
      %v5612 = vpop.f32.mrf.mxu0
      %5613 = vmatprep.mubr.f32.mxu0 0.0
      %v5614 = vand.u32 %v4922, 4294901760
      %v5615 = vsub.f32 %v4922, %v5614
      %v5616 = vand.u32 %v5615, 4294901760
      %5617 = vmatmul.mubr.f32.gmra.mxu0 %v5616
      %v5618 = vpop.f32.mrf.mxu0
      %v5619 = vadd.f32 %v5439, %v5618
      %v5620 = vpop.f32.mrf.mxu0
      %5621 = vmatprep.mubr.f32.mxu0 0.0
      %v5622 = vand.u32 %v4925, 4294901760
      %v5623 = vsub.f32 %v4925, %v5622
      %v5624 = vand.u32 %v5623, 4294901760
      %5625 = vmatmul.mubr.f32.gmra.mxu0 %v5624
      %v5626 = vpop.f32.mrf.mxu0
      %v5627 = vadd.f32 %v5446, %v5626
      %v5628 = vpop.f32.mrf.mxu0
      %5629 = vmatprep.mubr.f32.mxu0 0.0
      %v5630 = vand.u32 %v4928, 4294901760
      %v5631 = vsub.f32 %v4928, %v5630
      %v5632 = vand.u32 %v5631, 4294901760
      %5633 = vmatmul.mubr.f32.gmra.mxu0 %v5632
      %v5634 = vpop.f32.mrf.mxu0
      %v5635 = vadd.f32 %v5453, %v5634
      %v5636 = vpop.f32.mrf.mxu0
      %5637 = vmatprep.mubr.f32.mxu0 0.0
      %v5638 = vand.u32 %v4931, 4294901760
      %v5639 = vsub.f32 %v4931, %v5638
      %v5640 = vand.u32 %v5639, 4294901760
      %5641 = vmatmul.mubr.f32.gmra.mxu0 %v5640
      %v5642 = vpop.f32.mrf.mxu0
      %v5643 = vadd.f32 %v5460, %v5642
      %v5644 = vpop.f32.mrf.mxu0
      %5645 = vmatprep.mubr.f32.mxu0 0.0
      %v5646 = vand.u32 %v4934, 4294901760
      %v5647 = vsub.f32 %v4934, %v5646
      %v5648 = vand.u32 %v5647, 4294901760
      %5649 = vmatmul.mubr.f32.gmra.mxu0 %v5648
      %v5650 = vpop.f32.mrf.mxu0
      %v5651 = vadd.f32 %v5467, %v5650
      %v5652 = vpop.f32.mrf.mxu0
      %5653 = vmatprep.mubr.f32.mxu0 0.0
      %v5654 = vand.u32 %v4937, 4294901760
      %v5655 = vsub.f32 %v4937, %v5654
      %v5656 = vand.u32 %v5655, 4294901760
      %5657 = vmatmul.mubr.f32.gmra.mxu0 %v5656
      %v5658 = vpop.f32.mrf.mxu0
      %v5659 = vadd.f32 %v5474, %v5658
      %v5660 = vpop.f32.mrf.mxu0
      %5661 = vmatprep.mubr.f32.mxu0 0.0
      %v5662 = vand.u32 %v4940, 4294901760
      %v5663 = vsub.f32 %v4940, %v5662
      %v5664 = vand.u32 %v5663, 4294901760
      %5665 = vmatmul.mubr.f32.gmra.mxu0 %v5664
      %v5666 = vpop.f32.mrf.mxu0
      %v5667 = vadd.f32 %v5481, %v5666
      %v5668 = vpop.f32.mrf.mxu0
      %5669 = vmatprep.mubr.f32.mxu0 0.0
      %v5670 = vand.u32 %v4943, 4294901760
      %v5671 = vsub.f32 %v4943, %v5670
      %v5672 = vand.u32 %v5671, 4294901760
      %5673 = vmatmul.mubr.f32.gmra.mxu0 %v5672
      %v5674 = vpop.f32.mrf.mxu0
      %v5675 = vadd.f32 %v5488, %v5674
      %v5676 = vpop.f32.mrf.mxu0
      %5677 = vmatprep.mubr.f32.mxu0 0.0
      %v5678 = vand.u32 %v4946, 4294901760
      %v5679 = vsub.f32 %v4946, %v5678
      %v5680 = vand.u32 %v5679, 4294901760
      %5681 = vmatmul.mubr.f32.gmra.mxu0 %v5680
      %v5682 = vpop.f32.mrf.mxu0
      %v5683 = vadd.f32 %v5495, %v5682
      %v5684 = vpop.f32.mrf.mxu0
      %5685 = vmatprep.mubr.f32.mxu0 0.0
      %v5686 = vand.u32 %v4949, 4294901760
      %v5687 = vsub.f32 %v4949, %v5686
      %v5688 = vand.u32 %v5687, 4294901760
      %5689 = vmatmul.mubr.f32.gmra.mxu0 %v5688
      %v5690 = vpop.f32.mrf.mxu0
      %v5691 = vadd.f32 %v5502, %v5690
      %v5692 = vpop.f32.mrf.mxu0
      %5693 = vmatprep.mubr.f32.mxu0 0.0
      %v5694 = vand.u32 %v4952, 4294901760
      %v5695 = vsub.f32 %v4952, %v5694
      %v5696 = vand.u32 %v5695, 4294901760
      %5697 = vmatmul.mubr.f32.gmra.mxu0 %v5696
      %v5698 = vpop.f32.mrf.mxu0
      %v5699 = vadd.f32 %v5509, %v5698
      %v5700 = vpop.f32.mrf.mxu0
      %5701 = vmatprep.mubr.f32.mxu0 0.0
      %v5702 = vand.u32 %v4955, 4294901760
      %v5703 = vsub.f32 %v4955, %v5702
      %v5704 = vand.u32 %v5703, 4294901760
      %5705 = vmatmul.mubr.f32.gmra.mxu0 %v5704
      %v5706 = vpop.f32.mrf.mxu0
      %v5707 = vadd.f32 %v5516, %v5706
      %v5708 = vpop.f32.mrf.mxu0
      %5709 = vmatprep.mubr.f32.mxu0 0.0
      %v5710 = vand.u32 %v4958, 4294901760
      %v5711 = vsub.f32 %v4958, %v5710
      %v5712 = vand.u32 %v5711, 4294901760
      %5713 = vmatmul.mubr.f32.gmra.mxu0 %v5712
      %v5714 = vpop.f32.mrf.mxu0
      %v5715 = vadd.f32 %v5523, %v5714
      %v5716 = vpop.f32.mrf.mxu0
      %5717 = vmatprep.mubr.f32.mxu0 0.0
      %v5718 = vand.u32 %v4961, 4294901760
      %v5719 = vsub.f32 %v4961, %v5718
      %v5720 = vand.u32 %v5719, 4294901760
      %5721 = vmatmul.mubr.f32.gmra.mxu0 %v5720
      %v5722 = vpop.f32.mrf.mxu0
      %v5723 = vadd.f32 %v5530, %v5722
      %v5724 = vpop.f32.mrf.mxu0
      %5725 = vmatprep.mubr.f32.mxu0 0.0
      %v5726 = vand.u32 %v4964, 4294901760
      %v5727 = vsub.f32 %v4964, %v5726
      %v5728 = vand.u32 %v5727, 4294901760
      %5729 = vmatmul.mubr.f32.gmra.mxu0 %v5728
      %v5730 = vpop.f32.mrf.mxu0
      %v5731 = vadd.f32 %v5537, %v5730
      %v5732 = vpop.f32.mrf.mxu0
      %5733 = vdwg.mxu0
      %5734 = vmatprep.subr.mxu0 0.0
      %5735 = vmatpush1.msra.mxu0 0.0
      %5736 = vmatprep.subr.mxu0 0.0
      %5737 = vmatpush1.msra.mxu0 0.0
      %5738 = vmatprep.subr.mxu0 0.0
      %5739 = vmatpush1.msra.mxu0 0.0
      %5740 = vmatprep.subr.mxu0 0.0
      %5741 = vmatpush1.msra.mxu0 0.0
      %5742 = vmatprep.subr.mxu0 0.0
      %5743 = vmatpush1.msra.mxu0 0.0
      %5744 = vmatprep.subr.mxu0 0.0
      %5745 = vmatpush1.msra.mxu0 0.0
      %5746 = vmatprep.subr.mxu0 0.0
      %5747 = vmatpush1.msra.mxu0 0.0
      %5748 = vmatprep.subr.mxu0 0.0
      %5749 = vmatpush1.msra.mxu0 0.0
      %5750 = vmatprep.subr.mxu0 0.0
      %5751 = vmatpush1.msra.mxu0 0.0
      %5752 = vmatprep.subr.mxu0 0.0
      %5753 = vmatpush1.msra.mxu0 0.0
      %5754 = vmatprep.subr.mxu0 0.0
      %5755 = vmatpush1.msra.mxu0 0.0
      %5756 = vmatprep.subr.mxu0 0.0
      %5757 = vmatpush1.msra.mxu0 0.0
      %5758 = vmatprep.subr.mxu0 0.0
      %5759 = vmatpush1.msra.mxu0 0.0
      %5760 = vmatprep.subr.mxu0 0.0
      %5761 = vmatpush1.msra.mxu0 0.0
      %5762 = vmatprep.subr.mxu0 0.0
      %5763 = vmatpush1.msra.mxu0 0.0
      %5764 = vmatprep.subr.mxu0 0.0
      %v5765 = vand.u32 %v4967, 4294901760
      %v5766 = vsub.f32 %v4967, %v5765
      %v5767 = vand.u32 %v5766, 4294901760
      %5768 = vmatpush1.msra.mxu0 %v5767
      %5769 = vmatprep.subr.mxu0 0.0
      %5770 = vmatpush2.msra.mxu0 0.0
      %5771 = vmatprep.subr.mxu0 0.0
      %5772 = vmatpush2.msra.mxu0 0.0
      %5773 = vmatprep.subr.mxu0 0.0
      %5774 = vmatpush2.msra.mxu0 0.0
      %5775 = vmatprep.subr.mxu0 0.0
      %5776 = vmatpush2.msra.mxu0 0.0
      %5777 = vmatprep.subr.mxu0 0.0
      %5778 = vmatpush2.msra.mxu0 0.0
      %5779 = vmatprep.subr.mxu0 0.0
      %5780 = vmatpush2.msra.mxu0 0.0
      %5781 = vmatprep.subr.mxu0 0.0
      %5782 = vmatpush2.msra.mxu0 0.0
      %5783 = vmatprep.subr.mxu0 0.0
      %5784 = vmatpush2.msra.mxu0 0.0
      %5785 = vmatprep.subr.mxu0 0.0
      %5786 = vmatpush2.msra.mxu0 0.0
      %5787 = vmatprep.subr.mxu0 0.0
      %5788 = vmatpush2.msra.mxu0 0.0
      %5789 = vmatprep.subr.mxu0 0.0
      %5790 = vmatpush2.msra.mxu0 0.0
      %5791 = vmatprep.subr.mxu0 0.0
      %5792 = vmatpush2.msra.mxu0 0.0
      %5793 = vmatprep.subr.mxu0 0.0
      %5794 = vmatpush2.msra.mxu0 0.0
      %5795 = vmatprep.subr.mxu0 0.0
      %5796 = vmatpush2.msra.mxu0 0.0
      %5797 = vmatprep.subr.mxu0 0.0
      %5798 = vmatpush2.msra.mxu0 0.0
      %5799 = vmatprep.subr.mxu0 0.0
      %5800 = vmatpush2.msra.mxu0 0.0
      %5801 = vmatprep.mubr.f32.mxu0 0.0
      %v5802 = vand.u32 %v4919, 4294901760
      %5803 = vmatmul.mubr.f32.gmra.mxu0 %v5802
      %v5804 = vpop.f32.mrf.mxu0
      %v5805 = vadd.f32 %v5611, %v5804
      %v5806 = vpop.f32.mrf.mxu0
      %5807 = vmatprep.mubr.f32.mxu0 0.0
      %v5808 = vand.u32 %v4922, 4294901760
      %5809 = vmatmul.mubr.f32.gmra.mxu0 %v5808
      %v5810 = vpop.f32.mrf.mxu0
      %v5811 = vadd.f32 %v5619, %v5810
      %v5812 = vpop.f32.mrf.mxu0
      %5813 = vmatprep.mubr.f32.mxu0 0.0
      %v5814 = vand.u32 %v4925, 4294901760
      %5815 = vmatmul.mubr.f32.gmra.mxu0 %v5814
      %v5816 = vpop.f32.mrf.mxu0
      %v5817 = vadd.f32 %v5627, %v5816
      %v5818 = vpop.f32.mrf.mxu0
      %5819 = vmatprep.mubr.f32.mxu0 0.0
      %v5820 = vand.u32 %v4928, 4294901760
      %5821 = vmatmul.mubr.f32.gmra.mxu0 %v5820
      %v5822 = vpop.f32.mrf.mxu0
      %v5823 = vadd.f32 %v5635, %v5822
      %v5824 = vpop.f32.mrf.mxu0
      %5825 = vmatprep.mubr.f32.mxu0 0.0
      %v5826 = vand.u32 %v4931, 4294901760
      %5827 = vmatmul.mubr.f32.gmra.mxu0 %v5826
      %v5828 = vpop.f32.mrf.mxu0
      %v5829 = vadd.f32 %v5643, %v5828
      %v5830 = vpop.f32.mrf.mxu0
      %5831 = vmatprep.mubr.f32.mxu0 0.0
      %v5832 = vand.u32 %v4934, 4294901760
      %5833 = vmatmul.mubr.f32.gmra.mxu0 %v5832
      %v5834 = vpop.f32.mrf.mxu0
      %v5835 = vadd.f32 %v5651, %v5834
      %v5836 = vpop.f32.mrf.mxu0
      %5837 = vmatprep.mubr.f32.mxu0 0.0
      %v5838 = vand.u32 %v4937, 4294901760
      %5839 = vmatmul.mubr.f32.gmra.mxu0 %v5838
      %v5840 = vpop.f32.mrf.mxu0
      %v5841 = vadd.f32 %v5659, %v5840
      %v5842 = vpop.f32.mrf.mxu0
      %5843 = vmatprep.mubr.f32.mxu0 0.0
      %v5844 = vand.u32 %v4940, 4294901760
      %5845 = vmatmul.mubr.f32.gmra.mxu0 %v5844
      %v5846 = vpop.f32.mrf.mxu0
      %v5847 = vadd.f32 %v5667, %v5846
      %v5848 = vpop.f32.mrf.mxu0
      %5849 = vmatprep.mubr.f32.mxu0 0.0
      %v5850 = vand.u32 %v4943, 4294901760
      %5851 = vmatmul.mubr.f32.gmra.mxu0 %v5850
      %v5852 = vpop.f32.mrf.mxu0
      %v5853 = vadd.f32 %v5675, %v5852
      %v5854 = vpop.f32.mrf.mxu0
      %5855 = vmatprep.mubr.f32.mxu0 0.0
      %v5856 = vand.u32 %v4946, 4294901760
      %5857 = vmatmul.mubr.f32.gmra.mxu0 %v5856
      %v5858 = vpop.f32.mrf.mxu0
      %v5859 = vadd.f32 %v5683, %v5858
      %v5860 = vpop.f32.mrf.mxu0
      %5861 = vmatprep.mubr.f32.mxu0 0.0
      %v5862 = vand.u32 %v4949, 4294901760
      %5863 = vmatmul.mubr.f32.gmra.mxu0 %v5862
      %v5864 = vpop.f32.mrf.mxu0
      %v5865 = vadd.f32 %v5691, %v5864
      %v5866 = vpop.f32.mrf.mxu0
      %5867 = vmatprep.mubr.f32.mxu0 0.0
      %v5868 = vand.u32 %v4952, 4294901760
      %5869 = vmatmul.mubr.f32.gmra.mxu0 %v5868
      %v5870 = vpop.f32.mrf.mxu0
      %v5871 = vadd.f32 %v5699, %v5870
      %v5872 = vpop.f32.mrf.mxu0
      %5873 = vmatprep.mubr.f32.mxu0 0.0
      %v5874 = vand.u32 %v4955, 4294901760
      %5875 = vmatmul.mubr.f32.gmra.mxu0 %v5874
      %v5876 = vpop.f32.mrf.mxu0
      %v5877 = vadd.f32 %v5707, %v5876
      %v5878 = vpop.f32.mrf.mxu0
      %5879 = vmatprep.mubr.f32.mxu0 0.0
      %v5880 = vand.u32 %v4958, 4294901760
      %5881 = vmatmul.mubr.f32.gmra.mxu0 %v5880
      %v5882 = vpop.f32.mrf.mxu0
      %v5883 = vadd.f32 %v5715, %v5882
      %v5884 = vpop.f32.mrf.mxu0
      %5885 = vmatprep.mubr.f32.mxu0 0.0
      %v5886 = vand.u32 %v4961, 4294901760
      %5887 = vmatmul.mubr.f32.gmra.mxu0 %v5886
      %v5888 = vpop.f32.mrf.mxu0
      %v5889 = vadd.f32 %v5723, %v5888
      %v5890 = vpop.f32.mrf.mxu0
      %5891 = vmatprep.mubr.f32.mxu0 0.0
      %v5892 = vand.u32 %v4964, 4294901760
      %5893 = vmatmul.mubr.f32.gmra.mxu0 %v5892
      %v5894 = vpop.f32.mrf.mxu0
      %v5895 = vadd.f32 %v5731, %v5894
      %v5896 = vpop.f32.mrf.mxu0
      %5897 = vdwg.mxu0
      %5898 = vmatprep.subr.mxu0 0.0
      %5899 = vmatpush1.msra.mxu0 0.0
      %5900 = vmatprep.subr.mxu0 0.0
      %5901 = vmatpush1.msra.mxu0 0.0
      %5902 = vmatprep.subr.mxu0 0.0
      %5903 = vmatpush1.msra.mxu0 0.0
      %5904 = vmatprep.subr.mxu0 0.0
      %5905 = vmatpush1.msra.mxu0 0.0
      %5906 = vmatprep.subr.mxu0 0.0
      %5907 = vmatpush1.msra.mxu0 0.0
      %5908 = vmatprep.subr.mxu0 0.0
      %5909 = vmatpush1.msra.mxu0 0.0
      %5910 = vmatprep.subr.mxu0 0.0
      %5911 = vmatpush1.msra.mxu0 0.0
      %5912 = vmatprep.subr.mxu0 0.0
      %5913 = vmatpush1.msra.mxu0 0.0
      %5914 = vmatprep.subr.mxu0 0.0
      %5915 = vmatpush1.msra.mxu0 0.0
      %5916 = vmatprep.subr.mxu0 0.0
      %5917 = vmatpush1.msra.mxu0 0.0
      %5918 = vmatprep.subr.mxu0 0.0
      %5919 = vmatpush1.msra.mxu0 0.0
      %5920 = vmatprep.subr.mxu0 0.0
      %5921 = vmatpush1.msra.mxu0 0.0
      %5922 = vmatprep.subr.mxu0 0.0
      %5923 = vmatpush1.msra.mxu0 0.0
      %5924 = vmatprep.subr.mxu0 0.0
      %5925 = vmatpush1.msra.mxu0 0.0
      %5926 = vmatprep.subr.mxu0 0.0
      %5927 = vmatpush1.msra.mxu0 0.0
      %5928 = vmatprep.subr.mxu0 0.0
      %v5929 = vand.u32 %v4967, 4294901760
      %5930 = vmatpush1.msra.mxu0 %v5929
      %5931 = vmatprep.subr.mxu0 0.0
      %5932 = vmatpush2.msra.mxu0 0.0
      %5933 = vmatprep.subr.mxu0 0.0
      %5934 = vmatpush2.msra.mxu0 0.0
      %5935 = vmatprep.subr.mxu0 0.0
      %5936 = vmatpush2.msra.mxu0 0.0
      %5937 = vmatprep.subr.mxu0 0.0
      %5938 = vmatpush2.msra.mxu0 0.0
      %5939 = vmatprep.subr.mxu0 0.0
      %5940 = vmatpush2.msra.mxu0 0.0
      %5941 = vmatprep.subr.mxu0 0.0
      %5942 = vmatpush2.msra.mxu0 0.0
      %5943 = vmatprep.subr.mxu0 0.0
      %5944 = vmatpush2.msra.mxu0 0.0
      %5945 = vmatprep.subr.mxu0 0.0
      %5946 = vmatpush2.msra.mxu0 0.0
      %5947 = vmatprep.subr.mxu0 0.0
      %5948 = vmatpush2.msra.mxu0 0.0
      %5949 = vmatprep.subr.mxu0 0.0
      %5950 = vmatpush2.msra.mxu0 0.0
      %5951 = vmatprep.subr.mxu0 0.0
      %5952 = vmatpush2.msra.mxu0 0.0
      %5953 = vmatprep.subr.mxu0 0.0
      %5954 = vmatpush2.msra.mxu0 0.0
      %5955 = vmatprep.subr.mxu0 0.0
      %5956 = vmatpush2.msra.mxu0 0.0
      %5957 = vmatprep.subr.mxu0 0.0
      %5958 = vmatpush2.msra.mxu0 0.0
      %5959 = vmatprep.subr.mxu0 0.0
      %5960 = vmatpush2.msra.mxu0 0.0
      %5961 = vmatprep.subr.mxu0 0.0
      %5962 = vmatpush2.msra.mxu0 0.0
      %5963 = vmatprep.mubr.f32.mxu0 0.0
      %v5964 = vand.u32 %v4919, 4294901760
      %5965 = vmatmul.mubr.f32.gmra.mxu0 %v5964
      %v5966 = vpop.f32.mrf.mxu0
      %v5967 = vadd.f32 %v5805, %v5966
      %v5968 = vpop.f32.mrf.mxu0
      %5969 = vmatprep.mubr.f32.mxu0 0.0
      %v5970 = vand.u32 %v4922, 4294901760
      %5971 = vmatmul.mubr.f32.gmra.mxu0 %v5970
      %v5972 = vpop.f32.mrf.mxu0
      %v5973 = vadd.f32 %v5811, %v5972
      %v5974 = vpop.f32.mrf.mxu0
      %5975 = vmatprep.mubr.f32.mxu0 0.0
      %v5976 = vand.u32 %v4925, 4294901760
      %5977 = vmatmul.mubr.f32.gmra.mxu0 %v5976
      %v5978 = vpop.f32.mrf.mxu0
      %v5979 = vadd.f32 %v5817, %v5978
      %v5980 = vpop.f32.mrf.mxu0
      %5981 = vmatprep.mubr.f32.mxu0 0.0
      %v5982 = vand.u32 %v4928, 4294901760
      %5983 = vmatmul.mubr.f32.gmra.mxu0 %v5982
      %v5984 = vpop.f32.mrf.mxu0
      %v5985 = vadd.f32 %v5823, %v5984
      %v5986 = vpop.f32.mrf.mxu0
      %5987 = vmatprep.mubr.f32.mxu0 0.0
      %v5988 = vand.u32 %v4931, 4294901760
      %5989 = vmatmul.mubr.f32.gmra.mxu0 %v5988
      %v5990 = vpop.f32.mrf.mxu0
      %v5991 = vadd.f32 %v5829, %v5990
      %v5992 = vpop.f32.mrf.mxu0
      %5993 = vmatprep.mubr.f32.mxu0 0.0
      %v5994 = vand.u32 %v4934, 4294901760
      %5995 = vmatmul.mubr.f32.gmra.mxu0 %v5994
      %v5996 = vpop.f32.mrf.mxu0
      %v5997 = vadd.f32 %v5835, %v5996
      %v5998 = vpop.f32.mrf.mxu0
      %5999 = vmatprep.mubr.f32.mxu0 0.0
      %v6000 = vand.u32 %v4937, 4294901760
      %6001 = vmatmul.mubr.f32.gmra.mxu0 %v6000
      %v6002 = vpop.f32.mrf.mxu0
      %v6003 = vadd.f32 %v5841, %v6002
      %v6004 = vpop.f32.mrf.mxu0
      %6005 = vmatprep.mubr.f32.mxu0 0.0
      %v6006 = vand.u32 %v4940, 4294901760
      %6007 = vmatmul.mubr.f32.gmra.mxu0 %v6006
      %v6008 = vpop.f32.mrf.mxu0
      %v6009 = vadd.f32 %v5847, %v6008
      %v6010 = vpop.f32.mrf.mxu0
      %6011 = vmatprep.mubr.f32.mxu0 0.0
      %v6012 = vand.u32 %v4943, 4294901760
      %6013 = vmatmul.mubr.f32.gmra.mxu0 %v6012
      %v6014 = vpop.f32.mrf.mxu0
      %v6015 = vadd.f32 %v5853, %v6014
      %v6016 = vpop.f32.mrf.mxu0
      %6017 = vmatprep.mubr.f32.mxu0 0.0
      %v6018 = vand.u32 %v4946, 4294901760
      %6019 = vmatmul.mubr.f32.gmra.mxu0 %v6018
      %v6020 = vpop.f32.mrf.mxu0
      %v6021 = vadd.f32 %v5859, %v6020
      %v6022 = vpop.f32.mrf.mxu0
      %6023 = vmatprep.mubr.f32.mxu0 0.0
      %v6024 = vand.u32 %v4949, 4294901760
      %6025 = vmatmul.mubr.f32.gmra.mxu0 %v6024
      %v6026 = vpop.f32.mrf.mxu0
      %v6027 = vadd.f32 %v5865, %v6026
      %v6028 = vpop.f32.mrf.mxu0
      %6029 = vmatprep.mubr.f32.mxu0 0.0
      %v6030 = vand.u32 %v4952, 4294901760
      %6031 = vmatmul.mubr.f32.gmra.mxu0 %v6030
      %v6032 = vpop.f32.mrf.mxu0
      %v6033 = vadd.f32 %v5871, %v6032
      %v6034 = vpop.f32.mrf.mxu0
      %6035 = vmatprep.mubr.f32.mxu0 0.0
      %v6036 = vand.u32 %v4955, 4294901760
      %6037 = vmatmul.mubr.f32.gmra.mxu0 %v6036
      %v6038 = vpop.f32.mrf.mxu0
      %v6039 = vadd.f32 %v5877, %v6038
      %v6040 = vpop.f32.mrf.mxu0
      %6041 = vmatprep.mubr.f32.mxu0 0.0
      %v6042 = vand.u32 %v4958, 4294901760
      %6043 = vmatmul.mubr.f32.gmra.mxu0 %v6042
      %v6044 = vpop.f32.mrf.mxu0
      %v6045 = vadd.f32 %v5883, %v6044
      %v6046 = vpop.f32.mrf.mxu0
      %6047 = vmatprep.mubr.f32.mxu0 0.0
      %v6048 = vand.u32 %v4961, 4294901760
      %6049 = vmatmul.mubr.f32.gmra.mxu0 %v6048
      %v6050 = vpop.f32.mrf.mxu0
      %v6051 = vadd.f32 %v5889, %v6050
      %v6052 = vpop.f32.mrf.mxu0
      %6053 = vmatprep.mubr.f32.mxu0 0.0
      %v6054 = vand.u32 %v4964, 4294901760
      %6055 = vmatmul.mubr.f32.gmra.mxu0 %v6054
      %v6056 = vpop.f32.mrf.mxu0
      %v6057 = vadd.f32 %v5895, %v6056
      %v6058 = vpop.f32.mrf.mxu0
      %6059 = vdwg.mxu0
      %v6060 = vadd.f32 %v4884, %v5967
      %v6061 = vadd.f32 %v4885, %v5973
      %v6062 = vadd.f32 %v4886, %v5979
      %v6063 = vadd.f32 %v4887, %v5985
      %v6064 = vadd.f32 %v4888, %v5991
      %v6065 = vadd.f32 %v4889, %v5997
      %v6066 = vadd.f32 %v4890, %v6003
      %v6067 = vadd.f32 %v4891, %v6009
      %v6068 = vadd.f32 %v4892, %v6015
      %v6069 = vadd.f32 %v4893, %v6021
      %v6070 = vadd.f32 %v4894, %v6027
      %v6071 = vadd.f32 %v4895, %v6033
      %v6072 = vadd.f32 %v4896, %v6039
      %v6073 = vadd.f32 %v4897, %v6045
      %v6074 = vadd.f32 %v4898, %v6051
      %v6075 = vadd.f32 %v4899, %v6057
      %v6076 = vld [vmem:[%s3723 + $0x2] sm:$0xff]
      %v6077 = vld [vmem:[%s3723 + $0xa] sm:$0xff]
      %v6078 = vld [vmem:[%s3723 + $0x1a] sm:$0xff]
      %v6079 = vld [vmem:[%s3723 + $0x22] sm:$0xff]
      %v6080 = vld [vmem:[%s3723 + $0x32] sm:$0xff]
      %v6081 = vld [vmem:[%s3723 + $0x3a] sm:$0xff]
      %v6082 = vld [vmem:[%s3723 + $0x4a] sm:$0xff]
      %v6083 = vld [vmem:[%s3723 + $0x52] sm:$0xff]
      %v6084 = vld [vmem:[%s3723 + $0x62] sm:$0xff]
      %v6085 = vld [vmem:[%s3723 + $0x6a] sm:$0xff]
      %v6086 = vld [vmem:[%s3723 + $0x7a] sm:$0xff]
      %v6087 = vld [vmem:[%s3723 + $0x82] sm:$0xff]
      %v6088 = vld [vmem:[%s3723 + $0x92] sm:$0xff]
      %v6089 = vld [vmem:[%s3723 + $0x9a] sm:$0xff]
      %v6090 = vld [vmem:[%s3723 + $0xaa] sm:$0xff]
      %v6091 = vld [vmem:[%s3723 + $0xb2] sm:$0xff]
      %s6092 = scalar_lea.vmem %s1, 20
      %v6093 = vld [vmem:[%s6092] sm:$0xf]
      %v6095 = vsel %vm259, %v6076, 0
      %v6098 = vsel %vm259, %v6077, 0
      %v6101 = vsel %vm259, %v6078, 0
      %v6104 = vsel %vm259, %v6079, 0
      %v6107 = vsel %vm259, %v6080, 0
      %v6110 = vsel %vm259, %v6081, 0
      %v6113 = vsel %vm259, %v6082, 0
      %v6116 = vsel %vm259, %v6083, 0
      %v6119 = vsel %vm259, %v6084, 0
      %v6122 = vsel %vm259, %v6085, 0
      %v6125 = vsel %vm259, %v6086, 0
      %v6128 = vsel %vm259, %v6087, 0
      %v6131 = vsel %vm259, %v6088, 0
      %v6134 = vsel %vm259, %v6089, 0
      %v6137 = vsel %vm259, %v6090, 0
      %v6140 = vsel %vm259, %v6091, 0
      %v6143 = vsel %vm308, %v6093, 0
      %6145 = vmatprep.subr.mxu0 0.0
      %6146 = vmatpush1.msra.mxu0 0.0
      %6147 = vmatprep.subr.mxu0 0.0
      %6148 = vmatpush1.msra.mxu0 0.0
      %6149 = vmatprep.subr.mxu0 0.0
      %6150 = vmatpush1.msra.mxu0 0.0
      %6151 = vmatprep.subr.mxu0 0.0
      %6152 = vmatpush1.msra.mxu0 0.0
      %6153 = vmatprep.subr.mxu0 0.0
      %6154 = vmatpush1.msra.mxu0 0.0
      %6155 = vmatprep.subr.mxu0 0.0
      %6156 = vmatpush1.msra.mxu0 0.0
      %6157 = vmatprep.subr.mxu0 0.0
      %6158 = vmatpush1.msra.mxu0 0.0
      %6159 = vmatprep.subr.mxu0 0.0
      %6160 = vmatpush1.msra.mxu0 0.0
      %6161 = vmatprep.subr.mxu0 0.0
      %6162 = vmatpush1.msra.mxu0 0.0
      %6163 = vmatprep.subr.mxu0 0.0
      %6164 = vmatpush1.msra.mxu0 0.0
      %6165 = vmatprep.subr.mxu0 0.0
      %6166 = vmatpush1.msra.mxu0 0.0
      %6167 = vmatprep.subr.mxu0 0.0
      %6168 = vmatpush1.msra.mxu0 0.0
      %6169 = vmatprep.subr.mxu0 0.0
      %6170 = vmatpush1.msra.mxu0 0.0
      %6171 = vmatprep.subr.mxu0 0.0
      %6172 = vmatpush1.msra.mxu0 0.0
      %6173 = vmatprep.subr.mxu0 0.0
      %6174 = vmatpush1.msra.mxu0 0.0
      %6175 = vmatprep.subr.mxu0 0.0
      %v6176 = vand.u32 %v6143, 4294901760
      %6177 = vmatpush1.msra.mxu0 %v6176
      %6178 = vmatprep.subr.mxu0 0.0
      %6179 = vmatpush2.msra.mxu0 0.0
      %6180 = vmatprep.subr.mxu0 0.0
      %6181 = vmatpush2.msra.mxu0 0.0
      %6182 = vmatprep.subr.mxu0 0.0
      %6183 = vmatpush2.msra.mxu0 0.0
      %6184 = vmatprep.subr.mxu0 0.0
      %6185 = vmatpush2.msra.mxu0 0.0
      %6186 = vmatprep.subr.mxu0 0.0
      %6187 = vmatpush2.msra.mxu0 0.0
      %6188 = vmatprep.subr.mxu0 0.0
      %6189 = vmatpush2.msra.mxu0 0.0
      %6190 = vmatprep.subr.mxu0 0.0
      %6191 = vmatpush2.msra.mxu0 0.0
      %6192 = vmatprep.subr.mxu0 0.0
      %6193 = vmatpush2.msra.mxu0 0.0
      %6194 = vmatprep.subr.mxu0 0.0
      %6195 = vmatpush2.msra.mxu0 0.0
      %6196 = vmatprep.subr.mxu0 0.0
      %6197 = vmatpush2.msra.mxu0 0.0
      %6198 = vmatprep.subr.mxu0 0.0
      %6199 = vmatpush2.msra.mxu0 0.0
      %6200 = vmatprep.subr.mxu0 0.0
      %6201 = vmatpush2.msra.mxu0 0.0
      %6202 = vmatprep.subr.mxu0 0.0
      %6203 = vmatpush2.msra.mxu0 0.0
      %6204 = vmatprep.subr.mxu0 0.0
      %6205 = vmatpush2.msra.mxu0 0.0
      %6206 = vmatprep.subr.mxu0 0.0
      %6207 = vmatpush2.msra.mxu0 0.0
      %6208 = vmatprep.subr.mxu0 0.0
      %6209 = vmatpush2.msra.mxu0 0.0
      %6210 = vmatprep.mubr.f32.mxu0 0.0
      %v6211 = vand.u32 %v6095, 4294901760
      %v6212 = vsub.f32 %v6095, %v6211
      %v6213 = vand.u32 %v6212, 4294901760
      %v6214 = vsub.f32 %v6212, %v6213
      %v6215 = vand.u32 %v6214, 4294901760
      %6216 = vmatmul.mubr.f32.gmra.mxu0 %v6215
      %v6217 = vpop.f32.mrf.mxu0
      %v6218 = vadd.f32 0.0, %v6217
      %v6219 = vpop.f32.mrf.mxu0
      %6220 = vmatprep.mubr.f32.mxu0 0.0
      %v6221 = vand.u32 %v6098, 4294901760
      %v6222 = vsub.f32 %v6098, %v6221
      %v6223 = vand.u32 %v6222, 4294901760
      %v6224 = vsub.f32 %v6222, %v6223
      %v6225 = vand.u32 %v6224, 4294901760
      %6226 = vmatmul.mubr.f32.gmra.mxu0 %v6225
      %v6227 = vpop.f32.mrf.mxu0
      %v6228 = vadd.f32 0.0, %v6227
      %v6229 = vpop.f32.mrf.mxu0
      %6230 = vmatprep.mubr.f32.mxu0 0.0
      %v6231 = vand.u32 %v6101, 4294901760
      %v6232 = vsub.f32 %v6101, %v6231
      %v6233 = vand.u32 %v6232, 4294901760
      %v6234 = vsub.f32 %v6232, %v6233
      %v6235 = vand.u32 %v6234, 4294901760
      %6236 = vmatmul.mubr.f32.gmra.mxu0 %v6235
      %v6237 = vpop.f32.mrf.mxu0
      %v6238 = vadd.f32 0.0, %v6237
      %v6239 = vpop.f32.mrf.mxu0
      %6240 = vmatprep.mubr.f32.mxu0 0.0
      %v6241 = vand.u32 %v6104, 4294901760
      %v6242 = vsub.f32 %v6104, %v6241
      %v6243 = vand.u32 %v6242, 4294901760
      %v6244 = vsub.f32 %v6242, %v6243
      %v6245 = vand.u32 %v6244, 4294901760
      %6246 = vmatmul.mubr.f32.gmra.mxu0 %v6245
      %v6247 = vpop.f32.mrf.mxu0
      %v6248 = vadd.f32 0.0, %v6247
      %v6249 = vpop.f32.mrf.mxu0
      %6250 = vmatprep.mubr.f32.mxu0 0.0
      %v6251 = vand.u32 %v6107, 4294901760
      %v6252 = vsub.f32 %v6107, %v6251
      %v6253 = vand.u32 %v6252, 4294901760
      %v6254 = vsub.f32 %v6252, %v6253
      %v6255 = vand.u32 %v6254, 4294901760
      %6256 = vmatmul.mubr.f32.gmra.mxu0 %v6255
      %v6257 = vpop.f32.mrf.mxu0
      %v6258 = vadd.f32 0.0, %v6257
      %v6259 = vpop.f32.mrf.mxu0
      %6260 = vmatprep.mubr.f32.mxu0 0.0
      %v6261 = vand.u32 %v6110, 4294901760
      %v6262 = vsub.f32 %v6110, %v6261
      %v6263 = vand.u32 %v6262, 4294901760
      %v6264 = vsub.f32 %v6262, %v6263
      %v6265 = vand.u32 %v6264, 4294901760
      %6266 = vmatmul.mubr.f32.gmra.mxu0 %v6265
      %v6267 = vpop.f32.mrf.mxu0
      %v6268 = vadd.f32 0.0, %v6267
      %v6269 = vpop.f32.mrf.mxu0
      %6270 = vmatprep.mubr.f32.mxu0 0.0
      %v6271 = vand.u32 %v6113, 4294901760
      %v6272 = vsub.f32 %v6113, %v6271
      %v6273 = vand.u32 %v6272, 4294901760
      %v6274 = vsub.f32 %v6272, %v6273
      %v6275 = vand.u32 %v6274, 4294901760
      %6276 = vmatmul.mubr.f32.gmra.mxu0 %v6275
      %v6277 = vpop.f32.mrf.mxu0
      %v6278 = vadd.f32 0.0, %v6277
      %v6279 = vpop.f32.mrf.mxu0
      %6280 = vmatprep.mubr.f32.mxu0 0.0
      %v6281 = vand.u32 %v6116, 4294901760
      %v6282 = vsub.f32 %v6116, %v6281
      %v6283 = vand.u32 %v6282, 4294901760
      %v6284 = vsub.f32 %v6282, %v6283
      %v6285 = vand.u32 %v6284, 4294901760
      %6286 = vmatmul.mubr.f32.gmra.mxu0 %v6285
      %v6287 = vpop.f32.mrf.mxu0
      %v6288 = vadd.f32 0.0, %v6287
      %v6289 = vpop.f32.mrf.mxu0
      %6290 = vmatprep.mubr.f32.mxu0 0.0
      %v6291 = vand.u32 %v6119, 4294901760
      %v6292 = vsub.f32 %v6119, %v6291
      %v6293 = vand.u32 %v6292, 4294901760
      %v6294 = vsub.f32 %v6292, %v6293
      %v6295 = vand.u32 %v6294, 4294901760
      %6296 = vmatmul.mubr.f32.gmra.mxu0 %v6295
      %v6297 = vpop.f32.mrf.mxu0
      %v6298 = vadd.f32 0.0, %v6297
      %v6299 = vpop.f32.mrf.mxu0
      %6300 = vmatprep.mubr.f32.mxu0 0.0
      %v6301 = vand.u32 %v6122, 4294901760
      %v6302 = vsub.f32 %v6122, %v6301
      %v6303 = vand.u32 %v6302, 4294901760
      %v6304 = vsub.f32 %v6302, %v6303
      %v6305 = vand.u32 %v6304, 4294901760
      %6306 = vmatmul.mubr.f32.gmra.mxu0 %v6305
      %v6307 = vpop.f32.mrf.mxu0
      %v6308 = vadd.f32 0.0, %v6307
      %v6309 = vpop.f32.mrf.mxu0
      %6310 = vmatprep.mubr.f32.mxu0 0.0
      %v6311 = vand.u32 %v6125, 4294901760
      %v6312 = vsub.f32 %v6125, %v6311
      %v6313 = vand.u32 %v6312, 4294901760
      %v6314 = vsub.f32 %v6312, %v6313
      %v6315 = vand.u32 %v6314, 4294901760
      %6316 = vmatmul.mubr.f32.gmra.mxu0 %v6315
      %v6317 = vpop.f32.mrf.mxu0
      %v6318 = vadd.f32 0.0, %v6317
      %v6319 = vpop.f32.mrf.mxu0
      %6320 = vmatprep.mubr.f32.mxu0 0.0
      %v6321 = vand.u32 %v6128, 4294901760
      %v6322 = vsub.f32 %v6128, %v6321
      %v6323 = vand.u32 %v6322, 4294901760
      %v6324 = vsub.f32 %v6322, %v6323
      %v6325 = vand.u32 %v6324, 4294901760
      %6326 = vmatmul.mubr.f32.gmra.mxu0 %v6325
      %v6327 = vpop.f32.mrf.mxu0
      %v6328 = vadd.f32 0.0, %v6327
      %v6329 = vpop.f32.mrf.mxu0
      %6330 = vmatprep.mubr.f32.mxu0 0.0
      %v6331 = vand.u32 %v6131, 4294901760
      %v6332 = vsub.f32 %v6131, %v6331
      %v6333 = vand.u32 %v6332, 4294901760
      %v6334 = vsub.f32 %v6332, %v6333
      %v6335 = vand.u32 %v6334, 4294901760
      %6336 = vmatmul.mubr.f32.gmra.mxu0 %v6335
      %v6337 = vpop.f32.mrf.mxu0
      %v6338 = vadd.f32 0.0, %v6337
      %v6339 = vpop.f32.mrf.mxu0
      %6340 = vmatprep.mubr.f32.mxu0 0.0
      %v6341 = vand.u32 %v6134, 4294901760
      %v6342 = vsub.f32 %v6134, %v6341
      %v6343 = vand.u32 %v6342, 4294901760
      %v6344 = vsub.f32 %v6342, %v6343
      %v6345 = vand.u32 %v6344, 4294901760
      %6346 = vmatmul.mubr.f32.gmra.mxu0 %v6345
      %v6347 = vpop.f32.mrf.mxu0
      %v6348 = vadd.f32 0.0, %v6347
      %v6349 = vpop.f32.mrf.mxu0
      %6350 = vmatprep.mubr.f32.mxu0 0.0
      %v6351 = vand.u32 %v6137, 4294901760
      %v6352 = vsub.f32 %v6137, %v6351
      %v6353 = vand.u32 %v6352, 4294901760
      %v6354 = vsub.f32 %v6352, %v6353
      %v6355 = vand.u32 %v6354, 4294901760
      %6356 = vmatmul.mubr.f32.gmra.mxu0 %v6355
      %v6357 = vpop.f32.mrf.mxu0
      %v6358 = vadd.f32 0.0, %v6357
      %v6359 = vpop.f32.mrf.mxu0
      %6360 = vmatprep.mubr.f32.mxu0 0.0
      %v6361 = vand.u32 %v6140, 4294901760
      %v6362 = vsub.f32 %v6140, %v6361
      %v6363 = vand.u32 %v6362, 4294901760
      %v6364 = vsub.f32 %v6362, %v6363
      %v6365 = vand.u32 %v6364, 4294901760
      %6366 = vmatmul.mubr.f32.gmra.mxu0 %v6365
      %v6367 = vpop.f32.mrf.mxu0
      %v6368 = vadd.f32 0.0, %v6367
      %v6369 = vpop.f32.mrf.mxu0
      %6370 = vdwg.mxu0
      %6371 = vmatprep.subr.mxu0 0.0
      %6372 = vmatpush1.msra.mxu0 0.0
      %6373 = vmatprep.subr.mxu0 0.0
      %6374 = vmatpush1.msra.mxu0 0.0
      %6375 = vmatprep.subr.mxu0 0.0
      %6376 = vmatpush1.msra.mxu0 0.0
      %6377 = vmatprep.subr.mxu0 0.0
      %6378 = vmatpush1.msra.mxu0 0.0
      %6379 = vmatprep.subr.mxu0 0.0
      %6380 = vmatpush1.msra.mxu0 0.0
      %6381 = vmatprep.subr.mxu0 0.0
      %6382 = vmatpush1.msra.mxu0 0.0
      %6383 = vmatprep.subr.mxu0 0.0
      %6384 = vmatpush1.msra.mxu0 0.0
      %6385 = vmatprep.subr.mxu0 0.0
      %6386 = vmatpush1.msra.mxu0 0.0
      %6387 = vmatprep.subr.mxu0 0.0
      %6388 = vmatpush1.msra.mxu0 0.0
      %6389 = vmatprep.subr.mxu0 0.0
      %6390 = vmatpush1.msra.mxu0 0.0
      %6391 = vmatprep.subr.mxu0 0.0
      %6392 = vmatpush1.msra.mxu0 0.0
      %6393 = vmatprep.subr.mxu0 0.0
      %6394 = vmatpush1.msra.mxu0 0.0
      %6395 = vmatprep.subr.mxu0 0.0
      %6396 = vmatpush1.msra.mxu0 0.0
      %6397 = vmatprep.subr.mxu0 0.0
      %6398 = vmatpush1.msra.mxu0 0.0
      %6399 = vmatprep.subr.mxu0 0.0
      %6400 = vmatpush1.msra.mxu0 0.0
      %6401 = vmatprep.subr.mxu0 0.0
      %v6402 = vand.u32 %v6143, 4294901760
      %v6403 = vsub.f32 %v6143, %v6402
      %v6404 = vand.u32 %v6403, 4294901760
      %v6405 = vsub.f32 %v6403, %v6404
      %v6406 = vand.u32 %v6405, 4294901760
      %6407 = vmatpush1.msra.mxu0 %v6406
      %6408 = vmatprep.subr.mxu0 0.0
      %6409 = vmatpush2.msra.mxu0 0.0
      %6410 = vmatprep.subr.mxu0 0.0
      %6411 = vmatpush2.msra.mxu0 0.0
      %6412 = vmatprep.subr.mxu0 0.0
      %6413 = vmatpush2.msra.mxu0 0.0
      %6414 = vmatprep.subr.mxu0 0.0
      %6415 = vmatpush2.msra.mxu0 0.0
      %6416 = vmatprep.subr.mxu0 0.0
      %6417 = vmatpush2.msra.mxu0 0.0
      %6418 = vmatprep.subr.mxu0 0.0
      %6419 = vmatpush2.msra.mxu0 0.0
      %6420 = vmatprep.subr.mxu0 0.0
      %6421 = vmatpush2.msra.mxu0 0.0
      %6422 = vmatprep.subr.mxu0 0.0
      %6423 = vmatpush2.msra.mxu0 0.0
      %6424 = vmatprep.subr.mxu0 0.0
      %6425 = vmatpush2.msra.mxu0 0.0
      %6426 = vmatprep.subr.mxu0 0.0
      %6427 = vmatpush2.msra.mxu0 0.0
      %6428 = vmatprep.subr.mxu0 0.0
      %6429 = vmatpush2.msra.mxu0 0.0
      %6430 = vmatprep.subr.mxu0 0.0
      %6431 = vmatpush2.msra.mxu0 0.0
      %6432 = vmatprep.subr.mxu0 0.0
      %6433 = vmatpush2.msra.mxu0 0.0
      %6434 = vmatprep.subr.mxu0 0.0
      %6435 = vmatpush2.msra.mxu0 0.0
      %6436 = vmatprep.subr.mxu0 0.0
      %6437 = vmatpush2.msra.mxu0 0.0
      %6438 = vmatprep.subr.mxu0 0.0
      %6439 = vmatpush2.msra.mxu0 0.0
      %6440 = vmatprep.mubr.f32.mxu0 0.0
      %v6441 = vand.u32 %v6095, 4294901760
      %6442 = vmatmul.mubr.f32.gmra.mxu0 %v6441
      %v6443 = vpop.f32.mrf.mxu0
      %v6444 = vadd.f32 %v6218, %v6443
      %v6445 = vpop.f32.mrf.mxu0
      %6446 = vmatprep.mubr.f32.mxu0 0.0
      %v6447 = vand.u32 %v6098, 4294901760
      %6448 = vmatmul.mubr.f32.gmra.mxu0 %v6447
      %v6449 = vpop.f32.mrf.mxu0
      %v6450 = vadd.f32 %v6228, %v6449
      %v6451 = vpop.f32.mrf.mxu0
      %6452 = vmatprep.mubr.f32.mxu0 0.0
      %v6453 = vand.u32 %v6101, 4294901760
      %6454 = vmatmul.mubr.f32.gmra.mxu0 %v6453
      %v6455 = vpop.f32.mrf.mxu0
      %v6456 = vadd.f32 %v6238, %v6455
      %v6457 = vpop.f32.mrf.mxu0
      %6458 = vmatprep.mubr.f32.mxu0 0.0
      %v6459 = vand.u32 %v6104, 4294901760
      %6460 = vmatmul.mubr.f32.gmra.mxu0 %v6459
      %v6461 = vpop.f32.mrf.mxu0
      %v6462 = vadd.f32 %v6248, %v6461
      %v6463 = vpop.f32.mrf.mxu0
      %6464 = vmatprep.mubr.f32.mxu0 0.0
      %v6465 = vand.u32 %v6107, 4294901760
      %6466 = vmatmul.mubr.f32.gmra.mxu0 %v6465
      %v6467 = vpop.f32.mrf.mxu0
      %v6468 = vadd.f32 %v6258, %v6467
      %v6469 = vpop.f32.mrf.mxu0
      %6470 = vmatprep.mubr.f32.mxu0 0.0
      %v6471 = vand.u32 %v6110, 4294901760
      %6472 = vmatmul.mubr.f32.gmra.mxu0 %v6471
      %v6473 = vpop.f32.mrf.mxu0
      %v6474 = vadd.f32 %v6268, %v6473
      %v6475 = vpop.f32.mrf.mxu0
      %6476 = vmatprep.mubr.f32.mxu0 0.0
      %v6477 = vand.u32 %v6113, 4294901760
      %6478 = vmatmul.mubr.f32.gmra.mxu0 %v6477
      %v6479 = vpop.f32.mrf.mxu0
      %v6480 = vadd.f32 %v6278, %v6479
      %v6481 = vpop.f32.mrf.mxu0
      %6482 = vmatprep.mubr.f32.mxu0 0.0
      %v6483 = vand.u32 %v6116, 4294901760
      %6484 = vmatmul.mubr.f32.gmra.mxu0 %v6483
      %v6485 = vpop.f32.mrf.mxu0
      %v6486 = vadd.f32 %v6288, %v6485
      %v6487 = vpop.f32.mrf.mxu0
      %6488 = vmatprep.mubr.f32.mxu0 0.0
      %v6489 = vand.u32 %v6119, 4294901760
      %6490 = vmatmul.mubr.f32.gmra.mxu0 %v6489
      %v6491 = vpop.f32.mrf.mxu0
      %v6492 = vadd.f32 %v6298, %v6491
      %v6493 = vpop.f32.mrf.mxu0
      %6494 = vmatprep.mubr.f32.mxu0 0.0
      %v6495 = vand.u32 %v6122, 4294901760
      %6496 = vmatmul.mubr.f32.gmra.mxu0 %v6495
      %v6497 = vpop.f32.mrf.mxu0
      %v6498 = vadd.f32 %v6308, %v6497
      %v6499 = vpop.f32.mrf.mxu0
      %6500 = vmatprep.mubr.f32.mxu0 0.0
      %v6501 = vand.u32 %v6125, 4294901760
      %6502 = vmatmul.mubr.f32.gmra.mxu0 %v6501
      %v6503 = vpop.f32.mrf.mxu0
      %v6504 = vadd.f32 %v6318, %v6503
      %v6505 = vpop.f32.mrf.mxu0
      %6506 = vmatprep.mubr.f32.mxu0 0.0
      %v6507 = vand.u32 %v6128, 4294901760
      %6508 = vmatmul.mubr.f32.gmra.mxu0 %v6507
      %v6509 = vpop.f32.mrf.mxu0
      %v6510 = vadd.f32 %v6328, %v6509
      %v6511 = vpop.f32.mrf.mxu0
      %6512 = vmatprep.mubr.f32.mxu0 0.0
      %v6513 = vand.u32 %v6131, 4294901760
      %6514 = vmatmul.mubr.f32.gmra.mxu0 %v6513
      %v6515 = vpop.f32.mrf.mxu0
      %v6516 = vadd.f32 %v6338, %v6515
      %v6517 = vpop.f32.mrf.mxu0
      %6518 = vmatprep.mubr.f32.mxu0 0.0
      %v6519 = vand.u32 %v6134, 4294901760
      %6520 = vmatmul.mubr.f32.gmra.mxu0 %v6519
      %v6521 = vpop.f32.mrf.mxu0
      %v6522 = vadd.f32 %v6348, %v6521
      %v6523 = vpop.f32.mrf.mxu0
      %6524 = vmatprep.mubr.f32.mxu0 0.0
      %v6525 = vand.u32 %v6137, 4294901760
      %6526 = vmatmul.mubr.f32.gmra.mxu0 %v6525
      %v6527 = vpop.f32.mrf.mxu0
      %v6528 = vadd.f32 %v6358, %v6527
      %v6529 = vpop.f32.mrf.mxu0
      %6530 = vmatprep.mubr.f32.mxu0 0.0
      %v6531 = vand.u32 %v6140, 4294901760
      %6532 = vmatmul.mubr.f32.gmra.mxu0 %v6531
      %v6533 = vpop.f32.mrf.mxu0
      %v6534 = vadd.f32 %v6368, %v6533
      %v6535 = vpop.f32.mrf.mxu0
      %6536 = vdwg.mxu0
      %6537 = vmatprep.subr.mxu0 0.0
      %6538 = vmatpush1.msra.mxu0 0.0
      %6539 = vmatprep.subr.mxu0 0.0
      %6540 = vmatpush1.msra.mxu0 0.0
      %6541 = vmatprep.subr.mxu0 0.0
      %6542 = vmatpush1.msra.mxu0 0.0
      %6543 = vmatprep.subr.mxu0 0.0
      %6544 = vmatpush1.msra.mxu0 0.0
      %6545 = vmatprep.subr.mxu0 0.0
      %6546 = vmatpush1.msra.mxu0 0.0
      %6547 = vmatprep.subr.mxu0 0.0
      %6548 = vmatpush1.msra.mxu0 0.0
      %6549 = vmatprep.subr.mxu0 0.0
      %6550 = vmatpush1.msra.mxu0 0.0
      %6551 = vmatprep.subr.mxu0 0.0
      %6552 = vmatpush1.msra.mxu0 0.0
      %6553 = vmatprep.subr.mxu0 0.0
      %6554 = vmatpush1.msra.mxu0 0.0
      %6555 = vmatprep.subr.mxu0 0.0
      %6556 = vmatpush1.msra.mxu0 0.0
      %6557 = vmatprep.subr.mxu0 0.0
      %6558 = vmatpush1.msra.mxu0 0.0
      %6559 = vmatprep.subr.mxu0 0.0
      %6560 = vmatpush1.msra.mxu0 0.0
      %6561 = vmatprep.subr.mxu0 0.0
      %6562 = vmatpush1.msra.mxu0 0.0
      %6563 = vmatprep.subr.mxu0 0.0
      %6564 = vmatpush1.msra.mxu0 0.0
      %6565 = vmatprep.subr.mxu0 0.0
      %6566 = vmatpush1.msra.mxu0 0.0
      %6567 = vmatprep.subr.mxu0 0.0
      %v6568 = vand.u32 %v6143, 4294901760
      %v6569 = vsub.f32 %v6143, %v6568
      %6570 = vmatpush1.msra.mxu0 %v6569
      %6571 = vmatprep.subr.mxu0 0.0
      %6572 = vmatpush2.msra.mxu0 0.0
      %6573 = vmatprep.subr.mxu0 0.0
      %6574 = vmatpush2.msra.mxu0 0.0
      %6575 = vmatprep.subr.mxu0 0.0
      %6576 = vmatpush2.msra.mxu0 0.0
      %6577 = vmatprep.subr.mxu0 0.0
      %6578 = vmatpush2.msra.mxu0 0.0
      %6579 = vmatprep.subr.mxu0 0.0
      %6580 = vmatpush2.msra.mxu0 0.0
      %6581 = vmatprep.subr.mxu0 0.0
      %6582 = vmatpush2.msra.mxu0 0.0
      %6583 = vmatprep.subr.mxu0 0.0
      %6584 = vmatpush2.msra.mxu0 0.0
      %6585 = vmatprep.subr.mxu0 0.0
      %6586 = vmatpush2.msra.mxu0 0.0
      %6587 = vmatprep.subr.mxu0 0.0
      %6588 = vmatpush2.msra.mxu0 0.0
      %6589 = vmatprep.subr.mxu0 0.0
      %6590 = vmatpush2.msra.mxu0 0.0
      %6591 = vmatprep.subr.mxu0 0.0
      %6592 = vmatpush2.msra.mxu0 0.0
      %6593 = vmatprep.subr.mxu0 0.0
      %6594 = vmatpush2.msra.mxu0 0.0
      %6595 = vmatprep.subr.mxu0 0.0
      %6596 = vmatpush2.msra.mxu0 0.0
      %6597 = vmatprep.subr.mxu0 0.0
      %6598 = vmatpush2.msra.mxu0 0.0
      %6599 = vmatprep.subr.mxu0 0.0
      %6600 = vmatpush2.msra.mxu0 0.0
      %6601 = vmatprep.subr.mxu0 0.0
      %6602 = vmatpush2.msra.mxu0 0.0
      %6603 = vmatprep.mubr.f32.mxu0 0.0
      %v6604 = vand.u32 %v6095, 4294901760
      %v6605 = vsub.f32 %v6095, %v6604
      %6606 = vmatmul.mubr.f32.gmra.mxu0 %v6605
      %v6607 = vpop.f32.mrf.mxu0
      %v6608 = vadd.f32 %v6444, %v6607
      %v6609 = vpop.f32.mrf.mxu0
      %6610 = vmatprep.mubr.f32.mxu0 0.0
      %v6611 = vand.u32 %v6098, 4294901760
      %v6612 = vsub.f32 %v6098, %v6611
      %6613 = vmatmul.mubr.f32.gmra.mxu0 %v6612
      %v6614 = vpop.f32.mrf.mxu0
      %v6615 = vadd.f32 %v6450, %v6614
      %v6616 = vpop.f32.mrf.mxu0
      %6617 = vmatprep.mubr.f32.mxu0 0.0
      %v6618 = vand.u32 %v6101, 4294901760
      %v6619 = vsub.f32 %v6101, %v6618
      %6620 = vmatmul.mubr.f32.gmra.mxu0 %v6619
      %v6621 = vpop.f32.mrf.mxu0
      %v6622 = vadd.f32 %v6456, %v6621
      %v6623 = vpop.f32.mrf.mxu0
      %6624 = vmatprep.mubr.f32.mxu0 0.0
      %v6625 = vand.u32 %v6104, 4294901760
      %v6626 = vsub.f32 %v6104, %v6625
      %6627 = vmatmul.mubr.f32.gmra.mxu0 %v6626
      %v6628 = vpop.f32.mrf.mxu0
      %v6629 = vadd.f32 %v6462, %v6628
      %v6630 = vpop.f32.mrf.mxu0
      %6631 = vmatprep.mubr.f32.mxu0 0.0
      %v6632 = vand.u32 %v6107, 4294901760
      %v6633 = vsub.f32 %v6107, %v6632
      %6634 = vmatmul.mubr.f32.gmra.mxu0 %v6633
      %v6635 = vpop.f32.mrf.mxu0
      %v6636 = vadd.f32 %v6468, %v6635
      %v6637 = vpop.f32.mrf.mxu0
      %6638 = vmatprep.mubr.f32.mxu0 0.0
      %v6639 = vand.u32 %v6110, 4294901760
      %v6640 = vsub.f32 %v6110, %v6639
      %6641 = vmatmul.mubr.f32.gmra.mxu0 %v6640
      %v6642 = vpop.f32.mrf.mxu0
      %v6643 = vadd.f32 %v6474, %v6642
      %v6644 = vpop.f32.mrf.mxu0
      %6645 = vmatprep.mubr.f32.mxu0 0.0
      %v6646 = vand.u32 %v6113, 4294901760
      %v6647 = vsub.f32 %v6113, %v6646
      %6648 = vmatmul.mubr.f32.gmra.mxu0 %v6647
      %v6649 = vpop.f32.mrf.mxu0
      %v6650 = vadd.f32 %v6480, %v6649
      %v6651 = vpop.f32.mrf.mxu0
      %6652 = vmatprep.mubr.f32.mxu0 0.0
      %v6653 = vand.u32 %v6116, 4294901760
      %v6654 = vsub.f32 %v6116, %v6653
      %6655 = vmatmul.mubr.f32.gmra.mxu0 %v6654
      %v6656 = vpop.f32.mrf.mxu0
      %v6657 = vadd.f32 %v6486, %v6656
      %v6658 = vpop.f32.mrf.mxu0
      %6659 = vmatprep.mubr.f32.mxu0 0.0
      %v6660 = vand.u32 %v6119, 4294901760
      %v6661 = vsub.f32 %v6119, %v6660
      %6662 = vmatmul.mubr.f32.gmra.mxu0 %v6661
      %v6663 = vpop.f32.mrf.mxu0
      %v6664 = vadd.f32 %v6492, %v6663
      %v6665 = vpop.f32.mrf.mxu0
      %6666 = vmatprep.mubr.f32.mxu0 0.0
      %v6667 = vand.u32 %v6122, 4294901760
      %v6668 = vsub.f32 %v6122, %v6667
      %6669 = vmatmul.mubr.f32.gmra.mxu0 %v6668
      %v6670 = vpop.f32.mrf.mxu0
      %v6671 = vadd.f32 %v6498, %v6670
      %v6672 = vpop.f32.mrf.mxu0
      %6673 = vmatprep.mubr.f32.mxu0 0.0
      %v6674 = vand.u32 %v6125, 4294901760
      %v6675 = vsub.f32 %v6125, %v6674
      %6676 = vmatmul.mubr.f32.gmra.mxu0 %v6675
      %v6677 = vpop.f32.mrf.mxu0
      %v6678 = vadd.f32 %v6504, %v6677
      %v6679 = vpop.f32.mrf.mxu0
      %6680 = vmatprep.mubr.f32.mxu0 0.0
      %v6681 = vand.u32 %v6128, 4294901760
      %v6682 = vsub.f32 %v6128, %v6681
      %6683 = vmatmul.mubr.f32.gmra.mxu0 %v6682
      %v6684 = vpop.f32.mrf.mxu0
      %v6685 = vadd.f32 %v6510, %v6684
      %v6686 = vpop.f32.mrf.mxu0
      %6687 = vmatprep.mubr.f32.mxu0 0.0
      %v6688 = vand.u32 %v6131, 4294901760
      %v6689 = vsub.f32 %v6131, %v6688
      %6690 = vmatmul.mubr.f32.gmra.mxu0 %v6689
      %v6691 = vpop.f32.mrf.mxu0
      %v6692 = vadd.f32 %v6516, %v6691
      %v6693 = vpop.f32.mrf.mxu0
      %6694 = vmatprep.mubr.f32.mxu0 0.0
      %v6695 = vand.u32 %v6134, 4294901760
      %v6696 = vsub.f32 %v6134, %v6695
      %6697 = vmatmul.mubr.f32.gmra.mxu0 %v6696
      %v6698 = vpop.f32.mrf.mxu0
      %v6699 = vadd.f32 %v6522, %v6698
      %v6700 = vpop.f32.mrf.mxu0
      %6701 = vmatprep.mubr.f32.mxu0 0.0
      %v6702 = vand.u32 %v6137, 4294901760
      %v6703 = vsub.f32 %v6137, %v6702
      %6704 = vmatmul.mubr.f32.gmra.mxu0 %v6703
      %v6705 = vpop.f32.mrf.mxu0
      %v6706 = vadd.f32 %v6528, %v6705
      %v6707 = vpop.f32.mrf.mxu0
      %6708 = vmatprep.mubr.f32.mxu0 0.0
      %v6709 = vand.u32 %v6140, 4294901760
      %v6710 = vsub.f32 %v6140, %v6709
      %6711 = vmatmul.mubr.f32.gmra.mxu0 %v6710
      %v6712 = vpop.f32.mrf.mxu0
      %v6713 = vadd.f32 %v6534, %v6712
      %v6714 = vpop.f32.mrf.mxu0
      %6715 = vdwg.mxu0
      %6716 = vmatprep.subr.mxu0 0.0
      %6717 = vmatpush1.msra.mxu0 0.0
      %6718 = vmatprep.subr.mxu0 0.0
      %6719 = vmatpush1.msra.mxu0 0.0
      %6720 = vmatprep.subr.mxu0 0.0
      %6721 = vmatpush1.msra.mxu0 0.0
      %6722 = vmatprep.subr.mxu0 0.0
      %6723 = vmatpush1.msra.mxu0 0.0
      %6724 = vmatprep.subr.mxu0 0.0
      %6725 = vmatpush1.msra.mxu0 0.0
      %6726 = vmatprep.subr.mxu0 0.0
      %6727 = vmatpush1.msra.mxu0 0.0
      %6728 = vmatprep.subr.mxu0 0.0
      %6729 = vmatpush1.msra.mxu0 0.0
      %6730 = vmatprep.subr.mxu0 0.0
      %6731 = vmatpush1.msra.mxu0 0.0
      %6732 = vmatprep.subr.mxu0 0.0
      %6733 = vmatpush1.msra.mxu0 0.0
      %6734 = vmatprep.subr.mxu0 0.0
      %6735 = vmatpush1.msra.mxu0 0.0
      %6736 = vmatprep.subr.mxu0 0.0
      %6737 = vmatpush1.msra.mxu0 0.0
      %6738 = vmatprep.subr.mxu0 0.0
      %6739 = vmatpush1.msra.mxu0 0.0
      %6740 = vmatprep.subr.mxu0 0.0
      %6741 = vmatpush1.msra.mxu0 0.0
      %6742 = vmatprep.subr.mxu0 0.0
      %6743 = vmatpush1.msra.mxu0 0.0
      %6744 = vmatprep.subr.mxu0 0.0
      %6745 = vmatpush1.msra.mxu0 0.0
      %6746 = vmatprep.subr.mxu0 0.0
      %v6747 = vand.u32 %v6143, 4294901760
      %6748 = vmatpush1.msra.mxu0 %v6747
      %6749 = vmatprep.subr.mxu0 0.0
      %6750 = vmatpush2.msra.mxu0 0.0
      %6751 = vmatprep.subr.mxu0 0.0
      %6752 = vmatpush2.msra.mxu0 0.0
      %6753 = vmatprep.subr.mxu0 0.0
      %6754 = vmatpush2.msra.mxu0 0.0
      %6755 = vmatprep.subr.mxu0 0.0
      %6756 = vmatpush2.msra.mxu0 0.0
      %6757 = vmatprep.subr.mxu0 0.0
      %6758 = vmatpush2.msra.mxu0 0.0
      %6759 = vmatprep.subr.mxu0 0.0
      %6760 = vmatpush2.msra.mxu0 0.0
      %6761 = vmatprep.subr.mxu0 0.0
      %6762 = vmatpush2.msra.mxu0 0.0
      %6763 = vmatprep.subr.mxu0 0.0
      %6764 = vmatpush2.msra.mxu0 0.0
      %6765 = vmatprep.subr.mxu0 0.0
      %6766 = vmatpush2.msra.mxu0 0.0
      %6767 = vmatprep.subr.mxu0 0.0
      %6768 = vmatpush2.msra.mxu0 0.0
      %6769 = vmatprep.subr.mxu0 0.0
      %6770 = vmatpush2.msra.mxu0 0.0
      %6771 = vmatprep.subr.mxu0 0.0
      %6772 = vmatpush2.msra.mxu0 0.0
      %6773 = vmatprep.subr.mxu0 0.0
      %6774 = vmatpush2.msra.mxu0 0.0
      %6775 = vmatprep.subr.mxu0 0.0
      %6776 = vmatpush2.msra.mxu0 0.0
      %6777 = vmatprep.subr.mxu0 0.0
      %6778 = vmatpush2.msra.mxu0 0.0
      %6779 = vmatprep.subr.mxu0 0.0
      %6780 = vmatpush2.msra.mxu0 0.0
      %6781 = vmatprep.mubr.f32.mxu0 0.0
      %v6782 = vand.u32 %v6095, 4294901760
      %v6783 = vsub.f32 %v6095, %v6782
      %v6784 = vand.u32 %v6783, 4294901760
      %6785 = vmatmul.mubr.f32.gmra.mxu0 %v6784
      %v6786 = vpop.f32.mrf.mxu0
      %v6787 = vadd.f32 %v6608, %v6786
      %v6788 = vpop.f32.mrf.mxu0
      %6789 = vmatprep.mubr.f32.mxu0 0.0
      %v6790 = vand.u32 %v6098, 4294901760
      %v6791 = vsub.f32 %v6098, %v6790
      %v6792 = vand.u32 %v6791, 4294901760
      %6793 = vmatmul.mubr.f32.gmra.mxu0 %v6792
      %v6794 = vpop.f32.mrf.mxu0
      %v6795 = vadd.f32 %v6615, %v6794
      %v6796 = vpop.f32.mrf.mxu0
      %6797 = vmatprep.mubr.f32.mxu0 0.0
      %v6798 = vand.u32 %v6101, 4294901760
      %v6799 = vsub.f32 %v6101, %v6798
      %v6800 = vand.u32 %v6799, 4294901760
      %6801 = vmatmul.mubr.f32.gmra.mxu0 %v6800
      %v6802 = vpop.f32.mrf.mxu0
      %v6803 = vadd.f32 %v6622, %v6802
      %v6804 = vpop.f32.mrf.mxu0
      %6805 = vmatprep.mubr.f32.mxu0 0.0
      %v6806 = vand.u32 %v6104, 4294901760
      %v6807 = vsub.f32 %v6104, %v6806
      %v6808 = vand.u32 %v6807, 4294901760
      %6809 = vmatmul.mubr.f32.gmra.mxu0 %v6808
      %v6810 = vpop.f32.mrf.mxu0
      %v6811 = vadd.f32 %v6629, %v6810
      %v6812 = vpop.f32.mrf.mxu0
      %6813 = vmatprep.mubr.f32.mxu0 0.0
      %v6814 = vand.u32 %v6107, 4294901760
      %v6815 = vsub.f32 %v6107, %v6814
      %v6816 = vand.u32 %v6815, 4294901760
      %6817 = vmatmul.mubr.f32.gmra.mxu0 %v6816
      %v6818 = vpop.f32.mrf.mxu0
      %v6819 = vadd.f32 %v6636, %v6818
      %v6820 = vpop.f32.mrf.mxu0
      %6821 = vmatprep.mubr.f32.mxu0 0.0
      %v6822 = vand.u32 %v6110, 4294901760
      %v6823 = vsub.f32 %v6110, %v6822
      %v6824 = vand.u32 %v6823, 4294901760
      %6825 = vmatmul.mubr.f32.gmra.mxu0 %v6824
      %v6826 = vpop.f32.mrf.mxu0
      %v6827 = vadd.f32 %v6643, %v6826
      %v6828 = vpop.f32.mrf.mxu0
      %6829 = vmatprep.mubr.f32.mxu0 0.0
      %v6830 = vand.u32 %v6113, 4294901760
      %v6831 = vsub.f32 %v6113, %v6830
      %v6832 = vand.u32 %v6831, 4294901760
      %6833 = vmatmul.mubr.f32.gmra.mxu0 %v6832
      %v6834 = vpop.f32.mrf.mxu0
      %v6835 = vadd.f32 %v6650, %v6834
      %v6836 = vpop.f32.mrf.mxu0
      %6837 = vmatprep.mubr.f32.mxu0 0.0
      %v6838 = vand.u32 %v6116, 4294901760
      %v6839 = vsub.f32 %v6116, %v6838
      %v6840 = vand.u32 %v6839, 4294901760
      %6841 = vmatmul.mubr.f32.gmra.mxu0 %v6840
      %v6842 = vpop.f32.mrf.mxu0
      %v6843 = vadd.f32 %v6657, %v6842
      %v6844 = vpop.f32.mrf.mxu0
      %6845 = vmatprep.mubr.f32.mxu0 0.0
      %v6846 = vand.u32 %v6119, 4294901760
      %v6847 = vsub.f32 %v6119, %v6846
      %v6848 = vand.u32 %v6847, 4294901760
      %6849 = vmatmul.mubr.f32.gmra.mxu0 %v6848
      %v6850 = vpop.f32.mrf.mxu0
      %v6851 = vadd.f32 %v6664, %v6850
      %v6852 = vpop.f32.mrf.mxu0
      %6853 = vmatprep.mubr.f32.mxu0 0.0
      %v6854 = vand.u32 %v6122, 4294901760
      %v6855 = vsub.f32 %v6122, %v6854
      %v6856 = vand.u32 %v6855, 4294901760
      %6857 = vmatmul.mubr.f32.gmra.mxu0 %v6856
      %v6858 = vpop.f32.mrf.mxu0
      %v6859 = vadd.f32 %v6671, %v6858
      %v6860 = vpop.f32.mrf.mxu0
      %6861 = vmatprep.mubr.f32.mxu0 0.0
      %v6862 = vand.u32 %v6125, 4294901760
      %v6863 = vsub.f32 %v6125, %v6862
      %v6864 = vand.u32 %v6863, 4294901760
      %6865 = vmatmul.mubr.f32.gmra.mxu0 %v6864
      %v6866 = vpop.f32.mrf.mxu0
      %v6867 = vadd.f32 %v6678, %v6866
      %v6868 = vpop.f32.mrf.mxu0
      %6869 = vmatprep.mubr.f32.mxu0 0.0
      %v6870 = vand.u32 %v6128, 4294901760
      %v6871 = vsub.f32 %v6128, %v6870
      %v6872 = vand.u32 %v6871, 4294901760
      %6873 = vmatmul.mubr.f32.gmra.mxu0 %v6872
      %v6874 = vpop.f32.mrf.mxu0
      %v6875 = vadd.f32 %v6685, %v6874
      %v6876 = vpop.f32.mrf.mxu0
      %6877 = vmatprep.mubr.f32.mxu0 0.0
      %v6878 = vand.u32 %v6131, 4294901760
      %v6879 = vsub.f32 %v6131, %v6878
      %v6880 = vand.u32 %v6879, 4294901760
      %6881 = vmatmul.mubr.f32.gmra.mxu0 %v6880
      %v6882 = vpop.f32.mrf.mxu0
      %v6883 = vadd.f32 %v6692, %v6882
      %v6884 = vpop.f32.mrf.mxu0
      %6885 = vmatprep.mubr.f32.mxu0 0.0
      %v6886 = vand.u32 %v6134, 4294901760
      %v6887 = vsub.f32 %v6134, %v6886
      %v6888 = vand.u32 %v6887, 4294901760
      %6889 = vmatmul.mubr.f32.gmra.mxu0 %v6888
      %v6890 = vpop.f32.mrf.mxu0
      %v6891 = vadd.f32 %v6699, %v6890
      %v6892 = vpop.f32.mrf.mxu0
      %6893 = vmatprep.mubr.f32.mxu0 0.0
      %v6894 = vand.u32 %v6137, 4294901760
      %v6895 = vsub.f32 %v6137, %v6894
      %v6896 = vand.u32 %v6895, 4294901760
      %6897 = vmatmul.mubr.f32.gmra.mxu0 %v6896
      %v6898 = vpop.f32.mrf.mxu0
      %v6899 = vadd.f32 %v6706, %v6898
      %v6900 = vpop.f32.mrf.mxu0
      %6901 = vmatprep.mubr.f32.mxu0 0.0
      %v6902 = vand.u32 %v6140, 4294901760
      %v6903 = vsub.f32 %v6140, %v6902
      %v6904 = vand.u32 %v6903, 4294901760
      %6905 = vmatmul.mubr.f32.gmra.mxu0 %v6904
      %v6906 = vpop.f32.mrf.mxu0
      %v6907 = vadd.f32 %v6713, %v6906
      %v6908 = vpop.f32.mrf.mxu0
      %6909 = vdwg.mxu0
      %6910 = vmatprep.subr.mxu0 0.0
      %6911 = vmatpush1.msra.mxu0 0.0
      %6912 = vmatprep.subr.mxu0 0.0
      %6913 = vmatpush1.msra.mxu0 0.0
      %6914 = vmatprep.subr.mxu0 0.0
      %6915 = vmatpush1.msra.mxu0 0.0
      %6916 = vmatprep.subr.mxu0 0.0
      %6917 = vmatpush1.msra.mxu0 0.0
      %6918 = vmatprep.subr.mxu0 0.0
      %6919 = vmatpush1.msra.mxu0 0.0
      %6920 = vmatprep.subr.mxu0 0.0
      %6921 = vmatpush1.msra.mxu0 0.0
      %6922 = vmatprep.subr.mxu0 0.0
      %6923 = vmatpush1.msra.mxu0 0.0
      %6924 = vmatprep.subr.mxu0 0.0
      %6925 = vmatpush1.msra.mxu0 0.0
      %6926 = vmatprep.subr.mxu0 0.0
      %6927 = vmatpush1.msra.mxu0 0.0
      %6928 = vmatprep.subr.mxu0 0.0
      %6929 = vmatpush1.msra.mxu0 0.0
      %6930 = vmatprep.subr.mxu0 0.0
      %6931 = vmatpush1.msra.mxu0 0.0
      %6932 = vmatprep.subr.mxu0 0.0
      %6933 = vmatpush1.msra.mxu0 0.0
      %6934 = vmatprep.subr.mxu0 0.0
      %6935 = vmatpush1.msra.mxu0 0.0
      %6936 = vmatprep.subr.mxu0 0.0
      %6937 = vmatpush1.msra.mxu0 0.0
      %6938 = vmatprep.subr.mxu0 0.0
      %6939 = vmatpush1.msra.mxu0 0.0
      %6940 = vmatprep.subr.mxu0 0.0
      %v6941 = vand.u32 %v6143, 4294901760
      %v6942 = vsub.f32 %v6143, %v6941
      %v6943 = vand.u32 %v6942, 4294901760
      %6944 = vmatpush1.msra.mxu0 %v6943
      %6945 = vmatprep.subr.mxu0 0.0
      %6946 = vmatpush2.msra.mxu0 0.0
      %6947 = vmatprep.subr.mxu0 0.0
      %6948 = vmatpush2.msra.mxu0 0.0
      %6949 = vmatprep.subr.mxu0 0.0
      %6950 = vmatpush2.msra.mxu0 0.0
      %6951 = vmatprep.subr.mxu0 0.0
      %6952 = vmatpush2.msra.mxu0 0.0
      %6953 = vmatprep.subr.mxu0 0.0
      %6954 = vmatpush2.msra.mxu0 0.0
      %6955 = vmatprep.subr.mxu0 0.0
      %6956 = vmatpush2.msra.mxu0 0.0
      %6957 = vmatprep.subr.mxu0 0.0
      %6958 = vmatpush2.msra.mxu0 0.0
      %6959 = vmatprep.subr.mxu0 0.0
      %6960 = vmatpush2.msra.mxu0 0.0
      %6961 = vmatprep.subr.mxu0 0.0
      %6962 = vmatpush2.msra.mxu0 0.0
      %6963 = vmatprep.subr.mxu0 0.0
      %6964 = vmatpush2.msra.mxu0 0.0
      %6965 = vmatprep.subr.mxu0 0.0
      %6966 = vmatpush2.msra.mxu0 0.0
      %6967 = vmatprep.subr.mxu0 0.0
      %6968 = vmatpush2.msra.mxu0 0.0
      %6969 = vmatprep.subr.mxu0 0.0
      %6970 = vmatpush2.msra.mxu0 0.0
      %6971 = vmatprep.subr.mxu0 0.0
      %6972 = vmatpush2.msra.mxu0 0.0
      %6973 = vmatprep.subr.mxu0 0.0
      %6974 = vmatpush2.msra.mxu0 0.0
      %6975 = vmatprep.subr.mxu0 0.0
      %6976 = vmatpush2.msra.mxu0 0.0
      %6977 = vmatprep.mubr.f32.mxu0 0.0
      %v6978 = vand.u32 %v6095, 4294901760
      %6979 = vmatmul.mubr.f32.gmra.mxu0 %v6978
      %v6980 = vpop.f32.mrf.mxu0
      %v6981 = vadd.f32 %v6787, %v6980
      %v6982 = vpop.f32.mrf.mxu0
      %6983 = vmatprep.mubr.f32.mxu0 0.0
      %v6984 = vand.u32 %v6098, 4294901760
      %6985 = vmatmul.mubr.f32.gmra.mxu0 %v6984
      %v6986 = vpop.f32.mrf.mxu0
      %v6987 = vadd.f32 %v6795, %v6986
      %v6988 = vpop.f32.mrf.mxu0
      %6989 = vmatprep.mubr.f32.mxu0 0.0
      %v6990 = vand.u32 %v6101, 4294901760
      %6991 = vmatmul.mubr.f32.gmra.mxu0 %v6990
      %v6992 = vpop.f32.mrf.mxu0
      %v6993 = vadd.f32 %v6803, %v6992
      %v6994 = vpop.f32.mrf.mxu0
      %6995 = vmatprep.mubr.f32.mxu0 0.0
      %v6996 = vand.u32 %v6104, 4294901760
      %6997 = vmatmul.mubr.f32.gmra.mxu0 %v6996
      %v6998 = vpop.f32.mrf.mxu0
      %v6999 = vadd.f32 %v6811, %v6998
      %v7000 = vpop.f32.mrf.mxu0
      %7001 = vmatprep.mubr.f32.mxu0 0.0
      %v7002 = vand.u32 %v6107, 4294901760
      %7003 = vmatmul.mubr.f32.gmra.mxu0 %v7002
      %v7004 = vpop.f32.mrf.mxu0
      %v7005 = vadd.f32 %v6819, %v7004
      %v7006 = vpop.f32.mrf.mxu0
      %7007 = vmatprep.mubr.f32.mxu0 0.0
      %v7008 = vand.u32 %v6110, 4294901760
      %7009 = vmatmul.mubr.f32.gmra.mxu0 %v7008
      %v7010 = vpop.f32.mrf.mxu0
      %v7011 = vadd.f32 %v6827, %v7010
      %v7012 = vpop.f32.mrf.mxu0
      %7013 = vmatprep.mubr.f32.mxu0 0.0
      %v7014 = vand.u32 %v6113, 4294901760
      %7015 = vmatmul.mubr.f32.gmra.mxu0 %v7014
      %v7016 = vpop.f32.mrf.mxu0
      %v7017 = vadd.f32 %v6835, %v7016
      %v7018 = vpop.f32.mrf.mxu0
      %7019 = vmatprep.mubr.f32.mxu0 0.0
      %v7020 = vand.u32 %v6116, 4294901760
      %7021 = vmatmul.mubr.f32.gmra.mxu0 %v7020
      %v7022 = vpop.f32.mrf.mxu0
      %v7023 = vadd.f32 %v6843, %v7022
      %v7024 = vpop.f32.mrf.mxu0
      %7025 = vmatprep.mubr.f32.mxu0 0.0
      %v7026 = vand.u32 %v6119, 4294901760
      %7027 = vmatmul.mubr.f32.gmra.mxu0 %v7026
      %v7028 = vpop.f32.mrf.mxu0
      %v7029 = vadd.f32 %v6851, %v7028
      %v7030 = vpop.f32.mrf.mxu0
      %7031 = vmatprep.mubr.f32.mxu0 0.0
      %v7032 = vand.u32 %v6122, 4294901760
      %7033 = vmatmul.mubr.f32.gmra.mxu0 %v7032
      %v7034 = vpop.f32.mrf.mxu0
      %v7035 = vadd.f32 %v6859, %v7034
      %v7036 = vpop.f32.mrf.mxu0
      %7037 = vmatprep.mubr.f32.mxu0 0.0
      %v7038 = vand.u32 %v6125, 4294901760
      %7039 = vmatmul.mubr.f32.gmra.mxu0 %v7038
      %v7040 = vpop.f32.mrf.mxu0
      %v7041 = vadd.f32 %v6867, %v7040
      %v7042 = vpop.f32.mrf.mxu0
      %7043 = vmatprep.mubr.f32.mxu0 0.0
      %v7044 = vand.u32 %v6128, 4294901760
      %7045 = vmatmul.mubr.f32.gmra.mxu0 %v7044
      %v7046 = vpop.f32.mrf.mxu0
      %v7047 = vadd.f32 %v6875, %v7046
      %v7048 = vpop.f32.mrf.mxu0
      %7049 = vmatprep.mubr.f32.mxu0 0.0
      %v7050 = vand.u32 %v6131, 4294901760
      %7051 = vmatmul.mubr.f32.gmra.mxu0 %v7050
      %v7052 = vpop.f32.mrf.mxu0
      %v7053 = vadd.f32 %v6883, %v7052
      %v7054 = vpop.f32.mrf.mxu0
      %7055 = vmatprep.mubr.f32.mxu0 0.0
      %v7056 = vand.u32 %v6134, 4294901760
      %7057 = vmatmul.mubr.f32.gmra.mxu0 %v7056
      %v7058 = vpop.f32.mrf.mxu0
      %v7059 = vadd.f32 %v6891, %v7058
      %v7060 = vpop.f32.mrf.mxu0
      %7061 = vmatprep.mubr.f32.mxu0 0.0
      %v7062 = vand.u32 %v6137, 4294901760
      %7063 = vmatmul.mubr.f32.gmra.mxu0 %v7062
      %v7064 = vpop.f32.mrf.mxu0
      %v7065 = vadd.f32 %v6899, %v7064
      %v7066 = vpop.f32.mrf.mxu0
      %7067 = vmatprep.mubr.f32.mxu0 0.0
      %v7068 = vand.u32 %v6140, 4294901760
      %7069 = vmatmul.mubr.f32.gmra.mxu0 %v7068
      %v7070 = vpop.f32.mrf.mxu0
      %v7071 = vadd.f32 %v6907, %v7070
      %v7072 = vpop.f32.mrf.mxu0
      %7073 = vdwg.mxu0
      %7074 = vmatprep.subr.mxu0 0.0
      %7075 = vmatpush1.msra.mxu0 0.0
      %7076 = vmatprep.subr.mxu0 0.0
      %7077 = vmatpush1.msra.mxu0 0.0
      %7078 = vmatprep.subr.mxu0 0.0
      %7079 = vmatpush1.msra.mxu0 0.0
      %7080 = vmatprep.subr.mxu0 0.0
      %7081 = vmatpush1.msra.mxu0 0.0
      %7082 = vmatprep.subr.mxu0 0.0
      %7083 = vmatpush1.msra.mxu0 0.0
      %7084 = vmatprep.subr.mxu0 0.0
      %7085 = vmatpush1.msra.mxu0 0.0
      %7086 = vmatprep.subr.mxu0 0.0
      %7087 = vmatpush1.msra.mxu0 0.0
      %7088 = vmatprep.subr.mxu0 0.0
      %7089 = vmatpush1.msra.mxu0 0.0
      %7090 = vmatprep.subr.mxu0 0.0
      %7091 = vmatpush1.msra.mxu0 0.0
      %7092 = vmatprep.subr.mxu0 0.0
      %7093 = vmatpush1.msra.mxu0 0.0
      %7094 = vmatprep.subr.mxu0 0.0
      %7095 = vmatpush1.msra.mxu0 0.0
      %7096 = vmatprep.subr.mxu0 0.0
      %7097 = vmatpush1.msra.mxu0 0.0
      %7098 = vmatprep.subr.mxu0 0.0
      %7099 = vmatpush1.msra.mxu0 0.0
      %7100 = vmatprep.subr.mxu0 0.0
      %7101 = vmatpush1.msra.mxu0 0.0
      %7102 = vmatprep.subr.mxu0 0.0
      %7103 = vmatpush1.msra.mxu0 0.0
      %7104 = vmatprep.subr.mxu0 0.0
      %v7105 = vand.u32 %v6143, 4294901760
      %7106 = vmatpush1.msra.mxu0 %v7105
      %7107 = vmatprep.subr.mxu0 0.0
      %7108 = vmatpush2.msra.mxu0 0.0
      %7109 = vmatprep.subr.mxu0 0.0
      %7110 = vmatpush2.msra.mxu0 0.0
      %7111 = vmatprep.subr.mxu0 0.0
      %7112 = vmatpush2.msra.mxu0 0.0
      %7113 = vmatprep.subr.mxu0 0.0
      %7114 = vmatpush2.msra.mxu0 0.0
      %7115 = vmatprep.subr.mxu0 0.0
      %7116 = vmatpush2.msra.mxu0 0.0
      %7117 = vmatprep.subr.mxu0 0.0
      %7118 = vmatpush2.msra.mxu0 0.0
      %7119 = vmatprep.subr.mxu0 0.0
      %7120 = vmatpush2.msra.mxu0 0.0
      %7121 = vmatprep.subr.mxu0 0.0
      %7122 = vmatpush2.msra.mxu0 0.0
      %7123 = vmatprep.subr.mxu0 0.0
      %7124 = vmatpush2.msra.mxu0 0.0
      %7125 = vmatprep.subr.mxu0 0.0
      %7126 = vmatpush2.msra.mxu0 0.0
      %7127 = vmatprep.subr.mxu0 0.0
      %7128 = vmatpush2.msra.mxu0 0.0
      %7129 = vmatprep.subr.mxu0 0.0
      %7130 = vmatpush2.msra.mxu0 0.0
      %7131 = vmatprep.subr.mxu0 0.0
      %7132 = vmatpush2.msra.mxu0 0.0
      %7133 = vmatprep.subr.mxu0 0.0
      %7134 = vmatpush2.msra.mxu0 0.0
      %7135 = vmatprep.subr.mxu0 0.0
      %7136 = vmatpush2.msra.mxu0 0.0
      %7137 = vmatprep.subr.mxu0 0.0
      %7138 = vmatpush2.msra.mxu0 0.0
      %7139 = vmatprep.mubr.f32.mxu0 0.0
      %v7140 = vand.u32 %v6095, 4294901760
      %7141 = vmatmul.mubr.f32.gmra.mxu0 %v7140
      %v7142 = vpop.f32.mrf.mxu0
      %v7143 = vadd.f32 %v6981, %v7142
      %v7144 = vpop.f32.mrf.mxu0
      %7145 = vmatprep.mubr.f32.mxu0 0.0
      %v7146 = vand.u32 %v6098, 4294901760
      %7147 = vmatmul.mubr.f32.gmra.mxu0 %v7146
      %v7148 = vpop.f32.mrf.mxu0
      %v7149 = vadd.f32 %v6987, %v7148
      %v7150 = vpop.f32.mrf.mxu0
      %7151 = vmatprep.mubr.f32.mxu0 0.0
      %v7152 = vand.u32 %v6101, 4294901760
      %7153 = vmatmul.mubr.f32.gmra.mxu0 %v7152
      %v7154 = vpop.f32.mrf.mxu0
      %v7155 = vadd.f32 %v6993, %v7154
      %v7156 = vpop.f32.mrf.mxu0
      %7157 = vmatprep.mubr.f32.mxu0 0.0
      %v7158 = vand.u32 %v6104, 4294901760
      %7159 = vmatmul.mubr.f32.gmra.mxu0 %v7158
      %v7160 = vpop.f32.mrf.mxu0
      %v7161 = vadd.f32 %v6999, %v7160
      %v7162 = vpop.f32.mrf.mxu0
      %7163 = vmatprep.mubr.f32.mxu0 0.0
      %v7164 = vand.u32 %v6107, 4294901760
      %7165 = vmatmul.mubr.f32.gmra.mxu0 %v7164
      %v7166 = vpop.f32.mrf.mxu0
      %v7167 = vadd.f32 %v7005, %v7166
      %v7168 = vpop.f32.mrf.mxu0
      %7169 = vmatprep.mubr.f32.mxu0 0.0
      %v7170 = vand.u32 %v6110, 4294901760
      %7171 = vmatmul.mubr.f32.gmra.mxu0 %v7170
      %v7172 = vpop.f32.mrf.mxu0
      %v7173 = vadd.f32 %v7011, %v7172
      %v7174 = vpop.f32.mrf.mxu0
      %7175 = vmatprep.mubr.f32.mxu0 0.0
      %v7176 = vand.u32 %v6113, 4294901760
      %7177 = vmatmul.mubr.f32.gmra.mxu0 %v7176
      %v7178 = vpop.f32.mrf.mxu0
      %v7179 = vadd.f32 %v7017, %v7178
      %v7180 = vpop.f32.mrf.mxu0
      %7181 = vmatprep.mubr.f32.mxu0 0.0
      %v7182 = vand.u32 %v6116, 4294901760
      %7183 = vmatmul.mubr.f32.gmra.mxu0 %v7182
      %v7184 = vpop.f32.mrf.mxu0
      %v7185 = vadd.f32 %v7023, %v7184
      %v7186 = vpop.f32.mrf.mxu0
      %7187 = vmatprep.mubr.f32.mxu0 0.0
      %v7188 = vand.u32 %v6119, 4294901760
      %7189 = vmatmul.mubr.f32.gmra.mxu0 %v7188
      %v7190 = vpop.f32.mrf.mxu0
      %v7191 = vadd.f32 %v7029, %v7190
      %v7192 = vpop.f32.mrf.mxu0
      %7193 = vmatprep.mubr.f32.mxu0 0.0
      %v7194 = vand.u32 %v6122, 4294901760
      %7195 = vmatmul.mubr.f32.gmra.mxu0 %v7194
      %v7196 = vpop.f32.mrf.mxu0
      %v7197 = vadd.f32 %v7035, %v7196
      %v7198 = vpop.f32.mrf.mxu0
      %7199 = vmatprep.mubr.f32.mxu0 0.0
      %v7200 = vand.u32 %v6125, 4294901760
      %7201 = vmatmul.mubr.f32.gmra.mxu0 %v7200
      %v7202 = vpop.f32.mrf.mxu0
      %v7203 = vadd.f32 %v7041, %v7202
      %v7204 = vpop.f32.mrf.mxu0
      %7205 = vmatprep.mubr.f32.mxu0 0.0
      %v7206 = vand.u32 %v6128, 4294901760
      %7207 = vmatmul.mubr.f32.gmra.mxu0 %v7206
      %v7208 = vpop.f32.mrf.mxu0
      %v7209 = vadd.f32 %v7047, %v7208
      %v7210 = vpop.f32.mrf.mxu0
      %7211 = vmatprep.mubr.f32.mxu0 0.0
      %v7212 = vand.u32 %v6131, 4294901760
      %7213 = vmatmul.mubr.f32.gmra.mxu0 %v7212
      %v7214 = vpop.f32.mrf.mxu0
      %v7215 = vadd.f32 %v7053, %v7214
      %v7216 = vpop.f32.mrf.mxu0
      %7217 = vmatprep.mubr.f32.mxu0 0.0
      %v7218 = vand.u32 %v6134, 4294901760
      %7219 = vmatmul.mubr.f32.gmra.mxu0 %v7218
      %v7220 = vpop.f32.mrf.mxu0
      %v7221 = vadd.f32 %v7059, %v7220
      %v7222 = vpop.f32.mrf.mxu0
      %7223 = vmatprep.mubr.f32.mxu0 0.0
      %v7224 = vand.u32 %v6137, 4294901760
      %7225 = vmatmul.mubr.f32.gmra.mxu0 %v7224
      %v7226 = vpop.f32.mrf.mxu0
      %v7227 = vadd.f32 %v7065, %v7226
      %v7228 = vpop.f32.mrf.mxu0
      %7229 = vmatprep.mubr.f32.mxu0 0.0
      %v7230 = vand.u32 %v6140, 4294901760
      %7231 = vmatmul.mubr.f32.gmra.mxu0 %v7230
      %v7232 = vpop.f32.mrf.mxu0
      %v7233 = vadd.f32 %v7071, %v7232
      %v7234 = vpop.f32.mrf.mxu0
      %7235 = vdwg.mxu0
      %v7236 = vadd.f32 %v6060, %v7143
      %v7237 = vadd.f32 %v6061, %v7149
      %v7238 = vadd.f32 %v6062, %v7155
      %v7239 = vadd.f32 %v6063, %v7161
      %v7240 = vadd.f32 %v6064, %v7167
      %v7241 = vadd.f32 %v6065, %v7173
      %v7242 = vadd.f32 %v6066, %v7179
      %v7243 = vadd.f32 %v6067, %v7185
      %v7244 = vadd.f32 %v6068, %v7191
      %v7245 = vadd.f32 %v6069, %v7197
      %v7246 = vadd.f32 %v6070, %v7203
      %v7247 = vadd.f32 %v6071, %v7209
      %v7248 = vadd.f32 %v6072, %v7215
      %v7249 = vadd.f32 %v6073, %v7221
      %v7250 = vadd.f32 %v6074, %v7227
      %v7251 = vadd.f32 %v6075, %v7233
      %s7252 = sadd.s32 %s221, 2
      %s7253 = smul.u32 %s7252, 24
      %s7254 = scalar_lea.vmem %s210, %s7253
      %v7255 = vld [vmem:[%s7254] sm:$0xff]
      %v7256 = vld [vmem:[%s7254 + $0x8] sm:$0xff]
      %v7257 = vld [vmem:[%s7254 + $0x18] sm:$0xff]
      %v7258 = vld [vmem:[%s7254 + $0x20] sm:$0xff]
      %v7259 = vld [vmem:[%s7254 + $0x30] sm:$0xff]
      %v7260 = vld [vmem:[%s7254 + $0x38] sm:$0xff]
      %v7261 = vld [vmem:[%s7254 + $0x48] sm:$0xff]
      %v7262 = vld [vmem:[%s7254 + $0x50] sm:$0xff]
      %v7263 = vld [vmem:[%s7254 + $0x60] sm:$0xff]
      %v7264 = vld [vmem:[%s7254 + $0x68] sm:$0xff]
      %v7265 = vld [vmem:[%s7254 + $0x78] sm:$0xff]
      %v7266 = vld [vmem:[%s7254 + $0x80] sm:$0xff]
      %v7267 = vld [vmem:[%s7254 + $0x90] sm:$0xff]
      %v7268 = vld [vmem:[%s7254 + $0x98] sm:$0xff]
      %v7269 = vld [vmem:[%s7254 + $0xa8] sm:$0xff]
      %v7270 = vld [vmem:[%s7254 + $0xb0] sm:$0xff]
      %s7271 = scalar_lea.vmem %s1, 24
      %v7272 = vld [vmem:[%s7271] sm:$0xf]
      %v7274 = vsel %vm259, %v7255, 0
      %v7277 = vsel %vm259, %v7256, 0
      %v7280 = vsel %vm259, %v7257, 0
      %v7283 = vsel %vm259, %v7258, 0
      %v7286 = vsel %vm259, %v7259, 0
      %v7289 = vsel %vm259, %v7260, 0
      %v7292 = vsel %vm259, %v7261, 0
      %v7295 = vsel %vm259, %v7262, 0
      %v7298 = vsel %vm259, %v7263, 0
      %v7301 = vsel %vm259, %v7264, 0
      %v7304 = vsel %vm259, %v7265, 0
      %v7307 = vsel %vm259, %v7266, 0
      %v7310 = vsel %vm259, %v7267, 0
      %v7313 = vsel %vm259, %v7268, 0
      %v7316 = vsel %vm259, %v7269, 0
      %v7319 = vsel %vm259, %v7270, 0
      %v7322 = vsel %vm308, %v7272, 0
      %7324 = vmatprep.subr.mxu0 0.0
      %7325 = vmatpush1.msra.mxu0 0.0
      %7326 = vmatprep.subr.mxu0 0.0
      %7327 = vmatpush1.msra.mxu0 0.0
      %7328 = vmatprep.subr.mxu0 0.0
      %7329 = vmatpush1.msra.mxu0 0.0
      %7330 = vmatprep.subr.mxu0 0.0
      %7331 = vmatpush1.msra.mxu0 0.0
      %7332 = vmatprep.subr.mxu0 0.0
      %7333 = vmatpush1.msra.mxu0 0.0
      %7334 = vmatprep.subr.mxu0 0.0
      %7335 = vmatpush1.msra.mxu0 0.0
      %7336 = vmatprep.subr.mxu0 0.0
      %7337 = vmatpush1.msra.mxu0 0.0
      %7338 = vmatprep.subr.mxu0 0.0
      %7339 = vmatpush1.msra.mxu0 0.0
      %7340 = vmatprep.subr.mxu0 0.0
      %7341 = vmatpush1.msra.mxu0 0.0
      %7342 = vmatprep.subr.mxu0 0.0
      %7343 = vmatpush1.msra.mxu0 0.0
      %7344 = vmatprep.subr.mxu0 0.0
      %7345 = vmatpush1.msra.mxu0 0.0
      %7346 = vmatprep.subr.mxu0 0.0
      %7347 = vmatpush1.msra.mxu0 0.0
      %7348 = vmatprep.subr.mxu0 0.0
      %7349 = vmatpush1.msra.mxu0 0.0
      %7350 = vmatprep.subr.mxu0 0.0
      %7351 = vmatpush1.msra.mxu0 0.0
      %7352 = vmatprep.subr.mxu0 0.0
      %7353 = vmatpush1.msra.mxu0 0.0
      %7354 = vmatprep.subr.mxu0 0.0
      %v7355 = vand.u32 %v7322, 4294901760
      %7356 = vmatpush1.msra.mxu0 %v7355
      %7357 = vmatprep.subr.mxu0 0.0
      %7358 = vmatpush2.msra.mxu0 0.0
      %7359 = vmatprep.subr.mxu0 0.0
      %7360 = vmatpush2.msra.mxu0 0.0
      %7361 = vmatprep.subr.mxu0 0.0
      %7362 = vmatpush2.msra.mxu0 0.0
      %7363 = vmatprep.subr.mxu0 0.0
      %7364 = vmatpush2.msra.mxu0 0.0
      %7365 = vmatprep.subr.mxu0 0.0
      %7366 = vmatpush2.msra.mxu0 0.0
      %7367 = vmatprep.subr.mxu0 0.0
      %7368 = vmatpush2.msra.mxu0 0.0
      %7369 = vmatprep.subr.mxu0 0.0
      %7370 = vmatpush2.msra.mxu0 0.0
      %7371 = vmatprep.subr.mxu0 0.0
      %7372 = vmatpush2.msra.mxu0 0.0
      %7373 = vmatprep.subr.mxu0 0.0
      %7374 = vmatpush2.msra.mxu0 0.0
      %7375 = vmatprep.subr.mxu0 0.0
      %7376 = vmatpush2.msra.mxu0 0.0
      %7377 = vmatprep.subr.mxu0 0.0
      %7378 = vmatpush2.msra.mxu0 0.0
      %7379 = vmatprep.subr.mxu0 0.0
      %7380 = vmatpush2.msra.mxu0 0.0
      %7381 = vmatprep.subr.mxu0 0.0
      %7382 = vmatpush2.msra.mxu0 0.0
      %7383 = vmatprep.subr.mxu0 0.0
      %7384 = vmatpush2.msra.mxu0 0.0
      %7385 = vmatprep.subr.mxu0 0.0
      %7386 = vmatpush2.msra.mxu0 0.0
      %7387 = vmatprep.subr.mxu0 0.0
      %7388 = vmatpush2.msra.mxu0 0.0
      %7389 = vmatprep.mubr.f32.mxu0 0.0
      %v7390 = vand.u32 %v7274, 4294901760
      %v7391 = vsub.f32 %v7274, %v7390
      %v7392 = vand.u32 %v7391, 4294901760
      %v7393 = vsub.f32 %v7391, %v7392
      %v7394 = vand.u32 %v7393, 4294901760
      %7395 = vmatmul.mubr.f32.gmra.mxu0 %v7394
      %v7396 = vpop.f32.mrf.mxu0
      %v7397 = vadd.f32 0.0, %v7396
      %v7398 = vpop.f32.mrf.mxu0
      %7399 = vmatprep.mubr.f32.mxu0 0.0
      %v7400 = vand.u32 %v7277, 4294901760
      %v7401 = vsub.f32 %v7277, %v7400
      %v7402 = vand.u32 %v7401, 4294901760
      %v7403 = vsub.f32 %v7401, %v7402
      %v7404 = vand.u32 %v7403, 4294901760
      %7405 = vmatmul.mubr.f32.gmra.mxu0 %v7404
      %v7406 = vpop.f32.mrf.mxu0
      %v7407 = vadd.f32 0.0, %v7406
      %v7408 = vpop.f32.mrf.mxu0
      %7409 = vmatprep.mubr.f32.mxu0 0.0
      %v7410 = vand.u32 %v7280, 4294901760
      %v7411 = vsub.f32 %v7280, %v7410
      %v7412 = vand.u32 %v7411, 4294901760
      %v7413 = vsub.f32 %v7411, %v7412
      %v7414 = vand.u32 %v7413, 4294901760
      %7415 = vmatmul.mubr.f32.gmra.mxu0 %v7414
      %v7416 = vpop.f32.mrf.mxu0
      %v7417 = vadd.f32 0.0, %v7416
      %v7418 = vpop.f32.mrf.mxu0
      %7419 = vmatprep.mubr.f32.mxu0 0.0
      %v7420 = vand.u32 %v7283, 4294901760
      %v7421 = vsub.f32 %v7283, %v7420
      %v7422 = vand.u32 %v7421, 4294901760
      %v7423 = vsub.f32 %v7421, %v7422
      %v7424 = vand.u32 %v7423, 4294901760
      %7425 = vmatmul.mubr.f32.gmra.mxu0 %v7424
      %v7426 = vpop.f32.mrf.mxu0
      %v7427 = vadd.f32 0.0, %v7426
      %v7428 = vpop.f32.mrf.mxu0
      %7429 = vmatprep.mubr.f32.mxu0 0.0
      %v7430 = vand.u32 %v7286, 4294901760
      %v7431 = vsub.f32 %v7286, %v7430
      %v7432 = vand.u32 %v7431, 4294901760
      %v7433 = vsub.f32 %v7431, %v7432
      %v7434 = vand.u32 %v7433, 4294901760
      %7435 = vmatmul.mubr.f32.gmra.mxu0 %v7434
      %v7436 = vpop.f32.mrf.mxu0
      %v7437 = vadd.f32 0.0, %v7436
      %v7438 = vpop.f32.mrf.mxu0
      %7439 = vmatprep.mubr.f32.mxu0 0.0
      %v7440 = vand.u32 %v7289, 4294901760
      %v7441 = vsub.f32 %v7289, %v7440
      %v7442 = vand.u32 %v7441, 4294901760
      %v7443 = vsub.f32 %v7441, %v7442
      %v7444 = vand.u32 %v7443, 4294901760
      %7445 = vmatmul.mubr.f32.gmra.mxu0 %v7444
      %v7446 = vpop.f32.mrf.mxu0
      %v7447 = vadd.f32 0.0, %v7446
      %v7448 = vpop.f32.mrf.mxu0
      %7449 = vmatprep.mubr.f32.mxu0 0.0
      %v7450 = vand.u32 %v7292, 4294901760
      %v7451 = vsub.f32 %v7292, %v7450
      %v7452 = vand.u32 %v7451, 4294901760
      %v7453 = vsub.f32 %v7451, %v7452
      %v7454 = vand.u32 %v7453, 4294901760
      %7455 = vmatmul.mubr.f32.gmra.mxu0 %v7454
      %v7456 = vpop.f32.mrf.mxu0
      %v7457 = vadd.f32 0.0, %v7456
      %v7458 = vpop.f32.mrf.mxu0
      %7459 = vmatprep.mubr.f32.mxu0 0.0
      %v7460 = vand.u32 %v7295, 4294901760
      %v7461 = vsub.f32 %v7295, %v7460
      %v7462 = vand.u32 %v7461, 4294901760
      %v7463 = vsub.f32 %v7461, %v7462
      %v7464 = vand.u32 %v7463, 4294901760
      %7465 = vmatmul.mubr.f32.gmra.mxu0 %v7464
      %v7466 = vpop.f32.mrf.mxu0
      %v7467 = vadd.f32 0.0, %v7466
      %v7468 = vpop.f32.mrf.mxu0
      %7469 = vmatprep.mubr.f32.mxu0 0.0
      %v7470 = vand.u32 %v7298, 4294901760
      %v7471 = vsub.f32 %v7298, %v7470
      %v7472 = vand.u32 %v7471, 4294901760
      %v7473 = vsub.f32 %v7471, %v7472
      %v7474 = vand.u32 %v7473, 4294901760
      %7475 = vmatmul.mubr.f32.gmra.mxu0 %v7474
      %v7476 = vpop.f32.mrf.mxu0
      %v7477 = vadd.f32 0.0, %v7476
      %v7478 = vpop.f32.mrf.mxu0
      %7479 = vmatprep.mubr.f32.mxu0 0.0
      %v7480 = vand.u32 %v7301, 4294901760
      %v7481 = vsub.f32 %v7301, %v7480
      %v7482 = vand.u32 %v7481, 4294901760
      %v7483 = vsub.f32 %v7481, %v7482
      %v7484 = vand.u32 %v7483, 4294901760
      %7485 = vmatmul.mubr.f32.gmra.mxu0 %v7484
      %v7486 = vpop.f32.mrf.mxu0
      %v7487 = vadd.f32 0.0, %v7486
      %v7488 = vpop.f32.mrf.mxu0
      %7489 = vmatprep.mubr.f32.mxu0 0.0
      %v7490 = vand.u32 %v7304, 4294901760
      %v7491 = vsub.f32 %v7304, %v7490
      %v7492 = vand.u32 %v7491, 4294901760
      %v7493 = vsub.f32 %v7491, %v7492
      %v7494 = vand.u32 %v7493, 4294901760
      %7495 = vmatmul.mubr.f32.gmra.mxu0 %v7494
      %v7496 = vpop.f32.mrf.mxu0
      %v7497 = vadd.f32 0.0, %v7496
      %v7498 = vpop.f32.mrf.mxu0
      %7499 = vmatprep.mubr.f32.mxu0 0.0
      %v7500 = vand.u32 %v7307, 4294901760
      %v7501 = vsub.f32 %v7307, %v7500
      %v7502 = vand.u32 %v7501, 4294901760
      %v7503 = vsub.f32 %v7501, %v7502
      %v7504 = vand.u32 %v7503, 4294901760
      %7505 = vmatmul.mubr.f32.gmra.mxu0 %v7504
      %v7506 = vpop.f32.mrf.mxu0
      %v7507 = vadd.f32 0.0, %v7506
      %v7508 = vpop.f32.mrf.mxu0
      %7509 = vmatprep.mubr.f32.mxu0 0.0
      %v7510 = vand.u32 %v7310, 4294901760
      %v7511 = vsub.f32 %v7310, %v7510
      %v7512 = vand.u32 %v7511, 4294901760
      %v7513 = vsub.f32 %v7511, %v7512
      %v7514 = vand.u32 %v7513, 4294901760
      %7515 = vmatmul.mubr.f32.gmra.mxu0 %v7514
      %v7516 = vpop.f32.mrf.mxu0
      %v7517 = vadd.f32 0.0, %v7516
      %v7518 = vpop.f32.mrf.mxu0
      %7519 = vmatprep.mubr.f32.mxu0 0.0
      %v7520 = vand.u32 %v7313, 4294901760
      %v7521 = vsub.f32 %v7313, %v7520
      %v7522 = vand.u32 %v7521, 4294901760
      %v7523 = vsub.f32 %v7521, %v7522
      %v7524 = vand.u32 %v7523, 4294901760
      %7525 = vmatmul.mubr.f32.gmra.mxu0 %v7524
      %v7526 = vpop.f32.mrf.mxu0
      %v7527 = vadd.f32 0.0, %v7526
      %v7528 = vpop.f32.mrf.mxu0
      %7529 = vmatprep.mubr.f32.mxu0 0.0
      %v7530 = vand.u32 %v7316, 4294901760
      %v7531 = vsub.f32 %v7316, %v7530
      %v7532 = vand.u32 %v7531, 4294901760
      %v7533 = vsub.f32 %v7531, %v7532
      %v7534 = vand.u32 %v7533, 4294901760
      %7535 = vmatmul.mubr.f32.gmra.mxu0 %v7534
      %v7536 = vpop.f32.mrf.mxu0
      %v7537 = vadd.f32 0.0, %v7536
      %v7538 = vpop.f32.mrf.mxu0
      %7539 = vmatprep.mubr.f32.mxu0 0.0
      %v7540 = vand.u32 %v7319, 4294901760
      %v7541 = vsub.f32 %v7319, %v7540
      %v7542 = vand.u32 %v7541, 4294901760
      %v7543 = vsub.f32 %v7541, %v7542
      %v7544 = vand.u32 %v7543, 4294901760
      %7545 = vmatmul.mubr.f32.gmra.mxu0 %v7544
      %v7546 = vpop.f32.mrf.mxu0
      %v7547 = vadd.f32 0.0, %v7546
      %v7548 = vpop.f32.mrf.mxu0
      %7549 = vdwg.mxu0
      %7550 = vmatprep.subr.mxu0 0.0
      %7551 = vmatpush1.msra.mxu0 0.0
      %7552 = vmatprep.subr.mxu0 0.0
      %7553 = vmatpush1.msra.mxu0 0.0
      %7554 = vmatprep.subr.mxu0 0.0
      %7555 = vmatpush1.msra.mxu0 0.0
      %7556 = vmatprep.subr.mxu0 0.0
      %7557 = vmatpush1.msra.mxu0 0.0
      %7558 = vmatprep.subr.mxu0 0.0
      %7559 = vmatpush1.msra.mxu0 0.0
      %7560 = vmatprep.subr.mxu0 0.0
      %7561 = vmatpush1.msra.mxu0 0.0
      %7562 = vmatprep.subr.mxu0 0.0
      %7563 = vmatpush1.msra.mxu0 0.0
      %7564 = vmatprep.subr.mxu0 0.0
      %7565 = vmatpush1.msra.mxu0 0.0
      %7566 = vmatprep.subr.mxu0 0.0
      %7567 = vmatpush1.msra.mxu0 0.0
      %7568 = vmatprep.subr.mxu0 0.0
      %7569 = vmatpush1.msra.mxu0 0.0
      %7570 = vmatprep.subr.mxu0 0.0
      %7571 = vmatpush1.msra.mxu0 0.0
      %7572 = vmatprep.subr.mxu0 0.0
      %7573 = vmatpush1.msra.mxu0 0.0
      %7574 = vmatprep.subr.mxu0 0.0
      %7575 = vmatpush1.msra.mxu0 0.0
      %7576 = vmatprep.subr.mxu0 0.0
      %7577 = vmatpush1.msra.mxu0 0.0
      %7578 = vmatprep.subr.mxu0 0.0
      %7579 = vmatpush1.msra.mxu0 0.0
      %7580 = vmatprep.subr.mxu0 0.0
      %v7581 = vand.u32 %v7322, 4294901760
      %v7582 = vsub.f32 %v7322, %v7581
      %v7583 = vand.u32 %v7582, 4294901760
      %v7584 = vsub.f32 %v7582, %v7583
      %v7585 = vand.u32 %v7584, 4294901760
      %7586 = vmatpush1.msra.mxu0 %v7585
      %7587 = vmatprep.subr.mxu0 0.0
      %7588 = vmatpush2.msra.mxu0 0.0
      %7589 = vmatprep.subr.mxu0 0.0
      %7590 = vmatpush2.msra.mxu0 0.0
      %7591 = vmatprep.subr.mxu0 0.0
      %7592 = vmatpush2.msra.mxu0 0.0
      %7593 = vmatprep.subr.mxu0 0.0
      %7594 = vmatpush2.msra.mxu0 0.0
      %7595 = vmatprep.subr.mxu0 0.0
      %7596 = vmatpush2.msra.mxu0 0.0
      %7597 = vmatprep.subr.mxu0 0.0
      %7598 = vmatpush2.msra.mxu0 0.0
      %7599 = vmatprep.subr.mxu0 0.0
      %7600 = vmatpush2.msra.mxu0 0.0
      %7601 = vmatprep.subr.mxu0 0.0
      %7602 = vmatpush2.msra.mxu0 0.0
      %7603 = vmatprep.subr.mxu0 0.0
      %7604 = vmatpush2.msra.mxu0 0.0
      %7605 = vmatprep.subr.mxu0 0.0
      %7606 = vmatpush2.msra.mxu0 0.0
      %7607 = vmatprep.subr.mxu0 0.0
      %7608 = vmatpush2.msra.mxu0 0.0
      %7609 = vmatprep.subr.mxu0 0.0
      %7610 = vmatpush2.msra.mxu0 0.0
      %7611 = vmatprep.subr.mxu0 0.0
      %7612 = vmatpush2.msra.mxu0 0.0
      %7613 = vmatprep.subr.mxu0 0.0
      %7614 = vmatpush2.msra.mxu0 0.0
      %7615 = vmatprep.subr.mxu0 0.0
      %7616 = vmatpush2.msra.mxu0 0.0
      %7617 = vmatprep.subr.mxu0 0.0
      %7618 = vmatpush2.msra.mxu0 0.0
      %7619 = vmatprep.mubr.f32.mxu0 0.0
      %v7620 = vand.u32 %v7274, 4294901760
      %7621 = vmatmul.mubr.f32.gmra.mxu0 %v7620
      %v7622 = vpop.f32.mrf.mxu0
      %v7623 = vadd.f32 %v7397, %v7622
      %v7624 = vpop.f32.mrf.mxu0
      %7625 = vmatprep.mubr.f32.mxu0 0.0
      %v7626 = vand.u32 %v7277, 4294901760
      %7627 = vmatmul.mubr.f32.gmra.mxu0 %v7626
      %v7628 = vpop.f32.mrf.mxu0
      %v7629 = vadd.f32 %v7407, %v7628
      %v7630 = vpop.f32.mrf.mxu0
      %7631 = vmatprep.mubr.f32.mxu0 0.0
      %v7632 = vand.u32 %v7280, 4294901760
      %7633 = vmatmul.mubr.f32.gmra.mxu0 %v7632
      %v7634 = vpop.f32.mrf.mxu0
      %v7635 = vadd.f32 %v7417, %v7634
      %v7636 = vpop.f32.mrf.mxu0
      %7637 = vmatprep.mubr.f32.mxu0 0.0
      %v7638 = vand.u32 %v7283, 4294901760
      %7639 = vmatmul.mubr.f32.gmra.mxu0 %v7638
      %v7640 = vpop.f32.mrf.mxu0
      %v7641 = vadd.f32 %v7427, %v7640
      %v7642 = vpop.f32.mrf.mxu0
      %7643 = vmatprep.mubr.f32.mxu0 0.0
      %v7644 = vand.u32 %v7286, 4294901760
      %7645 = vmatmul.mubr.f32.gmra.mxu0 %v7644
      %v7646 = vpop.f32.mrf.mxu0
      %v7647 = vadd.f32 %v7437, %v7646
      %v7648 = vpop.f32.mrf.mxu0
      %7649 = vmatprep.mubr.f32.mxu0 0.0
      %v7650 = vand.u32 %v7289, 4294901760
      %7651 = vmatmul.mubr.f32.gmra.mxu0 %v7650
      %v7652 = vpop.f32.mrf.mxu0
      %v7653 = vadd.f32 %v7447, %v7652
      %v7654 = vpop.f32.mrf.mxu0
      %7655 = vmatprep.mubr.f32.mxu0 0.0
      %v7656 = vand.u32 %v7292, 4294901760
      %7657 = vmatmul.mubr.f32.gmra.mxu0 %v7656
      %v7658 = vpop.f32.mrf.mxu0
      %v7659 = vadd.f32 %v7457, %v7658
      %v7660 = vpop.f32.mrf.mxu0
      %7661 = vmatprep.mubr.f32.mxu0 0.0
      %v7662 = vand.u32 %v7295, 4294901760
      %7663 = vmatmul.mubr.f32.gmra.mxu0 %v7662
      %v7664 = vpop.f32.mrf.mxu0
      %v7665 = vadd.f32 %v7467, %v7664
      %v7666 = vpop.f32.mrf.mxu0
      %7667 = vmatprep.mubr.f32.mxu0 0.0
      %v7668 = vand.u32 %v7298, 4294901760
      %7669 = vmatmul.mubr.f32.gmra.mxu0 %v7668
      %v7670 = vpop.f32.mrf.mxu0
      %v7671 = vadd.f32 %v7477, %v7670
      %v7672 = vpop.f32.mrf.mxu0
      %7673 = vmatprep.mubr.f32.mxu0 0.0
      %v7674 = vand.u32 %v7301, 4294901760
      %7675 = vmatmul.mubr.f32.gmra.mxu0 %v7674
      %v7676 = vpop.f32.mrf.mxu0
      %v7677 = vadd.f32 %v7487, %v7676
      %v7678 = vpop.f32.mrf.mxu0
      %7679 = vmatprep.mubr.f32.mxu0 0.0
      %v7680 = vand.u32 %v7304, 4294901760
      %7681 = vmatmul.mubr.f32.gmra.mxu0 %v7680
      %v7682 = vpop.f32.mrf.mxu0
      %v7683 = vadd.f32 %v7497, %v7682
      %v7684 = vpop.f32.mrf.mxu0
      %7685 = vmatprep.mubr.f32.mxu0 0.0
      %v7686 = vand.u32 %v7307, 4294901760
      %7687 = vmatmul.mubr.f32.gmra.mxu0 %v7686
      %v7688 = vpop.f32.mrf.mxu0
      %v7689 = vadd.f32 %v7507, %v7688
      %v7690 = vpop.f32.mrf.mxu0
      %7691 = vmatprep.mubr.f32.mxu0 0.0
      %v7692 = vand.u32 %v7310, 4294901760
      %7693 = vmatmul.mubr.f32.gmra.mxu0 %v7692
      %v7694 = vpop.f32.mrf.mxu0
      %v7695 = vadd.f32 %v7517, %v7694
      %v7696 = vpop.f32.mrf.mxu0
      %7697 = vmatprep.mubr.f32.mxu0 0.0
      %v7698 = vand.u32 %v7313, 4294901760
      %7699 = vmatmul.mubr.f32.gmra.mxu0 %v7698
      %v7700 = vpop.f32.mrf.mxu0
      %v7701 = vadd.f32 %v7527, %v7700
      %v7702 = vpop.f32.mrf.mxu0
      %7703 = vmatprep.mubr.f32.mxu0 0.0
      %v7704 = vand.u32 %v7316, 4294901760
      %7705 = vmatmul.mubr.f32.gmra.mxu0 %v7704
      %v7706 = vpop.f32.mrf.mxu0
      %v7707 = vadd.f32 %v7537, %v7706
      %v7708 = vpop.f32.mrf.mxu0
      %7709 = vmatprep.mubr.f32.mxu0 0.0
      %v7710 = vand.u32 %v7319, 4294901760
      %7711 = vmatmul.mubr.f32.gmra.mxu0 %v7710
      %v7712 = vpop.f32.mrf.mxu0
      %v7713 = vadd.f32 %v7547, %v7712
      %v7714 = vpop.f32.mrf.mxu0
      %7715 = vdwg.mxu0
      %7716 = vmatprep.subr.mxu0 0.0
      %7717 = vmatpush1.msra.mxu0 0.0
      %7718 = vmatprep.subr.mxu0 0.0
      %7719 = vmatpush1.msra.mxu0 0.0
      %7720 = vmatprep.subr.mxu0 0.0
      %7721 = vmatpush1.msra.mxu0 0.0
      %7722 = vmatprep.subr.mxu0 0.0
      %7723 = vmatpush1.msra.mxu0 0.0
      %7724 = vmatprep.subr.mxu0 0.0
      %7725 = vmatpush1.msra.mxu0 0.0
      %7726 = vmatprep.subr.mxu0 0.0
      %7727 = vmatpush1.msra.mxu0 0.0
      %7728 = vmatprep.subr.mxu0 0.0
      %7729 = vmatpush1.msra.mxu0 0.0
      %7730 = vmatprep.subr.mxu0 0.0
      %7731 = vmatpush1.msra.mxu0 0.0
      %7732 = vmatprep.subr.mxu0 0.0
      %7733 = vmatpush1.msra.mxu0 0.0
      %7734 = vmatprep.subr.mxu0 0.0
      %7735 = vmatpush1.msra.mxu0 0.0
      %7736 = vmatprep.subr.mxu0 0.0
      %7737 = vmatpush1.msra.mxu0 0.0
      %7738 = vmatprep.subr.mxu0 0.0
      %7739 = vmatpush1.msra.mxu0 0.0
      %7740 = vmatprep.subr.mxu0 0.0
      %7741 = vmatpush1.msra.mxu0 0.0
      %7742 = vmatprep.subr.mxu0 0.0
      %7743 = vmatpush1.msra.mxu0 0.0
      %7744 = vmatprep.subr.mxu0 0.0
      %7745 = vmatpush1.msra.mxu0 0.0
      %7746 = vmatprep.subr.mxu0 0.0
      %v7747 = vand.u32 %v7322, 4294901760
      %v7748 = vsub.f32 %v7322, %v7747
      %7749 = vmatpush1.msra.mxu0 %v7748
      %7750 = vmatprep.subr.mxu0 0.0
      %7751 = vmatpush2.msra.mxu0 0.0
      %7752 = vmatprep.subr.mxu0 0.0
      %7753 = vmatpush2.msra.mxu0 0.0
      %7754 = vmatprep.subr.mxu0 0.0
      %7755 = vmatpush2.msra.mxu0 0.0
      %7756 = vmatprep.subr.mxu0 0.0
      %7757 = vmatpush2.msra.mxu0 0.0
      %7758 = vmatprep.subr.mxu0 0.0
      %7759 = vmatpush2.msra.mxu0 0.0
      %7760 = vmatprep.subr.mxu0 0.0
      %7761 = vmatpush2.msra.mxu0 0.0
      %7762 = vmatprep.subr.mxu0 0.0
      %7763 = vmatpush2.msra.mxu0 0.0
      %7764 = vmatprep.subr.mxu0 0.0
      %7765 = vmatpush2.msra.mxu0 0.0
      %7766 = vmatprep.subr.mxu0 0.0
      %7767 = vmatpush2.msra.mxu0 0.0
      %7768 = vmatprep.subr.mxu0 0.0
      %7769 = vmatpush2.msra.mxu0 0.0
      %7770 = vmatprep.subr.mxu0 0.0
      %7771 = vmatpush2.msra.mxu0 0.0
      %7772 = vmatprep.subr.mxu0 0.0
      %7773 = vmatpush2.msra.mxu0 0.0
      %7774 = vmatprep.subr.mxu0 0.0
      %7775 = vmatpush2.msra.mxu0 0.0
      %7776 = vmatprep.subr.mxu0 0.0
      %7777 = vmatpush2.msra.mxu0 0.0
      %7778 = vmatprep.subr.mxu0 0.0
      %7779 = vmatpush2.msra.mxu0 0.0
      %7780 = vmatprep.subr.mxu0 0.0
      %7781 = vmatpush2.msra.mxu0 0.0
      %7782 = vmatprep.mubr.f32.mxu0 0.0
      %v7783 = vand.u32 %v7274, 4294901760
      %v7784 = vsub.f32 %v7274, %v7783
      %7785 = vmatmul.mubr.f32.gmra.mxu0 %v7784
      %v7786 = vpop.f32.mrf.mxu0
      %v7787 = vadd.f32 %v7623, %v7786
      %v7788 = vpop.f32.mrf.mxu0
      %7789 = vmatprep.mubr.f32.mxu0 0.0
      %v7790 = vand.u32 %v7277, 4294901760
      %v7791 = vsub.f32 %v7277, %v7790
      %7792 = vmatmul.mubr.f32.gmra.mxu0 %v7791
      %v7793 = vpop.f32.mrf.mxu0
      %v7794 = vadd.f32 %v7629, %v7793
      %v7795 = vpop.f32.mrf.mxu0
      %7796 = vmatprep.mubr.f32.mxu0 0.0
      %v7797 = vand.u32 %v7280, 4294901760
      %v7798 = vsub.f32 %v7280, %v7797
      %7799 = vmatmul.mubr.f32.gmra.mxu0 %v7798
      %v7800 = vpop.f32.mrf.mxu0
      %v7801 = vadd.f32 %v7635, %v7800
      %v7802 = vpop.f32.mrf.mxu0
      %7803 = vmatprep.mubr.f32.mxu0 0.0
      %v7804 = vand.u32 %v7283, 4294901760
      %v7805 = vsub.f32 %v7283, %v7804
      %7806 = vmatmul.mubr.f32.gmra.mxu0 %v7805
      %v7807 = vpop.f32.mrf.mxu0
      %v7808 = vadd.f32 %v7641, %v7807
      %v7809 = vpop.f32.mrf.mxu0
      %7810 = vmatprep.mubr.f32.mxu0 0.0
      %v7811 = vand.u32 %v7286, 4294901760
      %v7812 = vsub.f32 %v7286, %v7811
      %7813 = vmatmul.mubr.f32.gmra.mxu0 %v7812
      %v7814 = vpop.f32.mrf.mxu0
      %v7815 = vadd.f32 %v7647, %v7814
      %v7816 = vpop.f32.mrf.mxu0
      %7817 = vmatprep.mubr.f32.mxu0 0.0
      %v7818 = vand.u32 %v7289, 4294901760
      %v7819 = vsub.f32 %v7289, %v7818
      %7820 = vmatmul.mubr.f32.gmra.mxu0 %v7819
      %v7821 = vpop.f32.mrf.mxu0
      %v7822 = vadd.f32 %v7653, %v7821
      %v7823 = vpop.f32.mrf.mxu0
      %7824 = vmatprep.mubr.f32.mxu0 0.0
      %v7825 = vand.u32 %v7292, 4294901760
      %v7826 = vsub.f32 %v7292, %v7825
      %7827 = vmatmul.mubr.f32.gmra.mxu0 %v7826
      %v7828 = vpop.f32.mrf.mxu0
      %v7829 = vadd.f32 %v7659, %v7828
      %v7830 = vpop.f32.mrf.mxu0
      %7831 = vmatprep.mubr.f32.mxu0 0.0
      %v7832 = vand.u32 %v7295, 4294901760
      %v7833 = vsub.f32 %v7295, %v7832
      %7834 = vmatmul.mubr.f32.gmra.mxu0 %v7833
      %v7835 = vpop.f32.mrf.mxu0
      %v7836 = vadd.f32 %v7665, %v7835
      %v7837 = vpop.f32.mrf.mxu0
      %7838 = vmatprep.mubr.f32.mxu0 0.0
      %v7839 = vand.u32 %v7298, 4294901760
      %v7840 = vsub.f32 %v7298, %v7839
      %7841 = vmatmul.mubr.f32.gmra.mxu0 %v7840
      %v7842 = vpop.f32.mrf.mxu0
      %v7843 = vadd.f32 %v7671, %v7842
      %v7844 = vpop.f32.mrf.mxu0
      %7845 = vmatprep.mubr.f32.mxu0 0.0
      %v7846 = vand.u32 %v7301, 4294901760
      %v7847 = vsub.f32 %v7301, %v7846
      %7848 = vmatmul.mubr.f32.gmra.mxu0 %v7847
      %v7849 = vpop.f32.mrf.mxu0
      %v7850 = vadd.f32 %v7677, %v7849
      %v7851 = vpop.f32.mrf.mxu0
      %7852 = vmatprep.mubr.f32.mxu0 0.0
      %v7853 = vand.u32 %v7304, 4294901760
      %v7854 = vsub.f32 %v7304, %v7853
      %7855 = vmatmul.mubr.f32.gmra.mxu0 %v7854
      %v7856 = vpop.f32.mrf.mxu0
      %v7857 = vadd.f32 %v7683, %v7856
      %v7858 = vpop.f32.mrf.mxu0
      %7859 = vmatprep.mubr.f32.mxu0 0.0
      %v7860 = vand.u32 %v7307, 4294901760
      %v7861 = vsub.f32 %v7307, %v7860
      %7862 = vmatmul.mubr.f32.gmra.mxu0 %v7861
      %v7863 = vpop.f32.mrf.mxu0
      %v7864 = vadd.f32 %v7689, %v7863
      %v7865 = vpop.f32.mrf.mxu0
      %7866 = vmatprep.mubr.f32.mxu0 0.0
      %v7867 = vand.u32 %v7310, 4294901760
      %v7868 = vsub.f32 %v7310, %v7867
      %7869 = vmatmul.mubr.f32.gmra.mxu0 %v7868
      %v7870 = vpop.f32.mrf.mxu0
      %v7871 = vadd.f32 %v7695, %v7870
      %v7872 = vpop.f32.mrf.mxu0
      %7873 = vmatprep.mubr.f32.mxu0 0.0
      %v7874 = vand.u32 %v7313, 4294901760
      %v7875 = vsub.f32 %v7313, %v7874
      %7876 = vmatmul.mubr.f32.gmra.mxu0 %v7875
      %v7877 = vpop.f32.mrf.mxu0
      %v7878 = vadd.f32 %v7701, %v7877
      %v7879 = vpop.f32.mrf.mxu0
      %7880 = vmatprep.mubr.f32.mxu0 0.0
      %v7881 = vand.u32 %v7316, 4294901760
      %v7882 = vsub.f32 %v7316, %v7881
      %7883 = vmatmul.mubr.f32.gmra.mxu0 %v7882
      %v7884 = vpop.f32.mrf.mxu0
      %v7885 = vadd.f32 %v7707, %v7884
      %v7886 = vpop.f32.mrf.mxu0
      %7887 = vmatprep.mubr.f32.mxu0 0.0
      %v7888 = vand.u32 %v7319, 4294901760
      %v7889 = vsub.f32 %v7319, %v7888
      %7890 = vmatmul.mubr.f32.gmra.mxu0 %v7889
      %v7891 = vpop.f32.mrf.mxu0
      %v7892 = vadd.f32 %v7713, %v7891
      %v7893 = vpop.f32.mrf.mxu0
      %7894 = vdwg.mxu0
      %7895 = vmatprep.subr.mxu0 0.0
      %7896 = vmatpush1.msra.mxu0 0.0
      %7897 = vmatprep.subr.mxu0 0.0
      %7898 = vmatpush1.msra.mxu0 0.0
      %7899 = vmatprep.subr.mxu0 0.0
      %7900 = vmatpush1.msra.mxu0 0.0
      %7901 = vmatprep.subr.mxu0 0.0
      %7902 = vmatpush1.msra.mxu0 0.0
      %7903 = vmatprep.subr.mxu0 0.0
      %7904 = vmatpush1.msra.mxu0 0.0
      %7905 = vmatprep.subr.mxu0 0.0
      %7906 = vmatpush1.msra.mxu0 0.0
      %7907 = vmatprep.subr.mxu0 0.0
      %7908 = vmatpush1.msra.mxu0 0.0
      %7909 = vmatprep.subr.mxu0 0.0
      %7910 = vmatpush1.msra.mxu0 0.0
      %7911 = vmatprep.subr.mxu0 0.0
      %7912 = vmatpush1.msra.mxu0 0.0
      %7913 = vmatprep.subr.mxu0 0.0
      %7914 = vmatpush1.msra.mxu0 0.0
      %7915 = vmatprep.subr.mxu0 0.0
      %7916 = vmatpush1.msra.mxu0 0.0
      %7917 = vmatprep.subr.mxu0 0.0
      %7918 = vmatpush1.msra.mxu0 0.0
      %7919 = vmatprep.subr.mxu0 0.0
      %7920 = vmatpush1.msra.mxu0 0.0
      %7921 = vmatprep.subr.mxu0 0.0
      %7922 = vmatpush1.msra.mxu0 0.0
      %7923 = vmatprep.subr.mxu0 0.0
      %7924 = vmatpush1.msra.mxu0 0.0
      %7925 = vmatprep.subr.mxu0 0.0
      %v7926 = vand.u32 %v7322, 4294901760
      %7927 = vmatpush1.msra.mxu0 %v7926
      %7928 = vmatprep.subr.mxu0 0.0
      %7929 = vmatpush2.msra.mxu0 0.0
      %7930 = vmatprep.subr.mxu0 0.0
      %7931 = vmatpush2.msra.mxu0 0.0
      %7932 = vmatprep.subr.mxu0 0.0
      %7933 = vmatpush2.msra.mxu0 0.0
      %7934 = vmatprep.subr.mxu0 0.0
      %7935 = vmatpush2.msra.mxu0 0.0
      %7936 = vmatprep.subr.mxu0 0.0
      %7937 = vmatpush2.msra.mxu0 0.0
      %7938 = vmatprep.subr.mxu0 0.0
      %7939 = vmatpush2.msra.mxu0 0.0
      %7940 = vmatprep.subr.mxu0 0.0
      %7941 = vmatpush2.msra.mxu0 0.0
      %7942 = vmatprep.subr.mxu0 0.0
      %7943 = vmatpush2.msra.mxu0 0.0
      %7944 = vmatprep.subr.mxu0 0.0
      %7945 = vmatpush2.msra.mxu0 0.0
      %7946 = vmatprep.subr.mxu0 0.0
      %7947 = vmatpush2.msra.mxu0 0.0
      %7948 = vmatprep.subr.mxu0 0.0
      %7949 = vmatpush2.msra.mxu0 0.0
      %7950 = vmatprep.subr.mxu0 0.0
      %7951 = vmatpush2.msra.mxu0 0.0
      %7952 = vmatprep.subr.mxu0 0.0
      %7953 = vmatpush2.msra.mxu0 0.0
      %7954 = vmatprep.subr.mxu0 0.0
      %7955 = vmatpush2.msra.mxu0 0.0
      %7956 = vmatprep.subr.mxu0 0.0
      %7957 = vmatpush2.msra.mxu0 0.0
      %7958 = vmatprep.subr.mxu0 0.0
      %7959 = vmatpush2.msra.mxu0 0.0
      %7960 = vmatprep.mubr.f32.mxu0 0.0
      %v7961 = vand.u32 %v7274, 4294901760
      %v7962 = vsub.f32 %v7274, %v7961
      %v7963 = vand.u32 %v7962, 4294901760
      %7964 = vmatmul.mubr.f32.gmra.mxu0 %v7963
      %v7965 = vpop.f32.mrf.mxu0
      %v7966 = vadd.f32 %v7787, %v7965
      %v7967 = vpop.f32.mrf.mxu0
      %7968 = vmatprep.mubr.f32.mxu0 0.0
      %v7969 = vand.u32 %v7277, 4294901760
      %v7970 = vsub.f32 %v7277, %v7969
      %v7971 = vand.u32 %v7970, 4294901760
      %7972 = vmatmul.mubr.f32.gmra.mxu0 %v7971
      %v7973 = vpop.f32.mrf.mxu0
      %v7974 = vadd.f32 %v7794, %v7973
      %v7975 = vpop.f32.mrf.mxu0
      %7976 = vmatprep.mubr.f32.mxu0 0.0
      %v7977 = vand.u32 %v7280, 4294901760
      %v7978 = vsub.f32 %v7280, %v7977
      %v7979 = vand.u32 %v7978, 4294901760
      %7980 = vmatmul.mubr.f32.gmra.mxu0 %v7979
      %v7981 = vpop.f32.mrf.mxu0
      %v7982 = vadd.f32 %v7801, %v7981
      %v7983 = vpop.f32.mrf.mxu0
      %7984 = vmatprep.mubr.f32.mxu0 0.0
      %v7985 = vand.u32 %v7283, 4294901760
      %v7986 = vsub.f32 %v7283, %v7985
      %v7987 = vand.u32 %v7986, 4294901760
      %7988 = vmatmul.mubr.f32.gmra.mxu0 %v7987
      %v7989 = vpop.f32.mrf.mxu0
      %v7990 = vadd.f32 %v7808, %v7989
      %v7991 = vpop.f32.mrf.mxu0
      %7992 = vmatprep.mubr.f32.mxu0 0.0
      %v7993 = vand.u32 %v7286, 4294901760
      %v7994 = vsub.f32 %v7286, %v7993
      %v7995 = vand.u32 %v7994, 4294901760
      %7996 = vmatmul.mubr.f32.gmra.mxu0 %v7995
      %v7997 = vpop.f32.mrf.mxu0
      %v7998 = vadd.f32 %v7815, %v7997
      %v7999 = vpop.f32.mrf.mxu0
      %8000 = vmatprep.mubr.f32.mxu0 0.0
      %v8001 = vand.u32 %v7289, 4294901760
      %v8002 = vsub.f32 %v7289, %v8001
      %v8003 = vand.u32 %v8002, 4294901760
      %8004 = vmatmul.mubr.f32.gmra.mxu0 %v8003
      %v8005 = vpop.f32.mrf.mxu0
      %v8006 = vadd.f32 %v7822, %v8005
      %v8007 = vpop.f32.mrf.mxu0
      %8008 = vmatprep.mubr.f32.mxu0 0.0
      %v8009 = vand.u32 %v7292, 4294901760
      %v8010 = vsub.f32 %v7292, %v8009
      %v8011 = vand.u32 %v8010, 4294901760
      %8012 = vmatmul.mubr.f32.gmra.mxu0 %v8011
      %v8013 = vpop.f32.mrf.mxu0
      %v8014 = vadd.f32 %v7829, %v8013
      %v8015 = vpop.f32.mrf.mxu0
      %8016 = vmatprep.mubr.f32.mxu0 0.0
      %v8017 = vand.u32 %v7295, 4294901760
      %v8018 = vsub.f32 %v7295, %v8017
      %v8019 = vand.u32 %v8018, 4294901760
      %8020 = vmatmul.mubr.f32.gmra.mxu0 %v8019
      %v8021 = vpop.f32.mrf.mxu0
      %v8022 = vadd.f32 %v7836, %v8021
      %v8023 = vpop.f32.mrf.mxu0
      %8024 = vmatprep.mubr.f32.mxu0 0.0
      %v8025 = vand.u32 %v7298, 4294901760
      %v8026 = vsub.f32 %v7298, %v8025
      %v8027 = vand.u32 %v8026, 4294901760
      %8028 = vmatmul.mubr.f32.gmra.mxu0 %v8027
      %v8029 = vpop.f32.mrf.mxu0
      %v8030 = vadd.f32 %v7843, %v8029
      %v8031 = vpop.f32.mrf.mxu0
      %8032 = vmatprep.mubr.f32.mxu0 0.0
      %v8033 = vand.u32 %v7301, 4294901760
      %v8034 = vsub.f32 %v7301, %v8033
      %v8035 = vand.u32 %v8034, 4294901760
      %8036 = vmatmul.mubr.f32.gmra.mxu0 %v8035
      %v8037 = vpop.f32.mrf.mxu0
      %v8038 = vadd.f32 %v7850, %v8037
      %v8039 = vpop.f32.mrf.mxu0
      %8040 = vmatprep.mubr.f32.mxu0 0.0
      %v8041 = vand.u32 %v7304, 4294901760
      %v8042 = vsub.f32 %v7304, %v8041
      %v8043 = vand.u32 %v8042, 4294901760
      %8044 = vmatmul.mubr.f32.gmra.mxu0 %v8043
      %v8045 = vpop.f32.mrf.mxu0
      %v8046 = vadd.f32 %v7857, %v8045
      %v8047 = vpop.f32.mrf.mxu0
      %8048 = vmatprep.mubr.f32.mxu0 0.0
      %v8049 = vand.u32 %v7307, 4294901760
      %v8050 = vsub.f32 %v7307, %v8049
      %v8051 = vand.u32 %v8050, 4294901760
      %8052 = vmatmul.mubr.f32.gmra.mxu0 %v8051
      %v8053 = vpop.f32.mrf.mxu0
      %v8054 = vadd.f32 %v7864, %v8053
      %v8055 = vpop.f32.mrf.mxu0
      %8056 = vmatprep.mubr.f32.mxu0 0.0
      %v8057 = vand.u32 %v7310, 4294901760
      %v8058 = vsub.f32 %v7310, %v8057
      %v8059 = vand.u32 %v8058, 4294901760
      %8060 = vmatmul.mubr.f32.gmra.mxu0 %v8059
      %v8061 = vpop.f32.mrf.mxu0
      %v8062 = vadd.f32 %v7871, %v8061
      %v8063 = vpop.f32.mrf.mxu0
      %8064 = vmatprep.mubr.f32.mxu0 0.0
      %v8065 = vand.u32 %v7313, 4294901760
      %v8066 = vsub.f32 %v7313, %v8065
      %v8067 = vand.u32 %v8066, 4294901760
      %8068 = vmatmul.mubr.f32.gmra.mxu0 %v8067
      %v8069 = vpop.f32.mrf.mxu0
      %v8070 = vadd.f32 %v7878, %v8069
      %v8071 = vpop.f32.mrf.mxu0
      %8072 = vmatprep.mubr.f32.mxu0 0.0
      %v8073 = vand.u32 %v7316, 4294901760
      %v8074 = vsub.f32 %v7316, %v8073
      %v8075 = vand.u32 %v8074, 4294901760
      %8076 = vmatmul.mubr.f32.gmra.mxu0 %v8075
      %v8077 = vpop.f32.mrf.mxu0
      %v8078 = vadd.f32 %v7885, %v8077
      %v8079 = vpop.f32.mrf.mxu0
      %8080 = vmatprep.mubr.f32.mxu0 0.0
      %v8081 = vand.u32 %v7319, 4294901760
      %v8082 = vsub.f32 %v7319, %v8081
      %v8083 = vand.u32 %v8082, 4294901760
      %8084 = vmatmul.mubr.f32.gmra.mxu0 %v8083
      %v8085 = vpop.f32.mrf.mxu0
      %v8086 = vadd.f32 %v7892, %v8085
      %v8087 = vpop.f32.mrf.mxu0
      %8088 = vdwg.mxu0
      %8089 = vmatprep.subr.mxu0 0.0
      %8090 = vmatpush1.msra.mxu0 0.0
      %8091 = vmatprep.subr.mxu0 0.0
      %8092 = vmatpush1.msra.mxu0 0.0
      %8093 = vmatprep.subr.mxu0 0.0
      %8094 = vmatpush1.msra.mxu0 0.0
      %8095 = vmatprep.subr.mxu0 0.0
      %8096 = vmatpush1.msra.mxu0 0.0
      %8097 = vmatprep.subr.mxu0 0.0
      %8098 = vmatpush1.msra.mxu0 0.0
      %8099 = vmatprep.subr.mxu0 0.0
      %8100 = vmatpush1.msra.mxu0 0.0
      %8101 = vmatprep.subr.mxu0 0.0
      %8102 = vmatpush1.msra.mxu0 0.0
      %8103 = vmatprep.subr.mxu0 0.0
      %8104 = vmatpush1.msra.mxu0 0.0
      %8105 = vmatprep.subr.mxu0 0.0
      %8106 = vmatpush1.msra.mxu0 0.0
      %8107 = vmatprep.subr.mxu0 0.0
      %8108 = vmatpush1.msra.mxu0 0.0
      %8109 = vmatprep.subr.mxu0 0.0
      %8110 = vmatpush1.msra.mxu0 0.0
      %8111 = vmatprep.subr.mxu0 0.0
      %8112 = vmatpush1.msra.mxu0 0.0
      %8113 = vmatprep.subr.mxu0 0.0
      %8114 = vmatpush1.msra.mxu0 0.0
      %8115 = vmatprep.subr.mxu0 0.0
      %8116 = vmatpush1.msra.mxu0 0.0
      %8117 = vmatprep.subr.mxu0 0.0
      %8118 = vmatpush1.msra.mxu0 0.0
      %8119 = vmatprep.subr.mxu0 0.0
      %v8120 = vand.u32 %v7322, 4294901760
      %v8121 = vsub.f32 %v7322, %v8120
      %v8122 = vand.u32 %v8121, 4294901760
      %8123 = vmatpush1.msra.mxu0 %v8122
      %8124 = vmatprep.subr.mxu0 0.0
      %8125 = vmatpush2.msra.mxu0 0.0
      %8126 = vmatprep.subr.mxu0 0.0
      %8127 = vmatpush2.msra.mxu0 0.0
      %8128 = vmatprep.subr.mxu0 0.0
      %8129 = vmatpush2.msra.mxu0 0.0
      %8130 = vmatprep.subr.mxu0 0.0
      %8131 = vmatpush2.msra.mxu0 0.0
      %8132 = vmatprep.subr.mxu0 0.0
      %8133 = vmatpush2.msra.mxu0 0.0
      %8134 = vmatprep.subr.mxu0 0.0
      %8135 = vmatpush2.msra.mxu0 0.0
      %8136 = vmatprep.subr.mxu0 0.0
      %8137 = vmatpush2.msra.mxu0 0.0
      %8138 = vmatprep.subr.mxu0 0.0
      %8139 = vmatpush2.msra.mxu0 0.0
      %8140 = vmatprep.subr.mxu0 0.0
      %8141 = vmatpush2.msra.mxu0 0.0
      %8142 = vmatprep.subr.mxu0 0.0
      %8143 = vmatpush2.msra.mxu0 0.0
      %8144 = vmatprep.subr.mxu0 0.0
      %8145 = vmatpush2.msra.mxu0 0.0
      %8146 = vmatprep.subr.mxu0 0.0
      %8147 = vmatpush2.msra.mxu0 0.0
      %8148 = vmatprep.subr.mxu0 0.0
      %8149 = vmatpush2.msra.mxu0 0.0
      %8150 = vmatprep.subr.mxu0 0.0
      %8151 = vmatpush2.msra.mxu0 0.0
      %8152 = vmatprep.subr.mxu0 0.0
      %8153 = vmatpush2.msra.mxu0 0.0
      %8154 = vmatprep.subr.mxu0 0.0
      %8155 = vmatpush2.msra.mxu0 0.0
      %8156 = vmatprep.mubr.f32.mxu0 0.0
      %v8157 = vand.u32 %v7274, 4294901760
      %8158 = vmatmul.mubr.f32.gmra.mxu0 %v8157
      %v8159 = vpop.f32.mrf.mxu0
      %v8160 = vadd.f32 %v7966, %v8159
      %v8161 = vpop.f32.mrf.mxu0
      %8162 = vmatprep.mubr.f32.mxu0 0.0
      %v8163 = vand.u32 %v7277, 4294901760
      %8164 = vmatmul.mubr.f32.gmra.mxu0 %v8163
      %v8165 = vpop.f32.mrf.mxu0
      %v8166 = vadd.f32 %v7974, %v8165
      %v8167 = vpop.f32.mrf.mxu0
      %8168 = vmatprep.mubr.f32.mxu0 0.0
      %v8169 = vand.u32 %v7280, 4294901760
      %8170 = vmatmul.mubr.f32.gmra.mxu0 %v8169
      %v8171 = vpop.f32.mrf.mxu0
      %v8172 = vadd.f32 %v7982, %v8171
      %v8173 = vpop.f32.mrf.mxu0
      %8174 = vmatprep.mubr.f32.mxu0 0.0
      %v8175 = vand.u32 %v7283, 4294901760
      %8176 = vmatmul.mubr.f32.gmra.mxu0 %v8175
      %v8177 = vpop.f32.mrf.mxu0
      %v8178 = vadd.f32 %v7990, %v8177
      %v8179 = vpop.f32.mrf.mxu0
      %8180 = vmatprep.mubr.f32.mxu0 0.0
      %v8181 = vand.u32 %v7286, 4294901760
      %8182 = vmatmul.mubr.f32.gmra.mxu0 %v8181
      %v8183 = vpop.f32.mrf.mxu0
      %v8184 = vadd.f32 %v7998, %v8183
      %v8185 = vpop.f32.mrf.mxu0
      %8186 = vmatprep.mubr.f32.mxu0 0.0
      %v8187 = vand.u32 %v7289, 4294901760
      %8188 = vmatmul.mubr.f32.gmra.mxu0 %v8187
      %v8189 = vpop.f32.mrf.mxu0
      %v8190 = vadd.f32 %v8006, %v8189
      %v8191 = vpop.f32.mrf.mxu0
      %8192 = vmatprep.mubr.f32.mxu0 0.0
      %v8193 = vand.u32 %v7292, 4294901760
      %8194 = vmatmul.mubr.f32.gmra.mxu0 %v8193
      %v8195 = vpop.f32.mrf.mxu0
      %v8196 = vadd.f32 %v8014, %v8195
      %v8197 = vpop.f32.mrf.mxu0
      %8198 = vmatprep.mubr.f32.mxu0 0.0
      %v8199 = vand.u32 %v7295, 4294901760
      %8200 = vmatmul.mubr.f32.gmra.mxu0 %v8199
      %v8201 = vpop.f32.mrf.mxu0
      %v8202 = vadd.f32 %v8022, %v8201
      %v8203 = vpop.f32.mrf.mxu0
      %8204 = vmatprep.mubr.f32.mxu0 0.0
      %v8205 = vand.u32 %v7298, 4294901760
      %8206 = vmatmul.mubr.f32.gmra.mxu0 %v8205
      %v8207 = vpop.f32.mrf.mxu0
      %v8208 = vadd.f32 %v8030, %v8207
      %v8209 = vpop.f32.mrf.mxu0
      %8210 = vmatprep.mubr.f32.mxu0 0.0
      %v8211 = vand.u32 %v7301, 4294901760
      %8212 = vmatmul.mubr.f32.gmra.mxu0 %v8211
      %v8213 = vpop.f32.mrf.mxu0
      %v8214 = vadd.f32 %v8038, %v8213
      %v8215 = vpop.f32.mrf.mxu0
      %8216 = vmatprep.mubr.f32.mxu0 0.0
      %v8217 = vand.u32 %v7304, 4294901760
      %8218 = vmatmul.mubr.f32.gmra.mxu0 %v8217
      %v8219 = vpop.f32.mrf.mxu0
      %v8220 = vadd.f32 %v8046, %v8219
      %v8221 = vpop.f32.mrf.mxu0
      %8222 = vmatprep.mubr.f32.mxu0 0.0
      %v8223 = vand.u32 %v7307, 4294901760
      %8224 = vmatmul.mubr.f32.gmra.mxu0 %v8223
      %v8225 = vpop.f32.mrf.mxu0
      %v8226 = vadd.f32 %v8054, %v8225
      %v8227 = vpop.f32.mrf.mxu0
      %8228 = vmatprep.mubr.f32.mxu0 0.0
      %v8229 = vand.u32 %v7310, 4294901760
      %8230 = vmatmul.mubr.f32.gmra.mxu0 %v8229
      %v8231 = vpop.f32.mrf.mxu0
      %v8232 = vadd.f32 %v8062, %v8231
      %v8233 = vpop.f32.mrf.mxu0
      %8234 = vmatprep.mubr.f32.mxu0 0.0
      %v8235 = vand.u32 %v7313, 4294901760
      %8236 = vmatmul.mubr.f32.gmra.mxu0 %v8235
      %v8237 = vpop.f32.mrf.mxu0
      %v8238 = vadd.f32 %v8070, %v8237
      %v8239 = vpop.f32.mrf.mxu0
      %8240 = vmatprep.mubr.f32.mxu0 0.0
      %v8241 = vand.u32 %v7316, 4294901760
      %8242 = vmatmul.mubr.f32.gmra.mxu0 %v8241
      %v8243 = vpop.f32.mrf.mxu0
      %v8244 = vadd.f32 %v8078, %v8243
      %v8245 = vpop.f32.mrf.mxu0
      %8246 = vmatprep.mubr.f32.mxu0 0.0
      %v8247 = vand.u32 %v7319, 4294901760
      %8248 = vmatmul.mubr.f32.gmra.mxu0 %v8247
      %v8249 = vpop.f32.mrf.mxu0
      %v8250 = vadd.f32 %v8086, %v8249
      %v8251 = vpop.f32.mrf.mxu0
      %8252 = vdwg.mxu0
      %8253 = vmatprep.subr.mxu0 0.0
      %8254 = vmatpush1.msra.mxu0 0.0
      %8255 = vmatprep.subr.mxu0 0.0
      %8256 = vmatpush1.msra.mxu0 0.0
      %8257 = vmatprep.subr.mxu0 0.0
      %8258 = vmatpush1.msra.mxu0 0.0
      %8259 = vmatprep.subr.mxu0 0.0
      %8260 = vmatpush1.msra.mxu0 0.0
      %8261 = vmatprep.subr.mxu0 0.0
      %8262 = vmatpush1.msra.mxu0 0.0
      %8263 = vmatprep.subr.mxu0 0.0
      %8264 = vmatpush1.msra.mxu0 0.0
      %8265 = vmatprep.subr.mxu0 0.0
      %8266 = vmatpush1.msra.mxu0 0.0
      %8267 = vmatprep.subr.mxu0 0.0
      %8268 = vmatpush1.msra.mxu0 0.0
      %8269 = vmatprep.subr.mxu0 0.0
      %8270 = vmatpush1.msra.mxu0 0.0
      %8271 = vmatprep.subr.mxu0 0.0
      %8272 = vmatpush1.msra.mxu0 0.0
      %8273 = vmatprep.subr.mxu0 0.0
      %8274 = vmatpush1.msra.mxu0 0.0
      %8275 = vmatprep.subr.mxu0 0.0
      %8276 = vmatpush1.msra.mxu0 0.0
      %8277 = vmatprep.subr.mxu0 0.0
      %8278 = vmatpush1.msra.mxu0 0.0
      %8279 = vmatprep.subr.mxu0 0.0
      %8280 = vmatpush1.msra.mxu0 0.0
      %8281 = vmatprep.subr.mxu0 0.0
      %8282 = vmatpush1.msra.mxu0 0.0
      %8283 = vmatprep.subr.mxu0 0.0
      %v8284 = vand.u32 %v7322, 4294901760
      %8285 = vmatpush1.msra.mxu0 %v8284
      %8286 = vmatprep.subr.mxu0 0.0
      %8287 = vmatpush2.msra.mxu0 0.0
      %8288 = vmatprep.subr.mxu0 0.0
      %8289 = vmatpush2.msra.mxu0 0.0
      %8290 = vmatprep.subr.mxu0 0.0
      %8291 = vmatpush2.msra.mxu0 0.0
      %8292 = vmatprep.subr.mxu0 0.0
      %8293 = vmatpush2.msra.mxu0 0.0
      %8294 = vmatprep.subr.mxu0 0.0
      %8295 = vmatpush2.msra.mxu0 0.0
      %8296 = vmatprep.subr.mxu0 0.0
      %8297 = vmatpush2.msra.mxu0 0.0
      %8298 = vmatprep.subr.mxu0 0.0
      %8299 = vmatpush2.msra.mxu0 0.0
      %8300 = vmatprep.subr.mxu0 0.0
      %8301 = vmatpush2.msra.mxu0 0.0
      %8302 = vmatprep.subr.mxu0 0.0
      %8303 = vmatpush2.msra.mxu0 0.0
      %8304 = vmatprep.subr.mxu0 0.0
      %8305 = vmatpush2.msra.mxu0 0.0
      %8306 = vmatprep.subr.mxu0 0.0
      %8307 = vmatpush2.msra.mxu0 0.0
      %8308 = vmatprep.subr.mxu0 0.0
      %8309 = vmatpush2.msra.mxu0 0.0
      %8310 = vmatprep.subr.mxu0 0.0
      %8311 = vmatpush2.msra.mxu0 0.0
      %8312 = vmatprep.subr.mxu0 0.0
      %8313 = vmatpush2.msra.mxu0 0.0
      %8314 = vmatprep.subr.mxu0 0.0
      %8315 = vmatpush2.msra.mxu0 0.0
      %8316 = vmatprep.subr.mxu0 0.0
      %8317 = vmatpush2.msra.mxu0 0.0
      %8318 = vmatprep.mubr.f32.mxu0 0.0
      %v8319 = vand.u32 %v7274, 4294901760
      %8320 = vmatmul.mubr.f32.gmra.mxu0 %v8319
      %v8321 = vpop.f32.mrf.mxu0
      %v8322 = vadd.f32 %v8160, %v8321
      %v8323 = vpop.f32.mrf.mxu0
      %8324 = vmatprep.mubr.f32.mxu0 0.0
      %v8325 = vand.u32 %v7277, 4294901760
      %8326 = vmatmul.mubr.f32.gmra.mxu0 %v8325
      %v8327 = vpop.f32.mrf.mxu0
      %v8328 = vadd.f32 %v8166, %v8327
      %v8329 = vpop.f32.mrf.mxu0
      %8330 = vmatprep.mubr.f32.mxu0 0.0
      %v8331 = vand.u32 %v7280, 4294901760
      %8332 = vmatmul.mubr.f32.gmra.mxu0 %v8331
      %v8333 = vpop.f32.mrf.mxu0
      %v8334 = vadd.f32 %v8172, %v8333
      %v8335 = vpop.f32.mrf.mxu0
      %8336 = vmatprep.mubr.f32.mxu0 0.0
      %v8337 = vand.u32 %v7283, 4294901760
      %8338 = vmatmul.mubr.f32.gmra.mxu0 %v8337
      %v8339 = vpop.f32.mrf.mxu0
      %v8340 = vadd.f32 %v8178, %v8339
      %v8341 = vpop.f32.mrf.mxu0
      %8342 = vmatprep.mubr.f32.mxu0 0.0
      %v8343 = vand.u32 %v7286, 4294901760
      %8344 = vmatmul.mubr.f32.gmra.mxu0 %v8343
      %v8345 = vpop.f32.mrf.mxu0
      %v8346 = vadd.f32 %v8184, %v8345
      %v8347 = vpop.f32.mrf.mxu0
      %8348 = vmatprep.mubr.f32.mxu0 0.0
      %v8349 = vand.u32 %v7289, 4294901760
      %8350 = vmatmul.mubr.f32.gmra.mxu0 %v8349
      %v8351 = vpop.f32.mrf.mxu0
      %v8352 = vadd.f32 %v8190, %v8351
      %v8353 = vpop.f32.mrf.mxu0
      %8354 = vmatprep.mubr.f32.mxu0 0.0
      %v8355 = vand.u32 %v7292, 4294901760
      %8356 = vmatmul.mubr.f32.gmra.mxu0 %v8355
      %v8357 = vpop.f32.mrf.mxu0
      %v8358 = vadd.f32 %v8196, %v8357
      %v8359 = vpop.f32.mrf.mxu0
      %8360 = vmatprep.mubr.f32.mxu0 0.0
      %v8361 = vand.u32 %v7295, 4294901760
      %8362 = vmatmul.mubr.f32.gmra.mxu0 %v8361
      %v8363 = vpop.f32.mrf.mxu0
      %v8364 = vadd.f32 %v8202, %v8363
      %v8365 = vpop.f32.mrf.mxu0
      %8366 = vmatprep.mubr.f32.mxu0 0.0
      %v8367 = vand.u32 %v7298, 4294901760
      %8368 = vmatmul.mubr.f32.gmra.mxu0 %v8367
      %v8369 = vpop.f32.mrf.mxu0
      %v8370 = vadd.f32 %v8208, %v8369
      %v8371 = vpop.f32.mrf.mxu0
      %8372 = vmatprep.mubr.f32.mxu0 0.0
      %v8373 = vand.u32 %v7301, 4294901760
      %8374 = vmatmul.mubr.f32.gmra.mxu0 %v8373
      %v8375 = vpop.f32.mrf.mxu0
      %v8376 = vadd.f32 %v8214, %v8375
      %v8377 = vpop.f32.mrf.mxu0
      %8378 = vmatprep.mubr.f32.mxu0 0.0
      %v8379 = vand.u32 %v7304, 4294901760
      %8380 = vmatmul.mubr.f32.gmra.mxu0 %v8379
      %v8381 = vpop.f32.mrf.mxu0
      %v8382 = vadd.f32 %v8220, %v8381
      %v8383 = vpop.f32.mrf.mxu0
      %8384 = vmatprep.mubr.f32.mxu0 0.0
      %v8385 = vand.u32 %v7307, 4294901760
      %8386 = vmatmul.mubr.f32.gmra.mxu0 %v8385
      %v8387 = vpop.f32.mrf.mxu0
      %v8388 = vadd.f32 %v8226, %v8387
      %v8389 = vpop.f32.mrf.mxu0
      %8390 = vmatprep.mubr.f32.mxu0 0.0
      %v8391 = vand.u32 %v7310, 4294901760
      %8392 = vmatmul.mubr.f32.gmra.mxu0 %v8391
      %v8393 = vpop.f32.mrf.mxu0
      %v8394 = vadd.f32 %v8232, %v8393
      %v8395 = vpop.f32.mrf.mxu0
      %8396 = vmatprep.mubr.f32.mxu0 0.0
      %v8397 = vand.u32 %v7313, 4294901760
      %8398 = vmatmul.mubr.f32.gmra.mxu0 %v8397
      %v8399 = vpop.f32.mrf.mxu0
      %v8400 = vadd.f32 %v8238, %v8399
      %v8401 = vpop.f32.mrf.mxu0
      %8402 = vmatprep.mubr.f32.mxu0 0.0
      %v8403 = vand.u32 %v7316, 4294901760
      %8404 = vmatmul.mubr.f32.gmra.mxu0 %v8403
      %v8405 = vpop.f32.mrf.mxu0
      %v8406 = vadd.f32 %v8244, %v8405
      %v8407 = vpop.f32.mrf.mxu0
      %8408 = vmatprep.mubr.f32.mxu0 0.0
      %v8409 = vand.u32 %v7319, 4294901760
      %8410 = vmatmul.mubr.f32.gmra.mxu0 %v8409
      %v8411 = vpop.f32.mrf.mxu0
      %v8412 = vadd.f32 %v8250, %v8411
      %v8413 = vpop.f32.mrf.mxu0
      %8414 = vdwg.mxu0
      %v8415 = vadd.f32 %v7236, %v8322
      %v8416 = vadd.f32 %v7237, %v8328
      %v8417 = vadd.f32 %v7238, %v8334
      %v8418 = vadd.f32 %v7239, %v8340
      %v8419 = vadd.f32 %v7240, %v8346
      %v8420 = vadd.f32 %v7241, %v8352
      %v8421 = vadd.f32 %v7242, %v8358
      %v8422 = vadd.f32 %v7243, %v8364
      %v8423 = vadd.f32 %v7244, %v8370
      %v8424 = vadd.f32 %v7245, %v8376
      %v8425 = vadd.f32 %v7246, %v8382
      %v8426 = vadd.f32 %v7247, %v8388
      %v8427 = vadd.f32 %v7248, %v8394
      %v8428 = vadd.f32 %v7249, %v8400
      %v8429 = vadd.f32 %v7250, %v8406
      %v8430 = vadd.f32 %v7251, %v8412
      %v8431 = vld [vmem:[%s7254 + $0x1] sm:$0xff]
      %v8432 = vld [vmem:[%s7254 + $0x9] sm:$0xff]
      %v8433 = vld [vmem:[%s7254 + $0x19] sm:$0xff]
      %v8434 = vld [vmem:[%s7254 + $0x21] sm:$0xff]
      %v8435 = vld [vmem:[%s7254 + $0x31] sm:$0xff]
      %v8436 = vld [vmem:[%s7254 + $0x39] sm:$0xff]
      %v8437 = vld [vmem:[%s7254 + $0x49] sm:$0xff]
      %v8438 = vld [vmem:[%s7254 + $0x51] sm:$0xff]
      %v8439 = vld [vmem:[%s7254 + $0x61] sm:$0xff]
      %v8440 = vld [vmem:[%s7254 + $0x69] sm:$0xff]
      %v8441 = vld [vmem:[%s7254 + $0x79] sm:$0xff]
      %v8442 = vld [vmem:[%s7254 + $0x81] sm:$0xff]
      %v8443 = vld [vmem:[%s7254 + $0x91] sm:$0xff]
      %v8444 = vld [vmem:[%s7254 + $0x99] sm:$0xff]
      %v8445 = vld [vmem:[%s7254 + $0xa9] sm:$0xff]
      %v8446 = vld [vmem:[%s7254 + $0xb1] sm:$0xff]
      %s8447 = scalar_lea.vmem %s1, 28
      %v8448 = vld [vmem:[%s8447] sm:$0xf]
      %v8450 = vsel %vm259, %v8431, 0
      %v8453 = vsel %vm259, %v8432, 0
      %v8456 = vsel %vm259, %v8433, 0
      %v8459 = vsel %vm259, %v8434, 0
      %v8462 = vsel %vm259, %v8435, 0
      %v8465 = vsel %vm259, %v8436, 0
      %v8468 = vsel %vm259, %v8437, 0
      %v8471 = vsel %vm259, %v8438, 0
      %v8474 = vsel %vm259, %v8439, 0
      %v8477 = vsel %vm259, %v8440, 0
      %v8480 = vsel %vm259, %v8441, 0
      %v8483 = vsel %vm259, %v8442, 0
      %v8486 = vsel %vm259, %v8443, 0
      %v8489 = vsel %vm259, %v8444, 0
      %v8492 = vsel %vm259, %v8445, 0
      %v8495 = vsel %vm259, %v8446, 0
      %v8498 = vsel %vm308, %v8448, 0
      %8500 = vmatprep.subr.mxu0 0.0
      %8501 = vmatpush1.msra.mxu0 0.0
      %8502 = vmatprep.subr.mxu0 0.0
      %8503 = vmatpush1.msra.mxu0 0.0
      %8504 = vmatprep.subr.mxu0 0.0
      %8505 = vmatpush1.msra.mxu0 0.0
      %8506 = vmatprep.subr.mxu0 0.0
      %8507 = vmatpush1.msra.mxu0 0.0
      %8508 = vmatprep.subr.mxu0 0.0
      %8509 = vmatpush1.msra.mxu0 0.0
      %8510 = vmatprep.subr.mxu0 0.0
      %8511 = vmatpush1.msra.mxu0 0.0
      %8512 = vmatprep.subr.mxu0 0.0
      %8513 = vmatpush1.msra.mxu0 0.0
      %8514 = vmatprep.subr.mxu0 0.0
      %8515 = vmatpush1.msra.mxu0 0.0
      %8516 = vmatprep.subr.mxu0 0.0
      %8517 = vmatpush1.msra.mxu0 0.0
      %8518 = vmatprep.subr.mxu0 0.0
      %8519 = vmatpush1.msra.mxu0 0.0
      %8520 = vmatprep.subr.mxu0 0.0
      %8521 = vmatpush1.msra.mxu0 0.0
      %8522 = vmatprep.subr.mxu0 0.0
      %8523 = vmatpush1.msra.mxu0 0.0
      %8524 = vmatprep.subr.mxu0 0.0
      %8525 = vmatpush1.msra.mxu0 0.0
      %8526 = vmatprep.subr.mxu0 0.0
      %8527 = vmatpush1.msra.mxu0 0.0
      %8528 = vmatprep.subr.mxu0 0.0
      %8529 = vmatpush1.msra.mxu0 0.0
      %8530 = vmatprep.subr.mxu0 0.0
      %v8531 = vand.u32 %v8498, 4294901760
      %8532 = vmatpush1.msra.mxu0 %v8531
      %8533 = vmatprep.subr.mxu0 0.0
      %8534 = vmatpush2.msra.mxu0 0.0
      %8535 = vmatprep.subr.mxu0 0.0
      %8536 = vmatpush2.msra.mxu0 0.0
      %8537 = vmatprep.subr.mxu0 0.0
      %8538 = vmatpush2.msra.mxu0 0.0
      %8539 = vmatprep.subr.mxu0 0.0
      %8540 = vmatpush2.msra.mxu0 0.0
      %8541 = vmatprep.subr.mxu0 0.0
      %8542 = vmatpush2.msra.mxu0 0.0
      %8543 = vmatprep.subr.mxu0 0.0
      %8544 = vmatpush2.msra.mxu0 0.0
      %8545 = vmatprep.subr.mxu0 0.0
      %8546 = vmatpush2.msra.mxu0 0.0
      %8547 = vmatprep.subr.mxu0 0.0
      %8548 = vmatpush2.msra.mxu0 0.0
      %8549 = vmatprep.subr.mxu0 0.0
      %8550 = vmatpush2.msra.mxu0 0.0
      %8551 = vmatprep.subr.mxu0 0.0
      %8552 = vmatpush2.msra.mxu0 0.0
      %8553 = vmatprep.subr.mxu0 0.0
      %8554 = vmatpush2.msra.mxu0 0.0
      %8555 = vmatprep.subr.mxu0 0.0
      %8556 = vmatpush2.msra.mxu0 0.0
      %8557 = vmatprep.subr.mxu0 0.0
      %8558 = vmatpush2.msra.mxu0 0.0
      %8559 = vmatprep.subr.mxu0 0.0
      %8560 = vmatpush2.msra.mxu0 0.0
      %8561 = vmatprep.subr.mxu0 0.0
      %8562 = vmatpush2.msra.mxu0 0.0
      %8563 = vmatprep.subr.mxu0 0.0
      %8564 = vmatpush2.msra.mxu0 0.0
      %8565 = vmatprep.mubr.f32.mxu0 0.0
      %v8566 = vand.u32 %v8450, 4294901760
      %v8567 = vsub.f32 %v8450, %v8566
      %v8568 = vand.u32 %v8567, 4294901760
      %v8569 = vsub.f32 %v8567, %v8568
      %v8570 = vand.u32 %v8569, 4294901760
      %8571 = vmatmul.mubr.f32.gmra.mxu0 %v8570
      %v8572 = vpop.f32.mrf.mxu0
      %v8573 = vadd.f32 0.0, %v8572
      %v8574 = vpop.f32.mrf.mxu0
      %8575 = vmatprep.mubr.f32.mxu0 0.0
      %v8576 = vand.u32 %v8453, 4294901760
      %v8577 = vsub.f32 %v8453, %v8576
      %v8578 = vand.u32 %v8577, 4294901760
      %v8579 = vsub.f32 %v8577, %v8578
      %v8580 = vand.u32 %v8579, 4294901760
      %8581 = vmatmul.mubr.f32.gmra.mxu0 %v8580
      %v8582 = vpop.f32.mrf.mxu0
      %v8583 = vadd.f32 0.0, %v8582
      %v8584 = vpop.f32.mrf.mxu0
      %8585 = vmatprep.mubr.f32.mxu0 0.0
      %v8586 = vand.u32 %v8456, 4294901760
      %v8587 = vsub.f32 %v8456, %v8586
      %v8588 = vand.u32 %v8587, 4294901760
      %v8589 = vsub.f32 %v8587, %v8588
      %v8590 = vand.u32 %v8589, 4294901760
      %8591 = vmatmul.mubr.f32.gmra.mxu0 %v8590
      %v8592 = vpop.f32.mrf.mxu0
      %v8593 = vadd.f32 0.0, %v8592
      %v8594 = vpop.f32.mrf.mxu0
      %8595 = vmatprep.mubr.f32.mxu0 0.0
      %v8596 = vand.u32 %v8459, 4294901760
      %v8597 = vsub.f32 %v8459, %v8596
      %v8598 = vand.u32 %v8597, 4294901760
      %v8599 = vsub.f32 %v8597, %v8598
      %v8600 = vand.u32 %v8599, 4294901760
      %8601 = vmatmul.mubr.f32.gmra.mxu0 %v8600
      %v8602 = vpop.f32.mrf.mxu0
      %v8603 = vadd.f32 0.0, %v8602
      %v8604 = vpop.f32.mrf.mxu0
      %8605 = vmatprep.mubr.f32.mxu0 0.0
      %v8606 = vand.u32 %v8462, 4294901760
      %v8607 = vsub.f32 %v8462, %v8606
      %v8608 = vand.u32 %v8607, 4294901760
      %v8609 = vsub.f32 %v8607, %v8608
      %v8610 = vand.u32 %v8609, 4294901760
      %8611 = vmatmul.mubr.f32.gmra.mxu0 %v8610
      %v8612 = vpop.f32.mrf.mxu0
      %v8613 = vadd.f32 0.0, %v8612
      %v8614 = vpop.f32.mrf.mxu0
      %8615 = vmatprep.mubr.f32.mxu0 0.0
      %v8616 = vand.u32 %v8465, 4294901760
      %v8617 = vsub.f32 %v8465, %v8616
      %v8618 = vand.u32 %v8617, 4294901760
      %v8619 = vsub.f32 %v8617, %v8618
      %v8620 = vand.u32 %v8619, 4294901760
      %8621 = vmatmul.mubr.f32.gmra.mxu0 %v8620
      %v8622 = vpop.f32.mrf.mxu0
      %v8623 = vadd.f32 0.0, %v8622
      %v8624 = vpop.f32.mrf.mxu0
      %8625 = vmatprep.mubr.f32.mxu0 0.0
      %v8626 = vand.u32 %v8468, 4294901760
      %v8627 = vsub.f32 %v8468, %v8626
      %v8628 = vand.u32 %v8627, 4294901760
      %v8629 = vsub.f32 %v8627, %v8628
      %v8630 = vand.u32 %v8629, 4294901760
      %8631 = vmatmul.mubr.f32.gmra.mxu0 %v8630
      %v8632 = vpop.f32.mrf.mxu0
      %v8633 = vadd.f32 0.0, %v8632
      %v8634 = vpop.f32.mrf.mxu0
      %8635 = vmatprep.mubr.f32.mxu0 0.0
      %v8636 = vand.u32 %v8471, 4294901760
      %v8637 = vsub.f32 %v8471, %v8636
      %v8638 = vand.u32 %v8637, 4294901760
      %v8639 = vsub.f32 %v8637, %v8638
      %v8640 = vand.u32 %v8639, 4294901760
      %8641 = vmatmul.mubr.f32.gmra.mxu0 %v8640
      %v8642 = vpop.f32.mrf.mxu0
      %v8643 = vadd.f32 0.0, %v8642
      %v8644 = vpop.f32.mrf.mxu0
      %8645 = vmatprep.mubr.f32.mxu0 0.0
      %v8646 = vand.u32 %v8474, 4294901760
      %v8647 = vsub.f32 %v8474, %v8646
      %v8648 = vand.u32 %v8647, 4294901760
      %v8649 = vsub.f32 %v8647, %v8648
      %v8650 = vand.u32 %v8649, 4294901760
      %8651 = vmatmul.mubr.f32.gmra.mxu0 %v8650
      %v8652 = vpop.f32.mrf.mxu0
      %v8653 = vadd.f32 0.0, %v8652
      %v8654 = vpop.f32.mrf.mxu0
      %8655 = vmatprep.mubr.f32.mxu0 0.0
      %v8656 = vand.u32 %v8477, 4294901760
      %v8657 = vsub.f32 %v8477, %v8656
      %v8658 = vand.u32 %v8657, 4294901760
      %v8659 = vsub.f32 %v8657, %v8658
      %v8660 = vand.u32 %v8659, 4294901760
      %8661 = vmatmul.mubr.f32.gmra.mxu0 %v8660
      %v8662 = vpop.f32.mrf.mxu0
      %v8663 = vadd.f32 0.0, %v8662
      %v8664 = vpop.f32.mrf.mxu0
      %8665 = vmatprep.mubr.f32.mxu0 0.0
      %v8666 = vand.u32 %v8480, 4294901760
      %v8667 = vsub.f32 %v8480, %v8666
      %v8668 = vand.u32 %v8667, 4294901760
      %v8669 = vsub.f32 %v8667, %v8668
      %v8670 = vand.u32 %v8669, 4294901760
      %8671 = vmatmul.mubr.f32.gmra.mxu0 %v8670
      %v8672 = vpop.f32.mrf.mxu0
      %v8673 = vadd.f32 0.0, %v8672
      %v8674 = vpop.f32.mrf.mxu0
      %8675 = vmatprep.mubr.f32.mxu0 0.0
      %v8676 = vand.u32 %v8483, 4294901760
      %v8677 = vsub.f32 %v8483, %v8676
      %v8678 = vand.u32 %v8677, 4294901760
      %v8679 = vsub.f32 %v8677, %v8678
      %v8680 = vand.u32 %v8679, 4294901760
      %8681 = vmatmul.mubr.f32.gmra.mxu0 %v8680
      %v8682 = vpop.f32.mrf.mxu0
      %v8683 = vadd.f32 0.0, %v8682
      %v8684 = vpop.f32.mrf.mxu0
      %8685 = vmatprep.mubr.f32.mxu0 0.0
      %v8686 = vand.u32 %v8486, 4294901760
      %v8687 = vsub.f32 %v8486, %v8686
      %v8688 = vand.u32 %v8687, 4294901760
      %v8689 = vsub.f32 %v8687, %v8688
      %v8690 = vand.u32 %v8689, 4294901760
      %8691 = vmatmul.mubr.f32.gmra.mxu0 %v8690
      %v8692 = vpop.f32.mrf.mxu0
      %v8693 = vadd.f32 0.0, %v8692
      %v8694 = vpop.f32.mrf.mxu0
      %8695 = vmatprep.mubr.f32.mxu0 0.0
      %v8696 = vand.u32 %v8489, 4294901760
      %v8697 = vsub.f32 %v8489, %v8696
      %v8698 = vand.u32 %v8697, 4294901760
      %v8699 = vsub.f32 %v8697, %v8698
      %v8700 = vand.u32 %v8699, 4294901760
      %8701 = vmatmul.mubr.f32.gmra.mxu0 %v8700
      %v8702 = vpop.f32.mrf.mxu0
      %v8703 = vadd.f32 0.0, %v8702
      %v8704 = vpop.f32.mrf.mxu0
      %8705 = vmatprep.mubr.f32.mxu0 0.0
      %v8706 = vand.u32 %v8492, 4294901760
      %v8707 = vsub.f32 %v8492, %v8706
      %v8708 = vand.u32 %v8707, 4294901760
      %v8709 = vsub.f32 %v8707, %v8708
      %v8710 = vand.u32 %v8709, 4294901760
      %8711 = vmatmul.mubr.f32.gmra.mxu0 %v8710
      %v8712 = vpop.f32.mrf.mxu0
      %v8713 = vadd.f32 0.0, %v8712
      %v8714 = vpop.f32.mrf.mxu0
      %8715 = vmatprep.mubr.f32.mxu0 0.0
      %v8716 = vand.u32 %v8495, 4294901760
      %v8717 = vsub.f32 %v8495, %v8716
      %v8718 = vand.u32 %v8717, 4294901760
      %v8719 = vsub.f32 %v8717, %v8718
      %v8720 = vand.u32 %v8719, 4294901760
      %8721 = vmatmul.mubr.f32.gmra.mxu0 %v8720
      %v8722 = vpop.f32.mrf.mxu0
      %v8723 = vadd.f32 0.0, %v8722
      %v8724 = vpop.f32.mrf.mxu0
      %8725 = vdwg.mxu0
      %8726 = vmatprep.subr.mxu0 0.0
      %8727 = vmatpush1.msra.mxu0 0.0
      %8728 = vmatprep.subr.mxu0 0.0
      %8729 = vmatpush1.msra.mxu0 0.0
      %8730 = vmatprep.subr.mxu0 0.0
      %8731 = vmatpush1.msra.mxu0 0.0
      %8732 = vmatprep.subr.mxu0 0.0
      %8733 = vmatpush1.msra.mxu0 0.0
      %8734 = vmatprep.subr.mxu0 0.0
      %8735 = vmatpush1.msra.mxu0 0.0
      %8736 = vmatprep.subr.mxu0 0.0
      %8737 = vmatpush1.msra.mxu0 0.0
      %8738 = vmatprep.subr.mxu0 0.0
      %8739 = vmatpush1.msra.mxu0 0.0
      %8740 = vmatprep.subr.mxu0 0.0
      %8741 = vmatpush1.msra.mxu0 0.0
      %8742 = vmatprep.subr.mxu0 0.0
      %8743 = vmatpush1.msra.mxu0 0.0
      %8744 = vmatprep.subr.mxu0 0.0
      %8745 = vmatpush1.msra.mxu0 0.0
      %8746 = vmatprep.subr.mxu0 0.0
      %8747 = vmatpush1.msra.mxu0 0.0
      %8748 = vmatprep.subr.mxu0 0.0
      %8749 = vmatpush1.msra.mxu0 0.0
      %8750 = vmatprep.subr.mxu0 0.0
      %8751 = vmatpush1.msra.mxu0 0.0
      %8752 = vmatprep.subr.mxu0 0.0
      %8753 = vmatpush1.msra.mxu0 0.0
      %8754 = vmatprep.subr.mxu0 0.0
      %8755 = vmatpush1.msra.mxu0 0.0
      %8756 = vmatprep.subr.mxu0 0.0
      %v8757 = vand.u32 %v8498, 4294901760
      %v8758 = vsub.f32 %v8498, %v8757
      %v8759 = vand.u32 %v8758, 4294901760
      %v8760 = vsub.f32 %v8758, %v8759
      %v8761 = vand.u32 %v8760, 4294901760
      %8762 = vmatpush1.msra.mxu0 %v8761
      %8763 = vmatprep.subr.mxu0 0.0
      %8764 = vmatpush2.msra.mxu0 0.0
      %8765 = vmatprep.subr.mxu0 0.0
      %8766 = vmatpush2.msra.mxu0 0.0
      %8767 = vmatprep.subr.mxu0 0.0
      %8768 = vmatpush2.msra.mxu0 0.0
      %8769 = vmatprep.subr.mxu0 0.0
      %8770 = vmatpush2.msra.mxu0 0.0
      %8771 = vmatprep.subr.mxu0 0.0
      %8772 = vmatpush2.msra.mxu0 0.0
      %8773 = vmatprep.subr.mxu0 0.0
      %8774 = vmatpush2.msra.mxu0 0.0
      %8775 = vmatprep.subr.mxu0 0.0
      %8776 = vmatpush2.msra.mxu0 0.0
      %8777 = vmatprep.subr.mxu0 0.0
      %8778 = vmatpush2.msra.mxu0 0.0
      %8779 = vmatprep.subr.mxu0 0.0
      %8780 = vmatpush2.msra.mxu0 0.0
      %8781 = vmatprep.subr.mxu0 0.0
      %8782 = vmatpush2.msra.mxu0 0.0
      %8783 = vmatprep.subr.mxu0 0.0
      %8784 = vmatpush2.msra.mxu0 0.0
      %8785 = vmatprep.subr.mxu0 0.0
      %8786 = vmatpush2.msra.mxu0 0.0
      %8787 = vmatprep.subr.mxu0 0.0
      %8788 = vmatpush2.msra.mxu0 0.0
      %8789 = vmatprep.subr.mxu0 0.0
      %8790 = vmatpush2.msra.mxu0 0.0
      %8791 = vmatprep.subr.mxu0 0.0
      %8792 = vmatpush2.msra.mxu0 0.0
      %8793 = vmatprep.subr.mxu0 0.0
      %8794 = vmatpush2.msra.mxu0 0.0
      %8795 = vmatprep.mubr.f32.mxu0 0.0
      %v8796 = vand.u32 %v8450, 4294901760
      %8797 = vmatmul.mubr.f32.gmra.mxu0 %v8796
      %v8798 = vpop.f32.mrf.mxu0
      %v8799 = vadd.f32 %v8573, %v8798
      %v8800 = vpop.f32.mrf.mxu0
      %8801 = vmatprep.mubr.f32.mxu0 0.0
      %v8802 = vand.u32 %v8453, 4294901760
      %8803 = vmatmul.mubr.f32.gmra.mxu0 %v8802
      %v8804 = vpop.f32.mrf.mxu0
      %v8805 = vadd.f32 %v8583, %v8804
      %v8806 = vpop.f32.mrf.mxu0
      %8807 = vmatprep.mubr.f32.mxu0 0.0
      %v8808 = vand.u32 %v8456, 4294901760
      %8809 = vmatmul.mubr.f32.gmra.mxu0 %v8808
      %v8810 = vpop.f32.mrf.mxu0
      %v8811 = vadd.f32 %v8593, %v8810
      %v8812 = vpop.f32.mrf.mxu0
      %8813 = vmatprep.mubr.f32.mxu0 0.0
      %v8814 = vand.u32 %v8459, 4294901760
      %8815 = vmatmul.mubr.f32.gmra.mxu0 %v8814
      %v8816 = vpop.f32.mrf.mxu0
      %v8817 = vadd.f32 %v8603, %v8816
      %v8818 = vpop.f32.mrf.mxu0
      %8819 = vmatprep.mubr.f32.mxu0 0.0
      %v8820 = vand.u32 %v8462, 4294901760
      %8821 = vmatmul.mubr.f32.gmra.mxu0 %v8820
      %v8822 = vpop.f32.mrf.mxu0
      %v8823 = vadd.f32 %v8613, %v8822
      %v8824 = vpop.f32.mrf.mxu0
      %8825 = vmatprep.mubr.f32.mxu0 0.0
      %v8826 = vand.u32 %v8465, 4294901760
      %8827 = vmatmul.mubr.f32.gmra.mxu0 %v8826
      %v8828 = vpop.f32.mrf.mxu0
      %v8829 = vadd.f32 %v8623, %v8828
      %v8830 = vpop.f32.mrf.mxu0
      %8831 = vmatprep.mubr.f32.mxu0 0.0
      %v8832 = vand.u32 %v8468, 4294901760
      %8833 = vmatmul.mubr.f32.gmra.mxu0 %v8832
      %v8834 = vpop.f32.mrf.mxu0
      %v8835 = vadd.f32 %v8633, %v8834
      %v8836 = vpop.f32.mrf.mxu0
      %8837 = vmatprep.mubr.f32.mxu0 0.0
      %v8838 = vand.u32 %v8471, 4294901760
      %8839 = vmatmul.mubr.f32.gmra.mxu0 %v8838
      %v8840 = vpop.f32.mrf.mxu0
      %v8841 = vadd.f32 %v8643, %v8840
      %v8842 = vpop.f32.mrf.mxu0
      %8843 = vmatprep.mubr.f32.mxu0 0.0
      %v8844 = vand.u32 %v8474, 4294901760
      %8845 = vmatmul.mubr.f32.gmra.mxu0 %v8844
      %v8846 = vpop.f32.mrf.mxu0
      %v8847 = vadd.f32 %v8653, %v8846
      %v8848 = vpop.f32.mrf.mxu0
      %8849 = vmatprep.mubr.f32.mxu0 0.0
      %v8850 = vand.u32 %v8477, 4294901760
      %8851 = vmatmul.mubr.f32.gmra.mxu0 %v8850
      %v8852 = vpop.f32.mrf.mxu0
      %v8853 = vadd.f32 %v8663, %v8852
      %v8854 = vpop.f32.mrf.mxu0
      %8855 = vmatprep.mubr.f32.mxu0 0.0
      %v8856 = vand.u32 %v8480, 4294901760
      %8857 = vmatmul.mubr.f32.gmra.mxu0 %v8856
      %v8858 = vpop.f32.mrf.mxu0
      %v8859 = vadd.f32 %v8673, %v8858
      %v8860 = vpop.f32.mrf.mxu0
      %8861 = vmatprep.mubr.f32.mxu0 0.0
      %v8862 = vand.u32 %v8483, 4294901760
      %8863 = vmatmul.mubr.f32.gmra.mxu0 %v8862
      %v8864 = vpop.f32.mrf.mxu0
      %v8865 = vadd.f32 %v8683, %v8864
      %v8866 = vpop.f32.mrf.mxu0
      %8867 = vmatprep.mubr.f32.mxu0 0.0
      %v8868 = vand.u32 %v8486, 4294901760
      %8869 = vmatmul.mubr.f32.gmra.mxu0 %v8868
      %v8870 = vpop.f32.mrf.mxu0
      %v8871 = vadd.f32 %v8693, %v8870
      %v8872 = vpop.f32.mrf.mxu0
      %8873 = vmatprep.mubr.f32.mxu0 0.0
      %v8874 = vand.u32 %v8489, 4294901760
      %8875 = vmatmul.mubr.f32.gmra.mxu0 %v8874
      %v8876 = vpop.f32.mrf.mxu0
      %v8877 = vadd.f32 %v8703, %v8876
      %v8878 = vpop.f32.mrf.mxu0
      %8879 = vmatprep.mubr.f32.mxu0 0.0
      %v8880 = vand.u32 %v8492, 4294901760
      %8881 = vmatmul.mubr.f32.gmra.mxu0 %v8880
      %v8882 = vpop.f32.mrf.mxu0
      %v8883 = vadd.f32 %v8713, %v8882
      %v8884 = vpop.f32.mrf.mxu0
      %8885 = vmatprep.mubr.f32.mxu0 0.0
      %v8886 = vand.u32 %v8495, 4294901760
      %8887 = vmatmul.mubr.f32.gmra.mxu0 %v8886
      %v8888 = vpop.f32.mrf.mxu0
      %v8889 = vadd.f32 %v8723, %v8888
      %v8890 = vpop.f32.mrf.mxu0
      %8891 = vdwg.mxu0
      %8892 = vmatprep.subr.mxu0 0.0
      %8893 = vmatpush1.msra.mxu0 0.0
      %8894 = vmatprep.subr.mxu0 0.0
      %8895 = vmatpush1.msra.mxu0 0.0
      %8896 = vmatprep.subr.mxu0 0.0
      %8897 = vmatpush1.msra.mxu0 0.0
      %8898 = vmatprep.subr.mxu0 0.0
      %8899 = vmatpush1.msra.mxu0 0.0
      %8900 = vmatprep.subr.mxu0 0.0
      %8901 = vmatpush1.msra.mxu0 0.0
      %8902 = vmatprep.subr.mxu0 0.0
      %8903 = vmatpush1.msra.mxu0 0.0
      %8904 = vmatprep.subr.mxu0 0.0
      %8905 = vmatpush1.msra.mxu0 0.0
      %8906 = vmatprep.subr.mxu0 0.0
      %8907 = vmatpush1.msra.mxu0 0.0
      %8908 = vmatprep.subr.mxu0 0.0
      %8909 = vmatpush1.msra.mxu0 0.0
      %8910 = vmatprep.subr.mxu0 0.0
      %8911 = vmatpush1.msra.mxu0 0.0
      %8912 = vmatprep.subr.mxu0 0.0
      %8913 = vmatpush1.msra.mxu0 0.0
      %8914 = vmatprep.subr.mxu0 0.0
      %8915 = vmatpush1.msra.mxu0 0.0
      %8916 = vmatprep.subr.mxu0 0.0
      %8917 = vmatpush1.msra.mxu0 0.0
      %8918 = vmatprep.subr.mxu0 0.0
      %8919 = vmatpush1.msra.mxu0 0.0
      %8920 = vmatprep.subr.mxu0 0.0
      %8921 = vmatpush1.msra.mxu0 0.0
      %8922 = vmatprep.subr.mxu0 0.0
      %v8923 = vand.u32 %v8498, 4294901760
      %v8924 = vsub.f32 %v8498, %v8923
      %8925 = vmatpush1.msra.mxu0 %v8924
      %8926 = vmatprep.subr.mxu0 0.0
      %8927 = vmatpush2.msra.mxu0 0.0
      %8928 = vmatprep.subr.mxu0 0.0
      %8929 = vmatpush2.msra.mxu0 0.0
      %8930 = vmatprep.subr.mxu0 0.0
      %8931 = vmatpush2.msra.mxu0 0.0
      %8932 = vmatprep.subr.mxu0 0.0
      %8933 = vmatpush2.msra.mxu0 0.0
      %8934 = vmatprep.subr.mxu0 0.0
      %8935 = vmatpush2.msra.mxu0 0.0
      %8936 = vmatprep.subr.mxu0 0.0
      %8937 = vmatpush2.msra.mxu0 0.0
      %8938 = vmatprep.subr.mxu0 0.0
      %8939 = vmatpush2.msra.mxu0 0.0
      %8940 = vmatprep.subr.mxu0 0.0
      %8941 = vmatpush2.msra.mxu0 0.0
      %8942 = vmatprep.subr.mxu0 0.0
      %8943 = vmatpush2.msra.mxu0 0.0
      %8944 = vmatprep.subr.mxu0 0.0
      %8945 = vmatpush2.msra.mxu0 0.0
      %8946 = vmatprep.subr.mxu0 0.0
      %8947 = vmatpush2.msra.mxu0 0.0
      %8948 = vmatprep.subr.mxu0 0.0
      %8949 = vmatpush2.msra.mxu0 0.0
      %8950 = vmatprep.subr.mxu0 0.0
      %8951 = vmatpush2.msra.mxu0 0.0
      %8952 = vmatprep.subr.mxu0 0.0
      %8953 = vmatpush2.msra.mxu0 0.0
      %8954 = vmatprep.subr.mxu0 0.0
      %8955 = vmatpush2.msra.mxu0 0.0
      %8956 = vmatprep.subr.mxu0 0.0
      %8957 = vmatpush2.msra.mxu0 0.0
      %8958 = vmatprep.mubr.f32.mxu0 0.0
      %v8959 = vand.u32 %v8450, 4294901760
      %v8960 = vsub.f32 %v8450, %v8959
      %8961 = vmatmul.mubr.f32.gmra.mxu0 %v8960
      %v8962 = vpop.f32.mrf.mxu0
      %v8963 = vadd.f32 %v8799, %v8962
      %v8964 = vpop.f32.mrf.mxu0
      %8965 = vmatprep.mubr.f32.mxu0 0.0
      %v8966 = vand.u32 %v8453, 4294901760
      %v8967 = vsub.f32 %v8453, %v8966
      %8968 = vmatmul.mubr.f32.gmra.mxu0 %v8967
      %v8969 = vpop.f32.mrf.mxu0
      %v8970 = vadd.f32 %v8805, %v8969
      %v8971 = vpop.f32.mrf.mxu0
      %8972 = vmatprep.mubr.f32.mxu0 0.0
      %v8973 = vand.u32 %v8456, 4294901760
      %v8974 = vsub.f32 %v8456, %v8973
      %8975 = vmatmul.mubr.f32.gmra.mxu0 %v8974
      %v8976 = vpop.f32.mrf.mxu0
      %v8977 = vadd.f32 %v8811, %v8976
      %v8978 = vpop.f32.mrf.mxu0
      %8979 = vmatprep.mubr.f32.mxu0 0.0
      %v8980 = vand.u32 %v8459, 4294901760
      %v8981 = vsub.f32 %v8459, %v8980
      %8982 = vmatmul.mubr.f32.gmra.mxu0 %v8981
      %v8983 = vpop.f32.mrf.mxu0
      %v8984 = vadd.f32 %v8817, %v8983
      %v8985 = vpop.f32.mrf.mxu0
      %8986 = vmatprep.mubr.f32.mxu0 0.0
      %v8987 = vand.u32 %v8462, 4294901760
      %v8988 = vsub.f32 %v8462, %v8987
      %8989 = vmatmul.mubr.f32.gmra.mxu0 %v8988
      %v8990 = vpop.f32.mrf.mxu0
      %v8991 = vadd.f32 %v8823, %v8990
      %v8992 = vpop.f32.mrf.mxu0
      %8993 = vmatprep.mubr.f32.mxu0 0.0
      %v8994 = vand.u32 %v8465, 4294901760
      %v8995 = vsub.f32 %v8465, %v8994
      %8996 = vmatmul.mubr.f32.gmra.mxu0 %v8995
      %v8997 = vpop.f32.mrf.mxu0
      %v8998 = vadd.f32 %v8829, %v8997
      %v8999 = vpop.f32.mrf.mxu0
      %9000 = vmatprep.mubr.f32.mxu0 0.0
      %v9001 = vand.u32 %v8468, 4294901760
      %v9002 = vsub.f32 %v8468, %v9001
      %9003 = vmatmul.mubr.f32.gmra.mxu0 %v9002
      %v9004 = vpop.f32.mrf.mxu0
      %v9005 = vadd.f32 %v8835, %v9004
      %v9006 = vpop.f32.mrf.mxu0
      %9007 = vmatprep.mubr.f32.mxu0 0.0
      %v9008 = vand.u32 %v8471, 4294901760
      %v9009 = vsub.f32 %v8471, %v9008
      %9010 = vmatmul.mubr.f32.gmra.mxu0 %v9009
      %v9011 = vpop.f32.mrf.mxu0
      %v9012 = vadd.f32 %v8841, %v9011
      %v9013 = vpop.f32.mrf.mxu0
      %9014 = vmatprep.mubr.f32.mxu0 0.0
      %v9015 = vand.u32 %v8474, 4294901760
      %v9016 = vsub.f32 %v8474, %v9015
      %9017 = vmatmul.mubr.f32.gmra.mxu0 %v9016
      %v9018 = vpop.f32.mrf.mxu0
      %v9019 = vadd.f32 %v8847, %v9018
      %v9020 = vpop.f32.mrf.mxu0
      %9021 = vmatprep.mubr.f32.mxu0 0.0
      %v9022 = vand.u32 %v8477, 4294901760
      %v9023 = vsub.f32 %v8477, %v9022
      %9024 = vmatmul.mubr.f32.gmra.mxu0 %v9023
      %v9025 = vpop.f32.mrf.mxu0
      %v9026 = vadd.f32 %v8853, %v9025
      %v9027 = vpop.f32.mrf.mxu0
      %9028 = vmatprep.mubr.f32.mxu0 0.0
      %v9029 = vand.u32 %v8480, 4294901760
      %v9030 = vsub.f32 %v8480, %v9029
      %9031 = vmatmul.mubr.f32.gmra.mxu0 %v9030
      %v9032 = vpop.f32.mrf.mxu0
      %v9033 = vadd.f32 %v8859, %v9032
      %v9034 = vpop.f32.mrf.mxu0
      %9035 = vmatprep.mubr.f32.mxu0 0.0
      %v9036 = vand.u32 %v8483, 4294901760
      %v9037 = vsub.f32 %v8483, %v9036
      %9038 = vmatmul.mubr.f32.gmra.mxu0 %v9037
      %v9039 = vpop.f32.mrf.mxu0
      %v9040 = vadd.f32 %v8865, %v9039
      %v9041 = vpop.f32.mrf.mxu0
      %9042 = vmatprep.mubr.f32.mxu0 0.0
      %v9043 = vand.u32 %v8486, 4294901760
      %v9044 = vsub.f32 %v8486, %v9043
      %9045 = vmatmul.mubr.f32.gmra.mxu0 %v9044
      %v9046 = vpop.f32.mrf.mxu0
      %v9047 = vadd.f32 %v8871, %v9046
      %v9048 = vpop.f32.mrf.mxu0
      %9049 = vmatprep.mubr.f32.mxu0 0.0
      %v9050 = vand.u32 %v8489, 4294901760
      %v9051 = vsub.f32 %v8489, %v9050
      %9052 = vmatmul.mubr.f32.gmra.mxu0 %v9051
      %v9053 = vpop.f32.mrf.mxu0
      %v9054 = vadd.f32 %v8877, %v9053
      %v9055 = vpop.f32.mrf.mxu0
      %9056 = vmatprep.mubr.f32.mxu0 0.0
      %v9057 = vand.u32 %v8492, 4294901760
      %v9058 = vsub.f32 %v8492, %v9057
      %9059 = vmatmul.mubr.f32.gmra.mxu0 %v9058
      %v9060 = vpop.f32.mrf.mxu0
      %v9061 = vadd.f32 %v8883, %v9060
      %v9062 = vpop.f32.mrf.mxu0
      %9063 = vmatprep.mubr.f32.mxu0 0.0
      %v9064 = vand.u32 %v8495, 4294901760
      %v9065 = vsub.f32 %v8495, %v9064
      %9066 = vmatmul.mubr.f32.gmra.mxu0 %v9065
      %v9067 = vpop.f32.mrf.mxu0
      %v9068 = vadd.f32 %v8889, %v9067
      %v9069 = vpop.f32.mrf.mxu0
      %9070 = vdwg.mxu0
      %9071 = vmatprep.subr.mxu0 0.0
      %9072 = vmatpush1.msra.mxu0 0.0
      %9073 = vmatprep.subr.mxu0 0.0
      %9074 = vmatpush1.msra.mxu0 0.0
      %9075 = vmatprep.subr.mxu0 0.0
      %9076 = vmatpush1.msra.mxu0 0.0
      %9077 = vmatprep.subr.mxu0 0.0
      %9078 = vmatpush1.msra.mxu0 0.0
      %9079 = vmatprep.subr.mxu0 0.0
      %9080 = vmatpush1.msra.mxu0 0.0
      %9081 = vmatprep.subr.mxu0 0.0
      %9082 = vmatpush1.msra.mxu0 0.0
      %9083 = vmatprep.subr.mxu0 0.0
      %9084 = vmatpush1.msra.mxu0 0.0
      %9085 = vmatprep.subr.mxu0 0.0
      %9086 = vmatpush1.msra.mxu0 0.0
      %9087 = vmatprep.subr.mxu0 0.0
      %9088 = vmatpush1.msra.mxu0 0.0
      %9089 = vmatprep.subr.mxu0 0.0
      %9090 = vmatpush1.msra.mxu0 0.0
      %9091 = vmatprep.subr.mxu0 0.0
      %9092 = vmatpush1.msra.mxu0 0.0
      %9093 = vmatprep.subr.mxu0 0.0
      %9094 = vmatpush1.msra.mxu0 0.0
      %9095 = vmatprep.subr.mxu0 0.0
      %9096 = vmatpush1.msra.mxu0 0.0
      %9097 = vmatprep.subr.mxu0 0.0
      %9098 = vmatpush1.msra.mxu0 0.0
      %9099 = vmatprep.subr.mxu0 0.0
      %9100 = vmatpush1.msra.mxu0 0.0
      %9101 = vmatprep.subr.mxu0 0.0
      %v9102 = vand.u32 %v8498, 4294901760
      %9103 = vmatpush1.msra.mxu0 %v9102
      %9104 = vmatprep.subr.mxu0 0.0
      %9105 = vmatpush2.msra.mxu0 0.0
      %9106 = vmatprep.subr.mxu0 0.0
      %9107 = vmatpush2.msra.mxu0 0.0
      %9108 = vmatprep.subr.mxu0 0.0
      %9109 = vmatpush2.msra.mxu0 0.0
      %9110 = vmatprep.subr.mxu0 0.0
      %9111 = vmatpush2.msra.mxu0 0.0
      %9112 = vmatprep.subr.mxu0 0.0
      %9113 = vmatpush2.msra.mxu0 0.0
      %9114 = vmatprep.subr.mxu0 0.0
      %9115 = vmatpush2.msra.mxu0 0.0
      %9116 = vmatprep.subr.mxu0 0.0
      %9117 = vmatpush2.msra.mxu0 0.0
      %9118 = vmatprep.subr.mxu0 0.0
      %9119 = vmatpush2.msra.mxu0 0.0
      %9120 = vmatprep.subr.mxu0 0.0
      %9121 = vmatpush2.msra.mxu0 0.0
      %9122 = vmatprep.subr.mxu0 0.0
      %9123 = vmatpush2.msra.mxu0 0.0
      %9124 = vmatprep.subr.mxu0 0.0
      %9125 = vmatpush2.msra.mxu0 0.0
      %9126 = vmatprep.subr.mxu0 0.0
      %9127 = vmatpush2.msra.mxu0 0.0
      %9128 = vmatprep.subr.mxu0 0.0
      %9129 = vmatpush2.msra.mxu0 0.0
      %9130 = vmatprep.subr.mxu0 0.0
      %9131 = vmatpush2.msra.mxu0 0.0
      %9132 = vmatprep.subr.mxu0 0.0
      %9133 = vmatpush2.msra.mxu0 0.0
      %9134 = vmatprep.subr.mxu0 0.0
      %9135 = vmatpush2.msra.mxu0 0.0
      %9136 = vmatprep.mubr.f32.mxu0 0.0
      %v9137 = vand.u32 %v8450, 4294901760
      %v9138 = vsub.f32 %v8450, %v9137
      %v9139 = vand.u32 %v9138, 4294901760
      %9140 = vmatmul.mubr.f32.gmra.mxu0 %v9139
      %v9141 = vpop.f32.mrf.mxu0
      %v9142 = vadd.f32 %v8963, %v9141
      %v9143 = vpop.f32.mrf.mxu0
      %9144 = vmatprep.mubr.f32.mxu0 0.0
      %v9145 = vand.u32 %v8453, 4294901760
      %v9146 = vsub.f32 %v8453, %v9145
      %v9147 = vand.u32 %v9146, 4294901760
      %9148 = vmatmul.mubr.f32.gmra.mxu0 %v9147
      %v9149 = vpop.f32.mrf.mxu0
      %v9150 = vadd.f32 %v8970, %v9149
      %v9151 = vpop.f32.mrf.mxu0
      %9152 = vmatprep.mubr.f32.mxu0 0.0
      %v9153 = vand.u32 %v8456, 4294901760
      %v9154 = vsub.f32 %v8456, %v9153
      %v9155 = vand.u32 %v9154, 4294901760
      %9156 = vmatmul.mubr.f32.gmra.mxu0 %v9155
      %v9157 = vpop.f32.mrf.mxu0
      %v9158 = vadd.f32 %v8977, %v9157
      %v9159 = vpop.f32.mrf.mxu0
      %9160 = vmatprep.mubr.f32.mxu0 0.0
      %v9161 = vand.u32 %v8459, 4294901760
      %v9162 = vsub.f32 %v8459, %v9161
      %v9163 = vand.u32 %v9162, 4294901760
      %9164 = vmatmul.mubr.f32.gmra.mxu0 %v9163
      %v9165 = vpop.f32.mrf.mxu0
      %v9166 = vadd.f32 %v8984, %v9165
      %v9167 = vpop.f32.mrf.mxu0
      %9168 = vmatprep.mubr.f32.mxu0 0.0
      %v9169 = vand.u32 %v8462, 4294901760
      %v9170 = vsub.f32 %v8462, %v9169
      %v9171 = vand.u32 %v9170, 4294901760
      %9172 = vmatmul.mubr.f32.gmra.mxu0 %v9171
      %v9173 = vpop.f32.mrf.mxu0
      %v9174 = vadd.f32 %v8991, %v9173
      %v9175 = vpop.f32.mrf.mxu0
      %9176 = vmatprep.mubr.f32.mxu0 0.0
      %v9177 = vand.u32 %v8465, 4294901760
      %v9178 = vsub.f32 %v8465, %v9177
      %v9179 = vand.u32 %v9178, 4294901760
      %9180 = vmatmul.mubr.f32.gmra.mxu0 %v9179
      %v9181 = vpop.f32.mrf.mxu0
      %v9182 = vadd.f32 %v8998, %v9181
      %v9183 = vpop.f32.mrf.mxu0
      %9184 = vmatprep.mubr.f32.mxu0 0.0
      %v9185 = vand.u32 %v8468, 4294901760
      %v9186 = vsub.f32 %v8468, %v9185
      %v9187 = vand.u32 %v9186, 4294901760
      %9188 = vmatmul.mubr.f32.gmra.mxu0 %v9187
      %v9189 = vpop.f32.mrf.mxu0
      %v9190 = vadd.f32 %v9005, %v9189
      %v9191 = vpop.f32.mrf.mxu0
      %9192 = vmatprep.mubr.f32.mxu0 0.0
      %v9193 = vand.u32 %v8471, 4294901760
      %v9194 = vsub.f32 %v8471, %v9193
      %v9195 = vand.u32 %v9194, 4294901760
      %9196 = vmatmul.mubr.f32.gmra.mxu0 %v9195
      %v9197 = vpop.f32.mrf.mxu0
      %v9198 = vadd.f32 %v9012, %v9197
      %v9199 = vpop.f32.mrf.mxu0
      %9200 = vmatprep.mubr.f32.mxu0 0.0
      %v9201 = vand.u32 %v8474, 4294901760
      %v9202 = vsub.f32 %v8474, %v9201
      %v9203 = vand.u32 %v9202, 4294901760
      %9204 = vmatmul.mubr.f32.gmra.mxu0 %v9203
      %v9205 = vpop.f32.mrf.mxu0
      %v9206 = vadd.f32 %v9019, %v9205
      %v9207 = vpop.f32.mrf.mxu0
      %9208 = vmatprep.mubr.f32.mxu0 0.0
      %v9209 = vand.u32 %v8477, 4294901760
      %v9210 = vsub.f32 %v8477, %v9209
      %v9211 = vand.u32 %v9210, 4294901760
      %9212 = vmatmul.mubr.f32.gmra.mxu0 %v9211
      %v9213 = vpop.f32.mrf.mxu0
      %v9214 = vadd.f32 %v9026, %v9213
      %v9215 = vpop.f32.mrf.mxu0
      %9216 = vmatprep.mubr.f32.mxu0 0.0
      %v9217 = vand.u32 %v8480, 4294901760
      %v9218 = vsub.f32 %v8480, %v9217
      %v9219 = vand.u32 %v9218, 4294901760
      %9220 = vmatmul.mubr.f32.gmra.mxu0 %v9219
      %v9221 = vpop.f32.mrf.mxu0
      %v9222 = vadd.f32 %v9033, %v9221
      %v9223 = vpop.f32.mrf.mxu0
      %9224 = vmatprep.mubr.f32.mxu0 0.0
      %v9225 = vand.u32 %v8483, 4294901760
      %v9226 = vsub.f32 %v8483, %v9225
      %v9227 = vand.u32 %v9226, 4294901760
      %9228 = vmatmul.mubr.f32.gmra.mxu0 %v9227
      %v9229 = vpop.f32.mrf.mxu0
      %v9230 = vadd.f32 %v9040, %v9229
      %v9231 = vpop.f32.mrf.mxu0
      %9232 = vmatprep.mubr.f32.mxu0 0.0
      %v9233 = vand.u32 %v8486, 4294901760
      %v9234 = vsub.f32 %v8486, %v9233
      %v9235 = vand.u32 %v9234, 4294901760
      %9236 = vmatmul.mubr.f32.gmra.mxu0 %v9235
      %v9237 = vpop.f32.mrf.mxu0
      %v9238 = vadd.f32 %v9047, %v9237
      %v9239 = vpop.f32.mrf.mxu0
      %9240 = vmatprep.mubr.f32.mxu0 0.0
      %v9241 = vand.u32 %v8489, 4294901760
      %v9242 = vsub.f32 %v8489, %v9241
      %v9243 = vand.u32 %v9242, 4294901760
      %9244 = vmatmul.mubr.f32.gmra.mxu0 %v9243
      %v9245 = vpop.f32.mrf.mxu0
      %v9246 = vadd.f32 %v9054, %v9245
      %v9247 = vpop.f32.mrf.mxu0
      %9248 = vmatprep.mubr.f32.mxu0 0.0
      %v9249 = vand.u32 %v8492, 4294901760
      %v9250 = vsub.f32 %v8492, %v9249
      %v9251 = vand.u32 %v9250, 4294901760
      %9252 = vmatmul.mubr.f32.gmra.mxu0 %v9251
      %v9253 = vpop.f32.mrf.mxu0
      %v9254 = vadd.f32 %v9061, %v9253
      %v9255 = vpop.f32.mrf.mxu0
      %9256 = vmatprep.mubr.f32.mxu0 0.0
      %v9257 = vand.u32 %v8495, 4294901760
      %v9258 = vsub.f32 %v8495, %v9257
      %v9259 = vand.u32 %v9258, 4294901760
      %9260 = vmatmul.mubr.f32.gmra.mxu0 %v9259
      %v9261 = vpop.f32.mrf.mxu0
      %v9262 = vadd.f32 %v9068, %v9261
      %v9263 = vpop.f32.mrf.mxu0
      %9264 = vdwg.mxu0
      %9265 = vmatprep.subr.mxu0 0.0
      %9266 = vmatpush1.msra.mxu0 0.0
      %9267 = vmatprep.subr.mxu0 0.0
      %9268 = vmatpush1.msra.mxu0 0.0
      %9269 = vmatprep.subr.mxu0 0.0
      %9270 = vmatpush1.msra.mxu0 0.0
      %9271 = vmatprep.subr.mxu0 0.0
      %9272 = vmatpush1.msra.mxu0 0.0
      %9273 = vmatprep.subr.mxu0 0.0
      %9274 = vmatpush1.msra.mxu0 0.0
      %9275 = vmatprep.subr.mxu0 0.0
      %9276 = vmatpush1.msra.mxu0 0.0
      %9277 = vmatprep.subr.mxu0 0.0
      %9278 = vmatpush1.msra.mxu0 0.0
      %9279 = vmatprep.subr.mxu0 0.0
      %9280 = vmatpush1.msra.mxu0 0.0
      %9281 = vmatprep.subr.mxu0 0.0
      %9282 = vmatpush1.msra.mxu0 0.0
      %9283 = vmatprep.subr.mxu0 0.0
      %9284 = vmatpush1.msra.mxu0 0.0
      %9285 = vmatprep.subr.mxu0 0.0
      %9286 = vmatpush1.msra.mxu0 0.0
      %9287 = vmatprep.subr.mxu0 0.0
      %9288 = vmatpush1.msra.mxu0 0.0
      %9289 = vmatprep.subr.mxu0 0.0
      %9290 = vmatpush1.msra.mxu0 0.0
      %9291 = vmatprep.subr.mxu0 0.0
      %9292 = vmatpush1.msra.mxu0 0.0
      %9293 = vmatprep.subr.mxu0 0.0
      %9294 = vmatpush1.msra.mxu0 0.0
      %9295 = vmatprep.subr.mxu0 0.0
      %v9296 = vand.u32 %v8498, 4294901760
      %v9297 = vsub.f32 %v8498, %v9296
      %v9298 = vand.u32 %v9297, 4294901760
      %9299 = vmatpush1.msra.mxu0 %v9298
      %9300 = vmatprep.subr.mxu0 0.0
      %9301 = vmatpush2.msra.mxu0 0.0
      %9302 = vmatprep.subr.mxu0 0.0
      %9303 = vmatpush2.msra.mxu0 0.0
      %9304 = vmatprep.subr.mxu0 0.0
      %9305 = vmatpush2.msra.mxu0 0.0
      %9306 = vmatprep.subr.mxu0 0.0
      %9307 = vmatpush2.msra.mxu0 0.0
      %9308 = vmatprep.subr.mxu0 0.0
      %9309 = vmatpush2.msra.mxu0 0.0
      %9310 = vmatprep.subr.mxu0 0.0
      %9311 = vmatpush2.msra.mxu0 0.0
      %9312 = vmatprep.subr.mxu0 0.0
      %9313 = vmatpush2.msra.mxu0 0.0
      %9314 = vmatprep.subr.mxu0 0.0
      %9315 = vmatpush2.msra.mxu0 0.0
      %9316 = vmatprep.subr.mxu0 0.0
      %9317 = vmatpush2.msra.mxu0 0.0
      %9318 = vmatprep.subr.mxu0 0.0
      %9319 = vmatpush2.msra.mxu0 0.0
      %9320 = vmatprep.subr.mxu0 0.0
      %9321 = vmatpush2.msra.mxu0 0.0
      %9322 = vmatprep.subr.mxu0 0.0
      %9323 = vmatpush2.msra.mxu0 0.0
      %9324 = vmatprep.subr.mxu0 0.0
      %9325 = vmatpush2.msra.mxu0 0.0
      %9326 = vmatprep.subr.mxu0 0.0
      %9327 = vmatpush2.msra.mxu0 0.0
      %9328 = vmatprep.subr.mxu0 0.0
      %9329 = vmatpush2.msra.mxu0 0.0
      %9330 = vmatprep.subr.mxu0 0.0
      %9331 = vmatpush2.msra.mxu0 0.0
      %9332 = vmatprep.mubr.f32.mxu0 0.0
      %v9333 = vand.u32 %v8450, 4294901760
      %9334 = vmatmul.mubr.f32.gmra.mxu0 %v9333
      %v9335 = vpop.f32.mrf.mxu0
      %v9336 = vadd.f32 %v9142, %v9335
      %v9337 = vpop.f32.mrf.mxu0
      %9338 = vmatprep.mubr.f32.mxu0 0.0
      %v9339 = vand.u32 %v8453, 4294901760
      %9340 = vmatmul.mubr.f32.gmra.mxu0 %v9339
      %v9341 = vpop.f32.mrf.mxu0
      %v9342 = vadd.f32 %v9150, %v9341
      %v9343 = vpop.f32.mrf.mxu0
      %9344 = vmatprep.mubr.f32.mxu0 0.0
      %v9345 = vand.u32 %v8456, 4294901760
      %9346 = vmatmul.mubr.f32.gmra.mxu0 %v9345
      %v9347 = vpop.f32.mrf.mxu0
      %v9348 = vadd.f32 %v9158, %v9347
      %v9349 = vpop.f32.mrf.mxu0
      %9350 = vmatprep.mubr.f32.mxu0 0.0
      %v9351 = vand.u32 %v8459, 4294901760
      %9352 = vmatmul.mubr.f32.gmra.mxu0 %v9351
      %v9353 = vpop.f32.mrf.mxu0
      %v9354 = vadd.f32 %v9166, %v9353
      %v9355 = vpop.f32.mrf.mxu0
      %9356 = vmatprep.mubr.f32.mxu0 0.0
      %v9357 = vand.u32 %v8462, 4294901760
      %9358 = vmatmul.mubr.f32.gmra.mxu0 %v9357
      %v9359 = vpop.f32.mrf.mxu0
      %v9360 = vadd.f32 %v9174, %v9359
      %v9361 = vpop.f32.mrf.mxu0
      %9362 = vmatprep.mubr.f32.mxu0 0.0
      %v9363 = vand.u32 %v8465, 4294901760
      %9364 = vmatmul.mubr.f32.gmra.mxu0 %v9363
      %v9365 = vpop.f32.mrf.mxu0
      %v9366 = vadd.f32 %v9182, %v9365
      %v9367 = vpop.f32.mrf.mxu0
      %9368 = vmatprep.mubr.f32.mxu0 0.0
      %v9369 = vand.u32 %v8468, 4294901760
      %9370 = vmatmul.mubr.f32.gmra.mxu0 %v9369
      %v9371 = vpop.f32.mrf.mxu0
      %v9372 = vadd.f32 %v9190, %v9371
      %v9373 = vpop.f32.mrf.mxu0
      %9374 = vmatprep.mubr.f32.mxu0 0.0
      %v9375 = vand.u32 %v8471, 4294901760
      %9376 = vmatmul.mubr.f32.gmra.mxu0 %v9375
      %v9377 = vpop.f32.mrf.mxu0
      %v9378 = vadd.f32 %v9198, %v9377
      %v9379 = vpop.f32.mrf.mxu0
      %9380 = vmatprep.mubr.f32.mxu0 0.0
      %v9381 = vand.u32 %v8474, 4294901760
      %9382 = vmatmul.mubr.f32.gmra.mxu0 %v9381
      %v9383 = vpop.f32.mrf.mxu0
      %v9384 = vadd.f32 %v9206, %v9383
      %v9385 = vpop.f32.mrf.mxu0
      %9386 = vmatprep.mubr.f32.mxu0 0.0
      %v9387 = vand.u32 %v8477, 4294901760
      %9388 = vmatmul.mubr.f32.gmra.mxu0 %v9387
      %v9389 = vpop.f32.mrf.mxu0
      %v9390 = vadd.f32 %v9214, %v9389
      %v9391 = vpop.f32.mrf.mxu0
      %9392 = vmatprep.mubr.f32.mxu0 0.0
      %v9393 = vand.u32 %v8480, 4294901760
      %9394 = vmatmul.mubr.f32.gmra.mxu0 %v9393
      %v9395 = vpop.f32.mrf.mxu0
      %v9396 = vadd.f32 %v9222, %v9395
      %v9397 = vpop.f32.mrf.mxu0
      %9398 = vmatprep.mubr.f32.mxu0 0.0
      %v9399 = vand.u32 %v8483, 4294901760
      %9400 = vmatmul.mubr.f32.gmra.mxu0 %v9399
      %v9401 = vpop.f32.mrf.mxu0
      %v9402 = vadd.f32 %v9230, %v9401
      %v9403 = vpop.f32.mrf.mxu0
      %9404 = vmatprep.mubr.f32.mxu0 0.0
      %v9405 = vand.u32 %v8486, 4294901760
      %9406 = vmatmul.mubr.f32.gmra.mxu0 %v9405
      %v9407 = vpop.f32.mrf.mxu0
      %v9408 = vadd.f32 %v9238, %v9407
      %v9409 = vpop.f32.mrf.mxu0
      %9410 = vmatprep.mubr.f32.mxu0 0.0
      %v9411 = vand.u32 %v8489, 4294901760
      %9412 = vmatmul.mubr.f32.gmra.mxu0 %v9411
      %v9413 = vpop.f32.mrf.mxu0
      %v9414 = vadd.f32 %v9246, %v9413
      %v9415 = vpop.f32.mrf.mxu0
      %9416 = vmatprep.mubr.f32.mxu0 0.0
      %v9417 = vand.u32 %v8492, 4294901760
      %9418 = vmatmul.mubr.f32.gmra.mxu0 %v9417
      %v9419 = vpop.f32.mrf.mxu0
      %v9420 = vadd.f32 %v9254, %v9419
      %v9421 = vpop.f32.mrf.mxu0
      %9422 = vmatprep.mubr.f32.mxu0 0.0
      %v9423 = vand.u32 %v8495, 4294901760
      %9424 = vmatmul.mubr.f32.gmra.mxu0 %v9423
      %v9425 = vpop.f32.mrf.mxu0
      %v9426 = vadd.f32 %v9262, %v9425
      %v9427 = vpop.f32.mrf.mxu0
      %9428 = vdwg.mxu0
      %9429 = vmatprep.subr.mxu0 0.0
      %9430 = vmatpush1.msra.mxu0 0.0
      %9431 = vmatprep.subr.mxu0 0.0
      %9432 = vmatpush1.msra.mxu0 0.0
      %9433 = vmatprep.subr.mxu0 0.0
      %9434 = vmatpush1.msra.mxu0 0.0
      %9435 = vmatprep.subr.mxu0 0.0
      %9436 = vmatpush1.msra.mxu0 0.0
      %9437 = vmatprep.subr.mxu0 0.0
      %9438 = vmatpush1.msra.mxu0 0.0
      %9439 = vmatprep.subr.mxu0 0.0
      %9440 = vmatpush1.msra.mxu0 0.0
      %9441 = vmatprep.subr.mxu0 0.0
      %9442 = vmatpush1.msra.mxu0 0.0
      %9443 = vmatprep.subr.mxu0 0.0
      %9444 = vmatpush1.msra.mxu0 0.0
      %9445 = vmatprep.subr.mxu0 0.0
      %9446 = vmatpush1.msra.mxu0 0.0
      %9447 = vmatprep.subr.mxu0 0.0
      %9448 = vmatpush1.msra.mxu0 0.0
      %9449 = vmatprep.subr.mxu0 0.0
      %9450 = vmatpush1.msra.mxu0 0.0
      %9451 = vmatprep.subr.mxu0 0.0
      %9452 = vmatpush1.msra.mxu0 0.0
      %9453 = vmatprep.subr.mxu0 0.0
      %9454 = vmatpush1.msra.mxu0 0.0
      %9455 = vmatprep.subr.mxu0 0.0
      %9456 = vmatpush1.msra.mxu0 0.0
      %9457 = vmatprep.subr.mxu0 0.0
      %9458 = vmatpush1.msra.mxu0 0.0
      %9459 = vmatprep.subr.mxu0 0.0
      %v9460 = vand.u32 %v8498, 4294901760
      %9461 = vmatpush1.msra.mxu0 %v9460
      %9462 = vmatprep.subr.mxu0 0.0
      %9463 = vmatpush2.msra.mxu0 0.0
      %9464 = vmatprep.subr.mxu0 0.0
      %9465 = vmatpush2.msra.mxu0 0.0
      %9466 = vmatprep.subr.mxu0 0.0
      %9467 = vmatpush2.msra.mxu0 0.0
      %9468 = vmatprep.subr.mxu0 0.0
      %9469 = vmatpush2.msra.mxu0 0.0
      %9470 = vmatprep.subr.mxu0 0.0
      %9471 = vmatpush2.msra.mxu0 0.0
      %9472 = vmatprep.subr.mxu0 0.0
      %9473 = vmatpush2.msra.mxu0 0.0
      %9474 = vmatprep.subr.mxu0 0.0
      %9475 = vmatpush2.msra.mxu0 0.0
      %9476 = vmatprep.subr.mxu0 0.0
      %9477 = vmatpush2.msra.mxu0 0.0
      %9478 = vmatprep.subr.mxu0 0.0
      %9479 = vmatpush2.msra.mxu0 0.0
      %9480 = vmatprep.subr.mxu0 0.0
      %9481 = vmatpush2.msra.mxu0 0.0
      %9482 = vmatprep.subr.mxu0 0.0
      %9483 = vmatpush2.msra.mxu0 0.0
      %9484 = vmatprep.subr.mxu0 0.0
      %9485 = vmatpush2.msra.mxu0 0.0
      %9486 = vmatprep.subr.mxu0 0.0
      %9487 = vmatpush2.msra.mxu0 0.0
      %9488 = vmatprep.subr.mxu0 0.0
      %9489 = vmatpush2.msra.mxu0 0.0
      %9490 = vmatprep.subr.mxu0 0.0
      %9491 = vmatpush2.msra.mxu0 0.0
      %9492 = vmatprep.subr.mxu0 0.0
      %9493 = vmatpush2.msra.mxu0 0.0
      %9494 = vmatprep.mubr.f32.mxu0 0.0
      %v9495 = vand.u32 %v8450, 4294901760
      %9496 = vmatmul.mubr.f32.gmra.mxu0 %v9495
      %v9497 = vpop.f32.mrf.mxu0
      %v9498 = vadd.f32 %v9336, %v9497
      %v9499 = vpop.f32.mrf.mxu0
      %9500 = vmatprep.mubr.f32.mxu0 0.0
      %v9501 = vand.u32 %v8453, 4294901760
      %9502 = vmatmul.mubr.f32.gmra.mxu0 %v9501
      %v9503 = vpop.f32.mrf.mxu0
      %v9504 = vadd.f32 %v9342, %v9503
      %v9505 = vpop.f32.mrf.mxu0
      %9506 = vmatprep.mubr.f32.mxu0 0.0
      %v9507 = vand.u32 %v8456, 4294901760
      %9508 = vmatmul.mubr.f32.gmra.mxu0 %v9507
      %v9509 = vpop.f32.mrf.mxu0
      %v9510 = vadd.f32 %v9348, %v9509
      %v9511 = vpop.f32.mrf.mxu0
      %9512 = vmatprep.mubr.f32.mxu0 0.0
      %v9513 = vand.u32 %v8459, 4294901760
      %9514 = vmatmul.mubr.f32.gmra.mxu0 %v9513
      %v9515 = vpop.f32.mrf.mxu0
      %v9516 = vadd.f32 %v9354, %v9515
      %v9517 = vpop.f32.mrf.mxu0
      %9518 = vmatprep.mubr.f32.mxu0 0.0
      %v9519 = vand.u32 %v8462, 4294901760
      %9520 = vmatmul.mubr.f32.gmra.mxu0 %v9519
      %v9521 = vpop.f32.mrf.mxu0
      %v9522 = vadd.f32 %v9360, %v9521
      %v9523 = vpop.f32.mrf.mxu0
      %9524 = vmatprep.mubr.f32.mxu0 0.0
      %v9525 = vand.u32 %v8465, 4294901760
      %9526 = vmatmul.mubr.f32.gmra.mxu0 %v9525
      %v9527 = vpop.f32.mrf.mxu0
      %v9528 = vadd.f32 %v9366, %v9527
      %v9529 = vpop.f32.mrf.mxu0
      %9530 = vmatprep.mubr.f32.mxu0 0.0
      %v9531 = vand.u32 %v8468, 4294901760
      %9532 = vmatmul.mubr.f32.gmra.mxu0 %v9531
      %v9533 = vpop.f32.mrf.mxu0
      %v9534 = vadd.f32 %v9372, %v9533
      %v9535 = vpop.f32.mrf.mxu0
      %9536 = vmatprep.mubr.f32.mxu0 0.0
      %v9537 = vand.u32 %v8471, 4294901760
      %9538 = vmatmul.mubr.f32.gmra.mxu0 %v9537
      %v9539 = vpop.f32.mrf.mxu0
      %v9540 = vadd.f32 %v9378, %v9539
      %v9541 = vpop.f32.mrf.mxu0
      %9542 = vmatprep.mubr.f32.mxu0 0.0
      %v9543 = vand.u32 %v8474, 4294901760
      %9544 = vmatmul.mubr.f32.gmra.mxu0 %v9543
      %v9545 = vpop.f32.mrf.mxu0
      %v9546 = vadd.f32 %v9384, %v9545
      %v9547 = vpop.f32.mrf.mxu0
      %9548 = vmatprep.mubr.f32.mxu0 0.0
      %v9549 = vand.u32 %v8477, 4294901760
      %9550 = vmatmul.mubr.f32.gmra.mxu0 %v9549
      %v9551 = vpop.f32.mrf.mxu0
      %v9552 = vadd.f32 %v9390, %v9551
      %v9553 = vpop.f32.mrf.mxu0
      %9554 = vmatprep.mubr.f32.mxu0 0.0
      %v9555 = vand.u32 %v8480, 4294901760
      %9556 = vmatmul.mubr.f32.gmra.mxu0 %v9555
      %v9557 = vpop.f32.mrf.mxu0
      %v9558 = vadd.f32 %v9396, %v9557
      %v9559 = vpop.f32.mrf.mxu0
      %9560 = vmatprep.mubr.f32.mxu0 0.0
      %v9561 = vand.u32 %v8483, 4294901760
      %9562 = vmatmul.mubr.f32.gmra.mxu0 %v9561
      %v9563 = vpop.f32.mrf.mxu0
      %v9564 = vadd.f32 %v9402, %v9563
      %v9565 = vpop.f32.mrf.mxu0
      %9566 = vmatprep.mubr.f32.mxu0 0.0
      %v9567 = vand.u32 %v8486, 4294901760
      %9568 = vmatmul.mubr.f32.gmra.mxu0 %v9567
      %v9569 = vpop.f32.mrf.mxu0
      %v9570 = vadd.f32 %v9408, %v9569
      %v9571 = vpop.f32.mrf.mxu0
      %9572 = vmatprep.mubr.f32.mxu0 0.0
      %v9573 = vand.u32 %v8489, 4294901760
      %9574 = vmatmul.mubr.f32.gmra.mxu0 %v9573
      %v9575 = vpop.f32.mrf.mxu0
      %v9576 = vadd.f32 %v9414, %v9575
      %v9577 = vpop.f32.mrf.mxu0
      %9578 = vmatprep.mubr.f32.mxu0 0.0
      %v9579 = vand.u32 %v8492, 4294901760
      %9580 = vmatmul.mubr.f32.gmra.mxu0 %v9579
      %v9581 = vpop.f32.mrf.mxu0
      %v9582 = vadd.f32 %v9420, %v9581
      %v9583 = vpop.f32.mrf.mxu0
      %9584 = vmatprep.mubr.f32.mxu0 0.0
      %v9585 = vand.u32 %v8495, 4294901760
      %9586 = vmatmul.mubr.f32.gmra.mxu0 %v9585
      %v9587 = vpop.f32.mrf.mxu0
      %v9588 = vadd.f32 %v9426, %v9587
      %v9589 = vpop.f32.mrf.mxu0
      %9590 = vdwg.mxu0
      %v9591 = vadd.f32 %v8415, %v9498
      %v9592 = vadd.f32 %v8416, %v9504
      %v9593 = vadd.f32 %v8417, %v9510
      %v9594 = vadd.f32 %v8418, %v9516
      %v9595 = vadd.f32 %v8419, %v9522
      %v9596 = vadd.f32 %v8420, %v9528
      %v9597 = vadd.f32 %v8421, %v9534
      %v9598 = vadd.f32 %v8422, %v9540
      %v9599 = vadd.f32 %v8423, %v9546
      %v9600 = vadd.f32 %v8424, %v9552
      %v9601 = vadd.f32 %v8425, %v9558
      %v9602 = vadd.f32 %v8426, %v9564
      %v9603 = vadd.f32 %v8427, %v9570
      %v9604 = vadd.f32 %v8428, %v9576
      %v9605 = vadd.f32 %v8429, %v9582
      %v9606 = vadd.f32 %v8430, %v9588
      %v9607 = vld [vmem:[%s7254 + $0x2] sm:$0xff]
      %v9608 = vld [vmem:[%s7254 + $0xa] sm:$0xff]
      %v9609 = vld [vmem:[%s7254 + $0x1a] sm:$0xff]
      %v9610 = vld [vmem:[%s7254 + $0x22] sm:$0xff]
      %v9611 = vld [vmem:[%s7254 + $0x32] sm:$0xff]
      %v9612 = vld [vmem:[%s7254 + $0x3a] sm:$0xff]
      %v9613 = vld [vmem:[%s7254 + $0x4a] sm:$0xff]
      %v9614 = vld [vmem:[%s7254 + $0x52] sm:$0xff]
      %v9615 = vld [vmem:[%s7254 + $0x62] sm:$0xff]
      %v9616 = vld [vmem:[%s7254 + $0x6a] sm:$0xff]
      %v9617 = vld [vmem:[%s7254 + $0x7a] sm:$0xff]
      %v9618 = vld [vmem:[%s7254 + $0x82] sm:$0xff]
      %v9619 = vld [vmem:[%s7254 + $0x92] sm:$0xff]
      %v9620 = vld [vmem:[%s7254 + $0x9a] sm:$0xff]
      %v9621 = vld [vmem:[%s7254 + $0xaa] sm:$0xff]
      %v9622 = vld [vmem:[%s7254 + $0xb2] sm:$0xff]
      %s9623 = scalar_lea.vmem %s1, 32
      %v9624 = vld [vmem:[%s9623] sm:$0xf]
      %v9626 = vsel %vm259, %v9607, 0
      %v9629 = vsel %vm259, %v9608, 0
      %v9632 = vsel %vm259, %v9609, 0
      %v9635 = vsel %vm259, %v9610, 0
      %v9638 = vsel %vm259, %v9611, 0
      %v9641 = vsel %vm259, %v9612, 0
      %v9644 = vsel %vm259, %v9613, 0
      %v9647 = vsel %vm259, %v9614, 0
      %v9650 = vsel %vm259, %v9615, 0
      %v9653 = vsel %vm259, %v9616, 0
      %v9656 = vsel %vm259, %v9617, 0
      %v9659 = vsel %vm259, %v9618, 0
      %v9662 = vsel %vm259, %v9619, 0
      %v9665 = vsel %vm259, %v9620, 0
      %v9668 = vsel %vm259, %v9621, 0
      %v9671 = vsel %vm259, %v9622, 0
      %v9674 = vsel %vm308, %v9624, 0
      %9676 = vmatprep.subr.mxu0 0.0
      %9677 = vmatpush1.msra.mxu0 0.0
      %9678 = vmatprep.subr.mxu0 0.0
      %9679 = vmatpush1.msra.mxu0 0.0
      %9680 = vmatprep.subr.mxu0 0.0
      %9681 = vmatpush1.msra.mxu0 0.0
      %9682 = vmatprep.subr.mxu0 0.0
      %9683 = vmatpush1.msra.mxu0 0.0
      %9684 = vmatprep.subr.mxu0 0.0
      %9685 = vmatpush1.msra.mxu0 0.0
      %9686 = vmatprep.subr.mxu0 0.0
      %9687 = vmatpush1.msra.mxu0 0.0
      %9688 = vmatprep.subr.mxu0 0.0
      %9689 = vmatpush1.msra.mxu0 0.0
      %9690 = vmatprep.subr.mxu0 0.0
      %9691 = vmatpush1.msra.mxu0 0.0
      %9692 = vmatprep.subr.mxu0 0.0
      %9693 = vmatpush1.msra.mxu0 0.0
      %9694 = vmatprep.subr.mxu0 0.0
      %9695 = vmatpush1.msra.mxu0 0.0
      %9696 = vmatprep.subr.mxu0 0.0
      %9697 = vmatpush1.msra.mxu0 0.0
      %9698 = vmatprep.subr.mxu0 0.0
      %9699 = vmatpush1.msra.mxu0 0.0
      %9700 = vmatprep.subr.mxu0 0.0
      %9701 = vmatpush1.msra.mxu0 0.0
      %9702 = vmatprep.subr.mxu0 0.0
      %9703 = vmatpush1.msra.mxu0 0.0
      %9704 = vmatprep.subr.mxu0 0.0
      %9705 = vmatpush1.msra.mxu0 0.0
      %9706 = vmatprep.subr.mxu0 0.0
      %v9707 = vand.u32 %v9674, 4294901760
      %9708 = vmatpush1.msra.mxu0 %v9707
      %9709 = vmatprep.subr.mxu0 0.0
      %9710 = vmatpush2.msra.mxu0 0.0
      %9711 = vmatprep.subr.mxu0 0.0
      %9712 = vmatpush2.msra.mxu0 0.0
      %9713 = vmatprep.subr.mxu0 0.0
      %9714 = vmatpush2.msra.mxu0 0.0
      %9715 = vmatprep.subr.mxu0 0.0
      %9716 = vmatpush2.msra.mxu0 0.0
      %9717 = vmatprep.subr.mxu0 0.0
      %9718 = vmatpush2.msra.mxu0 0.0
      %9719 = vmatprep.subr.mxu0 0.0
      %9720 = vmatpush2.msra.mxu0 0.0
      %9721 = vmatprep.subr.mxu0 0.0
      %9722 = vmatpush2.msra.mxu0 0.0
      %9723 = vmatprep.subr.mxu0 0.0
      %9724 = vmatpush2.msra.mxu0 0.0
      %9725 = vmatprep.subr.mxu0 0.0
      %9726 = vmatpush2.msra.mxu0 0.0
      %9727 = vmatprep.subr.mxu0 0.0
      %9728 = vmatpush2.msra.mxu0 0.0
      %9729 = vmatprep.subr.mxu0 0.0
      %9730 = vmatpush2.msra.mxu0 0.0
      %9731 = vmatprep.subr.mxu0 0.0
      %9732 = vmatpush2.msra.mxu0 0.0
      %9733 = vmatprep.subr.mxu0 0.0
      %9734 = vmatpush2.msra.mxu0 0.0
      %9735 = vmatprep.subr.mxu0 0.0
      %9736 = vmatpush2.msra.mxu0 0.0
      %9737 = vmatprep.subr.mxu0 0.0
      %9738 = vmatpush2.msra.mxu0 0.0
      %9739 = vmatprep.subr.mxu0 0.0
      %9740 = vmatpush2.msra.mxu0 0.0
      %9741 = vmatprep.mubr.f32.mxu0 0.0
      %v9742 = vand.u32 %v9626, 4294901760
      %v9743 = vsub.f32 %v9626, %v9742
      %v9744 = vand.u32 %v9743, 4294901760
      %v9745 = vsub.f32 %v9743, %v9744
      %v9746 = vand.u32 %v9745, 4294901760
      %9747 = vmatmul.mubr.f32.gmra.mxu0 %v9746
      %v9748 = vpop.f32.mrf.mxu0
      %v9749 = vadd.f32 0.0, %v9748
      %v9750 = vpop.f32.mrf.mxu0
      %9751 = vmatprep.mubr.f32.mxu0 0.0
      %v9752 = vand.u32 %v9629, 4294901760
      %v9753 = vsub.f32 %v9629, %v9752
      %v9754 = vand.u32 %v9753, 4294901760
      %v9755 = vsub.f32 %v9753, %v9754
      %v9756 = vand.u32 %v9755, 4294901760
      %9757 = vmatmul.mubr.f32.gmra.mxu0 %v9756
      %v9758 = vpop.f32.mrf.mxu0
      %v9759 = vadd.f32 0.0, %v9758
      %v9760 = vpop.f32.mrf.mxu0
      %9761 = vmatprep.mubr.f32.mxu0 0.0
      %v9762 = vand.u32 %v9632, 4294901760
      %v9763 = vsub.f32 %v9632, %v9762
      %v9764 = vand.u32 %v9763, 4294901760
      %v9765 = vsub.f32 %v9763, %v9764
      %v9766 = vand.u32 %v9765, 4294901760
      %9767 = vmatmul.mubr.f32.gmra.mxu0 %v9766
      %v9768 = vpop.f32.mrf.mxu0
      %v9769 = vadd.f32 0.0, %v9768
      %v9770 = vpop.f32.mrf.mxu0
      %9771 = vmatprep.mubr.f32.mxu0 0.0
      %v9772 = vand.u32 %v9635, 4294901760
      %v9773 = vsub.f32 %v9635, %v9772
      %v9774 = vand.u32 %v9773, 4294901760
      %v9775 = vsub.f32 %v9773, %v9774
      %v9776 = vand.u32 %v9775, 4294901760
      %9777 = vmatmul.mubr.f32.gmra.mxu0 %v9776
      %v9778 = vpop.f32.mrf.mxu0
      %v9779 = vadd.f32 0.0, %v9778
      %v9780 = vpop.f32.mrf.mxu0
      %9781 = vmatprep.mubr.f32.mxu0 0.0
      %v9782 = vand.u32 %v9638, 4294901760
      %v9783 = vsub.f32 %v9638, %v9782
      %v9784 = vand.u32 %v9783, 4294901760
      %v9785 = vsub.f32 %v9783, %v9784
      %v9786 = vand.u32 %v9785, 4294901760
      %9787 = vmatmul.mubr.f32.gmra.mxu0 %v9786
      %v9788 = vpop.f32.mrf.mxu0
      %v9789 = vadd.f32 0.0, %v9788
      %v9790 = vpop.f32.mrf.mxu0
      %9791 = vmatprep.mubr.f32.mxu0 0.0
      %v9792 = vand.u32 %v9641, 4294901760
      %v9793 = vsub.f32 %v9641, %v9792
      %v9794 = vand.u32 %v9793, 4294901760
      %v9795 = vsub.f32 %v9793, %v9794
      %v9796 = vand.u32 %v9795, 4294901760
      %9797 = vmatmul.mubr.f32.gmra.mxu0 %v9796
      %v9798 = vpop.f32.mrf.mxu0
      %v9799 = vadd.f32 0.0, %v9798
      %v9800 = vpop.f32.mrf.mxu0
      %9801 = vmatprep.mubr.f32.mxu0 0.0
      %v9802 = vand.u32 %v9644, 4294901760
      %v9803 = vsub.f32 %v9644, %v9802
      %v9804 = vand.u32 %v9803, 4294901760
      %v9805 = vsub.f32 %v9803, %v9804
      %v9806 = vand.u32 %v9805, 4294901760
      %9807 = vmatmul.mubr.f32.gmra.mxu0 %v9806
      %v9808 = vpop.f32.mrf.mxu0
      %v9809 = vadd.f32 0.0, %v9808
      %v9810 = vpop.f32.mrf.mxu0
      %9811 = vmatprep.mubr.f32.mxu0 0.0
      %v9812 = vand.u32 %v9647, 4294901760
      %v9813 = vsub.f32 %v9647, %v9812
      %v9814 = vand.u32 %v9813, 4294901760
      %v9815 = vsub.f32 %v9813, %v9814
      %v9816 = vand.u32 %v9815, 4294901760
      %9817 = vmatmul.mubr.f32.gmra.mxu0 %v9816
      %v9818 = vpop.f32.mrf.mxu0
      %v9819 = vadd.f32 0.0, %v9818
      %v9820 = vpop.f32.mrf.mxu0
      %9821 = vmatprep.mubr.f32.mxu0 0.0
      %v9822 = vand.u32 %v9650, 4294901760
      %v9823 = vsub.f32 %v9650, %v9822
      %v9824 = vand.u32 %v9823, 4294901760
      %v9825 = vsub.f32 %v9823, %v9824
      %v9826 = vand.u32 %v9825, 4294901760
      %9827 = vmatmul.mubr.f32.gmra.mxu0 %v9826
      %v9828 = vpop.f32.mrf.mxu0
      %v9829 = vadd.f32 0.0, %v9828
      %v9830 = vpop.f32.mrf.mxu0
      %9831 = vmatprep.mubr.f32.mxu0 0.0
      %v9832 = vand.u32 %v9653, 4294901760
      %v9833 = vsub.f32 %v9653, %v9832
      %v9834 = vand.u32 %v9833, 4294901760
      %v9835 = vsub.f32 %v9833, %v9834
      %v9836 = vand.u32 %v9835, 4294901760
      %9837 = vmatmul.mubr.f32.gmra.mxu0 %v9836
      %v9838 = vpop.f32.mrf.mxu0
      %v9839 = vadd.f32 0.0, %v9838
      %v9840 = vpop.f32.mrf.mxu0
      %9841 = vmatprep.mubr.f32.mxu0 0.0
      %v9842 = vand.u32 %v9656, 4294901760
      %v9843 = vsub.f32 %v9656, %v9842
      %v9844 = vand.u32 %v9843, 4294901760
      %v9845 = vsub.f32 %v9843, %v9844
      %v9846 = vand.u32 %v9845, 4294901760
      %9847 = vmatmul.mubr.f32.gmra.mxu0 %v9846
      %v9848 = vpop.f32.mrf.mxu0
      %v9849 = vadd.f32 0.0, %v9848
      %v9850 = vpop.f32.mrf.mxu0
      %9851 = vmatprep.mubr.f32.mxu0 0.0
      %v9852 = vand.u32 %v9659, 4294901760
      %v9853 = vsub.f32 %v9659, %v9852
      %v9854 = vand.u32 %v9853, 4294901760
      %v9855 = vsub.f32 %v9853, %v9854
      %v9856 = vand.u32 %v9855, 4294901760
      %9857 = vmatmul.mubr.f32.gmra.mxu0 %v9856
      %v9858 = vpop.f32.mrf.mxu0
      %v9859 = vadd.f32 0.0, %v9858
      %v9860 = vpop.f32.mrf.mxu0
      %9861 = vmatprep.mubr.f32.mxu0 0.0
      %v9862 = vand.u32 %v9662, 4294901760
      %v9863 = vsub.f32 %v9662, %v9862
      %v9864 = vand.u32 %v9863, 4294901760
      %v9865 = vsub.f32 %v9863, %v9864
      %v9866 = vand.u32 %v9865, 4294901760
      %9867 = vmatmul.mubr.f32.gmra.mxu0 %v9866
      %v9868 = vpop.f32.mrf.mxu0
      %v9869 = vadd.f32 0.0, %v9868
      %v9870 = vpop.f32.mrf.mxu0
      %9871 = vmatprep.mubr.f32.mxu0 0.0
      %v9872 = vand.u32 %v9665, 4294901760
      %v9873 = vsub.f32 %v9665, %v9872
      %v9874 = vand.u32 %v9873, 4294901760
      %v9875 = vsub.f32 %v9873, %v9874
      %v9876 = vand.u32 %v9875, 4294901760
      %9877 = vmatmul.mubr.f32.gmra.mxu0 %v9876
      %v9878 = vpop.f32.mrf.mxu0
      %v9879 = vadd.f32 0.0, %v9878
      %v9880 = vpop.f32.mrf.mxu0
      %9881 = vmatprep.mubr.f32.mxu0 0.0
      %v9882 = vand.u32 %v9668, 4294901760
      %v9883 = vsub.f32 %v9668, %v9882
      %v9884 = vand.u32 %v9883, 4294901760
      %v9885 = vsub.f32 %v9883, %v9884
      %v9886 = vand.u32 %v9885, 4294901760
      %9887 = vmatmul.mubr.f32.gmra.mxu0 %v9886
      %v9888 = vpop.f32.mrf.mxu0
      %v9889 = vadd.f32 0.0, %v9888
      %v9890 = vpop.f32.mrf.mxu0
      %9891 = vmatprep.mubr.f32.mxu0 0.0
      %v9892 = vand.u32 %v9671, 4294901760
      %v9893 = vsub.f32 %v9671, %v9892
      %v9894 = vand.u32 %v9893, 4294901760
      %v9895 = vsub.f32 %v9893, %v9894
      %v9896 = vand.u32 %v9895, 4294901760
      %9897 = vmatmul.mubr.f32.gmra.mxu0 %v9896
      %v9898 = vpop.f32.mrf.mxu0
      %v9899 = vadd.f32 0.0, %v9898
      %v9900 = vpop.f32.mrf.mxu0
      %9901 = vdwg.mxu0
      %9902 = vmatprep.subr.mxu0 0.0
      %9903 = vmatpush1.msra.mxu0 0.0
      %9904 = vmatprep.subr.mxu0 0.0
      %9905 = vmatpush1.msra.mxu0 0.0
      %9906 = vmatprep.subr.mxu0 0.0
      %9907 = vmatpush1.msra.mxu0 0.0
      %9908 = vmatprep.subr.mxu0 0.0
      %9909 = vmatpush1.msra.mxu0 0.0
      %9910 = vmatprep.subr.mxu0 0.0
      %9911 = vmatpush1.msra.mxu0 0.0
      %9912 = vmatprep.subr.mxu0 0.0
      %9913 = vmatpush1.msra.mxu0 0.0
      %9914 = vmatprep.subr.mxu0 0.0
      %9915 = vmatpush1.msra.mxu0 0.0
      %9916 = vmatprep.subr.mxu0 0.0
      %9917 = vmatpush1.msra.mxu0 0.0
      %9918 = vmatprep.subr.mxu0 0.0
      %9919 = vmatpush1.msra.mxu0 0.0
      %9920 = vmatprep.subr.mxu0 0.0
      %9921 = vmatpush1.msra.mxu0 0.0
      %9922 = vmatprep.subr.mxu0 0.0
      %9923 = vmatpush1.msra.mxu0 0.0
      %9924 = vmatprep.subr.mxu0 0.0
      %9925 = vmatpush1.msra.mxu0 0.0
      %9926 = vmatprep.subr.mxu0 0.0
      %9927 = vmatpush1.msra.mxu0 0.0
      %9928 = vmatprep.subr.mxu0 0.0
      %9929 = vmatpush1.msra.mxu0 0.0
      %9930 = vmatprep.subr.mxu0 0.0
      %9931 = vmatpush1.msra.mxu0 0.0
      %9932 = vmatprep.subr.mxu0 0.0
      %v9933 = vand.u32 %v9674, 4294901760
      %v9934 = vsub.f32 %v9674, %v9933
      %v9935 = vand.u32 %v9934, 4294901760
      %v9936 = vsub.f32 %v9934, %v9935
      %v9937 = vand.u32 %v9936, 4294901760
      %9938 = vmatpush1.msra.mxu0 %v9937
      %9939 = vmatprep.subr.mxu0 0.0
      %9940 = vmatpush2.msra.mxu0 0.0
      %9941 = vmatprep.subr.mxu0 0.0
      %9942 = vmatpush2.msra.mxu0 0.0
      %9943 = vmatprep.subr.mxu0 0.0
      %9944 = vmatpush2.msra.mxu0 0.0
      %9945 = vmatprep.subr.mxu0 0.0
      %9946 = vmatpush2.msra.mxu0 0.0
      %9947 = vmatprep.subr.mxu0 0.0
      %9948 = vmatpush2.msra.mxu0 0.0
      %9949 = vmatprep.subr.mxu0 0.0
      %9950 = vmatpush2.msra.mxu0 0.0
      %9951 = vmatprep.subr.mxu0 0.0
      %9952 = vmatpush2.msra.mxu0 0.0
      %9953 = vmatprep.subr.mxu0 0.0
      %9954 = vmatpush2.msra.mxu0 0.0
      %9955 = vmatprep.subr.mxu0 0.0
      %9956 = vmatpush2.msra.mxu0 0.0
      %9957 = vmatprep.subr.mxu0 0.0
      %9958 = vmatpush2.msra.mxu0 0.0
      %9959 = vmatprep.subr.mxu0 0.0
      %9960 = vmatpush2.msra.mxu0 0.0
      %9961 = vmatprep.subr.mxu0 0.0
      %9962 = vmatpush2.msra.mxu0 0.0
      %9963 = vmatprep.subr.mxu0 0.0
      %9964 = vmatpush2.msra.mxu0 0.0
      %9965 = vmatprep.subr.mxu0 0.0
      %9966 = vmatpush2.msra.mxu0 0.0
      %9967 = vmatprep.subr.mxu0 0.0
      %9968 = vmatpush2.msra.mxu0 0.0
      %9969 = vmatprep.subr.mxu0 0.0
      %9970 = vmatpush2.msra.mxu0 0.0
      %9971 = vmatprep.mubr.f32.mxu0 0.0
      %v9972 = vand.u32 %v9626, 4294901760
      %9973 = vmatmul.mubr.f32.gmra.mxu0 %v9972
      %v9974 = vpop.f32.mrf.mxu0
      %v9975 = vadd.f32 %v9749, %v9974
      %v9976 = vpop.f32.mrf.mxu0
      %9977 = vmatprep.mubr.f32.mxu0 0.0
      %v9978 = vand.u32 %v9629, 4294901760
      %9979 = vmatmul.mubr.f32.gmra.mxu0 %v9978
      %v9980 = vpop.f32.mrf.mxu0
      %v9981 = vadd.f32 %v9759, %v9980
      %v9982 = vpop.f32.mrf.mxu0
      %9983 = vmatprep.mubr.f32.mxu0 0.0
      %v9984 = vand.u32 %v9632, 4294901760
      %9985 = vmatmul.mubr.f32.gmra.mxu0 %v9984
      %v9986 = vpop.f32.mrf.mxu0
      %v9987 = vadd.f32 %v9769, %v9986
      %v9988 = vpop.f32.mrf.mxu0
      %9989 = vmatprep.mubr.f32.mxu0 0.0
      %v9990 = vand.u32 %v9635, 4294901760
      %9991 = vmatmul.mubr.f32.gmra.mxu0 %v9990
      %v9992 = vpop.f32.mrf.mxu0
      %v9993 = vadd.f32 %v9779, %v9992
      %v9994 = vpop.f32.mrf.mxu0
      %9995 = vmatprep.mubr.f32.mxu0 0.0
      %v9996 = vand.u32 %v9638, 4294901760
      %9997 = vmatmul.mubr.f32.gmra.mxu0 %v9996
      %v9998 = vpop.f32.mrf.mxu0
      %v9999 = vadd.f32 %v9789, %v9998
      %v10000 = vpop.f32.mrf.mxu0
      %10001 = vmatprep.mubr.f32.mxu0 0.0
      %v10002 = vand.u32 %v9641, 4294901760
      %10003 = vmatmul.mubr.f32.gmra.mxu0 %v10002
      %v10004 = vpop.f32.mrf.mxu0
      %v10005 = vadd.f32 %v9799, %v10004
      %v10006 = vpop.f32.mrf.mxu0
      %10007 = vmatprep.mubr.f32.mxu0 0.0
      %v10008 = vand.u32 %v9644, 4294901760
      %10009 = vmatmul.mubr.f32.gmra.mxu0 %v10008
      %v10010 = vpop.f32.mrf.mxu0
      %v10011 = vadd.f32 %v9809, %v10010
      %v10012 = vpop.f32.mrf.mxu0
      %10013 = vmatprep.mubr.f32.mxu0 0.0
      %v10014 = vand.u32 %v9647, 4294901760
      %10015 = vmatmul.mubr.f32.gmra.mxu0 %v10014
      %v10016 = vpop.f32.mrf.mxu0
      %v10017 = vadd.f32 %v9819, %v10016
      %v10018 = vpop.f32.mrf.mxu0
      %10019 = vmatprep.mubr.f32.mxu0 0.0
      %v10020 = vand.u32 %v9650, 4294901760
      %10021 = vmatmul.mubr.f32.gmra.mxu0 %v10020
      %v10022 = vpop.f32.mrf.mxu0
      %v10023 = vadd.f32 %v9829, %v10022
      %v10024 = vpop.f32.mrf.mxu0
      %10025 = vmatprep.mubr.f32.mxu0 0.0
      %v10026 = vand.u32 %v9653, 4294901760
      %10027 = vmatmul.mubr.f32.gmra.mxu0 %v10026
      %v10028 = vpop.f32.mrf.mxu0
      %v10029 = vadd.f32 %v9839, %v10028
      %v10030 = vpop.f32.mrf.mxu0
      %10031 = vmatprep.mubr.f32.mxu0 0.0
      %v10032 = vand.u32 %v9656, 4294901760
      %10033 = vmatmul.mubr.f32.gmra.mxu0 %v10032
      %v10034 = vpop.f32.mrf.mxu0
      %v10035 = vadd.f32 %v9849, %v10034
      %v10036 = vpop.f32.mrf.mxu0
      %10037 = vmatprep.mubr.f32.mxu0 0.0
      %v10038 = vand.u32 %v9659, 4294901760
      %10039 = vmatmul.mubr.f32.gmra.mxu0 %v10038
      %v10040 = vpop.f32.mrf.mxu0
      %v10041 = vadd.f32 %v9859, %v10040
      %v10042 = vpop.f32.mrf.mxu0
      %10043 = vmatprep.mubr.f32.mxu0 0.0
      %v10044 = vand.u32 %v9662, 4294901760
      %10045 = vmatmul.mubr.f32.gmra.mxu0 %v10044
      %v10046 = vpop.f32.mrf.mxu0
      %v10047 = vadd.f32 %v9869, %v10046
      %v10048 = vpop.f32.mrf.mxu0
      %10049 = vmatprep.mubr.f32.mxu0 0.0
      %v10050 = vand.u32 %v9665, 4294901760
      %10051 = vmatmul.mubr.f32.gmra.mxu0 %v10050
      %v10052 = vpop.f32.mrf.mxu0
      %v10053 = vadd.f32 %v9879, %v10052
      %v10054 = vpop.f32.mrf.mxu0
      %10055 = vmatprep.mubr.f32.mxu0 0.0
      %v10056 = vand.u32 %v9668, 4294901760
      %10057 = vmatmul.mubr.f32.gmra.mxu0 %v10056
      %v10058 = vpop.f32.mrf.mxu0
      %v10059 = vadd.f32 %v9889, %v10058
      %v10060 = vpop.f32.mrf.mxu0
      %10061 = vmatprep.mubr.f32.mxu0 0.0
      %v10062 = vand.u32 %v9671, 4294901760
      %10063 = vmatmul.mubr.f32.gmra.mxu0 %v10062
      %v10064 = vpop.f32.mrf.mxu0
      %v10065 = vadd.f32 %v9899, %v10064
      %v10066 = vpop.f32.mrf.mxu0
      %10067 = vdwg.mxu0
      %10068 = vmatprep.subr.mxu0 0.0
      %10069 = vmatpush1.msra.mxu0 0.0
      %10070 = vmatprep.subr.mxu0 0.0
      %10071 = vmatpush1.msra.mxu0 0.0
      %10072 = vmatprep.subr.mxu0 0.0
      %10073 = vmatpush1.msra.mxu0 0.0
      %10074 = vmatprep.subr.mxu0 0.0
      %10075 = vmatpush1.msra.mxu0 0.0
      %10076 = vmatprep.subr.mxu0 0.0
      %10077 = vmatpush1.msra.mxu0 0.0
      %10078 = vmatprep.subr.mxu0 0.0
      %10079 = vmatpush1.msra.mxu0 0.0
      %10080 = vmatprep.subr.mxu0 0.0
      %10081 = vmatpush1.msra.mxu0 0.0
      %10082 = vmatprep.subr.mxu0 0.0
      %10083 = vmatpush1.msra.mxu0 0.0
      %10084 = vmatprep.subr.mxu0 0.0
      %10085 = vmatpush1.msra.mxu0 0.0
      %10086 = vmatprep.subr.mxu0 0.0
      %10087 = vmatpush1.msra.mxu0 0.0
      %10088 = vmatprep.subr.mxu0 0.0
      %10089 = vmatpush1.msra.mxu0 0.0
      %10090 = vmatprep.subr.mxu0 0.0
      %10091 = vmatpush1.msra.mxu0 0.0
      %10092 = vmatprep.subr.mxu0 0.0
      %10093 = vmatpush1.msra.mxu0 0.0
      %10094 = vmatprep.subr.mxu0 0.0
      %10095 = vmatpush1.msra.mxu0 0.0
      %10096 = vmatprep.subr.mxu0 0.0
      %10097 = vmatpush1.msra.mxu0 0.0
      %10098 = vmatprep.subr.mxu0 0.0
      %v10099 = vand.u32 %v9674, 4294901760
      %v10100 = vsub.f32 %v9674, %v10099
      %10101 = vmatpush1.msra.mxu0 %v10100
      %10102 = vmatprep.subr.mxu0 0.0
      %10103 = vmatpush2.msra.mxu0 0.0
      %10104 = vmatprep.subr.mxu0 0.0
      %10105 = vmatpush2.msra.mxu0 0.0
      %10106 = vmatprep.subr.mxu0 0.0
      %10107 = vmatpush2.msra.mxu0 0.0
      %10108 = vmatprep.subr.mxu0 0.0
      %10109 = vmatpush2.msra.mxu0 0.0
      %10110 = vmatprep.subr.mxu0 0.0
      %10111 = vmatpush2.msra.mxu0 0.0
      %10112 = vmatprep.subr.mxu0 0.0
      %10113 = vmatpush2.msra.mxu0 0.0
      %10114 = vmatprep.subr.mxu0 0.0
      %10115 = vmatpush2.msra.mxu0 0.0
      %10116 = vmatprep.subr.mxu0 0.0
      %10117 = vmatpush2.msra.mxu0 0.0
      %10118 = vmatprep.subr.mxu0 0.0
      %10119 = vmatpush2.msra.mxu0 0.0
      %10120 = vmatprep.subr.mxu0 0.0
      %10121 = vmatpush2.msra.mxu0 0.0
      %10122 = vmatprep.subr.mxu0 0.0
      %10123 = vmatpush2.msra.mxu0 0.0
      %10124 = vmatprep.subr.mxu0 0.0
      %10125 = vmatpush2.msra.mxu0 0.0
      %10126 = vmatprep.subr.mxu0 0.0
      %10127 = vmatpush2.msra.mxu0 0.0
      %10128 = vmatprep.subr.mxu0 0.0
      %10129 = vmatpush2.msra.mxu0 0.0
      %10130 = vmatprep.subr.mxu0 0.0
      %10131 = vmatpush2.msra.mxu0 0.0
      %10132 = vmatprep.subr.mxu0 0.0
      %10133 = vmatpush2.msra.mxu0 0.0
      %10134 = vmatprep.mubr.f32.mxu0 0.0
      %v10135 = vand.u32 %v9626, 4294901760
      %v10136 = vsub.f32 %v9626, %v10135
      %10137 = vmatmul.mubr.f32.gmra.mxu0 %v10136
      %v10138 = vpop.f32.mrf.mxu0
      %v10139 = vadd.f32 %v9975, %v10138
      %v10140 = vpop.f32.mrf.mxu0
      %10141 = vmatprep.mubr.f32.mxu0 0.0
      %v10142 = vand.u32 %v9629, 4294901760
      %v10143 = vsub.f32 %v9629, %v10142
      %10144 = vmatmul.mubr.f32.gmra.mxu0 %v10143
      %v10145 = vpop.f32.mrf.mxu0
      %v10146 = vadd.f32 %v9981, %v10145
      %v10147 = vpop.f32.mrf.mxu0
      %10148 = vmatprep.mubr.f32.mxu0 0.0
      %v10149 = vand.u32 %v9632, 4294901760
      %v10150 = vsub.f32 %v9632, %v10149
      %10151 = vmatmul.mubr.f32.gmra.mxu0 %v10150
      %v10152 = vpop.f32.mrf.mxu0
      %v10153 = vadd.f32 %v9987, %v10152
      %v10154 = vpop.f32.mrf.mxu0
      %10155 = vmatprep.mubr.f32.mxu0 0.0
      %v10156 = vand.u32 %v9635, 4294901760
      %v10157 = vsub.f32 %v9635, %v10156
      %10158 = vmatmul.mubr.f32.gmra.mxu0 %v10157
      %v10159 = vpop.f32.mrf.mxu0
      %v10160 = vadd.f32 %v9993, %v10159
      %v10161 = vpop.f32.mrf.mxu0
      %10162 = vmatprep.mubr.f32.mxu0 0.0
      %v10163 = vand.u32 %v9638, 4294901760
      %v10164 = vsub.f32 %v9638, %v10163
      %10165 = vmatmul.mubr.f32.gmra.mxu0 %v10164
      %v10166 = vpop.f32.mrf.mxu0
      %v10167 = vadd.f32 %v9999, %v10166
      %v10168 = vpop.f32.mrf.mxu0
      %10169 = vmatprep.mubr.f32.mxu0 0.0
      %v10170 = vand.u32 %v9641, 4294901760
      %v10171 = vsub.f32 %v9641, %v10170
      %10172 = vmatmul.mubr.f32.gmra.mxu0 %v10171
      %v10173 = vpop.f32.mrf.mxu0
      %v10174 = vadd.f32 %v10005, %v10173
      %v10175 = vpop.f32.mrf.mxu0
      %10176 = vmatprep.mubr.f32.mxu0 0.0
      %v10177 = vand.u32 %v9644, 4294901760
      %v10178 = vsub.f32 %v9644, %v10177
      %10179 = vmatmul.mubr.f32.gmra.mxu0 %v10178
      %v10180 = vpop.f32.mrf.mxu0
      %v10181 = vadd.f32 %v10011, %v10180
      %v10182 = vpop.f32.mrf.mxu0
      %10183 = vmatprep.mubr.f32.mxu0 0.0
      %v10184 = vand.u32 %v9647, 4294901760
      %v10185 = vsub.f32 %v9647, %v10184
      %10186 = vmatmul.mubr.f32.gmra.mxu0 %v10185
      %v10187 = vpop.f32.mrf.mxu0
      %v10188 = vadd.f32 %v10017, %v10187
      %v10189 = vpop.f32.mrf.mxu0
      %10190 = vmatprep.mubr.f32.mxu0 0.0
      %v10191 = vand.u32 %v9650, 4294901760
      %v10192 = vsub.f32 %v9650, %v10191
      %10193 = vmatmul.mubr.f32.gmra.mxu0 %v10192
      %v10194 = vpop.f32.mrf.mxu0
      %v10195 = vadd.f32 %v10023, %v10194
      %v10196 = vpop.f32.mrf.mxu0
      %10197 = vmatprep.mubr.f32.mxu0 0.0
      %v10198 = vand.u32 %v9653, 4294901760
      %v10199 = vsub.f32 %v9653, %v10198
      %10200 = vmatmul.mubr.f32.gmra.mxu0 %v10199
      %v10201 = vpop.f32.mrf.mxu0
      %v10202 = vadd.f32 %v10029, %v10201
      %v10203 = vpop.f32.mrf.mxu0
      %10204 = vmatprep.mubr.f32.mxu0 0.0
      %v10205 = vand.u32 %v9656, 4294901760
      %v10206 = vsub.f32 %v9656, %v10205
      %10207 = vmatmul.mubr.f32.gmra.mxu0 %v10206
      %v10208 = vpop.f32.mrf.mxu0
      %v10209 = vadd.f32 %v10035, %v10208
      %v10210 = vpop.f32.mrf.mxu0
      %10211 = vmatprep.mubr.f32.mxu0 0.0
      %v10212 = vand.u32 %v9659, 4294901760
      %v10213 = vsub.f32 %v9659, %v10212
      %10214 = vmatmul.mubr.f32.gmra.mxu0 %v10213
      %v10215 = vpop.f32.mrf.mxu0
      %v10216 = vadd.f32 %v10041, %v10215
      %v10217 = vpop.f32.mrf.mxu0
      %10218 = vmatprep.mubr.f32.mxu0 0.0
      %v10219 = vand.u32 %v9662, 4294901760
      %v10220 = vsub.f32 %v9662, %v10219
      %10221 = vmatmul.mubr.f32.gmra.mxu0 %v10220
      %v10222 = vpop.f32.mrf.mxu0
      %v10223 = vadd.f32 %v10047, %v10222
      %v10224 = vpop.f32.mrf.mxu0
      %10225 = vmatprep.mubr.f32.mxu0 0.0
      %v10226 = vand.u32 %v9665, 4294901760
      %v10227 = vsub.f32 %v9665, %v10226
      %10228 = vmatmul.mubr.f32.gmra.mxu0 %v10227
      %v10229 = vpop.f32.mrf.mxu0
      %v10230 = vadd.f32 %v10053, %v10229
      %v10231 = vpop.f32.mrf.mxu0
      %10232 = vmatprep.mubr.f32.mxu0 0.0
      %v10233 = vand.u32 %v9668, 4294901760
      %v10234 = vsub.f32 %v9668, %v10233
      %10235 = vmatmul.mubr.f32.gmra.mxu0 %v10234
      %v10236 = vpop.f32.mrf.mxu0
      %v10237 = vadd.f32 %v10059, %v10236
      %v10238 = vpop.f32.mrf.mxu0
      %10239 = vmatprep.mubr.f32.mxu0 0.0
      %v10240 = vand.u32 %v9671, 4294901760
      %v10241 = vsub.f32 %v9671, %v10240
      %10242 = vmatmul.mubr.f32.gmra.mxu0 %v10241
      %v10243 = vpop.f32.mrf.mxu0
      %v10244 = vadd.f32 %v10065, %v10243
      %v10245 = vpop.f32.mrf.mxu0
      %10246 = vdwg.mxu0
      %10247 = vmatprep.subr.mxu0 0.0
      %10248 = vmatpush1.msra.mxu0 0.0
      %10249 = vmatprep.subr.mxu0 0.0
      %10250 = vmatpush1.msra.mxu0 0.0
      %10251 = vmatprep.subr.mxu0 0.0
      %10252 = vmatpush1.msra.mxu0 0.0
      %10253 = vmatprep.subr.mxu0 0.0
      %10254 = vmatpush1.msra.mxu0 0.0
      %10255 = vmatprep.subr.mxu0 0.0
      %10256 = vmatpush1.msra.mxu0 0.0
      %10257 = vmatprep.subr.mxu0 0.0
      %10258 = vmatpush1.msra.mxu0 0.0
      %10259 = vmatprep.subr.mxu0 0.0
      %10260 = vmatpush1.msra.mxu0 0.0
      %10261 = vmatprep.subr.mxu0 0.0
      %10262 = vmatpush1.msra.mxu0 0.0
      %10263 = vmatprep.subr.mxu0 0.0
      %10264 = vmatpush1.msra.mxu0 0.0
      %10265 = vmatprep.subr.mxu0 0.0
      %10266 = vmatpush1.msra.mxu0 0.0
      %10267 = vmatprep.subr.mxu0 0.0
      %10268 = vmatpush1.msra.mxu0 0.0
      %10269 = vmatprep.subr.mxu0 0.0
      %10270 = vmatpush1.msra.mxu0 0.0
      %10271 = vmatprep.subr.mxu0 0.0
      %10272 = vmatpush1.msra.mxu0 0.0
      %10273 = vmatprep.subr.mxu0 0.0
      %10274 = vmatpush1.msra.mxu0 0.0
      %10275 = vmatprep.subr.mxu0 0.0
      %10276 = vmatpush1.msra.mxu0 0.0
      %10277 = vmatprep.subr.mxu0 0.0
      %v10278 = vand.u32 %v9674, 4294901760
      %10279 = vmatpush1.msra.mxu0 %v10278
      %10280 = vmatprep.subr.mxu0 0.0
      %10281 = vmatpush2.msra.mxu0 0.0
      %10282 = vmatprep.subr.mxu0 0.0
      %10283 = vmatpush2.msra.mxu0 0.0
      %10284 = vmatprep.subr.mxu0 0.0
      %10285 = vmatpush2.msra.mxu0 0.0
      %10286 = vmatprep.subr.mxu0 0.0
      %10287 = vmatpush2.msra.mxu0 0.0
      %10288 = vmatprep.subr.mxu0 0.0
      %10289 = vmatpush2.msra.mxu0 0.0
      %10290 = vmatprep.subr.mxu0 0.0
      %10291 = vmatpush2.msra.mxu0 0.0
      %10292 = vmatprep.subr.mxu0 0.0
      %10293 = vmatpush2.msra.mxu0 0.0
      %10294 = vmatprep.subr.mxu0 0.0
      %10295 = vmatpush2.msra.mxu0 0.0
      %10296 = vmatprep.subr.mxu0 0.0
      %10297 = vmatpush2.msra.mxu0 0.0
      %10298 = vmatprep.subr.mxu0 0.0
      %10299 = vmatpush2.msra.mxu0 0.0
      %10300 = vmatprep.subr.mxu0 0.0
      %10301 = vmatpush2.msra.mxu0 0.0
      %10302 = vmatprep.subr.mxu0 0.0
      %10303 = vmatpush2.msra.mxu0 0.0
      %10304 = vmatprep.subr.mxu0 0.0
      %10305 = vmatpush2.msra.mxu0 0.0
      %10306 = vmatprep.subr.mxu0 0.0
      %10307 = vmatpush2.msra.mxu0 0.0
      %10308 = vmatprep.subr.mxu0 0.0
      %10309 = vmatpush2.msra.mxu0 0.0
      %10310 = vmatprep.subr.mxu0 0.0
      %10311 = vmatpush2.msra.mxu0 0.0
      %10312 = vmatprep.mubr.f32.mxu0 0.0
      %v10313 = vand.u32 %v9626, 4294901760
      %v10314 = vsub.f32 %v9626, %v10313
      %v10315 = vand.u32 %v10314, 4294901760
      %10316 = vmatmul.mubr.f32.gmra.mxu0 %v10315
      %v10317 = vpop.f32.mrf.mxu0
      %v10318 = vadd.f32 %v10139, %v10317
      %v10319 = vpop.f32.mrf.mxu0
      %10320 = vmatprep.mubr.f32.mxu0 0.0
      %v10321 = vand.u32 %v9629, 4294901760
      %v10322 = vsub.f32 %v9629, %v10321
      %v10323 = vand.u32 %v10322, 4294901760
      %10324 = vmatmul.mubr.f32.gmra.mxu0 %v10323
      %v10325 = vpop.f32.mrf.mxu0
      %v10326 = vadd.f32 %v10146, %v10325
      %v10327 = vpop.f32.mrf.mxu0
      %10328 = vmatprep.mubr.f32.mxu0 0.0
      %v10329 = vand.u32 %v9632, 4294901760
      %v10330 = vsub.f32 %v9632, %v10329
      %v10331 = vand.u32 %v10330, 4294901760
      %10332 = vmatmul.mubr.f32.gmra.mxu0 %v10331
      %v10333 = vpop.f32.mrf.mxu0
      %v10334 = vadd.f32 %v10153, %v10333
      %v10335 = vpop.f32.mrf.mxu0
      %10336 = vmatprep.mubr.f32.mxu0 0.0
      %v10337 = vand.u32 %v9635, 4294901760
      %v10338 = vsub.f32 %v9635, %v10337
      %v10339 = vand.u32 %v10338, 4294901760
      %10340 = vmatmul.mubr.f32.gmra.mxu0 %v10339
      %v10341 = vpop.f32.mrf.mxu0
      %v10342 = vadd.f32 %v10160, %v10341
      %v10343 = vpop.f32.mrf.mxu0
      %10344 = vmatprep.mubr.f32.mxu0 0.0
      %v10345 = vand.u32 %v9638, 4294901760
      %v10346 = vsub.f32 %v9638, %v10345
      %v10347 = vand.u32 %v10346, 4294901760
      %10348 = vmatmul.mubr.f32.gmra.mxu0 %v10347
      %v10349 = vpop.f32.mrf.mxu0
      %v10350 = vadd.f32 %v10167, %v10349
      %v10351 = vpop.f32.mrf.mxu0
      %10352 = vmatprep.mubr.f32.mxu0 0.0
      %v10353 = vand.u32 %v9641, 4294901760
      %v10354 = vsub.f32 %v9641, %v10353
      %v10355 = vand.u32 %v10354, 4294901760
      %10356 = vmatmul.mubr.f32.gmra.mxu0 %v10355
      %v10357 = vpop.f32.mrf.mxu0
      %v10358 = vadd.f32 %v10174, %v10357
      %v10359 = vpop.f32.mrf.mxu0
      %10360 = vmatprep.mubr.f32.mxu0 0.0
      %v10361 = vand.u32 %v9644, 4294901760
      %v10362 = vsub.f32 %v9644, %v10361
      %v10363 = vand.u32 %v10362, 4294901760
      %10364 = vmatmul.mubr.f32.gmra.mxu0 %v10363
      %v10365 = vpop.f32.mrf.mxu0
      %v10366 = vadd.f32 %v10181, %v10365
      %v10367 = vpop.f32.mrf.mxu0
      %10368 = vmatprep.mubr.f32.mxu0 0.0
      %v10369 = vand.u32 %v9647, 4294901760
      %v10370 = vsub.f32 %v9647, %v10369
      %v10371 = vand.u32 %v10370, 4294901760
      %10372 = vmatmul.mubr.f32.gmra.mxu0 %v10371
      %v10373 = vpop.f32.mrf.mxu0
      %v10374 = vadd.f32 %v10188, %v10373
      %v10375 = vpop.f32.mrf.mxu0
      %10376 = vmatprep.mubr.f32.mxu0 0.0
      %v10377 = vand.u32 %v9650, 4294901760
      %v10378 = vsub.f32 %v9650, %v10377
      %v10379 = vand.u32 %v10378, 4294901760
      %10380 = vmatmul.mubr.f32.gmra.mxu0 %v10379
      %v10381 = vpop.f32.mrf.mxu0
      %v10382 = vadd.f32 %v10195, %v10381
      %v10383 = vpop.f32.mrf.mxu0
      %10384 = vmatprep.mubr.f32.mxu0 0.0
      %v10385 = vand.u32 %v9653, 4294901760
      %v10386 = vsub.f32 %v9653, %v10385
      %v10387 = vand.u32 %v10386, 4294901760
      %10388 = vmatmul.mubr.f32.gmra.mxu0 %v10387
      %v10389 = vpop.f32.mrf.mxu0
      %v10390 = vadd.f32 %v10202, %v10389
      %v10391 = vpop.f32.mrf.mxu0
      %10392 = vmatprep.mubr.f32.mxu0 0.0
      %v10393 = vand.u32 %v9656, 4294901760
      %v10394 = vsub.f32 %v9656, %v10393
      %v10395 = vand.u32 %v10394, 4294901760
      %10396 = vmatmul.mubr.f32.gmra.mxu0 %v10395
      %v10397 = vpop.f32.mrf.mxu0
      %v10398 = vadd.f32 %v10209, %v10397
      %v10399 = vpop.f32.mrf.mxu0
      %10400 = vmatprep.mubr.f32.mxu0 0.0
      %v10401 = vand.u32 %v9659, 4294901760
      %v10402 = vsub.f32 %v9659, %v10401
      %v10403 = vand.u32 %v10402, 4294901760
      %10404 = vmatmul.mubr.f32.gmra.mxu0 %v10403
      %v10405 = vpop.f32.mrf.mxu0
      %v10406 = vadd.f32 %v10216, %v10405
      %v10407 = vpop.f32.mrf.mxu0
      %10408 = vmatprep.mubr.f32.mxu0 0.0
      %v10409 = vand.u32 %v9662, 4294901760
      %v10410 = vsub.f32 %v9662, %v10409
      %v10411 = vand.u32 %v10410, 4294901760
      %10412 = vmatmul.mubr.f32.gmra.mxu0 %v10411
      %v10413 = vpop.f32.mrf.mxu0
      %v10414 = vadd.f32 %v10223, %v10413
      %v10415 = vpop.f32.mrf.mxu0
      %10416 = vmatprep.mubr.f32.mxu0 0.0
      %v10417 = vand.u32 %v9665, 4294901760
      %v10418 = vsub.f32 %v9665, %v10417
      %v10419 = vand.u32 %v10418, 4294901760
      %10420 = vmatmul.mubr.f32.gmra.mxu0 %v10419
      %v10421 = vpop.f32.mrf.mxu0
      %v10422 = vadd.f32 %v10230, %v10421
      %v10423 = vpop.f32.mrf.mxu0
      %10424 = vmatprep.mubr.f32.mxu0 0.0
      %v10425 = vand.u32 %v9668, 4294901760
      %v10426 = vsub.f32 %v9668, %v10425
      %v10427 = vand.u32 %v10426, 4294901760
      %10428 = vmatmul.mubr.f32.gmra.mxu0 %v10427
      %v10429 = vpop.f32.mrf.mxu0
      %v10430 = vadd.f32 %v10237, %v10429
      %v10431 = vpop.f32.mrf.mxu0
      %10432 = vmatprep.mubr.f32.mxu0 0.0
      %v10433 = vand.u32 %v9671, 4294901760
      %v10434 = vsub.f32 %v9671, %v10433
      %v10435 = vand.u32 %v10434, 4294901760
      %10436 = vmatmul.mubr.f32.gmra.mxu0 %v10435
      %v10437 = vpop.f32.mrf.mxu0
      %v10438 = vadd.f32 %v10244, %v10437
      %v10439 = vpop.f32.mrf.mxu0
      %10440 = vdwg.mxu0
      %10441 = vmatprep.subr.mxu0 0.0
      %10442 = vmatpush1.msra.mxu0 0.0
      %10443 = vmatprep.subr.mxu0 0.0
      %10444 = vmatpush1.msra.mxu0 0.0
      %10445 = vmatprep.subr.mxu0 0.0
      %10446 = vmatpush1.msra.mxu0 0.0
      %10447 = vmatprep.subr.mxu0 0.0
      %10448 = vmatpush1.msra.mxu0 0.0
      %10449 = vmatprep.subr.mxu0 0.0
      %10450 = vmatpush1.msra.mxu0 0.0
      %10451 = vmatprep.subr.mxu0 0.0
      %10452 = vmatpush1.msra.mxu0 0.0
      %10453 = vmatprep.subr.mxu0 0.0
      %10454 = vmatpush1.msra.mxu0 0.0
      %10455 = vmatprep.subr.mxu0 0.0
      %10456 = vmatpush1.msra.mxu0 0.0
      %10457 = vmatprep.subr.mxu0 0.0
      %10458 = vmatpush1.msra.mxu0 0.0
      %10459 = vmatprep.subr.mxu0 0.0
      %10460 = vmatpush1.msra.mxu0 0.0
      %10461 = vmatprep.subr.mxu0 0.0
      %10462 = vmatpush1.msra.mxu0 0.0
      %10463 = vmatprep.subr.mxu0 0.0
      %10464 = vmatpush1.msra.mxu0 0.0
      %10465 = vmatprep.subr.mxu0 0.0
      %10466 = vmatpush1.msra.mxu0 0.0
      %10467 = vmatprep.subr.mxu0 0.0
      %10468 = vmatpush1.msra.mxu0 0.0
      %10469 = vmatprep.subr.mxu0 0.0
      %10470 = vmatpush1.msra.mxu0 0.0
      %10471 = vmatprep.subr.mxu0 0.0
      %v10472 = vand.u32 %v9674, 4294901760
      %v10473 = vsub.f32 %v9674, %v10472
      %v10474 = vand.u32 %v10473, 4294901760
      %10475 = vmatpush1.msra.mxu0 %v10474
      %10476 = vmatprep.subr.mxu0 0.0
      %10477 = vmatpush2.msra.mxu0 0.0
      %10478 = vmatprep.subr.mxu0 0.0
      %10479 = vmatpush2.msra.mxu0 0.0
      %10480 = vmatprep.subr.mxu0 0.0
      %10481 = vmatpush2.msra.mxu0 0.0
      %10482 = vmatprep.subr.mxu0 0.0
      %10483 = vmatpush2.msra.mxu0 0.0
      %10484 = vmatprep.subr.mxu0 0.0
      %10485 = vmatpush2.msra.mxu0 0.0
      %10486 = vmatprep.subr.mxu0 0.0
      %10487 = vmatpush2.msra.mxu0 0.0
      %10488 = vmatprep.subr.mxu0 0.0
      %10489 = vmatpush2.msra.mxu0 0.0
      %10490 = vmatprep.subr.mxu0 0.0
      %10491 = vmatpush2.msra.mxu0 0.0
      %10492 = vmatprep.subr.mxu0 0.0
      %10493 = vmatpush2.msra.mxu0 0.0
      %10494 = vmatprep.subr.mxu0 0.0
      %10495 = vmatpush2.msra.mxu0 0.0
      %10496 = vmatprep.subr.mxu0 0.0
      %10497 = vmatpush2.msra.mxu0 0.0
      %10498 = vmatprep.subr.mxu0 0.0
      %10499 = vmatpush2.msra.mxu0 0.0
      %10500 = vmatprep.subr.mxu0 0.0
      %10501 = vmatpush2.msra.mxu0 0.0
      %10502 = vmatprep.subr.mxu0 0.0
      %10503 = vmatpush2.msra.mxu0 0.0
      %10504 = vmatprep.subr.mxu0 0.0
      %10505 = vmatpush2.msra.mxu0 0.0
      %10506 = vmatprep.subr.mxu0 0.0
      %10507 = vmatpush2.msra.mxu0 0.0
      %10508 = vmatprep.mubr.f32.mxu0 0.0
      %v10509 = vand.u32 %v9626, 4294901760
      %10510 = vmatmul.mubr.f32.gmra.mxu0 %v10509
      %v10511 = vpop.f32.mrf.mxu0
      %v10512 = vadd.f32 %v10318, %v10511
      %v10513 = vpop.f32.mrf.mxu0
      %10514 = vmatprep.mubr.f32.mxu0 0.0
      %v10515 = vand.u32 %v9629, 4294901760
      %10516 = vmatmul.mubr.f32.gmra.mxu0 %v10515
      %v10517 = vpop.f32.mrf.mxu0
      %v10518 = vadd.f32 %v10326, %v10517
      %v10519 = vpop.f32.mrf.mxu0
      %10520 = vmatprep.mubr.f32.mxu0 0.0
      %v10521 = vand.u32 %v9632, 4294901760
      %10522 = vmatmul.mubr.f32.gmra.mxu0 %v10521
      %v10523 = vpop.f32.mrf.mxu0
      %v10524 = vadd.f32 %v10334, %v10523
      %v10525 = vpop.f32.mrf.mxu0
      %10526 = vmatprep.mubr.f32.mxu0 0.0
      %v10527 = vand.u32 %v9635, 4294901760
      %10528 = vmatmul.mubr.f32.gmra.mxu0 %v10527
      %v10529 = vpop.f32.mrf.mxu0
      %v10530 = vadd.f32 %v10342, %v10529
      %v10531 = vpop.f32.mrf.mxu0
      %10532 = vmatprep.mubr.f32.mxu0 0.0
      %v10533 = vand.u32 %v9638, 4294901760
      %10534 = vmatmul.mubr.f32.gmra.mxu0 %v10533
      %v10535 = vpop.f32.mrf.mxu0
      %v10536 = vadd.f32 %v10350, %v10535
      %v10537 = vpop.f32.mrf.mxu0
      %10538 = vmatprep.mubr.f32.mxu0 0.0
      %v10539 = vand.u32 %v9641, 4294901760
      %10540 = vmatmul.mubr.f32.gmra.mxu0 %v10539
      %v10541 = vpop.f32.mrf.mxu0
      %v10542 = vadd.f32 %v10358, %v10541
      %v10543 = vpop.f32.mrf.mxu0
      %10544 = vmatprep.mubr.f32.mxu0 0.0
      %v10545 = vand.u32 %v9644, 4294901760
      %10546 = vmatmul.mubr.f32.gmra.mxu0 %v10545
      %v10547 = vpop.f32.mrf.mxu0
      %v10548 = vadd.f32 %v10366, %v10547
      %v10549 = vpop.f32.mrf.mxu0
      %10550 = vmatprep.mubr.f32.mxu0 0.0
      %v10551 = vand.u32 %v9647, 4294901760
      %10552 = vmatmul.mubr.f32.gmra.mxu0 %v10551
      %v10553 = vpop.f32.mrf.mxu0
      %v10554 = vadd.f32 %v10374, %v10553
      %v10555 = vpop.f32.mrf.mxu0
      %10556 = vmatprep.mubr.f32.mxu0 0.0
      %v10557 = vand.u32 %v9650, 4294901760
      %10558 = vmatmul.mubr.f32.gmra.mxu0 %v10557
      %v10559 = vpop.f32.mrf.mxu0
      %v10560 = vadd.f32 %v10382, %v10559
      %v10561 = vpop.f32.mrf.mxu0
      %10562 = vmatprep.mubr.f32.mxu0 0.0
      %v10563 = vand.u32 %v9653, 4294901760
      %10564 = vmatmul.mubr.f32.gmra.mxu0 %v10563
      %v10565 = vpop.f32.mrf.mxu0
      %v10566 = vadd.f32 %v10390, %v10565
      %v10567 = vpop.f32.mrf.mxu0
      %10568 = vmatprep.mubr.f32.mxu0 0.0
      %v10569 = vand.u32 %v9656, 4294901760
      %10570 = vmatmul.mubr.f32.gmra.mxu0 %v10569
      %v10571 = vpop.f32.mrf.mxu0
      %v10572 = vadd.f32 %v10398, %v10571
      %v10573 = vpop.f32.mrf.mxu0
      %10574 = vmatprep.mubr.f32.mxu0 0.0
      %v10575 = vand.u32 %v9659, 4294901760
      %10576 = vmatmul.mubr.f32.gmra.mxu0 %v10575
      %v10577 = vpop.f32.mrf.mxu0
      %v10578 = vadd.f32 %v10406, %v10577
      %v10579 = vpop.f32.mrf.mxu0
      %10580 = vmatprep.mubr.f32.mxu0 0.0
      %v10581 = vand.u32 %v9662, 4294901760
      %10582 = vmatmul.mubr.f32.gmra.mxu0 %v10581
      %v10583 = vpop.f32.mrf.mxu0
      %v10584 = vadd.f32 %v10414, %v10583
      %v10585 = vpop.f32.mrf.mxu0
      %10586 = vmatprep.mubr.f32.mxu0 0.0
      %v10587 = vand.u32 %v9665, 4294901760
      %10588 = vmatmul.mubr.f32.gmra.mxu0 %v10587
      %v10589 = vpop.f32.mrf.mxu0
      %v10590 = vadd.f32 %v10422, %v10589
      %v10591 = vpop.f32.mrf.mxu0
      %10592 = vmatprep.mubr.f32.mxu0 0.0
      %v10593 = vand.u32 %v9668, 4294901760
      %10594 = vmatmul.mubr.f32.gmra.mxu0 %v10593
      %v10595 = vpop.f32.mrf.mxu0
      %v10596 = vadd.f32 %v10430, %v10595
      %v10597 = vpop.f32.mrf.mxu0
      %10598 = vmatprep.mubr.f32.mxu0 0.0
      %v10599 = vand.u32 %v9671, 4294901760
      %10600 = vmatmul.mubr.f32.gmra.mxu0 %v10599
      %v10601 = vpop.f32.mrf.mxu0
      %v10602 = vadd.f32 %v10438, %v10601
      %v10603 = vpop.f32.mrf.mxu0
      %10604 = vdwg.mxu0
      %10605 = vmatprep.subr.mxu0 0.0
      %10606 = vmatpush1.msra.mxu0 0.0
      %10607 = vmatprep.subr.mxu0 0.0
      %10608 = vmatpush1.msra.mxu0 0.0
      %10609 = vmatprep.subr.mxu0 0.0
      %10610 = vmatpush1.msra.mxu0 0.0
      %10611 = vmatprep.subr.mxu0 0.0
      %10612 = vmatpush1.msra.mxu0 0.0
      %10613 = vmatprep.subr.mxu0 0.0
      %10614 = vmatpush1.msra.mxu0 0.0
      %10615 = vmatprep.subr.mxu0 0.0
      %10616 = vmatpush1.msra.mxu0 0.0
      %10617 = vmatprep.subr.mxu0 0.0
      %10618 = vmatpush1.msra.mxu0 0.0
      %10619 = vmatprep.subr.mxu0 0.0
      %10620 = vmatpush1.msra.mxu0 0.0
      %10621 = vmatprep.subr.mxu0 0.0
      %10622 = vmatpush1.msra.mxu0 0.0
      %10623 = vmatprep.subr.mxu0 0.0
      %10624 = vmatpush1.msra.mxu0 0.0
      %10625 = vmatprep.subr.mxu0 0.0
      %10626 = vmatpush1.msra.mxu0 0.0
      %10627 = vmatprep.subr.mxu0 0.0
      %10628 = vmatpush1.msra.mxu0 0.0
      %10629 = vmatprep.subr.mxu0 0.0
      %10630 = vmatpush1.msra.mxu0 0.0
      %10631 = vmatprep.subr.mxu0 0.0
      %10632 = vmatpush1.msra.mxu0 0.0
      %10633 = vmatprep.subr.mxu0 0.0
      %10634 = vmatpush1.msra.mxu0 0.0
      %10635 = vmatprep.subr.mxu0 0.0
      %v10636 = vand.u32 %v9674, 4294901760
      %10637 = vmatpush1.msra.mxu0 %v10636
      %10638 = vmatprep.subr.mxu0 0.0
      %10639 = vmatpush2.msra.mxu0 0.0
      %10640 = vmatprep.subr.mxu0 0.0
      %10641 = vmatpush2.msra.mxu0 0.0
      %10642 = vmatprep.subr.mxu0 0.0
      %10643 = vmatpush2.msra.mxu0 0.0
      %10644 = vmatprep.subr.mxu0 0.0
      %10645 = vmatpush2.msra.mxu0 0.0
      %10646 = vmatprep.subr.mxu0 0.0
      %10647 = vmatpush2.msra.mxu0 0.0
      %10648 = vmatprep.subr.mxu0 0.0
      %10649 = vmatpush2.msra.mxu0 0.0
      %10650 = vmatprep.subr.mxu0 0.0
      %10651 = vmatpush2.msra.mxu0 0.0
      %10652 = vmatprep.subr.mxu0 0.0
      %10653 = vmatpush2.msra.mxu0 0.0
      %10654 = vmatprep.subr.mxu0 0.0
      %10655 = vmatpush2.msra.mxu0 0.0
      %10656 = vmatprep.subr.mxu0 0.0
      %10657 = vmatpush2.msra.mxu0 0.0
      %10658 = vmatprep.subr.mxu0 0.0
      %10659 = vmatpush2.msra.mxu0 0.0
      %10660 = vmatprep.subr.mxu0 0.0
      %10661 = vmatpush2.msra.mxu0 0.0
      %10662 = vmatprep.subr.mxu0 0.0
      %10663 = vmatpush2.msra.mxu0 0.0
      %10664 = vmatprep.subr.mxu0 0.0
      %10665 = vmatpush2.msra.mxu0 0.0
      %10666 = vmatprep.subr.mxu0 0.0
      %10667 = vmatpush2.msra.mxu0 0.0
      %10668 = vmatprep.subr.mxu0 0.0
      %10669 = vmatpush2.msra.mxu0 0.0
      %10670 = vmatprep.mubr.f32.mxu0 0.0
      %v10671 = vand.u32 %v9626, 4294901760
      %10672 = vmatmul.mubr.f32.gmra.mxu0 %v10671
      %v10673 = vpop.f32.mrf.mxu0
      %v10674 = vadd.f32 %v10512, %v10673
      %v10675 = vpop.f32.mrf.mxu0
      %10676 = vmatprep.mubr.f32.mxu0 0.0
      %v10677 = vand.u32 %v9629, 4294901760
      %10678 = vmatmul.mubr.f32.gmra.mxu0 %v10677
      %v10679 = vpop.f32.mrf.mxu0
      %v10680 = vadd.f32 %v10518, %v10679
      %v10681 = vpop.f32.mrf.mxu0
      %10682 = vmatprep.mubr.f32.mxu0 0.0
      %v10683 = vand.u32 %v9632, 4294901760
      %10684 = vmatmul.mubr.f32.gmra.mxu0 %v10683
      %v10685 = vpop.f32.mrf.mxu0
      %v10686 = vadd.f32 %v10524, %v10685
      %v10687 = vpop.f32.mrf.mxu0
      %10688 = vmatprep.mubr.f32.mxu0 0.0
      %v10689 = vand.u32 %v9635, 4294901760
      %10690 = vmatmul.mubr.f32.gmra.mxu0 %v10689
      %v10691 = vpop.f32.mrf.mxu0
      %v10692 = vadd.f32 %v10530, %v10691
      %v10693 = vpop.f32.mrf.mxu0
      %10694 = vmatprep.mubr.f32.mxu0 0.0
      %v10695 = vand.u32 %v9638, 4294901760
      %10696 = vmatmul.mubr.f32.gmra.mxu0 %v10695
      %v10697 = vpop.f32.mrf.mxu0
      %v10698 = vadd.f32 %v10536, %v10697
      %v10699 = vpop.f32.mrf.mxu0
      %10700 = vmatprep.mubr.f32.mxu0 0.0
      %v10701 = vand.u32 %v9641, 4294901760
      %10702 = vmatmul.mubr.f32.gmra.mxu0 %v10701
      %v10703 = vpop.f32.mrf.mxu0
      %v10704 = vadd.f32 %v10542, %v10703
      %v10705 = vpop.f32.mrf.mxu0
      %10706 = vmatprep.mubr.f32.mxu0 0.0
      %v10707 = vand.u32 %v9644, 4294901760
      %10708 = vmatmul.mubr.f32.gmra.mxu0 %v10707
      %v10709 = vpop.f32.mrf.mxu0
      %v10710 = vadd.f32 %v10548, %v10709
      %v10711 = vpop.f32.mrf.mxu0
      %10712 = vmatprep.mubr.f32.mxu0 0.0
      %v10713 = vand.u32 %v9647, 4294901760
      %10714 = vmatmul.mubr.f32.gmra.mxu0 %v10713
      %v10715 = vpop.f32.mrf.mxu0
      %v10716 = vadd.f32 %v10554, %v10715
      %v10717 = vpop.f32.mrf.mxu0
      %10718 = vmatprep.mubr.f32.mxu0 0.0
      %v10719 = vand.u32 %v9650, 4294901760
      %10720 = vmatmul.mubr.f32.gmra.mxu0 %v10719
      %v10721 = vpop.f32.mrf.mxu0
      %v10722 = vadd.f32 %v10560, %v10721
      %v10723 = vpop.f32.mrf.mxu0
      %10724 = vmatprep.mubr.f32.mxu0 0.0
      %v10725 = vand.u32 %v9653, 4294901760
      %10726 = vmatmul.mubr.f32.gmra.mxu0 %v10725
      %v10727 = vpop.f32.mrf.mxu0
      %v10728 = vadd.f32 %v10566, %v10727
      %v10729 = vpop.f32.mrf.mxu0
      %10730 = vmatprep.mubr.f32.mxu0 0.0
      %v10731 = vand.u32 %v9656, 4294901760
      %10732 = vmatmul.mubr.f32.gmra.mxu0 %v10731
      %v10733 = vpop.f32.mrf.mxu0
      %v10734 = vadd.f32 %v10572, %v10733
      %v10735 = vpop.f32.mrf.mxu0
      %10736 = vmatprep.mubr.f32.mxu0 0.0
      %v10737 = vand.u32 %v9659, 4294901760
      %10738 = vmatmul.mubr.f32.gmra.mxu0 %v10737
      %v10739 = vpop.f32.mrf.mxu0
      %v10740 = vadd.f32 %v10578, %v10739
      %v10741 = vpop.f32.mrf.mxu0
      %10742 = vmatprep.mubr.f32.mxu0 0.0
      %v10743 = vand.u32 %v9662, 4294901760
      %10744 = vmatmul.mubr.f32.gmra.mxu0 %v10743
      %v10745 = vpop.f32.mrf.mxu0
      %v10746 = vadd.f32 %v10584, %v10745
      %v10747 = vpop.f32.mrf.mxu0
      %10748 = vmatprep.mubr.f32.mxu0 0.0
      %v10749 = vand.u32 %v9665, 4294901760
      %10750 = vmatmul.mubr.f32.gmra.mxu0 %v10749
      %v10751 = vpop.f32.mrf.mxu0
      %v10752 = vadd.f32 %v10590, %v10751
      %v10753 = vpop.f32.mrf.mxu0
      %10754 = vmatprep.mubr.f32.mxu0 0.0
      %v10755 = vand.u32 %v9668, 4294901760
      %10756 = vmatmul.mubr.f32.gmra.mxu0 %v10755
      %v10757 = vpop.f32.mrf.mxu0
      %v10758 = vadd.f32 %v10596, %v10757
      %v10759 = vpop.f32.mrf.mxu0
      %10760 = vmatprep.mubr.f32.mxu0 0.0
      %v10761 = vand.u32 %v9671, 4294901760
      %10762 = vmatmul.mubr.f32.gmra.mxu0 %v10761
      %v10763 = vpop.f32.mrf.mxu0
      %v10764 = vadd.f32 %v10602, %v10763
      %v10765 = vpop.f32.mrf.mxu0
      %10766 = vdwg.mxu0
      %v10767 = vadd.f32 %v9591, %v10674
      %v10768 = vadd.f32 %v9592, %v10680
      %v10769 = vadd.f32 %v9593, %v10686
      %v10770 = vadd.f32 %v9594, %v10692
      %v10771 = vadd.f32 %v9595, %v10698
      %v10772 = vadd.f32 %v9596, %v10704
      %v10773 = vadd.f32 %v9597, %v10710
      %v10774 = vadd.f32 %v9598, %v10716
      %v10775 = vadd.f32 %v9599, %v10722
      %v10776 = vadd.f32 %v9600, %v10728
      %v10777 = vadd.f32 %v9601, %v10734
      %v10778 = vadd.f32 %v9602, %v10740
      %v10779 = vadd.f32 %v9603, %v10746
      %v10780 = vadd.f32 %v9604, %v10752
      %v10781 = vadd.f32 %v9605, %v10758
      %v10782 = vadd.f32 %v9606, %v10764
      %v10783 = vld [vmem:[%s2] sm:$0x1]
      %v10785 = vlaneseq
      %v10786 = vshrl.u32 %v10785, 7
      %v10787 = vsub.s32 0, %v10786
      %v10788 = vrot.slane %v10783, %v10787
      %v10790 = vmul.f32 %v10767, %v10788
      %v10791 = vmul.f32 %v10768, %v10788
      %v10792 = vmul.f32 %v10769, %v10788
      %v10793 = vmul.f32 %v10770, %v10788
      %v10794 = vmul.f32 %v10771, %v10788
      %v10795 = vmul.f32 %v10772, %v10788
      %v10796 = vmul.f32 %v10773, %v10788
      %v10797 = vmul.f32 %v10774, %v10788
      %v10798 = vmul.f32 %v10775, %v10788
      %v10799 = vmul.f32 %v10776, %v10788
      %v10800 = vmul.f32 %v10777, %v10788
      %v10801 = vmul.f32 %v10778, %v10788
      %v10802 = vmul.f32 %v10779, %v10788
      %v10803 = vmul.f32 %v10780, %v10788
      %v10804 = vmul.f32 %v10781, %v10788
      %v10805 = vmul.f32 %v10782, %v10788
      %v10806 = vld [vmem:[%s3] sm:$0x1]
      %v10808 = vlaneseq
      %v10809 = vshrl.u32 %v10808, 7
      %v10810 = vsub.s32 0, %v10809
      %v10811 = vrot.slane %v10806, %v10810
      %v10813 = vadd.f32 %v10790, %v10811
      %v10814 = vadd.f32 %v10791, %v10811
      %v10815 = vadd.f32 %v10792, %v10811
      %v10816 = vadd.f32 %v10793, %v10811
      %v10817 = vadd.f32 %v10794, %v10811
      %v10818 = vadd.f32 %v10795, %v10811
      %v10819 = vadd.f32 %v10796, %v10811
      %v10820 = vadd.f32 %v10797, %v10811
      %v10821 = vadd.f32 %v10798, %v10811
      %v10822 = vadd.f32 %v10799, %v10811
      %v10823 = vadd.f32 %v10800, %v10811
      %v10824 = vadd.f32 %v10801, %v10811
      %v10825 = vadd.f32 %v10802, %v10811
      %v10826 = vadd.f32 %v10803, %v10811
      %v10827 = vadd.f32 %v10804, %v10811
      %v10828 = vadd.f32 %v10805, %v10811
      %v10829 = vmax.f32 %v10813, 0.0
      %v10830 = vmax.f32 %v10814, 0.0
      %v10831 = vmax.f32 %v10815, 0.0
      %v10832 = vmax.f32 %v10816, 0.0
      %v10833 = vmax.f32 %v10817, 0.0
      %v10834 = vmax.f32 %v10818, 0.0
      %v10835 = vmax.f32 %v10819, 0.0
      %v10836 = vmax.f32 %v10820, 0.0
      %v10837 = vmax.f32 %v10821, 0.0
      %v10838 = vmax.f32 %v10822, 0.0
      %v10839 = vmax.f32 %v10823, 0.0
      %v10840 = vmax.f32 %v10824, 0.0
      %v10841 = vmax.f32 %v10825, 0.0
      %v10842 = vmax.f32 %v10826, 0.0
      %v10843 = vmax.f32 %v10827, 0.0
      %v10844 = vmax.f32 %v10828, 0.0
      %vm10845 = vcmask 64512
      %10846 = vst.msk [vmem:[%s219] sm:$0xff] %vm10845, %v10829
      %10847 = vst.msk [vmem:[%s219 + $0x8] sm:$0xff] %vm10845, %v10830
      %10848 = vst.msk [vmem:[%s219 + $0x10] sm:$0xff] %vm10845, %v10831
      %10849 = vst.msk [vmem:[%s219 + $0x18] sm:$0xff] %vm10845, %v10832
      %10850 = vst.msk [vmem:[%s219 + $0x20] sm:$0xff] %vm10845, %v10833
      %10851 = vst.msk [vmem:[%s219 + $0x28] sm:$0xff] %vm10845, %v10834
      %10852 = vst.msk [vmem:[%s219 + $0x30] sm:$0xff] %vm10845, %v10835
      %10853 = vst.msk [vmem:[%s219 + $0x38] sm:$0xff] %vm10845, %v10836
      %10854 = vst.msk [vmem:[%s219 + $0x40] sm:$0xff] %vm10845, %v10837
      %10855 = vst.msk [vmem:[%s219 + $0x48] sm:$0xff] %vm10845, %v10838
      %10856 = vst.msk [vmem:[%s219 + $0x50] sm:$0xff] %vm10845, %v10839
      %10857 = vst.msk [vmem:[%s219 + $0x58] sm:$0xff] %vm10845, %v10840
      %10858 = vst.msk [vmem:[%s219 + $0x60] sm:$0xff] %vm10845, %v10841
      %10859 = vst.msk [vmem:[%s219 + $0x68] sm:$0xff] %vm10845, %v10842
      %10860 = vst.msk [vmem:[%s219 + $0x70] sm:$0xff] %vm10845, %v10843
      %10861 = vst.msk [vmem:[%s219 + $0x78] sm:$0xff] %vm10845, %v10844
      %s10862 = smul.u32 16, %s20
      %p10863 = scmp.lt.s32.totalorder %s19, 1
      %s10864 = scalar_select %p10863, %s19, 1
      %p10865 = scmp.lt.s32.totalorder %s10862, 31
      %s10866 = scalar_select %p10865, %s10862, 31
      %s10867 = smul.addr %s10864, 32
      %s10868 = sadd.s32 %s10866, %s10867
      %s10869 = smul.addr %s10868, 8
      %s10870 = scalar_lea.vmem %s4, %s10869
      // Predicated region
      $region37: #{tpu_custom_call.1} parent=35 // pred_check
        %p10871 = pneg %p136
      $region38: #{tpu_custom_call.1} parent=35 // pred_check_branch
        %10873 = sbr.rel (%p10871) target = $region40
      $region39: #{tpu_custom_call.1} parent=35 // pred_region
        %s10874 = smul.u32 16, %s20
      $region40: #{tpu_custom_call.1} parent=35 // pred_fallthru
        _
    $region36: #{tpu_custom_call.1} parent=5 // pred_fallthru
      _
    %p10875 = scmp.le.s32.totalorder 2, %s10
    // Predicated region
    $region41: #{tpu_custom_call.1} parent=5 // pred_check
      %p10876 = pneg %p10875
    $region42: #{tpu_custom_call.1} parent=5 // pred_check_branch
      %10878 = sbr.rel (%p10876) target = $region44
    $region43: #{tpu_custom_call.1} parent=5 // pred_region
      %s10879 = ssub.s32 %s10, 2
      // Predicated region
      $region45: #{tpu_custom_call.1} parent=43 // pred_check
        %p10880 = pneg %p142
      $region46: #{tpu_custom_call.1} parent=43 // pred_check_branch
        %10882 = sbr.rel (%p10880) target = $region48
      $region47: #{tpu_custom_call.1} parent=43 // pred_region
        %s10883 = smul.u32 16, %s22
        %p10884 = scmp.lt.s32.totalorder %s21, 1
        %s10885 = scalar_select %p10884, %s21, 1
        %p10886 = scmp.lt.s32.totalorder %s10883, 31
        %s10887 = scalar_select %p10886, %s10883, 31
        %s10888 = smul.addr %s10885, 32
        %s10889 = sadd.s32 %s10887, %s10888
        %s10890 = smul.addr %s10889, 8
        %s10891 = scalar_lea.vmem %s4, %s10890
      $region48: #{tpu_custom_call.1} parent=43 // pred_fallthru
        _
    $region44: #{tpu_custom_call.1} parent=5 // pred_fallthru
      _
  $region6: #{tpu_custom_call.1} parent=0 // loop_footer
    %s14 = sadd.s32 1, %s10
  $region7: #{tpu_custom_call.1} parent=0 // loop_footer_branch
    %9 = sbr.rel target = $region3
  $region8: #{tpu_custom_call.1} parent=0 // loop_exit
    _

</llo_original>
